<compile_context>
chip_gen: v7x
topology: tpu7x:2x2x1
jax: 0.10.0
libtpu: 0.0.40
codegen_flags: <defaults>
</compile_context>

<pallas_src>
import functools
import math

import numpy as np
import jax
import jax.numpy as jnp
from jax.experimental import pallas as pl
from jax.experimental.pallas import tpu as pltpu

_NEG_BIG = -1e9


def _device_kind():
    try:
        return jax.devices()[0].device_kind.lower()
    except Exception:
        return ""


_KIND = _device_kind()
_IS_V7 = "v7" in _KIND

if _IS_V7:
    _VMEM_LIMIT = 40 * 1024 * 1024      # v7x: 64 MiB physical per TC
    _TM, _TN, _TK = 256, 256, 512       # streamed matmuls (QKV / generator)
    _TM_EPI = 128                       # full-E epilogue kernels (res+LN, FFN)
else:
    _VMEM_LIMIT = 64 * 1024 * 1024      # v5e / v6e: 128 MiB physical
    _TM, _TN, _TK = 512, 512, 1024
    _TM_EPI = 256
_TF = 256                               # FFN hidden tile (bounds the (tm,tf) f32 temp)
_TKV = 512                              # attention kv tile cap


# ----------------------------------------------------------------------------
# small helpers
# ----------------------------------------------------------------------------
def _round_up(x, m):
    return (x + m - 1) // m * m


def _tile(dim, target, align):
    """Pick a tile (multiple of `align`) and the padded dim it evenly divides,
    avoiding large padding blow-ups for dims just past a tile boundary."""
    if dim <= target:
        t = _round_up(dim, align)
        return t, t
    padded = _round_up(dim, align)
    for t in range(target, align - 1, -align):
        if padded % t == 0:
            return t, padded
    return target, _round_up(dim, target)


def _pad_to(x, shape):
    pads = tuple((0, t - s) for s, t in zip(x.shape, shape))
    if all(p[1] == 0 for p in pads):
        return x
    return jnp.pad(x, pads)


def _pad_seq(s):
    """Sequence-length padding: mult of 16 when it fits one kv tile, else 128."""
    sp = _round_up(s, 16)
    if sp > _TKV:
        sp = _round_up(s, 128)
    return sp


# ----------------------------------------------------------------------------
# Kernel 1: tiled matmul + bias   — QKV / cross-Q / cross-KV proj, generator
# ----------------------------------------------------------------------------
def _matmul_bias_kernel(x_ref, w_ref, b_ref, o_ref, acc_ref, *, n_k):
    kk = pl.program_id(2)

    @pl.when(kk == 0)
    def _():
        acc_ref[...] = jnp.zeros_like(acc_ref)

    acc_ref[...] += jnp.dot(x_ref[...], w_ref[...],
                            preferred_element_type=jnp.float32)

    @pl.when(kk == n_k - 1)
    def _():
        o_ref[...] = (acc_ref[...] + b_ref[...]).astype(o_ref.dtype)


def pallas_matmul_bias(x, w, b, out_dtype=jnp.bfloat16):
    """x @ w + b.  x:(M,K) bf16, w:(K,N) bf16, b:(1,N) f32."""
    M, K = x.shape
    N = w.shape[1]
    tm, Mp = _tile(M, _TM, 16)
    tn, Np = _tile(N, _TN, 128)
    tk, Kp = _tile(K, _TK, 128)
    n_m, n_n, n_k = Mp // tm, Np // tn, Kp // tk

    xb = _pad_to(x.astype(jnp.bfloat16), (Mp, Kp))
    wb = _pad_to(w.astype(jnp.bfloat16), (Kp, Np))
    bp = _pad_to(b.astype(jnp.float32), (1, Np))

    out = pl.pallas_call(
        functools.partial(_matmul_bias_kernel, n_k=n_k),
        out_shape=jax.ShapeDtypeStruct((Mp, Np), out_dtype),
        grid_spec=pltpu.PrefetchScalarGridSpec(
            num_scalar_prefetch=0,
            grid=(n_m, n_n, n_k),
            in_specs=[
                pl.BlockSpec((tm, tk), lambda i, j, k: (i, k)),
                pl.BlockSpec((tk, tn), lambda i, j, k: (k, j)),
                pl.BlockSpec((1, tn), lambda i, j, k: (0, j)),
            ],
            out_specs=pl.BlockSpec((tm, tn), lambda i, j, k: (i, j)),
            scratch_shapes=[pltpu.VMEM((tm, tn), jnp.float32)],
        ),
        compiler_params=pltpu.CompilerParams(
            dimension_semantics=("parallel", "parallel", "arbitrary"),
            vmem_limit_bytes=_VMEM_LIMIT),
    )(xb, wb, bp)
    if Mp != M or Np != N:
        out = out[:M, :N]
    return out


# ----------------------------------------------------------------------------
# Kernel 2: tiled matmul + bias + residual-add + LayerNorm epilogue (bf16 out)
#           (attention out-projection; E kept un-tiled for correct LN stats)
# ----------------------------------------------------------------------------
def _matmul_res_ln_kernel(x_ref, w_ref, b_ref, r_ref, g_ref, bb_ref,
                          o_ref, acc_ref, *, n_k, eps, inv_n):
    kk = pl.program_id(1)

    @pl.when(kk == 0)
    def _():
        acc_ref[...] = jnp.zeros_like(acc_ref)

    acc_ref[...] += jnp.dot(x_ref[...], w_ref[...],
                            preferred_element_type=jnp.float32)

    @pl.when(kk == n_k - 1)
    def _():
        y = acc_ref[...] + b_ref[...] + r_ref[...].astype(jnp.float32)
        # single-pass LN stats (one elementwise pass over the (tm, E) tile)
        s1 = jnp.sum(y, axis=-1, keepdims=True)
        s2 = jnp.sum(y * y, axis=-1, keepdims=True)
        mu = s1 * inv_n
        var = jnp.maximum(s2 * inv_n - mu * mu, 0.0)
        yn = (y - mu) * jax.lax.rsqrt(var + eps)
        o_ref[...] = (yn * g_ref[...] + bb_ref[...]).astype(o_ref.dtype)


def pallas_matmul_res_ln(x, w, b, residual, gamma, beta, eps=1e-5):
    """LayerNorm((x @ w + b) + residual) -> bf16.  N = E is the lane extent."""
    M, K = x.shape
    N = w.shape[1]
    tm, Mp = _tile(M, _TM_EPI, 16)
    tk, Kp = _tile(K, _TK, 128)
    n_m, n_k = Mp // tm, Kp // tk

    xb = _pad_to(x.astype(jnp.bfloat16), (Mp, Kp))
    wb = _pad_to(w.astype(jnp.bfloat16), (Kp, N))
    rp = _pad_to(residual.astype(jnp.bfloat16), (Mp, N))

    out = pl.pallas_call(
        functools.partial(_matmul_res_ln_kernel, n_k=n_k, eps=eps, inv_n=1.0 / N),
        out_shape=jax.ShapeDtypeStruct((Mp, N), jnp.bfloat16),
        grid_spec=pltpu.PrefetchScalarGridSpec(
            num_scalar_prefetch=0,
            grid=(n_m, n_k),
            in_specs=[
                pl.BlockSpec((tm, tk), lambda i, k: (i, k)),
                pl.BlockSpec((tk, N), lambda i, k: (k, 0)),
                pl.BlockSpec((1, N), lambda i, k: (0, 0)),
                pl.BlockSpec((tm, N), lambda i, k: (i, 0)),
                pl.BlockSpec((1, N), lambda i, k: (0, 0)),
                pl.BlockSpec((1, N), lambda i, k: (0, 0)),
            ],
            out_specs=pl.BlockSpec((tm, N), lambda i, k: (i, 0)),
            scratch_shapes=[pltpu.VMEM((tm, N), jnp.float32)],
        ),
        compiler_params=pltpu.CompilerParams(
            dimension_semantics=("parallel", "arbitrary"),
            vmem_limit_bytes=_VMEM_LIMIT),
    )(xb, wb, b.astype(jnp.float32), rp,
      gamma.astype(jnp.float32), beta.astype(jnp.float32))
    if Mp != M:
        out = out[:M]
    return out


# ----------------------------------------------------------------------------
# Kernel 3: fused FFN  (relu(x@W1+b1) @ W2 + b2 + residual -> LayerNorm, bf16)
#           hidden (dff) dim tiled on an "arbitrary" grid axis
# ----------------------------------------------------------------------------
def _ffn_res_ln_kernel(x_ref, w1_ref, b1_ref, w2_ref, b2_ref, r_ref,
                       g_ref, bb_ref, o_ref, acc_ref, *, n_f, eps, inv_n):
    f = pl.program_id(1)

    @pl.when(f == 0)
    def _():
        acc_ref[...] = jnp.zeros_like(acc_ref)

    h = jnp.dot(x_ref[...], w1_ref[...],
                preferred_element_type=jnp.float32) + b1_ref[...]
    h = jnp.maximum(h, 0.0).astype(w2_ref.dtype)
    acc_ref[...] += jnp.dot(h, w2_ref[...],
                            preferred_element_type=jnp.float32)

    @pl.when(f == n_f - 1)
    def _():
        y = acc_ref[...] + b2_ref[...] + r_ref[...].astype(jnp.float32)
        s1 = jnp.sum(y, axis=-1, keepdims=True)
        s2 = jnp.sum(y * y, axis=-1, keepdims=True)
        mu = s1 * inv_n
        var = jnp.maximum(s2 * inv_n - mu * mu, 0.0)
        yn = (y - mu) * jax.lax.rsqrt(var + eps)
        o_ref[...] = (yn * g_ref[...] + bb_ref[...]).astype(o_ref.dtype)


def pallas_ffn_res_ln(x, w1, b1, w2, b2, residual, gamma, beta, eps=1e-5):
    M, E = x.shape
    F = w1.shape[1]
    tm, Mp = _tile(M, _TM_EPI, 16)
    tf, Fp = _tile(F, _TF, 128)
    n_m, n_f = Mp // tm, Fp // tf

    xb = _pad_to(x.astype(jnp.bfloat16), (Mp, E))
    w1b = _pad_to(w1.astype(jnp.bfloat16), (E, Fp))
    b1p = _pad_to(b1.astype(jnp.float32), (1, Fp))
    w2b = _pad_to(w2.astype(jnp.bfloat16), (Fp, E))
    rp = _pad_to(residual.astype(jnp.bfloat16), (Mp, E))

    out = pl.pallas_call(
        functools.partial(_ffn_res_ln_kernel, n_f=n_f, eps=eps, inv_n=1.0 / E),
        out_shape=jax.ShapeDtypeStruct((Mp, E), jnp.bfloat16),
        grid_spec=pltpu.PrefetchScalarGridSpec(
            num_scalar_prefetch=0,
            grid=(n_m, n_f),
            in_specs=[
                pl.BlockSpec((tm, E), lambda i, f: (i, 0)),
                pl.BlockSpec((E, tf), lambda i, f: (0, f)),
                pl.BlockSpec((1, tf), lambda i, f: (0, f)),
                pl.BlockSpec((tf, E), lambda i, f: (f, 0)),
                pl.BlockSpec((1, E), lambda i, f: (0, 0)),
                pl.BlockSpec((tm, E), lambda i, f: (i, 0)),
                pl.BlockSpec((1, E), lambda i, f: (0, 0)),
                pl.BlockSpec((1, E), lambda i, f: (0, 0)),
            ],
            out_specs=pl.BlockSpec((tm, E), lambda i, f: (i, 0)),
            scratch_shapes=[pltpu.VMEM((tm, E), jnp.float32)],
        ),
        compiler_params=pltpu.CompilerParams(
            dimension_semantics=("parallel", "arbitrary"),
            vmem_limit_bytes=_VMEM_LIMIT),
    )(xb, w1b, b1p, w2b, b2.astype(jnp.float32), rp,
      gamma.astype(jnp.float32), beta.astype(jnp.float32))
    if Mp != M:
        out = out[:M]
    return out


# ----------------------------------------------------------------------------
# Kernel 4: grouped-head flash attention.
#   grid=(B, kv_tiles): one step handles ALL heads of one batch element.
#   q/k/v are read straight out of the packed projection via lane-block
#   index_maps; the (Sq, tkv) additive mask is bf16 and DMA'd once per step
#   (amortized over heads); the output is one lane-dense (Sq, E) block with
#   heads concatenated on the lane axis inside the kernel.
# ----------------------------------------------------------------------------
def _attn_kernel(q_ref, k_ref, v_ref, am_ref, kp_ref, o_ref,
                 m_ref, l_ref, acc_ref, *, nhead, head_dim, n_kv):
    kv = pl.program_id(1)

    @pl.when(kv == 0)
    def _():
        m_ref[...] = jnp.full_like(m_ref, -1e30)
        l_ref[...] = jnp.zeros_like(l_ref)
        acc_ref[...] = jnp.zeros_like(acc_ref)

    q = q_ref[0]                       # (Sq, E) bf16, q already scaled via Wq
    k = k_ref[0]                       # (tkv, E) bf16
    v = v_ref[0]                       # (tkv, E) bf16
    # additive bias shared by all heads of this batch element
    bias = am_ref[...].astype(jnp.float32) + kp_ref[0]        # (Sq, tkv)

    for h in range(nhead):
        sl = slice(h * head_dim, (h + 1) * head_dim)
        qh, kh, vh = q[:, sl], k[:, sl], v[:, sl]
        s = jax.lax.dot_general(qh, kh, (((1,), (1,)), ((), ())),
                                preferred_element_type=jnp.float32)
        s = s + bias
        m_prev = m_ref[h]
        m_new = jnp.maximum(m_prev, jnp.max(s, axis=-1, keepdims=True))
        alpha = jnp.exp(m_prev - m_new)
        p = jnp.exp(s - m_new)
        l_ref[h] = alpha * l_ref[h] + jnp.sum(p, axis=-1, keepdims=True)
        acc_ref[h] = alpha * acc_ref[h] + jnp.dot(
            p.astype(vh.dtype), vh, preferred_element_type=jnp.float32)
        m_ref[h] = m_new

    @pl.when(kv == n_kv - 1)
    def _():
        outs = []
        for h in range(nhead):
            inv_l = pl.reciprocal(l_ref[h], approx=True)
            outs.append(acc_ref[h] * inv_l)
        o_ref[0] = jnp.concatenate(outs, axis=-1).astype(o_ref.dtype)


def pallas_attention(q_src, kv_src, attn_mask_add, key_pad_add, *,
                     nhead, emb, q_blk, k_blk, v_blk):
    """q_src:(B,Sq,Cq*emb) bf16 packed projection holding Q at lane-block q_blk.
    kv_src:(B,Sk,Ckv*emb) bf16 packed projection holding K/V at k_blk/v_blk.
    attn_mask_add: (Sq,Sk) bf16 additive mask or None.
    key_pad_add:   (B,1,Sk) f32 additive key-padding mask.
    Returns (B, Sq, emb) bf16 (heads concatenated on the lane axis)."""
    B, Sq, _ = q_src.shape
    Sk = kv_src.shape[1]
    H, Dh = nhead, emb // nhead

    if emb % 128 == 0:
        q_arr, k_arr, v_arr = q_src, kv_src, kv_src
        qo, ko, vo = q_blk, k_blk, v_blk
    else:
        # fall back to XLA lane slicing when emb is not a 128-lane multiple
        q_arr = q_src[:, :, q_blk * emb:(q_blk + 1) * emb]
        k_arr = kv_src[:, :, k_blk * emb:(k_blk + 1) * emb]
        v_arr = kv_src[:, :, v_blk * emb:(v_blk + 1) * emb]
        qo = ko = vo = 0

    # kv tile: whole key sequence when it fits, otherwise a 128-multiple that
    # divides Sk (sequence padding policy guarantees one exists).
    if Sk <= _TKV:
        tkv = Sk
    else:
        tkv = 128
        for cand in (512, 384, 256, 128):
            if cand <= _TKV and Sk % cand == 0:
                tkv = cand
                break
    n_kv = Sk // tkv

    if attn_mask_add is None:
        am = jnp.zeros((Sq, Sk), jnp.bfloat16)
    else:
        am = attn_mask_add.astype(jnp.bfloat16)

    # TODO(synk): pipeline_mode=pl.Buffered(3) on the k/v specs would hide more
    # DMA latency for long sequences; left at the default depth for safety.
    out = pl.pallas_call(
        functools.partial(_attn_kernel, nhead=H, head_dim=Dh, n_kv=n_kv),
        out_shape=jax.ShapeDtypeStruct((B, Sq, emb), jnp.bfloat16),
        grid_spec=pltpu.PrefetchScalarGridSpec(
            num_scalar_prefetch=0,
            grid=(B, n_kv),
            in_specs=[
                pl.BlockSpec((1, Sq, emb), lambda b, kv, o=qo: (b, 0, o)),
                pl.BlockSpec((1, tkv, emb), lambda b, kv, o=ko: (b, kv, o)),
                pl.BlockSpec((1, tkv, emb), lambda b, kv, o=vo: (b, kv, o)),
                pl.BlockSpec((Sq, tkv), lambda b, kv: (0, kv)),
                pl.BlockSpec((1, 1, tkv), lambda b, kv: (b, 0, kv)),
            ],
            out_specs=pl.BlockSpec((1, Sq, emb), lambda b, kv: (b, 0, 0)),
            scratch_shapes=[
                pltpu.VMEM((H, Sq, 1), jnp.float32),
                pltpu.VMEM((H, Sq, 1), jnp.float32),
                pltpu.VMEM((H, Sq, Dh), jnp.float32),
            ],
        ),
        compiler_params=pltpu.CompilerParams(
            dimension_semantics=("parallel", "arbitrary"),
            vmem_limit_bytes=_VMEM_LIMIT),
    )(q_arr, k_arr, v_arr, am, key_pad_add)
    return out


# ----------------------------------------------------------------------------
# Model glue (parameters, masks, layers)
# ----------------------------------------------------------------------------
def make_pos_embedding(maxlen, emb_size):
    den = np.exp(-np.arange(0, emb_size, 2) * math.log(10000) / emb_size)
    pos = np.arange(0, maxlen).reshape(maxlen, 1)
    pe = np.zeros((maxlen, emb_size), np.float32)
    pe[:, 0::2] = np.sin(pos * den)
    pe[:, 1::2] = np.cos(pos * den)
    return jnp.asarray(pe)[:, None, :]  # (maxlen, 1, E)


def init_params(key, num_enc, num_dec, emb, nhead, src_vocab, tgt_vocab, dff):
    dh = emb // nhead
    qscale = dh ** -0.5
    keys = iter(jax.random.split(key, 256))

    def nrm(shape, s):
        return jax.random.normal(next(keys), shape, jnp.float32) * s

    def mha_self():
        wq, wk, wv = nrm((emb, emb), .05), nrm((emb, emb), .05), nrm((emb, emb), .05)
        bq, bk, bv = nrm((1, emb), .01), nrm((1, emb), .01), nrm((1, emb), .01)
        return dict(
            w_qkv=jnp.concatenate([wq * qscale, wk, wv], 1).astype(jnp.bfloat16),
            b_qkv=jnp.concatenate([bq * qscale, bk, bv], 1),
            wo=nrm((emb, emb), .05).astype(jnp.bfloat16), bo=nrm((1, emb), .01))

    def mha_cross():
        wq, wk, wv = nrm((emb, emb), .05), nrm((emb, emb), .05), nrm((emb, emb), .05)
        bq, bk, bv = nrm((1, emb), .01), nrm((1, emb), .01), nrm((1, emb), .01)
        return dict(
            wq=(wq * qscale).astype(jnp.bfloat16), bq=bq * qscale,
            w_kv=jnp.concatenate([wk, wv], 1).astype(jnp.bfloat16),
            b_kv=jnp.concatenate([bk, bv], 1),
            wo=nrm((emb, emb), .05).astype(jnp.bfloat16), bo=nrm((1, emb), .01))

    def ffn():
        # TODO(synk): on v7x these streamed weights could be fp8 for 2x MXU/BW.
        return dict(w1=nrm((emb, dff), .05).astype(jnp.bfloat16), b1=nrm((1, dff), .01),
                    w2=nrm((dff, emb), .05).astype(jnp.bfloat16), b2=nrm((1, emb), .01))

    def ln():
        return dict(g=jnp.ones((1, emb), jnp.float32),
                    b=jnp.zeros((1, emb), jnp.float32))

    def enc_layer():
        return dict(sa=mha_self(), ln1=ln(), ln2=ln(), ff=ffn())

    def dec_layer():
        return dict(sa=mha_self(), ca=mha_cross(),
                    ln1=ln(), ln2=ln(), ln3=ln(), ff=ffn())

    return dict(
        src_emb=nrm((src_vocab, emb), 1.0),
        tgt_emb=nrm((tgt_vocab, emb), 1.0),
        pos_emb=make_pos_embedding(64, emb),
        enc_layers=[enc_layer() for _ in range(num_enc)],
        dec_layers=[dec_layer() for _ in range(num_dec)],
        gen_w=nrm((emb, tgt_vocab), .05).astype(jnp.bfloat16),
        gen_b=nrm((1, tgt_vocab), .01))


def _sanitize_attn_mask(m, s):
    if m is None:
        return jnp.zeros((s, s), jnp.float32)
    if m.dtype == jnp.bool_:
        return jnp.where(m, _NEG_BIG, 0.0).astype(jnp.float32)
    return jnp.maximum(m.astype(jnp.float32), _NEG_BIG)


def _pad_key_mask(mask, B, S, Sp):
    """Boolean key-padding mask -> additive (B,1,Sp) f32; padded keys masked."""
    if mask is None:
        add = jnp.zeros((B, S), jnp.float32)
    else:
        add = jnp.where(mask, _NEG_BIG, 0.0).astype(jnp.float32)
    full = jnp.full((B, Sp), _NEG_BIG, jnp.float32)
    full = full.at[:, :S].set(add)
    return full.reshape(B, 1, Sp)


def embed_posenc(tokens, table, pos_emb):
    # TODO(synk): embedding gather + posenc add left in XLA (gather has no clean
    # Pallas win at these sizes); dropout after posenc is identity (eval mode).
    S, _ = tokens.shape
    E = table.shape[1]
    emb = jnp.take(table, tokens, axis=0) * math.sqrt(E)
    return emb + pos_emb[:S]


def encoder_layer(x2d, p, nhead, B, Sp, attn_am, key_pad):
    E = x2d.shape[1]
    qkv = pallas_matmul_bias(x2d, p["sa"]["w_qkv"], p["sa"]["b_qkv"])   # (B*Sp, 3E)
    attn = pallas_attention(qkv.reshape(B, Sp, 3 * E), qkv.reshape(B, Sp, 3 * E),
                            attn_am, key_pad, nhead=nhead, emb=E,
                            q_blk=0, k_blk=1, v_blk=2)                  # (B, Sp, E)
    x2d = pallas_matmul_res_ln(attn.reshape(B * Sp, E),
                               p["sa"]["wo"], p["sa"]["bo"], x2d,
                               p["ln1"]["g"], p["ln1"]["b"])
    x2d = pallas_ffn_res_ln(x2d, p["ff"]["w1"], p["ff"]["b1"],
                            p["ff"]["w2"], p["ff"]["b2"],
                            x2d, p["ln2"]["g"], p["ln2"]["b"])
    return x2d


def decoder_layer(x2d, mem2d, p, nhead, B, Stp, Ssp, self_am, tgt_kp, mem_kp):
    E = x2d.shape[1]

    # self-attention block
    qkv = pallas_matmul_bias(x2d, p["sa"]["w_qkv"], p["sa"]["b_qkv"])
    attn = pallas_attention(qkv.reshape(B, Stp, 3 * E), qkv.reshape(B, Stp, 3 * E),
                            self_am, tgt_kp, nhead=nhead, emb=E,
                            q_blk=0, k_blk=1, v_blk=2)
    x2d = pallas_matmul_res_ln(attn.reshape(B * Stp, E),
                               p["sa"]["wo"], p["sa"]["bo"], x2d,
                               p["ln1"]["g"], p["ln1"]["b"])

    # cross-attention block
    qc = pallas_matmul_bias(x2d, p["ca"]["wq"], p["ca"]["bq"])          # (B*Stp, E)
    kvc = pallas_matmul_bias(mem2d, p["ca"]["w_kv"], p["ca"]["b_kv"])   # (B*Ssp, 2E)
    attn = pallas_attention(qc.reshape(B, Stp, E), kvc.reshape(B, Ssp, 2 * E),
                            None, mem_kp, nhead=nhead, emb=E,
                            q_blk=0, k_blk=0, v_blk=1)
    x2d = pallas_matmul_res_ln(attn.reshape(B * Stp, E),
                               p["ca"]["wo"], p["ca"]["bo"], x2d,
                               p["ln2"]["g"], p["ln2"]["b"])

    # feed-forward block
    x2d = pallas_ffn_res_ln(x2d, p["ff"]["w1"], p["ff"]["b1"],
                            p["ff"]["w2"], p["ff"]["b2"],
                            x2d, p["ln3"]["g"], p["ln3"]["b"])
    return x2d


def seq2seq_forward(params, src, tgt, src_mask, tgt_mask,
                    src_padding_mask, tgt_padding_mask,
                    memory_key_padding_mask, *, nhead):
    E = params["src_emb"].shape[1]
    S_src, B = src.shape
    S_tgt, _ = tgt.shape
    Ssp, Stp = _pad_seq(S_src), _pad_seq(S_tgt)

    def prep(tokens, table, Sp):
        x = embed_posenc(tokens, table, params["pos_emb"])        # (S, B, E) f32
        x = jnp.transpose(x, (1, 0, 2)).astype(jnp.bfloat16)      # batch-major bf16
        x = _pad_to(x, (B, Sp, E))
        return x.reshape(B * Sp, E)

    src_x = prep(src, params["src_emb"], Ssp)
    tgt_x = prep(tgt, params["tgt_emb"], Stp)

    src_am = _pad_to(_sanitize_attn_mask(src_mask, S_src), (Ssp, Ssp)).astype(jnp.bfloat16)
    tgt_am = _pad_to(_sanitize_attn_mask(tgt_mask, S_tgt), (Stp, Stp)).astype(jnp.bfloat16)
    src_kp = _pad_key_mask(src_padding_mask, B, S_src, Ssp)
    tgt_kp = _pad_key_mask(tgt_padding_mask, B, S_tgt, Stp)
    mem_kp = _pad_key_mask(memory_key_padding_mask, B, S_src, Ssp)

    memory = src_x
    for lp in params["enc_layers"]:
        memory = encoder_layer(memory, lp, nhead, B, Ssp, src_am, src_kp)

    x = tgt_x
    for lp in params["dec_layers"]:
        x = decoder_layer(x, memory, lp, nhead, B, Stp, Ssp,
                          tgt_am, tgt_kp, mem_kp)

    # back to (S_tgt, B, E) before the generator (cheap: E << vocab), so the
    # large logits tensor is written directly in its final layout.
    xo = x.reshape(B, Stp, E)[:, :S_tgt]
    xo = jnp.transpose(xo, (1, 0, 2)).reshape(S_tgt * B, E)
    logits = pallas_matmul_bias(xo, params["gen_w"], params["gen_b"],
                                out_dtype=jnp.float32)
    return logits.reshape(S_tgt, B, -1)


# ----------------------------------------------------------------------------
# Demo
# ----------------------------------------------------------------------------
if __name__ == "__main__":
    NUM_ENC, NUM_DEC = 2, 2
    EMB, NHEAD, DFF = 256, 2, 512      # head_dim = 128 -> lane-aligned heads
    SRC_VOCAB, TGT_VOCAB = 50, 60
    S_SRC, S_TGT, B = 10, 7, 2

    key = jax.random.PRNGKey(0)
    k_params, k_src, k_tgt = jax.random.split(key, 3)
    params = init_params(k_params, NUM_ENC, NUM_DEC, EMB, NHEAD,
                         SRC_VOCAB, TGT_VOCAB, DFF)

    src = jax.random.randint(k_src, (S_SRC, B), 0, SRC_VOCAB, dtype=jnp.int32)
    tgt = jax.random.randint(k_tgt, (S_TGT, B), 0, TGT_VOCAB, dtype=jnp.int32)

    src_mask = jnp.zeros((S_SRC, S_SRC), jnp.float32)
    causal = jnp.triu(jnp.ones((S_TGT, S_TGT), bool), k=1)
    tgt_mask = jnp.where(causal, -jnp.inf, 0.0).astype(jnp.float32)

    src_padding_mask = jnp.zeros((B, S_SRC), bool).at[1, S_SRC - 1].set(True)
    tgt_padding_mask = jnp.zeros((B, S_TGT), bool).at[0, S_TGT - 1].set(True)
    memory_key_padding_mask = src_padding_mask

    fwd = jax.jit(functools.partial(seq2seq_forward, nhead=NHEAD))
    out = fwd(params, src, tgt, src_mask, tgt_mask,
              src_padding_mask, tgt_padding_mask, memory_key_padding_mask)
    out = jax.block_until_ready(out)

    assert out.shape == (S_TGT, B, TGT_VOCAB)
    assert bool(jnp.all(jnp.isfinite(out)))
    print("KERNEL_OK")
</pallas_src>

<mosaic_0001>
module attributes {stable_mosaic.version = 11 : i64} {
  func.func @_attn_kernel(%arg0: i32, %arg1: i32, %arg2: memref<1x16x256xbf16, #tpu.memory_space<vmem>>, %arg3: memref<1x16x256xbf16, #tpu.memory_space<vmem>>, %arg4: memref<1x16x256xbf16, #tpu.memory_space<vmem>>, %arg5: memref<16x16xbf16, #tpu.memory_space<vmem>>, %arg6: memref<1x1x16xf32, #tpu.memory_space<vmem>>, %arg7: memref<1x16x256xbf16, #tpu.memory_space<vmem>>, %arg8: memref<2x16x1xf32, #tpu.memory_space<vmem>>, %arg9: memref<2x16x1xf32, #tpu.memory_space<vmem>>, %arg10: memref<2x16x128xf32, #tpu.memory_space<vmem>>) attributes {dimension_semantics = [#tpu.dimension_semantics<parallel>, #tpu.dimension_semantics<arbitrary>], iteration_bounds = array<i64: 2, 1>, scalar_prefetch = 0 : i64, scratch_operands = 3 : i64, tpu.core_type = #tpu.core_type<tc>, window_params = [{transform_indices = @transform_0, window_bounds = array<i64: 1, 16, 256>}, {transform_indices = @transform_1, window_bounds = array<i64: 1, 16, 256>}, {transform_indices = @transform_2, window_bounds = array<i64: 1, 16, 256>}, {transform_indices = @transform_3, window_bounds = array<i64: 16, 16>}, {transform_indices = @transform_4, window_bounds = array<i64: 1, 1, 16>}, {transform_indices = @transform_5, window_bounds = array<i64: 1, 16, 256>}]} {
    %c0_i32 = arith.constant 0 : i32
    %0 = arith.cmpi eq, %arg1, %c0_i32 : i32
    %1 = arith.extui %0 : i1 to i32
    %c0_i32_0 = arith.constant 0 : i32
    %2 = arith.cmpi ne, %1, %c0_i32_0 : i32
    scf.if %2 {
      %cst_58 = arith.constant -1.000000e+30 : f32
      %92 = vector.broadcast %cst_58 : f32 to vector<2x16x1xf32>
      %c0_59 = arith.constant 0 : index
      %c0_60 = arith.constant 0 : index
      %c0_61 = arith.constant 0 : index
      %93 = vector.load %arg8[%c0_59, %c0_60, %c0_61] : memref<2x16x1xf32, #tpu.memory_space<vmem>>, vector<2x16x1xf32>
      tpu.vector_store %arg8[%c0_59, %c0_60, %c0_61], %92 {strides = array<i32>} : memref<2x16x1xf32, #tpu.memory_space<vmem>>, vector<2x16x1xf32>,
      %cst_62 = arith.constant 0.000000e+00 : f32
      %94 = vector.broadcast %cst_62 : f32 to vector<2x16x1xf32>
      %c0_63 = arith.constant 0 : index
      %c0_64 = arith.constant 0 : index
      %c0_65 = arith.constant 0 : index
      %95 = vector.load %arg9[%c0_63, %c0_64, %c0_65] : memref<2x16x1xf32, #tpu.memory_space<vmem>>, vector<2x16x1xf32>
      tpu.vector_store %arg9[%c0_63, %c0_64, %c0_65], %94 {strides = array<i32>} : memref<2x16x1xf32, #tpu.memory_space<vmem>>, vector<2x16x1xf32>,
      %cst_66 = arith.constant 0.000000e+00 : f32
      %96 = vector.broadcast %cst_66 : f32 to vector<2x16x128xf32>
      %c0_67 = arith.constant 0 : index
      %c0_68 = arith.constant 0 : index
      %c0_69 = arith.constant 0 : index
      %97 = vector.load %arg10[%c0_67, %c0_68, %c0_69] : memref<2x16x128xf32, #tpu.memory_space<vmem>>, vector<2x16x128xf32>
      tpu.vector_store %arg10[%c0_67, %c0_68, %c0_69], %96 {strides = array<i32>} : memref<2x16x128xf32, #tpu.memory_space<vmem>>, vector<2x16x128xf32>,
    } else {
    }
    %c0 = arith.constant 0 : index
    %c0_1 = arith.constant 0 : index
    %c0_2 = arith.constant 0 : index
    %3 = vector.load %arg2[%c0, %c0_1, %c0_2] : memref<1x16x256xbf16, #tpu.memory_space<vmem>>, vector<1x16x256xbf16>
    %4 = vector.shape_cast %3 : vector<1x16x256xbf16> to vector<16x256xbf16>
    %c0_3 = arith.constant 0 : index
    %c0_4 = arith.constant 0 : index
    %c0_5 = arith.constant 0 : index
    %5 = vector.load %arg3[%c0_3, %c0_4, %c0_5] : memref<1x16x256xbf16, #tpu.memory_space<vmem>>, vector<1x16x256xbf16>
    %6 = vector.shape_cast %5 : vector<1x16x256xbf16> to vector<16x256xbf16>
    %c0_6 = arith.constant 0 : index
    %c0_7 = arith.constant 0 : index
    %c0_8 = arith.constant 0 : index
    %7 = vector.load %arg4[%c0_6, %c0_7, %c0_8] : memref<1x16x256xbf16, #tpu.memory_space<vmem>>, vector<1x16x256xbf16>
    %8 = vector.shape_cast %7 : vector<1x16x256xbf16> to vector<16x256xbf16>
    %c0_9 = arith.constant 0 : index
    %c0_10 = arith.constant 0 : index
    %9 = vector.load %arg5[%c0_9, %c0_10] : memref<16x16xbf16, #tpu.memory_space<vmem>>, vector<16x16xbf16>
    %10 = arith.extf %9 : vector<16x16xbf16> to vector<16x16xf32>
    %c0_11 = arith.constant 0 : index
    %c0_12 = arith.constant 0 : index
    %c0_13 = arith.constant 0 : index
    %11 = vector.load %arg6[%c0_11, %c0_12, %c0_13] : memref<1x1x16xf32, #tpu.memory_space<vmem>>, vector<1x1x16xf32>
    %12 = vector.shape_cast %11 : vector<1x1x16xf32> to vector<1x16xf32>
    %13 = vector.broadcast %12 : vector<1x16xf32> to vector<16x16xf32>
    %14 = arith.addf %10, %13 : vector<16x16xf32>
    %15 = vector.extract_strided_slice %4 {offsets = [0, 0], sizes = [16, 128], strides = [1, 1]} : vector<16x256xbf16> to vector<16x128xbf16>
    %16 = vector.extract_strided_slice %6 {offsets = [0, 0], sizes = [16, 128], strides = [1, 1]} : vector<16x256xbf16> to vector<16x128xbf16>
    %17 = vector.extract_strided_slice %8 {offsets = [0, 0], sizes = [16, 128], strides = [1, 1]} : vector<16x256xbf16> to vector<16x128xbf16>
    %cst = arith.constant dense<0.000000e+00> : vector<16x16xf32>
    %18 = tpu.matmul %15, %16, %cst {dimension_numbers = #tpu.dot_dimension_numbers<[1], [1], [0], [0], [0, 0, 1, 0], [], []>} : vector<16x128xbf16>, vector<16x128xbf16>, vector<16x16xf32> -> vector<16x16xf32>
    %19 = arith.addf %18, %14 : vector<16x16xf32>
    %c0_14 = arith.constant 0 : index
    %c0_15 = arith.constant 0 : index
    %c0_16 = arith.constant 0 : index
    %20 = vector.load %arg8[%c0_14, %c0_15, %c0_16] : memref<2x16x1xf32, #tpu.memory_space<vmem>>, vector<1x16x1xf32>
    %21 = vector.shape_cast %20 : vector<1x16x1xf32> to vector<16x1xf32>
    %cst_17 = arith.constant dense<0xFF800000> : vector<16xf32>
    %22 = vector.multi_reduction <maximumf>, %19, %cst_17 [1] : vector<16x16xf32> to vector<16xf32>
    %23 = vector.shape_cast %22 : vector<16xf32> to vector<16x1xf32>
    %24 = arith.maximumf %21, %23 : vector<16x1xf32>
    %25 = arith.subf %21, %24 : vector<16x1xf32>
    %26 = math.exp %25 : vector<16x1xf32>
    %27 = vector.broadcast %24 : vector<16x1xf32> to vector<16x16xf32>
    %28 = arith.subf %19, %27 : vector<16x16xf32>
    %29 = math.exp %28 : vector<16x16xf32>
    %c0_18 = arith.constant 0 : index
    %c0_19 = arith.constant 0 : index
    %c0_20 = arith.constant 0 : index
    %30 = vector.load %arg9[%c0_18, %c0_19, %c0_20] : memref<2x16x1xf32, #tpu.memory_space<vmem>>, vector<1x16x1xf32>
    %31 = vector.shape_cast %30 : vector<1x16x1xf32> to vector<16x1xf32>
    %32 = arith.mulf %26, %31 : vector<16x1xf32>
    %cst_21 = arith.constant dense<0.000000e+00> : vector<16xf32>
    %33 = vector.multi_reduction <add>, %29, %cst_21 [1] : vector<16x16xf32> to vector<16xf32>
    %34 = vector.shape_cast %33 : vector<16xf32> to vector<16x1xf32>
    %35 = arith.addf %32, %34 : vector<16x1xf32>
    %c0_22 = arith.constant 0 : index
    %c0_23 = arith.constant 0 : index
    %c0_24 = arith.constant 0 : index
    %36 = vector.load %arg9[%c0_22, %c0_23, %c0_24] : memref<2x16x1xf32, #tpu.memory_space<vmem>>, vector<1x16x1xf32>
    %37 = vector.shape_cast %36 : vector<1x16x1xf32> to vector<16x1xf32>
    %38 = vector.shape_cast %35 : vector<16x1xf32> to vector<1x16x1xf32>
    tpu.vector_store %arg9[%c0_22, %c0_23, %c0_24], %38 {strides = array<i32>} : memref<2x16x1xf32, #tpu.memory_space<vmem>>, vector<1x16x1xf32>,
    %c0_25 = arith.constant 0 : index
    %c0_26 = arith.constant 0 : index
    %c0_27 = arith.constant 0 : index
    %39 = vector.load %arg10[%c0_25, %c0_26, %c0_27] : memref<2x16x128xf32, #tpu.memory_space<vmem>>, vector<1x16x128xf32>
    %40 = vector.shape_cast %39 : vector<1x16x128xf32> to vector<16x128xf32>
    %41 = vector.broadcast %26 : vector<16x1xf32> to vector<16x128xf32>
    %42 = arith.mulf %41, %40 : vector<16x128xf32>
    %43 = arith.truncf %29 : vector<16x16xf32> to vector<16x16xbf16>
    %cst_28 = arith.constant dense<0.000000e+00> : vector<16x128xf32>
    %44 = tpu.matmul %43, %17, %cst_28 {dimension_numbers = #tpu.dot_dimension_numbers<[1], [0], [0], [1], [0, 0, 1, 1], [], []>} : vector<16x16xbf16>, vector<16x128xbf16>, vector<16x128xf32> -> vector<16x128xf32>
    %45 = arith.addf %42, %44 : vector<16x128xf32>
    %c0_29 = arith.constant 0 : index
    %c0_30 = arith.constant 0 : index
    %c0_31 = arith.constant 0 : index
    %46 = vector.load %arg10[%c0_29, %c0_30, %c0_31] : memref<2x16x128xf32, #tpu.memory_space<vmem>>, vector<1x16x128xf32>
    %47 = vector.shape_cast %46 : vector<1x16x128xf32> to vector<16x128xf32>
    %48 = vector.shape_cast %45 : vector<16x128xf32> to vector<1x16x128xf32>
    tpu.vector_store %arg10[%c0_29, %c0_30, %c0_31], %48 {strides = array<i32>} : memref<2x16x128xf32, #tpu.memory_space<vmem>>, vector<1x16x128xf32>,
    %c0_32 = arith.constant 0 : index
    %c0_33 = arith.constant 0 : index
    %c0_34 = arith.constant 0 : index
    %49 = vector.load %arg8[%c0_32, %c0_33, %c0_34] : memref<2x16x1xf32, #tpu.memory_space<vmem>>, vector<1x16x1xf32>
    %50 = vector.shape_cast %49 : vector<1x16x1xf32> to vector<16x1xf32>
    %51 = vector.shape_cast %24 : vector<16x1xf32> to vector<1x16x1xf32>
    tpu.vector_store %arg8[%c0_32, %c0_33, %c0_34], %51 {strides = array<i32>} : memref<2x16x1xf32, #tpu.memory_space<vmem>>, vector<1x16x1xf32>,
    %52 = vector.extract_strided_slice %4 {offsets = [0, 128], sizes = [16, 128], strides = [1, 1]} : vector<16x256xbf16> to vector<16x128xbf16>
    %53 = vector.extract_strided_slice %6 {offsets = [0, 128], sizes = [16, 128], strides = [1, 1]} : vector<16x256xbf16> to vector<16x128xbf16>
    %54 = vector.extract_strided_slice %8 {offsets = [0, 128], sizes = [16, 128], strides = [1, 1]} : vector<16x256xbf16> to vector<16x128xbf16>
    %cst_35 = arith.constant dense<0.000000e+00> : vector<16x16xf32>
    %55 = tpu.matmul %52, %53, %cst_35 {dimension_numbers = #tpu.dot_dimension_numbers<[1], [1], [0], [0], [0, 0, 1, 0], [], []>} : vector<16x128xbf16>, vector<16x128xbf16>, vector<16x16xf32> -> vector<16x16xf32>
    %56 = arith.addf %55, %14 : vector<16x16xf32>
    %c1 = arith.constant 1 : index
    %c0_36 = arith.constant 0 : index
    %c0_37 = arith.constant 0 : index
    %57 = vector.load %arg8[%c1, %c0_36, %c0_37] : memref<2x16x1xf32, #tpu.memory_space<vmem>>, vector<1x16x1xf32>
    %58 = vector.shape_cast %57 : vector<1x16x1xf32> to vector<16x1xf32>
    %cst_38 = arith.constant dense<0xFF800000> : vector<16xf32>
    %59 = vector.multi_reduction <maximumf>, %56, %cst_38 [1] : vector<16x16xf32> to vector<16xf32>
    %60 = vector.shape_cast %59 : vector<16xf32> to vector<16x1xf32>
    %61 = arith.maximumf %58, %60 : vector<16x1xf32>
    %62 = arith.subf %58, %61 : vector<16x1xf32>
    %63 = math.exp %62 : vector<16x1xf32>
    %64 = vector.broadcast %61 : vector<16x1xf32> to vector<16x16xf32>
    %65 = arith.subf %56, %64 : vector<16x16xf32>
    %66 = math.exp %65 : vector<16x16xf32>
    %c1_39 = arith.constant 1 : index
    %c0_40 = arith.constant 0 : index
    %c0_41 = arith.constant 0 : index
    %67 = vector.load %arg9[%c1_39, %c0_40, %c0_41] : memref<2x16x1xf32, #tpu.memory_space<vmem>>, vector<1x16x1xf32>
    %68 = vector.shape_cast %67 : vector<1x16x1xf32> to vector<16x1xf32>
    %69 = arith.mulf %63, %68 : vector<16x1xf32>
    %cst_42 = arith.constant dense<0.000000e+00> : vector<16xf32>
    %70 = vector.multi_reduction <add>, %66, %cst_42 [1] : vector<16x16xf32> to vector<16xf32>
    %71 = vector.shape_cast %70 : vector<16xf32> to vector<16x1xf32>
    %72 = arith.addf %69, %71 : vector<16x1xf32>
    %c1_43 = arith.constant 1 : index
    %c0_44 = arith.constant 0 : index
    %c0_45 = arith.constant 0 : index
    %73 = vector.load %arg9[%c1_43, %c0_44, %c0_45] : memref<2x16x1xf32, #tpu.memory_space<vmem>>, vector<1x16x1xf32>
    %74 = vector.shape_cast %73 : vector<1x16x1xf32> to vector<16x1xf32>
    %75 = vector.shape_cast %72 : vector<16x1xf32> to vector<1x16x1xf32>
    tpu.vector_store %arg9[%c1_43, %c0_44, %c0_45], %75 {strides = array<i32>} : memref<2x16x1xf32, #tpu.memory_space<vmem>>, vector<1x16x1xf32>,
    %c1_46 = arith.constant 1 : index
    %c0_47 = arith.constant 0 : index
    %c0_48 = arith.constant 0 : index
    %76 = vector.load %arg10[%c1_46, %c0_47, %c0_48] : memref<2x16x128xf32, #tpu.memory_space<vmem>>, vector<1x16x128xf32>
    %77 = vector.shape_cast %76 : vector<1x16x128xf32> to vector<16x128xf32>
    %78 = vector.broadcast %63 : vector<16x1xf32> to vector<16x128xf32>
    %79 = arith.mulf %78, %77 : vector<16x128xf32>
    %80 = arith.truncf %66 : vector<16x16xf32> to vector<16x16xbf16>
    %cst_49 = arith.constant dense<0.000000e+00> : vector<16x128xf32>
    %81 = tpu.matmul %80, %54, %cst_49 {dimension_numbers = #tpu.dot_dimension_numbers<[1], [0], [0], [1], [0, 0, 1, 1], [], []>} : vector<16x16xbf16>, vector<16x128xbf16>, vector<16x128xf32> -> vector<16x128xf32>
    %82 = arith.addf %79, %81 : vector<16x128xf32>
    %c1_50 = arith.constant 1 : index
    %c0_51 = arith.constant 0 : index
    %c0_52 = arith.constant 0 : index
    %83 = vector.load %arg10[%c1_50, %c0_51, %c0_52] : memref<2x16x128xf32, #tpu.memory_space<vmem>>, vector<1x16x128xf32>
    %84 = vector.shape_cast %83 : vector<1x16x128xf32> to vector<16x128xf32>
    %85 = vector.shape_cast %82 : vector<16x128xf32> to vector<1x16x128xf32>
    tpu.vector_store %arg10[%c1_50, %c0_51, %c0_52], %85 {strides = array<i32>} : memref<2x16x128xf32, #tpu.memory_space<vmem>>, vector<1x16x128xf32>,
    %c1_53 = arith.constant 1 : index
    %c0_54 = arith.constant 0 : index
    %c0_55 = arith.constant 0 : index
    %86 = vector.load %arg8[%c1_53, %c0_54, %c0_55] : memref<2x16x1xf32, #tpu.memory_space<vmem>>, vector<1x16x1xf32>
    %87 = vector.shape_cast %86 : vector<1x16x1xf32> to vector<16x1xf32>
    %88 = vector.shape_cast %61 : vector<16x1xf32> to vector<1x16x1xf32>
    tpu.vector_store %arg8[%c1_53, %c0_54, %c0_55], %88 {strides = array<i32>} : memref<2x16x1xf32, #tpu.memory_space<vmem>>, vector<1x16x1xf32>,
    %c0_i32_56 = arith.constant 0 : i32
    %89 = arith.cmpi eq, %arg1, %c0_i32_56 : i32
    %90 = arith.extui %89 : i1 to i32
    %c0_i32_57 = arith.constant 0 : i32
    %91 = arith.cmpi ne, %90, %c0_i32_57 : i32
    scf.if %91 {
      %c0_58 = arith.constant 0 : index
      %c0_59 = arith.constant 0 : index
      %c0_60 = arith.constant 0 : index
      %92 = vector.load %arg9[%c0_58, %c0_59, %c0_60] : memref<2x16x1xf32, #tpu.memory_space<vmem>>, vector<1x16x1xf32>
      %93 = vector.shape_cast %92 : vector<1x16x1xf32> to vector<16x1xf32>
      %94 = tpu.reciprocal %93 {approx = true} : vector<16x1xf32> -> vector<16x1xf32>
      %c0_61 = arith.constant 0 : index
      %c0_62 = arith.constant 0 : index
      %c0_63 = arith.constant 0 : index
      %95 = vector.load %arg10[%c0_61, %c0_62, %c0_63] : memref<2x16x128xf32, #tpu.memory_space<vmem>>, vector<1x16x128xf32>
      %96 = vector.shape_cast %95 : vector<1x16x128xf32> to vector<16x128xf32>
      %97 = vector.broadcast %94 : vector<16x1xf32> to vector<16x128xf32>
      %98 = arith.mulf %96, %97 : vector<16x128xf32>
      %c1_64 = arith.constant 1 : index
      %c0_65 = arith.constant 0 : index
      %c0_66 = arith.constant 0 : index
      %99 = vector.load %arg9[%c1_64, %c0_65, %c0_66] : memref<2x16x1xf32, #tpu.memory_space<vmem>>, vector<1x16x1xf32>
      %100 = vector.shape_cast %99 : vector<1x16x1xf32> to vector<16x1xf32>
      %101 = tpu.reciprocal %100 {approx = true} : vector<16x1xf32> -> vector<16x1xf32>
      %c1_67 = arith.constant 1 : index
      %c0_68 = arith.constant 0 : index
      %c0_69 = arith.constant 0 : index
      %102 = vector.load %arg10[%c1_67, %c0_68, %c0_69] : memref<2x16x128xf32, #tpu.memory_space<vmem>>, vector<1x16x128xf32>
      %103 = vector.shape_cast %102 : vector<1x16x128xf32> to vector<16x128xf32>
      %104 = vector.broadcast %101 : vector<16x1xf32> to vector<16x128xf32>
      %105 = arith.mulf %103, %104 : vector<16x128xf32>
      %106 = tpu.concatenate %98, %105 in 1 : vector<16x128xf32>, vector<16x128xf32> -> vector<16x256xf32>
      %107 = arith.truncf %106 : vector<16x256xf32> to vector<16x256xbf16>
      %c0_70 = arith.constant 0 : index
      %c0_71 = arith.constant 0 : index
      %c0_72 = arith.constant 0 : index
      %108 = vector.load %arg7[%c0_70, %c0_71, %c0_72] : memref<1x16x256xbf16, #tpu.memory_space<vmem>>, vector<1x16x256xbf16>
      %109 = vector.shape_cast %108 : vector<1x16x256xbf16> to vector<16x256xbf16>
      %110 = vector.shape_cast %107 : vector<16x256xbf16> to vector<1x16x256xbf16>
      tpu.vector_store %arg7[%c0_70, %c0_71, %c0_72], %110 {strides = array<i32>} : memref<1x16x256xbf16, #tpu.memory_space<vmem>>, vector<1x16x256xbf16>,
    } else {
    }
    return
  }
  func.func @transform_0(%arg0: i32, %arg1: i32) -> (i32, i32, i32) {
    %c0_i32 = arith.constant 0 : i32
    %c0_i32_0 = arith.constant 0 : i32
    %c0_i32_1 = arith.constant 0 : i32
    return %arg0, %c0_i32, %c0_i32_0 : i32, i32, i32
  }
  func.func @transform_1(%arg0: i32, %arg1: i32) -> (i32, i32, i32) {
    %c1_i32 = arith.constant 1 : i32
    %c0_i32 = arith.constant 0 : i32
    return %arg0, %arg1, %c1_i32 : i32, i32, i32
  }
  func.func @transform_2(%arg0: i32, %arg1: i32) -> (i32, i32, i32) {
    %c2_i32 = arith.constant 2 : i32
    %c0_i32 = arith.constant 0 : i32
    return %arg0, %arg1, %c2_i32 : i32, i32, i32
  }
  func.func @transform_3(%arg0: i32, %arg1: i32) -> (i32, i32) {
    %c0_i32 = arith.constant 0 : i32
    %c0_i32_0 = arith.constant 0 : i32
    return %c0_i32, %arg1 : i32, i32
  }
  func.func @transform_4(%arg0: i32, %arg1: i32) -> (i32, i32, i32) {
    %c0_i32 = arith.constant 0 : i32
    %c0_i32_0 = arith.constant 0 : i32
    return %arg0, %c0_i32, %arg1 : i32, i32, i32
  }
  func.func @transform_5(%arg0: i32, %arg1: i32) -> (i32, i32, i32) {
    %c0_i32 = arith.constant 0 : i32
    %c0_i32_0 = arith.constant 0 : i32
    %c0_i32_1 = arith.constant 0 : i32
    return %arg0, %c0_i32, %c0_i32_0 : i32, i32, i32
  }
}

module attributes {stable_mosaic.version = 11 : i64} {
  func.func @_ffn_res_ln_kernel(%arg0: i32, %arg1: i32, %arg2: memref<32x256xbf16, #tpu.memory_space<vmem>>, %arg3: memref<256x256xbf16, #tpu.memory_space<vmem>>, %arg4: memref<1x256xf32, #tpu.memory_space<vmem>>, %arg5: memref<256x256xbf16, #tpu.memory_space<vmem>>, %arg6: memref<1x256xf32, #tpu.memory_space<vmem>>, %arg7: memref<32x256xbf16, #tpu.memory_space<vmem>>, %arg8: memref<1x256xf32, #tpu.memory_space<vmem>>, %arg9: memref<1x256xf32, #tpu.memory_space<vmem>>, %arg10: memref<32x256xbf16, #tpu.memory_space<vmem>>, %arg11: memref<32x256xf32, #tpu.memory_space<vmem>>) attributes {dimension_semantics = [#tpu.dimension_semantics<parallel>, #tpu.dimension_semantics<arbitrary>], iteration_bounds = array<i64: 1, 2>, scalar_prefetch = 0 : i64, scratch_operands = 1 : i64, tpu.core_type = #tpu.core_type<tc>, window_params = [{transform_indices = @transform_0, window_bounds = array<i64: 32, 256>}, {transform_indices = @transform_1, window_bounds = array<i64: 256, 256>}, {transform_indices = @transform_2, window_bounds = array<i64: 1, 256>}, {transform_indices = @transform_3, window_bounds = array<i64: 256, 256>}, {pipeline_mode = #tpu.pipeline_mode<synchronous>, transform_indices = @transform_4, window_bounds = array<i64: 1, 256>}, {transform_indices = @transform_5, window_bounds = array<i64: 32, 256>}, {pipeline_mode = #tpu.pipeline_mode<synchronous>, transform_indices = @transform_6, window_bounds = array<i64: 1, 256>}, {pipeline_mode = #tpu.pipeline_mode<synchronous>, transform_indices = @transform_7, window_bounds = array<i64: 1, 256>}, {transform_indices = @transform_8, window_bounds = array<i64: 32, 256>}]} {
    %c0_i32 = arith.constant 0 : i32
    %0 = arith.cmpi eq, %arg1, %c0_i32 : i32
    %1 = arith.extui %0 : i1 to i32
    %c0_i32_0 = arith.constant 0 : i32
    %2 = arith.cmpi ne, %1, %c0_i32_0 : i32
    scf.if %2 {
      %cst_15 = arith.constant 0.000000e+00 : f32
      %20 = vector.broadcast %cst_15 : f32 to vector<32x256xf32>
      %c0_16 = arith.constant 0 : index
      %c0_17 = arith.constant 0 : index
      %21 = vector.load %arg11[%c0_16, %c0_17] : memref<32x256xf32, #tpu.memory_space<vmem>>, vector<32x256xf32>
      tpu.vector_store %arg11[%c0_16, %c0_17], %20 {strides = array<i32>} : memref<32x256xf32, #tpu.memory_space<vmem>>, vector<32x256xf32>,
    } else {
    }
    %c0 = arith.constant 0 : index
    %c0_1 = arith.constant 0 : index
    %3 = vector.load %arg2[%c0, %c0_1] : memref<32x256xbf16, #tpu.memory_space<vmem>>, vector<32x256xbf16>
    %c0_2 = arith.constant 0 : index
    %c0_3 = arith.constant 0 : index
    %4 = vector.load %arg3[%c0_2, %c0_3] : memref<256x256xbf16, #tpu.memory_space<vmem>>, vector<256x256xbf16>
    %cst = arith.constant dense<0.000000e+00> : vector<32x256xf32>
    %5 = tpu.matmul %3, %4, %cst {dimension_numbers = #tpu.dot_dimension_numbers<[1], [0], [0], [1], [0, 0, 1, 1], [], []>} : vector<32x256xbf16>, vector<256x256xbf16>, vector<32x256xf32> -> vector<32x256xf32>
    %c0_4 = arith.constant 0 : index
    %c0_5 = arith.constant 0 : index
    %6 = vector.load %arg4[%c0_4, %c0_5] : memref<1x256xf32, #tpu.memory_space<vmem>>, vector<1x256xf32>
    %7 = vector.broadcast %6 : vector<1x256xf32> to vector<32x256xf32>
    %8 = arith.addf %5, %7 : vector<32x256xf32>
    %cst_6 = arith.constant 0.000000e+00 : f32
    %9 = vector.broadcast %cst_6 : f32 to vector<32x256xf32>
    %10 = arith.maximumf %8, %9 : vector<32x256xf32>
    %11 = arith.truncf %10 : vector<32x256xf32> to vector<32x256xbf16>
    %c0_7 = arith.constant 0 : index
    %c0_8 = arith.constant 0 : index
    %12 = vector.load %arg11[%c0_7, %c0_8] : memref<32x256xf32, #tpu.memory_space<vmem>>, vector<32x256xf32>
    %c0_9 = arith.constant 0 : index
    %c0_10 = arith.constant 0 : index
    %13 = vector.load %arg5[%c0_9, %c0_10] : memref<256x256xbf16, #tpu.memory_space<vmem>>, vector<256x256xbf16>
    %cst_11 = arith.constant dense<0.000000e+00> : vector<32x256xf32>
    %14 = tpu.matmul %11, %13, %cst_11 {dimension_numbers = #tpu.dot_dimension_numbers<[1], [0], [0], [1], [0, 0, 1, 1], [], []>} : vector<32x256xbf16>, vector<256x256xbf16>, vector<32x256xf32> -> vector<32x256xf32>
    %15 = arith.addf %12, %14 : vector<32x256xf32>
    %c0_12 = arith.constant 0 : index
    %c0_13 = arith.constant 0 : index
    %16 = vector.load %arg11[%c0_12, %c0_13] : memref<32x256xf32, #tpu.memory_space<vmem>>, vector<32x256xf32>
    tpu.vector_store %arg11[%c0_12, %c0_13], %15 {strides = array<i32>} : memref<32x256xf32, #tpu.memory_space<vmem>>, vector<32x256xf32>,
    %c1_i32 = arith.constant 1 : i32
    %17 = arith.cmpi eq, %arg1, %c1_i32 : i32
    %18 = arith.extui %17 : i1 to i32
    %c0_i32_14 = arith.constant 0 : i32
    %19 = arith.cmpi ne, %18, %c0_i32_14 : i32
    scf.if %19 {
      %c0_15 = arith.constant 0 : index
      %c0_16 = arith.constant 0 : index
      %20 = vector.load %arg11[%c0_15, %c0_16] : memref<32x256xf32, #tpu.memory_space<vmem>>, vector<32x256xf32>
      %c0_17 = arith.constant 0 : index
      %c0_18 = arith.constant 0 : index
      %21 = vector.load %arg6[%c0_17, %c0_18] : memref<1x256xf32, #tpu.memory_space<vmem>>, vector<1x256xf32>
      %22 = vector.broadcast %21 : vector<1x256xf32> to vector<32x256xf32>
      %23 = arith.addf %20, %22 : vector<32x256xf32>
      %c0_19 = arith.constant 0 : index
      %c0_20 = arith.constant 0 : index
      %24 = vector.load %arg7[%c0_19, %c0_20] : memref<32x256xbf16, #tpu.memory_space<vmem>>, vector<32x256xbf16>
      %25 = arith.extf %24 : vector<32x256xbf16> to vector<32x256xf32>
      %26 = arith.addf %23, %25 : vector<32x256xf32>
      %cst_21 = arith.constant dense<0.000000e+00> : vector<32xf32>
      %27 = vector.multi_reduction <add>, %26, %cst_21 [1] : vector<32x256xf32> to vector<32xf32>
      %28 = vector.shape_cast %27 : vector<32xf32> to vector<32x1xf32>
      %29 = arith.mulf %26, %26 : vector<32x256xf32>
      %cst_22 = arith.constant dense<0.000000e+00> : vector<32xf32>
      %30 = vector.multi_reduction <add>, %29, %cst_22 [1] : vector<32x256xf32> to vector<32xf32>
      %31 = vector.shape_cast %30 : vector<32xf32> to vector<32x1xf32>
      %cst_23 = arith.constant 3.906250e-03 : f32
      %32 = vector.broadcast %cst_23 : f32 to vector<32x1xf32>
      %33 = arith.mulf %28, %32 : vector<32x1xf32>
      %cst_24 = arith.constant 3.906250e-03 : f32
      %34 = vector.broadcast %cst_24 : f32 to vector<32x1xf32>
      %35 = arith.mulf %31, %34 : vector<32x1xf32>
      %36 = arith.mulf %33, %33 : vector<32x1xf32>
      %37 = arith.subf %35, %36 : vector<32x1xf32>
      %cst_25 = arith.constant 0.000000e+00 : f32
      %38 = vector.broadcast %cst_25 : f32 to vector<32x1xf32>
      %39 = arith.maximumf %37, %38 : vector<32x1xf32>
      %40 = vector.broadcast %33 : vector<32x1xf32> to vector<32x256xf32>
      %41 = arith.subf %26, %40 : vector<32x256xf32>
      %cst_26 = arith.constant 9.99999974E-6 : f32
      %42 = vector.broadcast %cst_26 : f32 to vector<32x1xf32>
      %43 = arith.addf %39, %42 : vector<32x1xf32>
      %44 = math.rsqrt %43 : vector<32x1xf32>
      %45 = vector.broadcast %44 : vector<32x1xf32> to vector<32x256xf32>
      %46 = arith.mulf %41, %45 : vector<32x256xf32>
      %c0_27 = arith.constant 0 : index
      %c0_28 = arith.constant 0 : index
      %47 = vector.load %arg8[%c0_27, %c0_28] : memref<1x256xf32, #tpu.memory_space<vmem>>, vector<1x256xf32>
      %48 = vector.broadcast %47 : vector<1x256xf32> to vector<32x256xf32>
      %49 = arith.mulf %46, %48 : vector<32x256xf32>
      %c0_29 = arith.constant 0 : index
      %c0_30 = arith.constant 0 : index
      %50 = vector.load %arg9[%c0_29, %c0_30] : memref<1x256xf32, #tpu.memory_space<vmem>>, vector<1x256xf32>
      %51 = vector.broadcast %50 : vector<1x256xf32> to vector<32x256xf32>
      %52 = arith.addf %49, %51 : vector<32x256xf32>
      %53 = arith.truncf %52 : vector<32x256xf32> to vector<32x256xbf16>
      %c0_31 = arith.constant 0 : index
      %c0_32 = arith.constant 0 : index
      %54 = vector.load %arg10[%c0_31, %c0_32] : memref<32x256xbf16, #tpu.memory_space<vmem>>, vector<32x256xbf16>
      tpu.vector_store %arg10[%c0_31, %c0_32], %53 {strides = array<i32>} : memref<32x256xbf16, #tpu.memory_space<vmem>>, vector<32x256xbf16>,
    } else {
    }
    return
  }
  func.func @transform_0(%arg0: i32, %arg1: i32) -> (i32, i32) {
    %c0_i32 = arith.constant 0 : i32
    %c0_i32_0 = arith.constant 0 : i32
    return %arg0, %c0_i32 : i32, i32
  }
  func.func @transform_1(%arg0: i32, %arg1: i32) -> (i32, i32) {
    %c0_i32 = arith.constant 0 : i32
    %c0_i32_0 = arith.constant 0 : i32
    return %c0_i32, %arg1 : i32, i32
  }
  func.func @transform_2(%arg0: i32, %arg1: i32) -> (i32, i32) {
    %c0_i32 = arith.constant 0 : i32
    %c0_i32_0 = arith.constant 0 : i32
    return %c0_i32, %arg1 : i32, i32
  }
  func.func @transform_3(%arg0: i32, %arg1: i32) -> (i32, i32) {
    %c0_i32 = arith.constant 0 : i32
    %c0_i32_0 = arith.constant 0 : i32
    return %arg1, %c0_i32 : i32, i32
  }
  func.func @transform_4(%arg0: i32, %arg1: i32) -> (i32, i32) {
    %c0_i32 = arith.constant 0 : i32
    %c0_i32_0 = arith.constant 0 : i32
    %c0_i32_1 = arith.constant 0 : i32
    return %c0_i32, %c0_i32_0 : i32, i32
  }
  func.func @transform_5(%arg0: i32, %arg1: i32) -> (i32, i32) {
    %c0_i32 = arith.constant 0 : i32
    %c0_i32_0 = arith.constant 0 : i32
    return %arg0, %c0_i32 : i32, i32
  }
  func.func @transform_6(%arg0: i32, %arg1: i32) -> (i32, i32) {
    %c0_i32 = arith.constant 0 : i32
    %c0_i32_0 = arith.constant 0 : i32
    %c0_i32_1 = arith.constant 0 : i32
    return %c0_i32, %c0_i32_0 : i32, i32
  }
  func.func @transform_7(%arg0: i32, %arg1: i32) -> (i32, i32) {
    %c0_i32 = arith.constant 0 : i32
    %c0_i32_0 = arith.constant 0 : i32
    %c0_i32_1 = arith.constant 0 : i32
    return %c0_i32, %c0_i32_0 : i32, i32
  }
  func.func @transform_8(%arg0: i32, %arg1: i32) -> (i32, i32) {
    %c0_i32 = arith.constant 0 : i32
    %c0_i32_0 = arith.constant 0 : i32
    return %arg0, %c0_i32 : i32, i32
  }
}

module attributes {stable_mosaic.version = 11 : i64} {
  func.func @_matmul_bias_kernel(%arg0: i32, %arg1: i32, %arg2: i32, %arg3: memref<32x256xbf16, #tpu.memory_space<vmem>>, %arg4: memref<256x384xbf16, #tpu.memory_space<vmem>>, %arg5: memref<1x384xf32, #tpu.memory_space<vmem>>, %arg6: memref<32x384xbf16, #tpu.memory_space<vmem>>, %arg7: memref<32x384xf32, #tpu.memory_space<vmem>>) attributes {dimension_semantics = [#tpu.dimension_semantics<parallel>, #tpu.dimension_semantics<parallel>, #tpu.dimension_semantics<arbitrary>], iteration_bounds = array<i64: 1, 2, 1>, scalar_prefetch = 0 : i64, scratch_operands = 1 : i64, tpu.core_type = #tpu.core_type<tc>, window_params = [{transform_indices = @transform_0, window_bounds = array<i64: 32, 256>}, {transform_indices = @transform_1, window_bounds = array<i64: 256, 384>}, {transform_indices = @transform_2, window_bounds = array<i64: 1, 384>}, {transform_indices = @transform_3, window_bounds = array<i64: 32, 384>}]} {
    %c0_i32 = arith.constant 0 : i32
    %0 = arith.cmpi eq, %arg2, %c0_i32 : i32
    %1 = arith.extui %0 : i1 to i32
    %c0_i32_0 = arith.constant 0 : i32
    %2 = arith.cmpi ne, %1, %c0_i32_0 : i32
    scf.if %2 {
      %cst_10 = arith.constant 0.000000e+00 : f32
      %12 = vector.broadcast %cst_10 : f32 to vector<32x384xf32>
      %c0_11 = arith.constant 0 : index
      %c0_12 = arith.constant 0 : index
      %13 = vector.load %arg7[%c0_11, %c0_12] : memref<32x384xf32, #tpu.memory_space<vmem>>, vector<32x384xf32>
      tpu.vector_store %arg7[%c0_11, %c0_12], %12 {strides = array<i32>} : memref<32x384xf32, #tpu.memory_space<vmem>>, vector<32x384xf32>,
    } else {
    }
    %c0 = arith.constant 0 : index
    %c0_1 = arith.constant 0 : index
    %3 = vector.load %arg7[%c0, %c0_1] : memref<32x384xf32, #tpu.memory_space<vmem>>, vector<32x384xf32>
    %c0_2 = arith.constant 0 : index
    %c0_3 = arith.constant 0 : index
    %4 = vector.load %arg3[%c0_2, %c0_3] : memref<32x256xbf16, #tpu.memory_space<vmem>>, vector<32x256xbf16>
    %c0_4 = arith.constant 0 : index
    %c0_5 = arith.constant 0 : index
    %5 = vector.load %arg4[%c0_4, %c0_5] : memref<256x384xbf16, #tpu.memory_space<vmem>>, vector<256x384xbf16>
    %cst = arith.constant dense<0.000000e+00> : vector<32x384xf32>
    %6 = tpu.matmul %4, %5, %cst {dimension_numbers = #tpu.dot_dimension_numbers<[1], [0], [0], [1], [0, 0, 1, 1], [], []>} : vector<32x256xbf16>, vector<256x384xbf16>, vector<32x384xf32> -> vector<32x384xf32>
    %7 = arith.addf %3, %6 : vector<32x384xf32>
    %c0_6 = arith.constant 0 : index
    %c0_7 = arith.constant 0 : index
    %8 = vector.load %arg7[%c0_6, %c0_7] : memref<32x384xf32, #tpu.memory_space<vmem>>, vector<32x384xf32>
    tpu.vector_store %arg7[%c0_6, %c0_7], %7 {strides = array<i32>} : memref<32x384xf32, #tpu.memory_space<vmem>>, vector<32x384xf32>,
    %c0_i32_8 = arith.constant 0 : i32
    %9 = arith.cmpi eq, %arg2, %c0_i32_8 : i32
    %10 = arith.extui %9 : i1 to i32
    %c0_i32_9 = arith.constant 0 : i32
    %11 = arith.cmpi ne, %10, %c0_i32_9 : i32
    scf.if %11 {
      %c0_10 = arith.constant 0 : index
      %c0_11 = arith.constant 0 : index
      %12 = vector.load %arg7[%c0_10, %c0_11] : memref<32x384xf32, #tpu.memory_space<vmem>>, vector<32x384xf32>
      %c0_12 = arith.constant 0 : index
      %c0_13 = arith.constant 0 : index
      %13 = vector.load %arg5[%c0_12, %c0_13] : memref<1x384xf32, #tpu.memory_space<vmem>>, vector<1x384xf32>
      %14 = vector.broadcast %13 : vector<1x384xf32> to vector<32x384xf32>
      %15 = arith.addf %12, %14 : vector<32x384xf32>
      %16 = arith.truncf %15 : vector<32x384xf32> to vector<32x384xbf16>
      %c0_14 = arith.constant 0 : index
      %c0_15 = arith.constant 0 : index
      %17 = vector.load %arg6[%c0_14, %c0_15] : memref<32x384xbf16, #tpu.memory_space<vmem>>, vector<32x384xbf16>
      tpu.vector_store %arg6[%c0_14, %c0_15], %16 {strides = array<i32>} : memref<32x384xbf16, #tpu.memory_space<vmem>>, vector<32x384xbf16>,
    } else {
    }
    return
  }
  func.func @transform_0(%arg0: i32, %arg1: i32, %arg2: i32) -> (i32, i32) {
    %c0_i32 = arith.constant 0 : i32
    return %arg0, %arg2 : i32, i32
  }
  func.func @transform_1(%arg0: i32, %arg1: i32, %arg2: i32) -> (i32, i32) {
    %c0_i32 = arith.constant 0 : i32
    return %arg2, %arg1 : i32, i32
  }
  func.func @transform_2(%arg0: i32, %arg1: i32, %arg2: i32) -> (i32, i32) {
    %c0_i32 = arith.constant 0 : i32
    %c0_i32_0 = arith.constant 0 : i32
    return %c0_i32, %arg1 : i32, i32
  }
  func.func @transform_3(%arg0: i32, %arg1: i32, %arg2: i32) -> (i32, i32) {
    %c0_i32 = arith.constant 0 : i32
    return %arg0, %arg1 : i32, i32
  }
}

module attributes {stable_mosaic.version = 11 : i64} {
  func.func @_matmul_res_ln_kernel(%arg0: i32, %arg1: i32, %arg2: memref<32x256xbf16, #tpu.memory_space<vmem>>, %arg3: memref<256x256xbf16, #tpu.memory_space<vmem>>, %arg4: memref<1x256xf32, #tpu.memory_space<vmem>>, %arg5: memref<32x256xbf16, #tpu.memory_space<vmem>>, %arg6: memref<1x256xf32, #tpu.memory_space<vmem>>, %arg7: memref<1x256xf32, #tpu.memory_space<vmem>>, %arg8: memref<32x256xbf16, #tpu.memory_space<vmem>>, %arg9: memref<32x256xf32, #tpu.memory_space<vmem>>) attributes {dimension_semantics = [#tpu.dimension_semantics<parallel>, #tpu.dimension_semantics<arbitrary>], iteration_bounds = array<i64: 1, 1>, scalar_prefetch = 0 : i64, scratch_operands = 1 : i64, tpu.core_type = #tpu.core_type<tc>, window_params = [{transform_indices = @transform_0, window_bounds = array<i64: 32, 256>}, {transform_indices = @transform_1, window_bounds = array<i64: 256, 256>}, {pipeline_mode = #tpu.pipeline_mode<synchronous>, transform_indices = @transform_2, window_bounds = array<i64: 1, 256>}, {transform_indices = @transform_3, window_bounds = array<i64: 32, 256>}, {pipeline_mode = #tpu.pipeline_mode<synchronous>, transform_indices = @transform_4, window_bounds = array<i64: 1, 256>}, {pipeline_mode = #tpu.pipeline_mode<synchronous>, transform_indices = @transform_5, window_bounds = array<i64: 1, 256>}, {transform_indices = @transform_6, window_bounds = array<i64: 32, 256>}]} {
    %c0_i32 = arith.constant 0 : i32
    %0 = arith.cmpi eq, %arg1, %c0_i32 : i32
    %1 = arith.extui %0 : i1 to i32
    %c0_i32_0 = arith.constant 0 : i32
    %2 = arith.cmpi ne, %1, %c0_i32_0 : i32
    scf.if %2 {
      %cst_10 = arith.constant 0.000000e+00 : f32
      %12 = vector.broadcast %cst_10 : f32 to vector<32x256xf32>
      %c0_11 = arith.constant 0 : index
      %c0_12 = arith.constant 0 : index
      %13 = vector.load %arg9[%c0_11, %c0_12] : memref<32x256xf32, #tpu.memory_space<vmem>>, vector<32x256xf32>
      tpu.vector_store %arg9[%c0_11, %c0_12], %12 {strides = array<i32>} : memref<32x256xf32, #tpu.memory_space<vmem>>, vector<32x256xf32>,
    } else {
    }
    %c0 = arith.constant 0 : index
    %c0_1 = arith.constant 0 : index
    %3 = vector.load %arg9[%c0, %c0_1] : memref<32x256xf32, #tpu.memory_space<vmem>>, vector<32x256xf32>
    %c0_2 = arith.constant 0 : index
    %c0_3 = arith.constant 0 : index
    %4 = vector.load %arg2[%c0_2, %c0_3] : memref<32x256xbf16, #tpu.memory_space<vmem>>, vector<32x256xbf16>
    %c0_4 = arith.constant 0 : index
    %c0_5 = arith.constant 0 : index
    %5 = vector.load %arg3[%c0_4, %c0_5] : memref<256x256xbf16, #tpu.memory_space<vmem>>, vector<256x256xbf16>
    %cst = arith.constant dense<0.000000e+00> : vector<32x256xf32>
    %6 = tpu.matmul %4, %5, %cst {dimension_numbers = #tpu.dot_dimension_numbers<[1], [0], [0], [1], [0, 0, 1, 1], [], []>} : vector<32x256xbf16>, vector<256x256xbf16>, vector<32x256xf32> -> vector<32x256xf32>
    %7 = arith.addf %3, %6 : vector<32x256xf32>
    %c0_6 = arith.constant 0 : index
    %c0_7 = arith.constant 0 : index
    %8 = vector.load %arg9[%c0_6, %c0_7] : memref<32x256xf32, #tpu.memory_space<vmem>>, vector<32x256xf32>
    tpu.vector_store %arg9[%c0_6, %c0_7], %7 {strides = array<i32>} : memref<32x256xf32, #tpu.memory_space<vmem>>, vector<32x256xf32>,
    %c0_i32_8 = arith.constant 0 : i32
    %9 = arith.cmpi eq, %arg1, %c0_i32_8 : i32
    %10 = arith.extui %9 : i1 to i32
    %c0_i32_9 = arith.constant 0 : i32
    %11 = arith.cmpi ne, %10, %c0_i32_9 : i32
    scf.if %11 {
      %c0_10 = arith.constant 0 : index
      %c0_11 = arith.constant 0 : index
      %12 = vector.load %arg9[%c0_10, %c0_11] : memref<32x256xf32, #tpu.memory_space<vmem>>, vector<32x256xf32>
      %c0_12 = arith.constant 0 : index
      %c0_13 = arith.constant 0 : index
      %13 = vector.load %arg4[%c0_12, %c0_13] : memref<1x256xf32, #tpu.memory_space<vmem>>, vector<1x256xf32>
      %14 = vector.broadcast %13 : vector<1x256xf32> to vector<32x256xf32>
      %15 = arith.addf %12, %14 : vector<32x256xf32>
      %c0_14 = arith.constant 0 : index
      %c0_15 = arith.constant 0 : index
      %16 = vector.load %arg5[%c0_14, %c0_15] : memref<32x256xbf16, #tpu.memory_space<vmem>>, vector<32x256xbf16>
      %17 = arith.extf %16 : vector<32x256xbf16> to vector<32x256xf32>
      %18 = arith.addf %15, %17 : vector<32x256xf32>
      %cst_16 = arith.constant dense<0.000000e+00> : vector<32xf32>
      %19 = vector.multi_reduction <add>, %18, %cst_16 [1] : vector<32x256xf32> to vector<32xf32>
      %20 = vector.shape_cast %19 : vector<32xf32> to vector<32x1xf32>
      %21 = arith.mulf %18, %18 : vector<32x256xf32>
      %cst_17 = arith.constant dense<0.000000e+00> : vector<32xf32>
      %22 = vector.multi_reduction <add>, %21, %cst_17 [1] : vector<32x256xf32> to vector<32xf32>
      %23 = vector.shape_cast %22 : vector<32xf32> to vector<32x1xf32>
      %cst_18 = arith.constant 3.906250e-03 : f32
      %24 = vector.broadcast %cst_18 : f32 to vector<32x1xf32>
      %25 = arith.mulf %20, %24 : vector<32x1xf32>
      %cst_19 = arith.constant 3.906250e-03 : f32
      %26 = vector.broadcast %cst_19 : f32 to vector<32x1xf32>
      %27 = arith.mulf %23, %26 : vector<32x1xf32>
      %28 = arith.mulf %25, %25 : vector<32x1xf32>
      %29 = arith.subf %27, %28 : vector<32x1xf32>
      %cst_20 = arith.constant 0.000000e+00 : f32
      %30 = vector.broadcast %cst_20 : f32 to vector<32x1xf32>
      %31 = arith.maximumf %29, %30 : vector<32x1xf32>
      %32 = vector.broadcast %25 : vector<32x1xf32> to vector<32x256xf32>
      %33 = arith.subf %18, %32 : vector<32x256xf32>
      %cst_21 = arith.constant 9.99999974E-6 : f32
      %34 = vector.broadcast %cst_21 : f32 to vector<32x1xf32>
      %35 = arith.addf %31, %34 : vector<32x1xf32>
      %36 = math.rsqrt %35 : vector<32x1xf32>
      %37 = vector.broadcast %36 : vector<32x1xf32> to vector<32x256xf32>
      %38 = arith.mulf %33, %37 : vector<32x256xf32>
      %c0_22 = arith.constant 0 : index
      %c0_23 = arith.constant 0 : index
      %39 = vector.load %arg6[%c0_22, %c0_23] : memref<1x256xf32, #tpu.memory_space<vmem>>, vector<1x256xf32>
      %40 = vector.broadcast %39 : vector<1x256xf32> to vector<32x256xf32>
      %41 = arith.mulf %38, %40 : vector<32x256xf32>
      %c0_24 = arith.constant 0 : index
      %c0_25 = arith.constant 0 : index
      %42 = vector.load %arg7[%c0_24, %c0_25] : memref<1x256xf32, #tpu.memory_space<vmem>>, vector<1x256xf32>
      %43 = vector.broadcast %42 : vector<1x256xf32> to vector<32x256xf32>
      %44 = arith.addf %41, %43 : vector<32x256xf32>
      %45 = arith.truncf %44 : vector<32x256xf32> to vector<32x256xbf16>
      %c0_26 = arith.constant 0 : index
      %c0_27 = arith.constant 0 : index
      %46 = vector.load %arg8[%c0_26, %c0_27] : memref<32x256xbf16, #tpu.memory_space<vmem>>, vector<32x256xbf16>
      tpu.vector_store %arg8[%c0_26, %c0_27], %45 {strides = array<i32>} : memref<32x256xbf16, #tpu.memory_space<vmem>>, vector<32x256xbf16>,
    } else {
    }
    return
  }
  func.func @transform_0(%arg0: i32, %arg1: i32) -> (i32, i32) {
    %c0_i32 = arith.constant 0 : i32
    return %arg0, %arg1 : i32, i32
  }
  func.func @transform_1(%arg0: i32, %arg1: i32) -> (i32, i32) {
    %c0_i32 = arith.constant 0 : i32
    %c0_i32_0 = arith.constant 0 : i32
    return %arg1, %c0_i32 : i32, i32
  }
  func.func @transform_2(%arg0: i32, %arg1: i32) -> (i32, i32) {
    %c0_i32 = arith.constant 0 : i32
    %c0_i32_0 = arith.constant 0 : i32
    %c0_i32_1 = arith.constant 0 : i32
    return %c0_i32, %c0_i32_0 : i32, i32
  }
  func.func @transform_3(%arg0: i32, %arg1: i32) -> (i32, i32) {
    %c0_i32 = arith.constant 0 : i32
    %c0_i32_0 = arith.constant 0 : i32
    return %arg0, %c0_i32 : i32, i32
  }
  func.func @transform_4(%arg0: i32, %arg1: i32) -> (i32, i32) {
    %c0_i32 = arith.constant 0 : i32
    %c0_i32_0 = arith.constant 0 : i32
    %c0_i32_1 = arith.constant 0 : i32
    return %c0_i32, %c0_i32_0 : i32, i32
  }
  func.func @transform_5(%arg0: i32, %arg1: i32) -> (i32, i32) {
    %c0_i32 = arith.constant 0 : i32
    %c0_i32_0 = arith.constant 0 : i32
    %c0_i32_1 = arith.constant 0 : i32
    return %c0_i32, %c0_i32_0 : i32, i32
  }
  func.func @transform_6(%arg0: i32, %arg1: i32) -> (i32, i32) {
    %c0_i32 = arith.constant 0 : i32
    %c0_i32_0 = arith.constant 0 : i32
    return %arg0, %c0_i32 : i32, i32
  }
}

module attributes {stable_mosaic.version = 11 : i64} {
  func.func @_matmul_bias_kernel(%arg0: i32, %arg1: i32, %arg2: i32, %arg3: memref<32x256xbf16, #tpu.memory_space<vmem>>, %arg4: memref<256x512xbf16, #tpu.memory_space<vmem>>, %arg5: memref<1x512xf32, #tpu.memory_space<vmem>>, %arg6: memref<32x512xbf16, #tpu.memory_space<vmem>>, %arg7: memref<32x512xf32, #tpu.memory_space<vmem>>) attributes {dimension_semantics = [#tpu.dimension_semantics<parallel>, #tpu.dimension_semantics<parallel>, #tpu.dimension_semantics<arbitrary>], iteration_bounds = array<i64: 1, 1, 1>, scalar_prefetch = 0 : i64, scratch_operands = 1 : i64, tpu.core_type = #tpu.core_type<tc>, window_params = [{transform_indices = @transform_0, window_bounds = array<i64: 32, 256>}, {transform_indices = @transform_1, window_bounds = array<i64: 256, 512>}, {transform_indices = @transform_2, window_bounds = array<i64: 1, 512>}, {transform_indices = @transform_3, window_bounds = array<i64: 32, 512>}]} {
    %c0_i32 = arith.constant 0 : i32
    %0 = arith.cmpi eq, %arg2, %c0_i32 : i32
    %1 = arith.extui %0 : i1 to i32
    %c0_i32_0 = arith.constant 0 : i32
    %2 = arith.cmpi ne, %1, %c0_i32_0 : i32
    scf.if %2 {
      %cst_10 = arith.constant 0.000000e+00 : f32
      %12 = vector.broadcast %cst_10 : f32 to vector<32x512xf32>
      %c0_11 = arith.constant 0 : index
      %c0_12 = arith.constant 0 : index
      %13 = vector.load %arg7[%c0_11, %c0_12] : memref<32x512xf32, #tpu.memory_space<vmem>>, vector<32x512xf32>
      tpu.vector_store %arg7[%c0_11, %c0_12], %12 {strides = array<i32>} : memref<32x512xf32, #tpu.memory_space<vmem>>, vector<32x512xf32>,
    } else {
    }
    %c0 = arith.constant 0 : index
    %c0_1 = arith.constant 0 : index
    %3 = vector.load %arg7[%c0, %c0_1] : memref<32x512xf32, #tpu.memory_space<vmem>>, vector<32x512xf32>
    %c0_2 = arith.constant 0 : index
    %c0_3 = arith.constant 0 : index
    %4 = vector.load %arg3[%c0_2, %c0_3] : memref<32x256xbf16, #tpu.memory_space<vmem>>, vector<32x256xbf16>
    %c0_4 = arith.constant 0 : index
    %c0_5 = arith.constant 0 : index
    %5 = vector.load %arg4[%c0_4, %c0_5] : memref<256x512xbf16, #tpu.memory_space<vmem>>, vector<256x512xbf16>
    %cst = arith.constant dense<0.000000e+00> : vector<32x512xf32>
    %6 = tpu.matmul %4, %5, %cst {dimension_numbers = #tpu.dot_dimension_numbers<[1], [0], [0], [1], [0, 0, 1, 1], [], []>} : vector<32x256xbf16>, vector<256x512xbf16>, vector<32x512xf32> -> vector<32x512xf32>
    %7 = arith.addf %3, %6 : vector<32x512xf32>
    %c0_6 = arith.constant 0 : index
    %c0_7 = arith.constant 0 : index
    %8 = vector.load %arg7[%c0_6, %c0_7] : memref<32x512xf32, #tpu.memory_space<vmem>>, vector<32x512xf32>
    tpu.vector_store %arg7[%c0_6, %c0_7], %7 {strides = array<i32>} : memref<32x512xf32, #tpu.memory_space<vmem>>, vector<32x512xf32>,
    %c0_i32_8 = arith.constant 0 : i32
    %9 = arith.cmpi eq, %arg2, %c0_i32_8 : i32
    %10 = arith.extui %9 : i1 to i32
    %c0_i32_9 = arith.constant 0 : i32
    %11 = arith.cmpi ne, %10, %c0_i32_9 : i32
    scf.if %11 {
      %c0_10 = arith.constant 0 : index
      %c0_11 = arith.constant 0 : index
      %12 = vector.load %arg7[%c0_10, %c0_11] : memref<32x512xf32, #tpu.memory_space<vmem>>, vector<32x512xf32>
      %c0_12 = arith.constant 0 : index
      %c0_13 = arith.constant 0 : index
      %13 = vector.load %arg5[%c0_12, %c0_13] : memref<1x512xf32, #tpu.memory_space<vmem>>, vector<1x512xf32>
      %14 = vector.broadcast %13 : vector<1x512xf32> to vector<32x512xf32>
      %15 = arith.addf %12, %14 : vector<32x512xf32>
      %16 = arith.truncf %15 : vector<32x512xf32> to vector<32x512xbf16>
      %c0_14 = arith.constant 0 : index
      %c0_15 = arith.constant 0 : index
      %17 = vector.load %arg6[%c0_14, %c0_15] : memref<32x512xbf16, #tpu.memory_space<vmem>>, vector<32x512xbf16>
      tpu.vector_store %arg6[%c0_14, %c0_15], %16 {strides = array<i32>} : memref<32x512xbf16, #tpu.memory_space<vmem>>, vector<32x512xbf16>,
    } else {
    }
    return
  }
  func.func @transform_0(%arg0: i32, %arg1: i32, %arg2: i32) -> (i32, i32) {
    %c0_i32 = arith.constant 0 : i32
    return %arg0, %arg2 : i32, i32
  }
  func.func @transform_1(%arg0: i32, %arg1: i32, %arg2: i32) -> (i32, i32) {
    %c0_i32 = arith.constant 0 : i32
    return %arg2, %arg1 : i32, i32
  }
  func.func @transform_2(%arg0: i32, %arg1: i32, %arg2: i32) -> (i32, i32) {
    %c0_i32 = arith.constant 0 : i32
    %c0_i32_0 = arith.constant 0 : i32
    return %c0_i32, %arg1 : i32, i32
  }
  func.func @transform_3(%arg0: i32, %arg1: i32, %arg2: i32) -> (i32, i32) {
    %c0_i32 = arith.constant 0 : i32
    return %arg0, %arg1 : i32, i32
  }
}

module attributes {stable_mosaic.version = 11 : i64} {
  func.func @_attn_kernel(%arg0: i32, %arg1: i32, %arg2: memref<1x16x256xbf16, #tpu.memory_space<vmem>>, %arg3: memref<1x16x256xbf16, #tpu.memory_space<vmem>>, %arg4: memref<1x16x256xbf16, #tpu.memory_space<vmem>>, %arg5: memref<16x16xbf16, #tpu.memory_space<vmem>>, %arg6: memref<1x1x16xf32, #tpu.memory_space<vmem>>, %arg7: memref<1x16x256xbf16, #tpu.memory_space<vmem>>, %arg8: memref<2x16x1xf32, #tpu.memory_space<vmem>>, %arg9: memref<2x16x1xf32, #tpu.memory_space<vmem>>, %arg10: memref<2x16x128xf32, #tpu.memory_space<vmem>>) attributes {dimension_semantics = [#tpu.dimension_semantics<parallel>, #tpu.dimension_semantics<arbitrary>], iteration_bounds = array<i64: 2, 1>, scalar_prefetch = 0 : i64, scratch_operands = 3 : i64, tpu.core_type = #tpu.core_type<tc>, window_params = [{transform_indices = @transform_0, window_bounds = array<i64: 1, 16, 256>}, {transform_indices = @transform_1, window_bounds = array<i64: 1, 16, 256>}, {transform_indices = @transform_2, window_bounds = array<i64: 1, 16, 256>}, {transform_indices = @transform_3, window_bounds = array<i64: 16, 16>}, {transform_indices = @transform_4, window_bounds = array<i64: 1, 1, 16>}, {transform_indices = @transform_5, window_bounds = array<i64: 1, 16, 256>}]} {
    %c0_i32 = arith.constant 0 : i32
    %0 = arith.cmpi eq, %arg1, %c0_i32 : i32
    %1 = arith.extui %0 : i1 to i32
    %c0_i32_0 = arith.constant 0 : i32
    %2 = arith.cmpi ne, %1, %c0_i32_0 : i32
    scf.if %2 {
      %cst_58 = arith.constant -1.000000e+30 : f32
      %92 = vector.broadcast %cst_58 : f32 to vector<2x16x1xf32>
      %c0_59 = arith.constant 0 : index
      %c0_60 = arith.constant 0 : index
      %c0_61 = arith.constant 0 : index
      %93 = vector.load %arg8[%c0_59, %c0_60, %c0_61] : memref<2x16x1xf32, #tpu.memory_space<vmem>>, vector<2x16x1xf32>
      tpu.vector_store %arg8[%c0_59, %c0_60, %c0_61], %92 {strides = array<i32>} : memref<2x16x1xf32, #tpu.memory_space<vmem>>, vector<2x16x1xf32>,
      %cst_62 = arith.constant 0.000000e+00 : f32
      %94 = vector.broadcast %cst_62 : f32 to vector<2x16x1xf32>
      %c0_63 = arith.constant 0 : index
      %c0_64 = arith.constant 0 : index
      %c0_65 = arith.constant 0 : index
      %95 = vector.load %arg9[%c0_63, %c0_64, %c0_65] : memref<2x16x1xf32, #tpu.memory_space<vmem>>, vector<2x16x1xf32>
      tpu.vector_store %arg9[%c0_63, %c0_64, %c0_65], %94 {strides = array<i32>} : memref<2x16x1xf32, #tpu.memory_space<vmem>>, vector<2x16x1xf32>,
      %cst_66 = arith.constant 0.000000e+00 : f32
      %96 = vector.broadcast %cst_66 : f32 to vector<2x16x128xf32>
      %c0_67 = arith.constant 0 : index
      %c0_68 = arith.constant 0 : index
      %c0_69 = arith.constant 0 : index
      %97 = vector.load %arg10[%c0_67, %c0_68, %c0_69] : memref<2x16x128xf32, #tpu.memory_space<vmem>>, vector<2x16x128xf32>
      tpu.vector_store %arg10[%c0_67, %c0_68, %c0_69], %96 {strides = array<i32>} : memref<2x16x128xf32, #tpu.memory_space<vmem>>, vector<2x16x128xf32>,
    } else {
    }
    %c0 = arith.constant 0 : index
    %c0_1 = arith.constant 0 : index
    %c0_2 = arith.constant 0 : index
    %3 = vector.load %arg2[%c0, %c0_1, %c0_2] : memref<1x16x256xbf16, #tpu.memory_space<vmem>>, vector<1x16x256xbf16>
    %4 = vector.shape_cast %3 : vector<1x16x256xbf16> to vector<16x256xbf16>
    %c0_3 = arith.constant 0 : index
    %c0_4 = arith.constant 0 : index
    %c0_5 = arith.constant 0 : index
    %5 = vector.load %arg3[%c0_3, %c0_4, %c0_5] : memref<1x16x256xbf16, #tpu.memory_space<vmem>>, vector<1x16x256xbf16>
    %6 = vector.shape_cast %5 : vector<1x16x256xbf16> to vector<16x256xbf16>
    %c0_6 = arith.constant 0 : index
    %c0_7 = arith.constant 0 : index
    %c0_8 = arith.constant 0 : index
    %7 = vector.load %arg4[%c0_6, %c0_7, %c0_8] : memref<1x16x256xbf16, #tpu.memory_space<vmem>>, vector<1x16x256xbf16>
    %8 = vector.shape_cast %7 : vector<1x16x256xbf16> to vector<16x256xbf16>
    %c0_9 = arith.constant 0 : index
    %c0_10 = arith.constant 0 : index
    %9 = vector.load %arg5[%c0_9, %c0_10] : memref<16x16xbf16, #tpu.memory_space<vmem>>, vector<16x16xbf16>
    %10 = arith.extf %9 : vector<16x16xbf16> to vector<16x16xf32>
    %c0_11 = arith.constant 0 : index
    %c0_12 = arith.constant 0 : index
    %c0_13 = arith.constant 0 : index
    %11 = vector.load %arg6[%c0_11, %c0_12, %c0_13] : memref<1x1x16xf32, #tpu.memory_space<vmem>>, vector<1x1x16xf32>
    %12 = vector.shape_cast %11 : vector<1x1x16xf32> to vector<1x16xf32>
    %13 = vector.broadcast %12 : vector<1x16xf32> to vector<16x16xf32>
    %14 = arith.addf %10, %13 : vector<16x16xf32>
    %15 = vector.extract_strided_slice %4 {offsets = [0, 0], sizes = [16, 128], strides = [1, 1]} : vector<16x256xbf16> to vector<16x128xbf16>
    %16 = vector.extract_strided_slice %6 {offsets = [0, 0], sizes = [16, 128], strides = [1, 1]} : vector<16x256xbf16> to vector<16x128xbf16>
    %17 = vector.extract_strided_slice %8 {offsets = [0, 0], sizes = [16, 128], strides = [1, 1]} : vector<16x256xbf16> to vector<16x128xbf16>
    %cst = arith.constant dense<0.000000e+00> : vector<16x16xf32>
    %18 = tpu.matmul %15, %16, %cst {dimension_numbers = #tpu.dot_dimension_numbers<[1], [1], [0], [0], [0, 0, 1, 0], [], []>} : vector<16x128xbf16>, vector<16x128xbf16>, vector<16x16xf32> -> vector<16x16xf32>
    %19 = arith.addf %18, %14 : vector<16x16xf32>
    %c0_14 = arith.constant 0 : index
    %c0_15 = arith.constant 0 : index
    %c0_16 = arith.constant 0 : index
    %20 = vector.load %arg8[%c0_14, %c0_15, %c0_16] : memref<2x16x1xf32, #tpu.memory_space<vmem>>, vector<1x16x1xf32>
    %21 = vector.shape_cast %20 : vector<1x16x1xf32> to vector<16x1xf32>
    %cst_17 = arith.constant dense<0xFF800000> : vector<16xf32>
    %22 = vector.multi_reduction <maximumf>, %19, %cst_17 [1] : vector<16x16xf32> to vector<16xf32>
    %23 = vector.shape_cast %22 : vector<16xf32> to vector<16x1xf32>
    %24 = arith.maximumf %21, %23 : vector<16x1xf32>
    %25 = arith.subf %21, %24 : vector<16x1xf32>
    %26 = math.exp %25 : vector<16x1xf32>
    %27 = vector.broadcast %24 : vector<16x1xf32> to vector<16x16xf32>
    %28 = arith.subf %19, %27 : vector<16x16xf32>
    %29 = math.exp %28 : vector<16x16xf32>
    %c0_18 = arith.constant 0 : index
    %c0_19 = arith.constant 0 : index
    %c0_20 = arith.constant 0 : index
    %30 = vector.load %arg9[%c0_18, %c0_19, %c0_20] : memref<2x16x1xf32, #tpu.memory_space<vmem>>, vector<1x16x1xf32>
    %31 = vector.shape_cast %30 : vector<1x16x1xf32> to vector<16x1xf32>
    %32 = arith.mulf %26, %31 : vector<16x1xf32>
    %cst_21 = arith.constant dense<0.000000e+00> : vector<16xf32>
    %33 = vector.multi_reduction <add>, %29, %cst_21 [1] : vector<16x16xf32> to vector<16xf32>
    %34 = vector.shape_cast %33 : vector<16xf32> to vector<16x1xf32>
    %35 = arith.addf %32, %34 : vector<16x1xf32>
    %c0_22 = arith.constant 0 : index
    %c0_23 = arith.constant 0 : index
    %c0_24 = arith.constant 0 : index
    %36 = vector.load %arg9[%c0_22, %c0_23, %c0_24] : memref<2x16x1xf32, #tpu.memory_space<vmem>>, vector<1x16x1xf32>
    %37 = vector.shape_cast %36 : vector<1x16x1xf32> to vector<16x1xf32>
    %38 = vector.shape_cast %35 : vector<16x1xf32> to vector<1x16x1xf32>
    tpu.vector_store %arg9[%c0_22, %c0_23, %c0_24], %38 {strides = array<i32>} : memref<2x16x1xf32, #tpu.memory_space<vmem>>, vector<1x16x1xf32>,
    %c0_25 = arith.constant 0 : index
    %c0_26 = arith.constant 0 : index
    %c0_27 = arith.constant 0 : index
    %39 = vector.load %arg10[%c0_25, %c0_26, %c0_27] : memref<2x16x128xf32, #tpu.memory_space<vmem>>, vector<1x16x128xf32>
    %40 = vector.shape_cast %39 : vector<1x16x128xf32> to vector<16x128xf32>
    %41 = vector.broadcast %26 : vector<16x1xf32> to vector<16x128xf32>
    %42 = arith.mulf %41, %40 : vector<16x128xf32>
    %43 = arith.truncf %29 : vector<16x16xf32> to vector<16x16xbf16>
    %cst_28 = arith.constant dense<0.000000e+00> : vector<16x128xf32>
    %44 = tpu.matmul %43, %17, %cst_28 {dimension_numbers = #tpu.dot_dimension_numbers<[1], [0], [0], [1], [0, 0, 1, 1], [], []>} : vector<16x16xbf16>, vector<16x128xbf16>, vector<16x128xf32> -> vector<16x128xf32>
    %45 = arith.addf %42, %44 : vector<16x128xf32>
    %c0_29 = arith.constant 0 : index
    %c0_30 = arith.constant 0 : index
    %c0_31 = arith.constant 0 : index
    %46 = vector.load %arg10[%c0_29, %c0_30, %c0_31] : memref<2x16x128xf32, #tpu.memory_space<vmem>>, vector<1x16x128xf32>
    %47 = vector.shape_cast %46 : vector<1x16x128xf32> to vector<16x128xf32>
    %48 = vector.shape_cast %45 : vector<16x128xf32> to vector<1x16x128xf32>
    tpu.vector_store %arg10[%c0_29, %c0_30, %c0_31], %48 {strides = array<i32>} : memref<2x16x128xf32, #tpu.memory_space<vmem>>, vector<1x16x128xf32>,
    %c0_32 = arith.constant 0 : index
    %c0_33 = arith.constant 0 : index
    %c0_34 = arith.constant 0 : index
    %49 = vector.load %arg8[%c0_32, %c0_33, %c0_34] : memref<2x16x1xf32, #tpu.memory_space<vmem>>, vector<1x16x1xf32>
    %50 = vector.shape_cast %49 : vector<1x16x1xf32> to vector<16x1xf32>
    %51 = vector.shape_cast %24 : vector<16x1xf32> to vector<1x16x1xf32>
    tpu.vector_store %arg8[%c0_32, %c0_33, %c0_34], %51 {strides = array<i32>} : memref<2x16x1xf32, #tpu.memory_space<vmem>>, vector<1x16x1xf32>,
    %52 = vector.extract_strided_slice %4 {offsets = [0, 128], sizes = [16, 128], strides = [1, 1]} : vector<16x256xbf16> to vector<16x128xbf16>
    %53 = vector.extract_strided_slice %6 {offsets = [0, 128], sizes = [16, 128], strides = [1, 1]} : vector<16x256xbf16> to vector<16x128xbf16>
    %54 = vector.extract_strided_slice %8 {offsets = [0, 128], sizes = [16, 128], strides = [1, 1]} : vector<16x256xbf16> to vector<16x128xbf16>
    %cst_35 = arith.constant dense<0.000000e+00> : vector<16x16xf32>
    %55 = tpu.matmul %52, %53, %cst_35 {dimension_numbers = #tpu.dot_dimension_numbers<[1], [1], [0], [0], [0, 0, 1, 0], [], []>} : vector<16x128xbf16>, vector<16x128xbf16>, vector<16x16xf32> -> vector<16x16xf32>
    %56 = arith.addf %55, %14 : vector<16x16xf32>
    %c1 = arith.constant 1 : index
    %c0_36 = arith.constant 0 : index
    %c0_37 = arith.constant 0 : index
    %57 = vector.load %arg8[%c1, %c0_36, %c0_37] : memref<2x16x1xf32, #tpu.memory_space<vmem>>, vector<1x16x1xf32>
    %58 = vector.shape_cast %57 : vector<1x16x1xf32> to vector<16x1xf32>
    %cst_38 = arith.constant dense<0xFF800000> : vector<16xf32>
    %59 = vector.multi_reduction <maximumf>, %56, %cst_38 [1] : vector<16x16xf32> to vector<16xf32>
    %60 = vector.shape_cast %59 : vector<16xf32> to vector<16x1xf32>
    %61 = arith.maximumf %58, %60 : vector<16x1xf32>
    %62 = arith.subf %58, %61 : vector<16x1xf32>
    %63 = math.exp %62 : vector<16x1xf32>
    %64 = vector.broadcast %61 : vector<16x1xf32> to vector<16x16xf32>
    %65 = arith.subf %56, %64 : vector<16x16xf32>
    %66 = math.exp %65 : vector<16x16xf32>
    %c1_39 = arith.constant 1 : index
    %c0_40 = arith.constant 0 : index
    %c0_41 = arith.constant 0 : index
    %67 = vector.load %arg9[%c1_39, %c0_40, %c0_41] : memref<2x16x1xf32, #tpu.memory_space<vmem>>, vector<1x16x1xf32>
    %68 = vector.shape_cast %67 : vector<1x16x1xf32> to vector<16x1xf32>
    %69 = arith.mulf %63, %68 : vector<16x1xf32>
    %cst_42 = arith.constant dense<0.000000e+00> : vector<16xf32>
    %70 = vector.multi_reduction <add>, %66, %cst_42 [1] : vector<16x16xf32> to vector<16xf32>
    %71 = vector.shape_cast %70 : vector<16xf32> to vector<16x1xf32>
    %72 = arith.addf %69, %71 : vector<16x1xf32>
    %c1_43 = arith.constant 1 : index
    %c0_44 = arith.constant 0 : index
    %c0_45 = arith.constant 0 : index
    %73 = vector.load %arg9[%c1_43, %c0_44, %c0_45] : memref<2x16x1xf32, #tpu.memory_space<vmem>>, vector<1x16x1xf32>
    %74 = vector.shape_cast %73 : vector<1x16x1xf32> to vector<16x1xf32>
    %75 = vector.shape_cast %72 : vector<16x1xf32> to vector<1x16x1xf32>
    tpu.vector_store %arg9[%c1_43, %c0_44, %c0_45], %75 {strides = array<i32>} : memref<2x16x1xf32, #tpu.memory_space<vmem>>, vector<1x16x1xf32>,
    %c1_46 = arith.constant 1 : index
    %c0_47 = arith.constant 0 : index
    %c0_48 = arith.constant 0 : index
    %76 = vector.load %arg10[%c1_46, %c0_47, %c0_48] : memref<2x16x128xf32, #tpu.memory_space<vmem>>, vector<1x16x128xf32>
    %77 = vector.shape_cast %76 : vector<1x16x128xf32> to vector<16x128xf32>
    %78 = vector.broadcast %63 : vector<16x1xf32> to vector<16x128xf32>
    %79 = arith.mulf %78, %77 : vector<16x128xf32>
    %80 = arith.truncf %66 : vector<16x16xf32> to vector<16x16xbf16>
    %cst_49 = arith.constant dense<0.000000e+00> : vector<16x128xf32>
    %81 = tpu.matmul %80, %54, %cst_49 {dimension_numbers = #tpu.dot_dimension_numbers<[1], [0], [0], [1], [0, 0, 1, 1], [], []>} : vector<16x16xbf16>, vector<16x128xbf16>, vector<16x128xf32> -> vector<16x128xf32>
    %82 = arith.addf %79, %81 : vector<16x128xf32>
    %c1_50 = arith.constant 1 : index
    %c0_51 = arith.constant 0 : index
    %c0_52 = arith.constant 0 : index
    %83 = vector.load %arg10[%c1_50, %c0_51, %c0_52] : memref<2x16x128xf32, #tpu.memory_space<vmem>>, vector<1x16x128xf32>
    %84 = vector.shape_cast %83 : vector<1x16x128xf32> to vector<16x128xf32>
    %85 = vector.shape_cast %82 : vector<16x128xf32> to vector<1x16x128xf32>
    tpu.vector_store %arg10[%c1_50, %c0_51, %c0_52], %85 {strides = array<i32>} : memref<2x16x128xf32, #tpu.memory_space<vmem>>, vector<1x16x128xf32>,
    %c1_53 = arith.constant 1 : index
    %c0_54 = arith.constant 0 : index
    %c0_55 = arith.constant 0 : index
    %86 = vector.load %arg8[%c1_53, %c0_54, %c0_55] : memref<2x16x1xf32, #tpu.memory_space<vmem>>, vector<1x16x1xf32>
    %87 = vector.shape_cast %86 : vector<1x16x1xf32> to vector<16x1xf32>
    %88 = vector.shape_cast %61 : vector<16x1xf32> to vector<1x16x1xf32>
    tpu.vector_store %arg8[%c1_53, %c0_54, %c0_55], %88 {strides = array<i32>} : memref<2x16x1xf32, #tpu.memory_space<vmem>>, vector<1x16x1xf32>,
    %c0_i32_56 = arith.constant 0 : i32
    %89 = arith.cmpi eq, %arg1, %c0_i32_56 : i32
    %90 = arith.extui %89 : i1 to i32
    %c0_i32_57 = arith.constant 0 : i32
    %91 = arith.cmpi ne, %90, %c0_i32_57 : i32
    scf.if %91 {
      %c0_58 = arith.constant 0 : index
      %c0_59 = arith.constant 0 : index
      %c0_60 = arith.constant 0 : index
      %92 = vector.load %arg9[%c0_58, %c0_59, %c0_60] : memref<2x16x1xf32, #tpu.memory_space<vmem>>, vector<1x16x1xf32>
      %93 = vector.shape_cast %92 : vector<1x16x1xf32> to vector<16x1xf32>
      %94 = tpu.reciprocal %93 {approx = true} : vector<16x1xf32> -> vector<16x1xf32>
      %c0_61 = arith.constant 0 : index
      %c0_62 = arith.constant 0 : index
      %c0_63 = arith.constant 0 : index
      %95 = vector.load %arg10[%c0_61, %c0_62, %c0_63] : memref<2x16x128xf32, #tpu.memory_space<vmem>>, vector<1x16x128xf32>
      %96 = vector.shape_cast %95 : vector<1x16x128xf32> to vector<16x128xf32>
      %97 = vector.broadcast %94 : vector<16x1xf32> to vector<16x128xf32>
      %98 = arith.mulf %96, %97 : vector<16x128xf32>
      %c1_64 = arith.constant 1 : index
      %c0_65 = arith.constant 0 : index
      %c0_66 = arith.constant 0 : index
      %99 = vector.load %arg9[%c1_64, %c0_65, %c0_66] : memref<2x16x1xf32, #tpu.memory_space<vmem>>, vector<1x16x1xf32>
      %100 = vector.shape_cast %99 : vector<1x16x1xf32> to vector<16x1xf32>
      %101 = tpu.reciprocal %100 {approx = true} : vector<16x1xf32> -> vector<16x1xf32>
      %c1_67 = arith.constant 1 : index
      %c0_68 = arith.constant 0 : index
      %c0_69 = arith.constant 0 : index
      %102 = vector.load %arg10[%c1_67, %c0_68, %c0_69] : memref<2x16x128xf32, #tpu.memory_space<vmem>>, vector<1x16x128xf32>
      %103 = vector.shape_cast %102 : vector<1x16x128xf32> to vector<16x128xf32>
      %104 = vector.broadcast %101 : vector<16x1xf32> to vector<16x128xf32>
      %105 = arith.mulf %103, %104 : vector<16x128xf32>
      %106 = tpu.concatenate %98, %105 in 1 : vector<16x128xf32>, vector<16x128xf32> -> vector<16x256xf32>
      %107 = arith.truncf %106 : vector<16x256xf32> to vector<16x256xbf16>
      %c0_70 = arith.constant 0 : index
      %c0_71 = arith.constant 0 : index
      %c0_72 = arith.constant 0 : index
      %108 = vector.load %arg7[%c0_70, %c0_71, %c0_72] : memref<1x16x256xbf16, #tpu.memory_space<vmem>>, vector<1x16x256xbf16>
      %109 = vector.shape_cast %108 : vector<1x16x256xbf16> to vector<16x256xbf16>
      %110 = vector.shape_cast %107 : vector<16x256xbf16> to vector<1x16x256xbf16>
      tpu.vector_store %arg7[%c0_70, %c0_71, %c0_72], %110 {strides = array<i32>} : memref<1x16x256xbf16, #tpu.memory_space<vmem>>, vector<1x16x256xbf16>,
    } else {
    }
    return
  }
  func.func @transform_0(%arg0: i32, %arg1: i32) -> (i32, i32, i32) {
    %c0_i32 = arith.constant 0 : i32
    %c0_i32_0 = arith.constant 0 : i32
    %c0_i32_1 = arith.constant 0 : i32
    return %arg0, %c0_i32, %c0_i32_0 : i32, i32, i32
  }
  func.func @transform_1(%arg0: i32, %arg1: i32) -> (i32, i32, i32) {
    %c0_i32 = arith.constant 0 : i32
    %c0_i32_0 = arith.constant 0 : i32
    return %arg0, %arg1, %c0_i32 : i32, i32, i32
  }
  func.func @transform_2(%arg0: i32, %arg1: i32) -> (i32, i32, i32) {
    %c1_i32 = arith.constant 1 : i32
    %c0_i32 = arith.constant 0 : i32
    return %arg0, %arg1, %c1_i32 : i32, i32, i32
  }
  func.func @transform_3(%arg0: i32, %arg1: i32) -> (i32, i32) {
    %c0_i32 = arith.constant 0 : i32
    %c0_i32_0 = arith.constant 0 : i32
    return %c0_i32, %arg1 : i32, i32
  }
  func.func @transform_4(%arg0: i32, %arg1: i32) -> (i32, i32, i32) {
    %c0_i32 = arith.constant 0 : i32
    %c0_i32_0 = arith.constant 0 : i32
    return %arg0, %c0_i32, %arg1 : i32, i32, i32
  }
  func.func @transform_5(%arg0: i32, %arg1: i32) -> (i32, i32, i32) {
    %c0_i32 = arith.constant 0 : i32
    %c0_i32_0 = arith.constant 0 : i32
    %c0_i32_1 = arith.constant 0 : i32
    return %arg0, %c0_i32, %c0_i32_0 : i32, i32, i32
  }
}

module attributes {stable_mosaic.version = 11 : i64} {
  func.func @_matmul_bias_kernel(%arg0: i32, %arg1: i32, %arg2: i32, %arg3: memref<32x256xbf16, #tpu.memory_space<vmem>>, %arg4: memref<256x256xbf16, #tpu.memory_space<vmem>>, %arg5: memref<1x256xf32, #tpu.memory_space<vmem>>, %arg6: memref<32x256xbf16, #tpu.memory_space<vmem>>, %arg7: memref<32x256xf32, #tpu.memory_space<vmem>>) attributes {dimension_semantics = [#tpu.dimension_semantics<parallel>, #tpu.dimension_semantics<parallel>, #tpu.dimension_semantics<arbitrary>], iteration_bounds = array<i64: 1, 1, 1>, scalar_prefetch = 0 : i64, scratch_operands = 1 : i64, tpu.core_type = #tpu.core_type<tc>, window_params = [{transform_indices = @transform_0, window_bounds = array<i64: 32, 256>}, {transform_indices = @transform_1, window_bounds = array<i64: 256, 256>}, {transform_indices = @transform_2, window_bounds = array<i64: 1, 256>}, {transform_indices = @transform_3, window_bounds = array<i64: 32, 256>}]} {
    %c0_i32 = arith.constant 0 : i32
    %0 = arith.cmpi eq, %arg2, %c0_i32 : i32
    %1 = arith.extui %0 : i1 to i32
    %c0_i32_0 = arith.constant 0 : i32
    %2 = arith.cmpi ne, %1, %c0_i32_0 : i32
    scf.if %2 {
      %cst_10 = arith.constant 0.000000e+00 : f32
      %12 = vector.broadcast %cst_10 : f32 to vector<32x256xf32>
      %c0_11 = arith.constant 0 : index
      %c0_12 = arith.constant 0 : index
      %13 = vector.load %arg7[%c0_11, %c0_12] : memref<32x256xf32, #tpu.memory_space<vmem>>, vector<32x256xf32>
      tpu.vector_store %arg7[%c0_11, %c0_12], %12 {strides = array<i32>} : memref<32x256xf32, #tpu.memory_space<vmem>>, vector<32x256xf32>,
    } else {
    }
    %c0 = arith.constant 0 : index
    %c0_1 = arith.constant 0 : index
    %3 = vector.load %arg7[%c0, %c0_1] : memref<32x256xf32, #tpu.memory_space<vmem>>, vector<32x256xf32>
    %c0_2 = arith.constant 0 : index
    %c0_3 = arith.constant 0 : index
    %4 = vector.load %arg3[%c0_2, %c0_3] : memref<32x256xbf16, #tpu.memory_space<vmem>>, vector<32x256xbf16>
    %c0_4 = arith.constant 0 : index
    %c0_5 = arith.constant 0 : index
    %5 = vector.load %arg4[%c0_4, %c0_5] : memref<256x256xbf16, #tpu.memory_space<vmem>>, vector<256x256xbf16>
    %cst = arith.constant dense<0.000000e+00> : vector<32x256xf32>
    %6 = tpu.matmul %4, %5, %cst {dimension_numbers = #tpu.dot_dimension_numbers<[1], [0], [0], [1], [0, 0, 1, 1], [], []>} : vector<32x256xbf16>, vector<256x256xbf16>, vector<32x256xf32> -> vector<32x256xf32>
    %7 = arith.addf %3, %6 : vector<32x256xf32>
    %c0_6 = arith.constant 0 : index
    %c0_7 = arith.constant 0 : index
    %8 = vector.load %arg7[%c0_6, %c0_7] : memref<32x256xf32, #tpu.memory_space<vmem>>, vector<32x256xf32>
    tpu.vector_store %arg7[%c0_6, %c0_7], %7 {strides = array<i32>} : memref<32x256xf32, #tpu.memory_space<vmem>>, vector<32x256xf32>,
    %c0_i32_8 = arith.constant 0 : i32
    %9 = arith.cmpi eq, %arg2, %c0_i32_8 : i32
    %10 = arith.extui %9 : i1 to i32
    %c0_i32_9 = arith.constant 0 : i32
    %11 = arith.cmpi ne, %10, %c0_i32_9 : i32
    scf.if %11 {
      %c0_10 = arith.constant 0 : index
      %c0_11 = arith.constant 0 : index
      %12 = vector.load %arg7[%c0_10, %c0_11] : memref<32x256xf32, #tpu.memory_space<vmem>>, vector<32x256xf32>
      %c0_12 = arith.constant 0 : index
      %c0_13 = arith.constant 0 : index
      %13 = vector.load %arg5[%c0_12, %c0_13] : memref<1x256xf32, #tpu.memory_space<vmem>>, vector<1x256xf32>
      %14 = vector.broadcast %13 : vector<1x256xf32> to vector<32x256xf32>
      %15 = arith.addf %12, %14 : vector<32x256xf32>
      %16 = arith.truncf %15 : vector<32x256xf32> to vector<32x256xbf16>
      %c0_14 = arith.constant 0 : index
      %c0_15 = arith.constant 0 : index
      %17 = vector.load %arg6[%c0_14, %c0_15] : memref<32x256xbf16, #tpu.memory_space<vmem>>, vector<32x256xbf16>
      tpu.vector_store %arg6[%c0_14, %c0_15], %16 {strides = array<i32>} : memref<32x256xbf16, #tpu.memory_space<vmem>>, vector<32x256xbf16>,
    } else {
    }
    return
  }
  func.func @transform_0(%arg0: i32, %arg1: i32, %arg2: i32) -> (i32, i32) {
    %c0_i32 = arith.constant 0 : i32
    return %arg0, %arg2 : i32, i32
  }
  func.func @transform_1(%arg0: i32, %arg1: i32, %arg2: i32) -> (i32, i32) {
    %c0_i32 = arith.constant 0 : i32
    return %arg2, %arg1 : i32, i32
  }
  func.func @transform_2(%arg0: i32, %arg1: i32, %arg2: i32) -> (i32, i32) {
    %c0_i32 = arith.constant 0 : i32
    %c0_i32_0 = arith.constant 0 : i32
    return %c0_i32, %arg1 : i32, i32
  }
  func.func @transform_3(%arg0: i32, %arg1: i32, %arg2: i32) -> (i32, i32) {
    %c0_i32 = arith.constant 0 : i32
    return %arg0, %arg1 : i32, i32
  }
}

module attributes {stable_mosaic.version = 11 : i64} {
  func.func @_matmul_bias_kernel(%arg0: i32, %arg1: i32, %arg2: i32, %arg3: memref<16x256xbf16, #tpu.memory_space<vmem>>, %arg4: memref<256x128xbf16, #tpu.memory_space<vmem>>, %arg5: memref<1x128xf32, #tpu.memory_space<vmem>>, %arg6: memref<16x128xf32, #tpu.memory_space<vmem>>, %arg7: memref<16x128xf32, #tpu.memory_space<vmem>>) attributes {dimension_semantics = [#tpu.dimension_semantics<parallel>, #tpu.dimension_semantics<parallel>, #tpu.dimension_semantics<arbitrary>], iteration_bounds = array<i64: 1, 1, 1>, scalar_prefetch = 0 : i64, scratch_operands = 1 : i64, tpu.core_type = #tpu.core_type<tc>, window_params = [{transform_indices = @transform_0, window_bounds = array<i64: 16, 256>}, {transform_indices = @transform_1, window_bounds = array<i64: 256, 128>}, {transform_indices = @transform_2, window_bounds = array<i64: 1, 128>}, {transform_indices = @transform_3, window_bounds = array<i64: 16, 128>}]} {
    %c0_i32 = arith.constant 0 : i32
    %0 = arith.cmpi eq, %arg2, %c0_i32 : i32
    %1 = arith.extui %0 : i1 to i32
    %c0_i32_0 = arith.constant 0 : i32
    %2 = arith.cmpi ne, %1, %c0_i32_0 : i32
    scf.if %2 {
      %cst_10 = arith.constant 0.000000e+00 : f32
      %12 = vector.broadcast %cst_10 : f32 to vector<16x128xf32>
      %c0_11 = arith.constant 0 : index
      %c0_12 = arith.constant 0 : index
      %13 = vector.load %arg7[%c0_11, %c0_12] : memref<16x128xf32, #tpu.memory_space<vmem>>, vector<16x128xf32>
      tpu.vector_store %arg7[%c0_11, %c0_12], %12 {strides = array<i32>} : memref<16x128xf32, #tpu.memory_space<vmem>>, vector<16x128xf32>,
    } else {
    }
    %c0 = arith.constant 0 : index
    %c0_1 = arith.constant 0 : index
    %3 = vector.load %arg7[%c0, %c0_1] : memref<16x128xf32, #tpu.memory_space<vmem>>, vector<16x128xf32>
    %c0_2 = arith.constant 0 : index
    %c0_3 = arith.constant 0 : index
    %4 = vector.load %arg3[%c0_2, %c0_3] : memref<16x256xbf16, #tpu.memory_space<vmem>>, vector<16x256xbf16>
    %c0_4 = arith.constant 0 : index
    %c0_5 = arith.constant 0 : index
    %5 = vector.load %arg4[%c0_4, %c0_5] : memref<256x128xbf16, #tpu.memory_space<vmem>>, vector<256x128xbf16>
    %cst = arith.constant dense<0.000000e+00> : vector<16x128xf32>
    %6 = tpu.matmul %4, %5, %cst {dimension_numbers = #tpu.dot_dimension_numbers<[1], [0], [0], [1], [0, 0, 1, 1], [], []>} : vector<16x256xbf16>, vector<256x128xbf16>, vector<16x128xf32> -> vector<16x128xf32>
    %7 = arith.addf %3, %6 : vector<16x128xf32>
    %c0_6 = arith.constant 0 : index
    %c0_7 = arith.constant 0 : index
    %8 = vector.load %arg7[%c0_6, %c0_7] : memref<16x128xf32, #tpu.memory_space<vmem>>, vector<16x128xf32>
    tpu.vector_store %arg7[%c0_6, %c0_7], %7 {strides = array<i32>} : memref<16x128xf32, #tpu.memory_space<vmem>>, vector<16x128xf32>,
    %c0_i32_8 = arith.constant 0 : i32
    %9 = arith.cmpi eq, %arg2, %c0_i32_8 : i32
    %10 = arith.extui %9 : i1 to i32
    %c0_i32_9 = arith.constant 0 : i32
    %11 = arith.cmpi ne, %10, %c0_i32_9 : i32
    scf.if %11 {
      %c0_10 = arith.constant 0 : index
      %c0_11 = arith.constant 0 : index
      %12 = vector.load %arg7[%c0_10, %c0_11] : memref<16x128xf32, #tpu.memory_space<vmem>>, vector<16x128xf32>
      %c0_12 = arith.constant 0 : index
      %c0_13 = arith.constant 0 : index
      %13 = vector.load %arg5[%c0_12, %c0_13] : memref<1x128xf32, #tpu.memory_space<vmem>>, vector<1x128xf32>
      %14 = vector.broadcast %13 : vector<1x128xf32> to vector<16x128xf32>
      %15 = arith.addf %12, %14 : vector<16x128xf32>
      %c0_14 = arith.constant 0 : index
      %c0_15 = arith.constant 0 : index
      %16 = vector.load %arg6[%c0_14, %c0_15] : memref<16x128xf32, #tpu.memory_space<vmem>>, vector<16x128xf32>
      tpu.vector_store %arg6[%c0_14, %c0_15], %15 {strides = array<i32>} : memref<16x128xf32, #tpu.memory_space<vmem>>, vector<16x128xf32>,
    } else {
    }
    return
  }
  func.func @transform_0(%arg0: i32, %arg1: i32, %arg2: i32) -> (i32, i32) {
    %c0_i32 = arith.constant 0 : i32
    return %arg0, %arg2 : i32, i32
  }
  func.func @transform_1(%arg0: i32, %arg1: i32, %arg2: i32) -> (i32, i32) {
    %c0_i32 = arith.constant 0 : i32
    return %arg2, %arg1 : i32, i32
  }
  func.func @transform_2(%arg0: i32, %arg1: i32, %arg2: i32) -> (i32, i32) {
    %c0_i32 = arith.constant 0 : i32
    %c0_i32_0 = arith.constant 0 : i32
    return %c0_i32, %arg1 : i32, i32
  }
  func.func @transform_3(%arg0: i32, %arg1: i32, %arg2: i32) -> (i32, i32) {
    %c0_i32 = arith.constant 0 : i32
    return %arg0, %arg1 : i32, i32
  }
}

</mosaic_0001>

<llo_original>
// kernel: seq2seq_forward.26
$region0: #{seq2seq_forward.26}
  #allocation0 [shape = 'u32[]', space=smem, size = 0x4, offset = 0x4, fixed_abs, tag = 'smem constant byte address 0x4 - core index']
  #allocation1 [shape = 'u32[144,128]{1,0:T(1,128)}', space=vmem, size = 0x12000, scoped, tag = 'internal scratch']
  #allocation2 [shape = 'f32[2,16,1]{2,1,0:T(8,128)}', space=vmem, size = 0x4000, scoped, tag = 'scratch operand']
  #allocation3 [shape = 'f32[2,16,1]{2,1,0:T(8,128)}', space=vmem, size = 0x4000, scoped, tag = 'scratch operand']
  #allocation4 [shape = 'f32[2,16,128]{2,1,0:T(8,128)}', space=vmem, size = 0x4000, scoped, tag = 'scratch operand']
  %s0 = inlined_call_operand.hbm [shape: bf16[2,16,768], index: 0, kind: input, shape index: {}, may-alias: {0,1,2}]
  %s1 = inlined_call_operand.hbm [shape: bf16[2,16,768], index: 1, kind: input, shape index: {}, may-alias: {0,1,2}]
  %s2 = inlined_call_operand.hbm [shape: bf16[2,16,768], index: 2, kind: input, shape index: {}, may-alias: {0,1,2}]
  %s3 = inlined_call_operand.hbm [shape: bf16[16,16], index: 3, kind: input, shape index: {}]
  %s4 = inlined_call_operand.hbm [shape: f32[2,1,16], index: 4, kind: input, shape index: {}]
  %s5 = inlined_call_operand.hbm [shape: bf16[2,16,256], index: 5, kind: output, shape index: {}]
  %s6 = sld [smem:[#allocation0]]
  $region81: #{seq2seq_forward.26} parent=0
    _
  %s8 = ssub.s32 1, %s6
  %s9 = scalar_select 0, %s8, %s6
  $region1: #{seq2seq_forward.26} parent=0
    #allocation5 [shape = 'u8[16384]{0}', space=vmem, size = 0x4000, scoped, tag = 'input window, operand 0']
    #allocation6 [shape = 's32[2]{0}', space=sflag, size = 0x8, scoped, tag = 'scoped memory for seq2seq_forward.26']
    #allocation7 [shape = 's32[2]{0}', space=sflag, size = 0x8, scoped, tag = 'scoped memory for seq2seq_forward.26']
    #allocation8 [shape = 'u8[16384]{0}', space=vmem, size = 0x4000, scoped, tag = 'input window, operand 1']
    #allocation9 [shape = 's32[2]{0}', space=sflag, size = 0x8, scoped, tag = 'scoped memory for seq2seq_forward.26']
    #allocation10 [shape = 'u8[16384]{0}', space=vmem, size = 0x4000, scoped, tag = 'input window, operand 2']
    #allocation11 [shape = 'u8[4096]{0}', space=vmem, size = 0x1000, scoped, tag = 'input window, operand 3, single buffered']
    #allocation12 [shape = 's32[1]{0}', space=sflag, size = 0x4, scoped, tag = 'scoped memory for seq2seq_forward.26']
    #allocation13 [shape = 'u8[1024]{0}', space=vmem, size = 0x400, scoped, tag = 'input window, operand 4']
    #allocation14 [shape = 'u8[16384]{0}', space=vmem, size = 0x4000, scoped, tag = 'output window, operand 0']
    %10 = vsyncpa [#allocation6], 0
    %s11 = scalar_lea.sflag [#allocation6], 1
    %12 = vsyncpa %s11, 0
    %13 = vsyncpa [#allocation9], 0
    %s14 = scalar_lea.sflag [#allocation9], 1
    %15 = vsyncpa %s14, 0
    %16 = vsyncpa [#allocation12], 0
    %17 = vsyncpa [#allocation7], 0
    %s18 = scalar_lea.sflag [#allocation7], 1
    %19 = vsyncpa %s18, 0
    loop: start=0, step=1, limit=4
    $region2: #{seq2seq_forward.26} parent=1 // loop_pre_header
      _
    $region3: #{seq2seq_forward.26} parent=1 // loop_header
      %s21 = sphi 0, %s25
      %p22 = scmp.ge.s32.totalorder %s21, 4
      %s28 = sphi 0, %s40
      %s29 = sphi 0, %s36
      %s30 = sphi 0, %s28
      %s31 = sphi 0, %s29
      %s32 = sphi 0, %s30
      %s33 = sphi 0, %s31
      %s43 = sphi 0, %s45
      %s46 = sphi 0, %s43
      %s47 = sphi 0, %s46
      %s63 = sphi 0, %s47
      %s71 = sphi 0, %s73
      %s74 = sphi 0, %s71
      %s75 = sphi 0, %s74
      %s91 = sphi 0, %s75
      %s99 = sphi 0, %s101
      %s102 = sphi 0, %s99
      %s103 = sphi 0, %s102
      %s119 = sphi 0, %s103
      %s125 = sphi 0, %s127
      %s128 = sphi 0, %s125
      %s129 = sphi 0, %s128
      %s145 = sphi 0, %s129
      %s153 = sphi 0, %s155
      %s156 = sphi 0, %s153
      %s157 = sphi 0, %s156
      %s173 = sphi 0, %s157
      %s179 = sphi 0, %s181
      %s182 = sphi 0, %s179
      %s183 = sphi 0, %s182
      %s199 = sphi 0, %s183
    $region4: #{seq2seq_forward.26} parent=1 // loop_header_branch
      %24 = sbr.rel (%p22) target = $region8
    $region5: #{seq2seq_forward.26} parent=1 // loop_body
      %s26 = ssub.s32 %s21, 1
      %s27 = ssub.s32 %s21, 2
      %s34 = sadd.s32 1, %s29
      %p35 = scmp.ge.s32.totalorder %s34, 1
      %s36 = scalar_select %p35, 0, %s34
      %s37 = sadd.s32 1, %s28
      %s38 = scalar_select %p35, %s37, %s28
      %p39 = scmp.ge.s32.totalorder %s38, 2
      %s40 = scalar_select %p39, 0, %s38
      %s41 = ssub.s32 %s28, %s40
      %p42 = scmp.eq.s32.totalorder %s41, 0
      %s44 = sadd.s32 %s43, 1
      %s45 = scalar_select %p42, %s43, %s44
      %p48 = pneg %p42
      %p49 = scmp.eq.s32.totalorder %s21, 1
      %p50 = por %p48, %p49
      %p51 = scmp.ne.s32.totalorder %s43, %s46
      %p52 = scmp.eq.s32.totalorder %s21, 0
      %p53 = por %p51, %p52
      %p54 = scmp.ne.s32.totalorder %s43, %s46
      %p55 = scmp.eq.s32.totalorder %s26, 1
      %p56 = por %p54, %p55
      %p57 = scmp.ne.s32.totalorder %s46, %s47
      %p58 = scmp.eq.s32.totalorder %s26, 0
      %p59 = por %p57, %p58
      %p60 = scmp.ne.s32.totalorder %s46, %s47
      %p61 = scmp.eq.s32.totalorder %s27, 1
      %p62 = por %p60, %p61
      %p64 = scmp.ne.s32.totalorder %s47, %s63
      %p65 = scmp.eq.s32.totalorder %s27, 0
      %p66 = por %p64, %p65
      %s67 = ssub.s32 %s28, %s40
      %s68 = ssub.s32 %s29, %s36
      %s69 = sor.u32 %s67, %s68
      %p70 = scmp.eq.s32.totalorder %s69, 0
      %s72 = sadd.s32 %s71, 1
      %s73 = scalar_select %p70, %s71, %s72
      %p76 = pneg %p70
      %p77 = scmp.eq.s32.totalorder %s21, 1
      %p78 = por %p76, %p77
      %p79 = scmp.ne.s32.totalorder %s71, %s74
      %p80 = scmp.eq.s32.totalorder %s21, 0
      %p81 = por %p79, %p80
      %p82 = scmp.ne.s32.totalorder %s71, %s74
      %p83 = scmp.eq.s32.totalorder %s26, 1
      %p84 = por %p82, %p83
      %p85 = scmp.ne.s32.totalorder %s74, %s75
      %p86 = scmp.eq.s32.totalorder %s26, 0
      %p87 = por %p85, %p86
      %p88 = scmp.ne.s32.totalorder %s74, %s75
      %p89 = scmp.eq.s32.totalorder %s27, 1
      %p90 = por %p88, %p89
      %p92 = scmp.ne.s32.totalorder %s75, %s91
      %p93 = scmp.eq.s32.totalorder %s27, 0
      %p94 = por %p92, %p93
      %s95 = ssub.s32 %s28, %s40
      %s96 = ssub.s32 %s29, %s36
      %s97 = sor.u32 %s95, %s96
      %p98 = scmp.eq.s32.totalorder %s97, 0
      %s100 = sadd.s32 %s99, 1
      %s101 = scalar_select %p98, %s99, %s100
      %p104 = pneg %p98
      %p105 = scmp.eq.s32.totalorder %s21, 1
      %p106 = por %p104, %p105
      %p107 = scmp.ne.s32.totalorder %s99, %s102
      %p108 = scmp.eq.s32.totalorder %s21, 0
      %p109 = por %p107, %p108
      %p110 = scmp.ne.s32.totalorder %s99, %s102
      %p111 = scmp.eq.s32.totalorder %s26, 1
      %p112 = por %p110, %p111
      %p113 = scmp.ne.s32.totalorder %s102, %s103
      %p114 = scmp.eq.s32.totalorder %s26, 0
      %p115 = por %p113, %p114
      %p116 = scmp.ne.s32.totalorder %s102, %s103
      %p117 = scmp.eq.s32.totalorder %s27, 1
      %p118 = por %p116, %p117
      %p120 = scmp.ne.s32.totalorder %s103, %s119
      %p121 = scmp.eq.s32.totalorder %s27, 0
      %p122 = por %p120, %p121
      %s123 = ssub.s32 %s29, %s36
      %p124 = scmp.eq.s32.totalorder %s123, 0
      %s126 = sadd.s32 %s125, 1
      %s127 = scalar_select %p124, %s125, %s126
      %p130 = pneg %p124
      %p131 = scmp.eq.s32.totalorder %s21, 1
      %p132 = por %p130, %p131
      %p133 = scmp.ne.s32.totalorder %s125, %s128
      %p134 = scmp.eq.s32.totalorder %s21, 0
      %p135 = por %p133, %p134
      %p136 = scmp.ne.s32.totalorder %s125, %s128
      %p137 = scmp.eq.s32.totalorder %s26, 1
      %p138 = por %p136, %p137
      %p139 = scmp.ne.s32.totalorder %s128, %s129
      %p140 = scmp.eq.s32.totalorder %s26, 0
      %p141 = por %p139, %p140
      %p142 = scmp.ne.s32.totalorder %s128, %s129
      %p143 = scmp.eq.s32.totalorder %s27, 1
      %p144 = por %p142, %p143
      %p146 = scmp.ne.s32.totalorder %s129, %s145
      %p147 = scmp.eq.s32.totalorder %s27, 0
      %p148 = por %p146, %p147
      %s149 = ssub.s32 %s28, %s40
      %s150 = ssub.s32 %s29, %s36
      %s151 = sor.u32 %s149, %s150
      %p152 = scmp.eq.s32.totalorder %s151, 0
      %s154 = sadd.s32 %s153, 1
      %s155 = scalar_select %p152, %s153, %s154
      %p158 = pneg %p152
      %p159 = scmp.eq.s32.totalorder %s21, 1
      %p160 = por %p158, %p159
      %p161 = scmp.ne.s32.totalorder %s153, %s156
      %p162 = scmp.eq.s32.totalorder %s21, 0
      %p163 = por %p161, %p162
      %p164 = scmp.ne.s32.totalorder %s153, %s156
      %p165 = scmp.eq.s32.totalorder %s26, 1
      %p166 = por %p164, %p165
      %p167 = scmp.ne.s32.totalorder %s156, %s157
      %p168 = scmp.eq.s32.totalorder %s26, 0
      %p169 = por %p167, %p168
      %p170 = scmp.ne.s32.totalorder %s156, %s157
      %p171 = scmp.eq.s32.totalorder %s27, 1
      %p172 = por %p170, %p171
      %p174 = scmp.ne.s32.totalorder %s157, %s173
      %p175 = scmp.eq.s32.totalorder %s27, 0
      %p176 = por %p174, %p175
      %s177 = ssub.s32 %s28, %s40
      %p178 = scmp.eq.s32.totalorder %s177, 0
      %s180 = sadd.s32 %s179, 1
      %s181 = scalar_select %p178, %s179, %s180
      %p184 = pneg %p178
      %p185 = scmp.eq.s32.totalorder %s21, 1
      %p186 = por %p184, %p185
      %p187 = scmp.ne.s32.totalorder %s179, %s182
      %p188 = scmp.eq.s32.totalorder %s21, 0
      %p189 = por %p187, %p188
      %p190 = scmp.ne.s32.totalorder %s179, %s182
      %p191 = scmp.eq.s32.totalorder %s26, 1
      %p192 = por %p190, %p191
      %p193 = scmp.ne.s32.totalorder %s182, %s183
      %p194 = scmp.eq.s32.totalorder %s26, 0
      %p195 = por %p193, %p194
      %p196 = scmp.ne.s32.totalorder %s182, %s183
      %p197 = scmp.eq.s32.totalorder %s27, 1
      %p198 = por %p196, %p197
      %p200 = scmp.ne.s32.totalorder %s183, %s199
      %p201 = scmp.eq.s32.totalorder %s27, 0
      %p202 = por %p200, %p201
      %p203 = scmp.le.s32.totalorder 1, %s21
      %p204 = scmp.lt.s32.totalorder %s21, 3
      %p205 = pnand %p203, %p204
      %p206 = pneg %p205
      // Predicated region
      $region9: #{seq2seq_forward.26} parent=5 // pred_check
        _
      $region10: #{seq2seq_forward.26} parent=5 // pred_check_branch
        %208 = sbr.rel (%p205) target = $region12
      $region11: #{seq2seq_forward.26} parent=5 // pred_region
        %s209 = ssub.s32 %s21, 1
        // Predicated region
        $region13: #{seq2seq_forward.26} parent=11 // pred_check
          %p210 = pneg %p141
        $region14: #{seq2seq_forward.26} parent=11 // pred_check_branch
          %212 = sbr.rel (%p210) target = $region16
        $region15: #{seq2seq_forward.26} parent=11 // pred_region
          %s214 = ssub.s32 128, 128
          %215 = vsyncadd [#allocation12], %s214
          %s216 = smul.addr %s31, 64
          %s217 = scalar_lea.hbm %s3, %s216
          %s218 = sshll.u32 [#allocation11], 4
          %s219 = int_to_ptr.vmem [resolvable:$true] %s218
          %224 = dma.hbm_to_vmem [thread:$0]  %s217, 128, %s219, [#allocation12], 64, 64, 4
        $region16: #{seq2seq_forward.26} parent=11 // pred_fallthru
          _
      $region12: #{seq2seq_forward.26} parent=5 // pred_fallthru
        _
      %p225 = scmp.lt.s32.totalorder %s21, 2
      // Predicated region
      $region17: #{seq2seq_forward.26} parent=5 // pred_check
        %p226 = pneg %p225
      $region18: #{seq2seq_forward.26} parent=5 // pred_check_branch
        %228 = sbr.rel (%p226) target = $region20
      $region19: #{seq2seq_forward.26} parent=5 // pred_region
        // Predicated region
        $region21: #{seq2seq_forward.26} parent=19 // pred_check
          %p229 = pneg %p53
        $region22: #{seq2seq_forward.26} parent=19 // pred_check_branch
          %231 = sbr.rel (%p229) target = $region24
        $region23: #{seq2seq_forward.26} parent=19 // pred_region
          %s232 = sand.u32 %s21, 1
          %s233 = scalar_lea.sflag [#allocation6], %s232
          %s234 = sand.u32 %s43, 1
          %s235 = smul.addr %s234, 16
          %s236 = scalar_lea.vmem [#allocation5], %s235
          %s238 = ssub.s32 256, 256
          %239 = vsyncadd %s233, %s238
          %s240 = smul.addr %s28, 12
          %s241 = smul.addr %s240, 64
          %s242 = scalar_lea.hbm %s0, %s241
          %s243 = sshll.u32 %s236, 4
          %s244 = int_to_ptr.vmem [resolvable:$true] %s243
          %249 = dma.hbm_to_vmem [thread:$0]  %s242, 256, %s244, %s233, 384, 128, 8
        $region24: #{seq2seq_forward.26} parent=19 // pred_fallthru
          _
        // Predicated region
        $region25: #{seq2seq_forward.26} parent=19 // pred_check
          %p250 = pneg %p81
        $region26: #{seq2seq_forward.26} parent=19 // pred_check_branch
          %252 = sbr.rel (%p250) target = $region28
        $region27: #{seq2seq_forward.26} parent=19 // pred_region
          %s253 = sand.u32 %s21, 1
          %s254 = scalar_lea.sflag [#allocation9], %s253
          %s255 = sand.u32 %s71, 1
          %s256 = smul.addr %s255, 16
          %s257 = scalar_lea.vmem [#allocation8], %s256
          %s258 = smul.u32 2, %s29
          %s260 = ssub.s32 256, 256
          %261 = vsyncadd %s254, %s260
          %s262 = smul.addr %s258, 6
          %s263 = sadd.s32 2, %s262
          %s264 = smul.addr %s28, 12
          %s265 = sadd.s32 %s263, %s264
          %s266 = smul.addr %s265, 64
          %s267 = scalar_lea.hbm %s1, %s266
          %s268 = sshll.u32 %s257, 4
          %s269 = int_to_ptr.vmem [resolvable:$true] %s268
          %274 = dma.hbm_to_vmem [thread:$0]  %s267, 256, %s269, %s254, 384, 128, 8
        $region28: #{seq2seq_forward.26} parent=19 // pred_fallthru
          _
        // Predicated region
        $region29: #{seq2seq_forward.26} parent=19 // pred_check
          %p275 = pneg %p109
        $region30: #{seq2seq_forward.26} parent=19 // pred_check_branch
          %277 = sbr.rel (%p275) target = $region32
        $region31: #{seq2seq_forward.26} parent=19 // pred_region
          %s278 = sand.u32 %s21, 1
          %s279 = scalar_lea.sflag [#allocation9], %s278
          %s280 = sand.u32 %s99, 1
          %s281 = smul.addr %s280, 16
          %s282 = scalar_lea.vmem [#allocation10], %s281
          %s283 = smul.u32 2, %s29
          %s285 = ssub.s32 256, 256
          %286 = vsyncadd %s279, %s285
          %s287 = smul.addr %s283, 6
          %s288 = sadd.s32 4, %s287
          %s289 = smul.addr %s28, 12
          %s290 = sadd.s32 %s288, %s289
          %s291 = smul.addr %s290, 64
          %s292 = scalar_lea.hbm %s2, %s291
          %s293 = sshll.u32 %s282, 4
          %s294 = int_to_ptr.vmem [resolvable:$true] %s293
          %299 = dma.hbm_to_vmem [thread:$0]  %s292, 256, %s294, %s279, 384, 128, 8
        $region32: #{seq2seq_forward.26} parent=19 // pred_fallthru
          _
        // Predicated region
        $region33: #{seq2seq_forward.26} parent=19 // pred_check
          %p300 = pneg %p163
        $region34: #{seq2seq_forward.26} parent=19 // pred_check_branch
          %302 = sbr.rel (%p300) target = $region36
        $region35: #{seq2seq_forward.26} parent=19 // pred_region
          %s303 = sand.u32 %s21, 1
          %s304 = scalar_lea.sflag [#allocation6], %s303
          %s305 = sand.u32 %s153, 1
          %s306 = scalar_lea.vmem [#allocation13], %s305
          %s308 = ssub.s32 16, 16
          %309 = vsyncadd %s304, %s308
          %s310 = sadd.s32 %s29, %s28
          %s311 = smul.addr %s310, 16
          %s312 = scalar_lea.hbm %s4, %s311
          %s314 = sshll.u32 %s306, 4
          %s315 = int_to_ptr.vmem [resolvable:$true] %s314
          %317 = dma.hbm_to_vmem [thread:$0]  %s312, 16, %s315, %s304
        $region36: #{seq2seq_forward.26} parent=19 // pred_fallthru
          _
      $region20: #{seq2seq_forward.26} parent=5 // pred_fallthru
        _
      %p318 = scmp.le.s32.totalorder 1, %s21
      %p319 = scmp.lt.s32.totalorder %s21, 3
      %p320 = pnand %p318, %p319
      %p321 = pneg %p320
      // Predicated region
      $region37: #{seq2seq_forward.26} parent=5 // pred_check
        _
      $region38: #{seq2seq_forward.26} parent=5 // pred_check_branch
        %323 = sbr.rel (%p320) target = $region40
      $region39: #{seq2seq_forward.26} parent=5 // pred_region
        %s324 = ssub.s32 %s21, 1
        %s325 = sand.u32 %s26, 1
        %s326 = scalar_lea.sflag [#allocation6], %s325
        %s327 = sand.u32 %s46, 1
        %s328 = smul.addr %s327, 16
        %s329 = scalar_lea.vmem [#allocation5], %s328
        // Predicated region
        $region41: #{seq2seq_forward.26} parent=39 // pred_check
          %p330 = pneg %p59
        $region42: #{seq2seq_forward.26} parent=39 // pred_check_branch
          %332 = sbr.rel (%p330) target = $region44
        $region43: #{seq2seq_forward.26} parent=39 // pred_region
          %333 = dma.done %s326, 256
        $region44: #{seq2seq_forward.26} parent=39 // pred_fallthru
          _
        %s334 = sand.u32 %s26, 1
        %s335 = scalar_lea.sflag [#allocation9], %s334
        %s336 = sand.u32 %s74, 1
        %s337 = smul.addr %s336, 16
        %s338 = scalar_lea.vmem [#allocation8], %s337
        // Predicated region
        $region45: #{seq2seq_forward.26} parent=39 // pred_check
          %p339 = pneg %p87
        $region46: #{seq2seq_forward.26} parent=39 // pred_check_branch
          %341 = sbr.rel (%p339) target = $region48
        $region47: #{seq2seq_forward.26} parent=39 // pred_region
          %342 = dma.done %s335, 256
        $region48: #{seq2seq_forward.26} parent=39 // pred_fallthru
          _
        %s343 = sand.u32 %s26, 1
        %s344 = scalar_lea.sflag [#allocation9], %s343
        %s345 = sand.u32 %s102, 1
        %s346 = smul.addr %s345, 16
        %s347 = scalar_lea.vmem [#allocation10], %s346
        // Predicated region
        $region49: #{seq2seq_forward.26} parent=39 // pred_check
          %p348 = pneg %p115
        $region50: #{seq2seq_forward.26} parent=39 // pred_check_branch
          %350 = sbr.rel (%p348) target = $region52
        $region51: #{seq2seq_forward.26} parent=39 // pred_region
          %351 = dma.done %s344, 256
        $region52: #{seq2seq_forward.26} parent=39 // pred_fallthru
          _
        // Predicated region
        $region53: #{seq2seq_forward.26} parent=39 // pred_check
          %p352 = pneg %p141
        $region54: #{seq2seq_forward.26} parent=39 // pred_check_branch
          %354 = sbr.rel (%p352) target = $region56
        $region55: #{seq2seq_forward.26} parent=39 // pred_region
          %355 = dma.done [#allocation12], 128
        $region56: #{seq2seq_forward.26} parent=39 // pred_fallthru
          _
        %s356 = sand.u32 %s26, 1
        %s357 = scalar_lea.sflag [#allocation6], %s356
        %s358 = sand.u32 %s156, 1
        %s359 = scalar_lea.vmem [#allocation13], %s358
        // Predicated region
        $region57: #{seq2seq_forward.26} parent=39 // pred_check
          %p360 = pneg %p169
        $region58: #{seq2seq_forward.26} parent=39 // pred_check_branch
          %362 = sbr.rel (%p360) target = $region60
        $region59: #{seq2seq_forward.26} parent=39 // pred_region
          %363 = dma.done %s357, 16
        $region60: #{seq2seq_forward.26} parent=39 // pred_fallthru
          _
        %s364 = sand.u32 %s26, 1
        %s365 = scalar_lea.sflag [#allocation6], %s364
        %s366 = sand.u32 %s46, 1
        %s367 = smul.addr %s366, 16
        %s368 = scalar_lea.vmem [#allocation5], %s367
        %p369 = pneg %p59
        %p370 = pneg %p56
        %s371 = sand.u32 %s26, 1
        %s372 = scalar_lea.sflag [#allocation9], %s371
        %s373 = sand.u32 %s74, 1
        %s374 = smul.addr %s373, 16
        %s375 = scalar_lea.vmem [#allocation8], %s374
        %p376 = pneg %p87
        %p377 = pneg %p84
        %s378 = sand.u32 %s26, 1
        %s379 = scalar_lea.sflag [#allocation9], %s378
        %s380 = sand.u32 %s102, 1
        %s381 = smul.addr %s380, 16
        %s382 = scalar_lea.vmem [#allocation10], %s381
        %p383 = pneg %p115
        %p384 = pneg %p112
        %p385 = pneg %p141
        %p386 = pneg %p138
        %s387 = sand.u32 %s26, 1
        %s388 = scalar_lea.sflag [#allocation6], %s387
        %s389 = sand.u32 %s156, 1
        %s390 = scalar_lea.vmem [#allocation13], %s389
        %p391 = pneg %p169
        %p392 = pneg %p166
        %p393 = pneg %p195
        %p394 = pneg %p192
        %s395 = sand.u32 %s182, 1
        %s396 = scalar_lea.sflag [#allocation7], %s395
        %s397 = sand.u32 %s182, 1
        %s398 = smul.addr %s397, 16
        %s399 = scalar_lea.vmem [#allocation14], %s398
        %s400 = smul.u32 2, %s31
        %s401 = smul.u32 2, %s31
        %p403 = scmp.eq.s32.totalorder %s31, 0
        // Predicated region
        $region61: #{seq2seq_forward.26} parent=39 // pred_check
          %p404 = pneg %p403
        $region62: #{seq2seq_forward.26} parent=39 // pred_check_branch
          %406 = sbr.rel (%p404) target = $region64
        $region63: #{seq2seq_forward.26} parent=39 // pred_region
          %vm407 = vcmask 7168
          %408 = vst.msk [vmem:[#allocation2] sm:$0xff] %vm407, -1e+30
          %409 = vst.msk [vmem:[#allocation2 + $0x8] sm:$0xff] %vm407, -1e+30
          %410 = vst.msk [vmem:[#allocation2 + $0x10] sm:$0xff] %vm407, -1e+30
          %411 = vst.msk [vmem:[#allocation2 + $0x18] sm:$0xff] %vm407, -1e+30
          %412 = vst.msk [vmem:[#allocation3] sm:$0xff] %vm407, 0.0
          %413 = vst.msk [vmem:[#allocation3 + $0x8] sm:$0xff] %vm407, 0.0
          %414 = vst.msk [vmem:[#allocation3 + $0x10] sm:$0xff] %vm407, 0.0
          %415 = vst.msk [vmem:[#allocation3 + $0x18] sm:$0xff] %vm407, 0.0
          %416 = vst [vmem:[#allocation4] sm:$0xff] 0.0
          %417 = vst [vmem:[#allocation4 + $0x8] sm:$0xff] 0.0
          %418 = vst [vmem:[#allocation4 + $0x10] sm:$0xff] 0.0
          %419 = vst [vmem:[#allocation4 + $0x18] sm:$0xff] 0.0
        $region64: #{seq2seq_forward.26} parent=39 // pred_fallthru
          _
        %v420 = vld [vmem:[%s329] sm:$0xff]
        %v421 = vld [vmem:[%s329 + $0x8] sm:$0xff]
        %v422 = vld [vmem:[%s338] sm:$0xff]
        %v423 = vld [vmem:[%s338 + $0x8] sm:$0xff]
        %v424 = vld [vmem:[%s347] sm:$0xff]
        %v425 = vld [vmem:[%s347 + $0x8] sm:$0xff]
        %v426 = vld [vmem:[#allocation11] sm:$0xf]
        %v427 = vld [vmem:[#allocation11 + $0x4] sm:$0xf]
        %v428 = vunpack.c.l.bf16 %v426
        %v429 = vunpack.c.l.bf16 %v427
        %v430 = vld [vmem:[%s359] sm:$0x1]
        %v432 = vlaneseq
        %v433 = vshrl.u32 %v432, 7
        %v434 = vsub.s32 0, %v433
        %v435 = vrot.slane %v430, %v434
        %v437 = vadd.f32 %v428, %v435
        %v438 = vadd.f32 %v429, %v435
        %v441 = vunpack.c.l.b16 %v420
        %v442 = vunpack.c.l.b16 %v421
        %v443 = vpack.c.b16 %v442, %v441
        %v447 = vunpack.c.l.b16 %v422
        %v448 = vunpack.c.l.b16 %v423
        %v449 = vpack.c.b16 %v448, %v447
        %451 = vmatprep.subr.bf16.mxu0 0
        %452 = vmatpush1.bf16.xpose.msra.mxu0 %v449
        %453 = vmatprep.subr.bf16.mxu0 0
        %454 = vmatpush1.bf16.xpose.msra.mxu0 0
        %455 = vmatprep.subr.bf16.mxu0 0
        %456 = vmatpush1.bf16.xpose.msra.mxu0 0
        %457 = vmatprep.subr.bf16.mxu0 0
        %458 = vmatpush1.bf16.xpose.msra.mxu0 0
        %459 = vmatprep.subr.bf16.mxu0 0
        %460 = vmatpush1.bf16.xpose.msra.mxu0 0
        %461 = vmatprep.subr.bf16.mxu0 0
        %462 = vmatpush1.bf16.xpose.msra.mxu0 0
        %463 = vmatprep.subr.bf16.mxu0 0
        %464 = vmatpush1.bf16.xpose.msra.mxu0 0
        %465 = vmatprep.subr.bf16.mxu0 0
        %466 = vmatpush1.bf16.xpose.msra.mxu0 0
        %467 = vmatprep.subr.bf16.mxu0 0
        %468 = vmatpush1.bf16.xpose.msra.mxu0 0
        %469 = vmatprep.subr.bf16.mxu0 0
        %470 = vmatpush1.bf16.xpose.msra.mxu0 0
        %471 = vmatprep.subr.bf16.mxu0 0
        %472 = vmatpush1.bf16.xpose.msra.mxu0 0
        %473 = vmatprep.subr.bf16.mxu0 0
        %474 = vmatpush1.bf16.xpose.msra.mxu0 0
        %475 = vmatprep.subr.bf16.mxu0 0
        %476 = vmatpush1.bf16.xpose.msra.mxu0 0
        %477 = vmatprep.subr.bf16.mxu0 0
        %478 = vmatpush1.bf16.xpose.msra.mxu0 0
        %479 = vmatprep.subr.bf16.mxu0 0
        %480 = vmatpush1.bf16.xpose.msra.mxu0 0
        %481 = vmatprep.subr.bf16.mxu0 0
        %482 = vmatpush1.bf16.xpose.msra.mxu0 0
        %483 = vmatprep.mubr.bf16.mxu0 0
        %484 = vmatmul.mubr.bf16.gmra.mrb[0].mxu0 %v443
        %v485 = vpop.f32.mrb[0].mxu0
        %v486 = vadd.f32 %v437, %v485
        %v487 = vpop.f32.mrb[0].mxu0
        %v488 = vpop.f32.mrb[0].mxu0
        %v489 = vadd.f32 %v438, %v488
        %v490 = vpop.f32.mrb[0].mxu0
        %491 = vdwg.mxu0
        %v492 = vld [vmem:[#allocation2] sm:$0xff]
        %v493 = vld [vmem:[#allocation2 + $0x8] sm:$0xff]
        %vm494 = vcmask 130048
        %v495 = vsel %vm494, %v486, -inf
        %496 = vmax.xlane.f32.xlu0 %v495
        %v497 = vpop.xlane.xlu0 %496
        %v498 = vsel %vm494, %v489, -inf
        %499 = vmax.xlane.f32.xlu0 %v498
        %v500 = vpop.xlane.xlu0 %499
        %v501 = vmax.f32 %v492, %v497
        %v502 = vmax.f32 %v493, %v500
        %v503 = vsub.f32 %v492, %v501
        %v504 = vsub.f32 %v493, %v502
        %v505 = vmul.f32 %v503, 1.442695
        %v506 = vpow.pop %v505
        %v507 = vmul.f32 %v504, 1.442695
        %v508 = vpow.pop %v507
        %510 = vset.pattern.permute.xlu0 0
        %511 = vperm.xlu0 %510, %v501
        %v512 = vpop.permute.xlu0 %511
        %515 = vset.pattern.permute.xlu0 0
        %516 = vperm.xlu0 %515, %v502
        %v517 = vpop.permute.xlu0 %516
        %v519 = vsub.f32 %v486, %v512
        %v520 = vsub.f32 %v489, %v517
        %v521 = vmul.f32 %v519, 1.442695
        %v522 = vpow.pop %v521
        %v523 = vmul.f32 %v520, 1.442695
        %v524 = vpow.pop %v523
        %v525 = vld [vmem:[#allocation3] sm:$0xff]
        %v526 = vld [vmem:[#allocation3 + $0x8] sm:$0xff]
        %v527 = vmul.f32 %v506, %v525
        %v528 = vmul.f32 %v508, %v526
        %v529 = vsel %vm494, %v522, 0.0
        %530 = vadd.xlane.f32.xlu0 %v529
        %v531 = vpop.xlane.xlu0 %530
        %v532 = vsel %vm494, %v524, 0.0
        %533 = vadd.xlane.f32.xlu0 %v532
        %v534 = vpop.xlane.xlu0 %533
        %v535 = vadd.f32 %v527, %v531
        %v536 = vadd.f32 %v528, %v534
        %vm537 = vcmask 7168
        %538 = vst.msk [vmem:[#allocation3] sm:$0xff] %vm537, %v535
        %539 = vst.msk [vmem:[#allocation3 + $0x8] sm:$0xff] %vm537, %v536
        %v540 = vld [vmem:[#allocation4] sm:$0xff]
        %v541 = vld [vmem:[#allocation4 + $0x8] sm:$0xff]
        %543 = vset.pattern.permute.xlu0 0
        %544 = vperm.xlu0 %543, %v506
        %v545 = vpop.permute.xlu0 %544
        %548 = vset.pattern.permute.xlu0 0
        %549 = vperm.xlu0 %548, %v508
        %v550 = vpop.permute.xlu0 %549
        %v552 = vmul.f32 %v545, %v540
        %v553 = vmul.f32 %v550, %v541
        %v554 = vpack.c.bf16 %v524, %v522
        %v557 = vunpack.c.l.b16 %v424
        %v558 = vunpack.c.l.b16 %v425
        %v559 = vpack.c.b16 %v558, %v557
        %v562 = vsel %vm494, %v554, 0
        %564 = vmatprep.subr.bf16.mxu0 0
        %565 = vmatpush1.bf16.msra.mxu0 %v559
        %566 = vmatprep.subr.bf16.mxu0 0
        %567 = vmatpush1.bf16.msra.mxu0 0
        %568 = vmatprep.subr.bf16.mxu0 0
        %569 = vmatpush1.bf16.msra.mxu0 0
        %570 = vmatprep.subr.bf16.mxu0 0
        %571 = vmatpush1.bf16.msra.mxu0 0
        %572 = vmatprep.subr.bf16.mxu0 0
        %573 = vmatpush1.bf16.msra.mxu0 0
        %574 = vmatprep.subr.bf16.mxu0 0
        %575 = vmatpush1.bf16.msra.mxu0 0
        %576 = vmatprep.subr.bf16.mxu0 0
        %577 = vmatpush1.bf16.msra.mxu0 0
        %578 = vmatprep.subr.bf16.mxu0 0
        %579 = vmatpush1.bf16.msra.mxu0 0
        %580 = vmatprep.subr.bf16.mxu0 0
        %581 = vmatpush1.bf16.msra.mxu0 0
        %582 = vmatprep.subr.bf16.mxu0 0
        %583 = vmatpush1.bf16.msra.mxu0 0
        %584 = vmatprep.subr.bf16.mxu0 0
        %585 = vmatpush1.bf16.msra.mxu0 0
        %586 = vmatprep.subr.bf16.mxu0 0
        %587 = vmatpush1.bf16.msra.mxu0 0
        %588 = vmatprep.subr.bf16.mxu0 0
        %589 = vmatpush1.bf16.msra.mxu0 0
        %590 = vmatprep.subr.bf16.mxu0 0
        %591 = vmatpush1.bf16.msra.mxu0 0
        %592 = vmatprep.subr.bf16.mxu0 0
        %593 = vmatpush1.bf16.msra.mxu0 0
        %594 = vmatprep.subr.bf16.mxu0 0
        %595 = vmatpush1.bf16.msra.mxu0 0
        %596 = vmatprep.mubr.bf16.mxu0 0
        %597 = vmatmul.mubr.bf16.gmra.mrb[0].mxu0 %v562
        %v598 = vpop.f32.mrb[0].mxu0
        %v599 = vadd.f32 0.0, %v598
        %v600 = vpop.f32.mrb[0].mxu0
        %v601 = vpop.f32.mrb[0].mxu0
        %v602 = vadd.f32 0.0, %v601
        %v603 = vpop.f32.mrb[0].mxu0
        %604 = vdwg.mxu0
        %v605 = vadd.f32 %v552, %v599
        %v606 = vadd.f32 %v553, %v602
        %607 = vst [vmem:[#allocation4] sm:$0xff] %v605
        %608 = vst [vmem:[#allocation4 + $0x8] sm:$0xff] %v606
        %609 = vst.msk [vmem:[#allocation2] sm:$0xff] %vm537, %v501
        %610 = vst.msk [vmem:[#allocation2 + $0x8] sm:$0xff] %vm537, %v502
        %v611 = vunpack.c.h.b16 %v420
        %v612 = vunpack.c.h.b16 %v421
        %v613 = vpack.c.b16 %v612, %v611
        %v615 = vunpack.c.h.b16 %v422
        %v616 = vunpack.c.h.b16 %v423
        %v617 = vpack.c.b16 %v616, %v615
        %619 = vmatprep.subr.bf16.mxu0 0
        %620 = vmatpush1.bf16.xpose.msra.mxu0 %v617
        %621 = vmatprep.subr.bf16.mxu0 0
        %622 = vmatpush1.bf16.xpose.msra.mxu0 0
        %623 = vmatprep.subr.bf16.mxu0 0
        %624 = vmatpush1.bf16.xpose.msra.mxu0 0
        %625 = vmatprep.subr.bf16.mxu0 0
        %626 = vmatpush1.bf16.xpose.msra.mxu0 0
        %627 = vmatprep.subr.bf16.mxu0 0
        %628 = vmatpush1.bf16.xpose.msra.mxu0 0
        %629 = vmatprep.subr.bf16.mxu0 0
        %630 = vmatpush1.bf16.xpose.msra.mxu0 0
        %631 = vmatprep.subr.bf16.mxu0 0
        %632 = vmatpush1.bf16.xpose.msra.mxu0 0
        %633 = vmatprep.subr.bf16.mxu0 0
        %634 = vmatpush1.bf16.xpose.msra.mxu0 0
        %635 = vmatprep.subr.bf16.mxu0 0
        %636 = vmatpush1.bf16.xpose.msra.mxu0 0
        %637 = vmatprep.subr.bf16.mxu0 0
        %638 = vmatpush1.bf16.xpose.msra.mxu0 0
        %639 = vmatprep.subr.bf16.mxu0 0
        %640 = vmatpush1.bf16.xpose.msra.mxu0 0
        %641 = vmatprep.subr.bf16.mxu0 0
        %642 = vmatpush1.bf16.xpose.msra.mxu0 0
        %643 = vmatprep.subr.bf16.mxu0 0
        %644 = vmatpush1.bf16.xpose.msra.mxu0 0
        %645 = vmatprep.subr.bf16.mxu0 0
        %646 = vmatpush1.bf16.xpose.msra.mxu0 0
        %647 = vmatprep.subr.bf16.mxu0 0
        %648 = vmatpush1.bf16.xpose.msra.mxu0 0
        %649 = vmatprep.subr.bf16.mxu0 0
        %650 = vmatpush1.bf16.xpose.msra.mxu0 0
        %651 = vmatprep.mubr.bf16.mxu0 0
        %652 = vmatmul.mubr.bf16.gmra.mrb[0].mxu0 %v613
        %v653 = vpop.f32.mrb[0].mxu0
        %v654 = vadd.f32 %v437, %v653
        %v655 = vpop.f32.mrb[0].mxu0
        %v656 = vpop.f32.mrb[0].mxu0
        %v657 = vadd.f32 %v438, %v656
        %v658 = vpop.f32.mrb[0].mxu0
        %659 = vdwg.mxu0
        %s660 = scalar_lea.vmem [#allocation2], 16
        %v661 = vld [vmem:[%s660] sm:$0xff]
        %v662 = vld [vmem:[%s660 + $0x8] sm:$0xff]
        %v663 = vsel %vm494, %v654, -inf
        %664 = vmax.xlane.f32.xlu0 %v663
        %v665 = vpop.xlane.xlu0 %664
        %v666 = vsel %vm494, %v657, -inf
        %667 = vmax.xlane.f32.xlu0 %v666
        %v668 = vpop.xlane.xlu0 %667
        %v669 = vmax.f32 %v661, %v665
        %v670 = vmax.f32 %v662, %v668
        %v671 = vsub.f32 %v661, %v669
        %v672 = vsub.f32 %v662, %v670
        %v673 = vmul.f32 %v671, 1.442695
        %v674 = vpow.pop %v673
        %v675 = vmul.f32 %v672, 1.442695
        %v676 = vpow.pop %v675
        %678 = vset.pattern.permute.xlu0 0
        %679 = vperm.xlu0 %678, %v669
        %v680 = vpop.permute.xlu0 %679
        %683 = vset.pattern.permute.xlu0 0
        %684 = vperm.xlu0 %683, %v670
        %v685 = vpop.permute.xlu0 %684
        %v687 = vsub.f32 %v654, %v680
        %v688 = vsub.f32 %v657, %v685
        %v689 = vmul.f32 %v687, 1.442695
        %v690 = vpow.pop %v689
        %v691 = vmul.f32 %v688, 1.442695
        %v692 = vpow.pop %v691
        %s693 = scalar_lea.vmem [#allocation3], 16
        %v694 = vld [vmem:[%s693] sm:$0xff]
        %v695 = vld [vmem:[%s693 + $0x8] sm:$0xff]
        %v696 = vmul.f32 %v674, %v694
        %v697 = vmul.f32 %v676, %v695
        %v698 = vsel %vm494, %v690, 0.0
        %699 = vadd.xlane.f32.xlu0 %v698
        %v700 = vpop.xlane.xlu0 %699
        %v701 = vsel %vm494, %v692, 0.0
        %702 = vadd.xlane.f32.xlu0 %v701
        %v703 = vpop.xlane.xlu0 %702
        %v704 = vadd.f32 %v696, %v700
        %v705 = vadd.f32 %v697, %v703
        %706 = vst.msk [vmem:[%s693] sm:$0xff] %vm537, %v704
        %707 = vst.msk [vmem:[%s693 + $0x8] sm:$0xff] %vm537, %v705
        %s708 = scalar_lea.vmem [#allocation4], 16
        %v709 = vld [vmem:[%s708] sm:$0xff]
        %v710 = vld [vmem:[%s708 + $0x8] sm:$0xff]
        %712 = vset.pattern.permute.xlu0 0
        %713 = vperm.xlu0 %712, %v674
        %v714 = vpop.permute.xlu0 %713
        %717 = vset.pattern.permute.xlu0 0
        %718 = vperm.xlu0 %717, %v676
        %v719 = vpop.permute.xlu0 %718
        %v721 = vmul.f32 %v714, %v709
        %v722 = vmul.f32 %v719, %v710
        %v723 = vpack.c.bf16 %v692, %v690
        %v724 = vunpack.c.h.b16 %v424
        %v725 = vunpack.c.h.b16 %v425
        %v726 = vpack.c.b16 %v725, %v724
        %v729 = vsel %vm494, %v723, 0
        %731 = vmatprep.subr.bf16.mxu0 0
        %732 = vmatpush1.bf16.msra.mxu0 %v726
        %733 = vmatprep.subr.bf16.mxu0 0
        %734 = vmatpush1.bf16.msra.mxu0 0
        %735 = vmatprep.subr.bf16.mxu0 0
        %736 = vmatpush1.bf16.msra.mxu0 0
        %737 = vmatprep.subr.bf16.mxu0 0
        %738 = vmatpush1.bf16.msra.mxu0 0
        %739 = vmatprep.subr.bf16.mxu0 0
        %740 = vmatpush1.bf16.msra.mxu0 0
        %741 = vmatprep.subr.bf16.mxu0 0
        %742 = vmatpush1.bf16.msra.mxu0 0
        %743 = vmatprep.subr.bf16.mxu0 0
        %744 = vmatpush1.bf16.msra.mxu0 0
        %745 = vmatprep.subr.bf16.mxu0 0
        %746 = vmatpush1.bf16.msra.mxu0 0
        %747 = vmatprep.subr.bf16.mxu0 0
        %748 = vmatpush1.bf16.msra.mxu0 0
        %749 = vmatprep.subr.bf16.mxu0 0
        %750 = vmatpush1.bf16.msra.mxu0 0
        %751 = vmatprep.subr.bf16.mxu0 0
        %752 = vmatpush1.bf16.msra.mxu0 0
        %753 = vmatprep.subr.bf16.mxu0 0
        %754 = vmatpush1.bf16.msra.mxu0 0
        %755 = vmatprep.subr.bf16.mxu0 0
        %756 = vmatpush1.bf16.msra.mxu0 0
        %757 = vmatprep.subr.bf16.mxu0 0
        %758 = vmatpush1.bf16.msra.mxu0 0
        %759 = vmatprep.subr.bf16.mxu0 0
        %760 = vmatpush1.bf16.msra.mxu0 0
        %761 = vmatprep.subr.bf16.mxu0 0
        %762 = vmatpush1.bf16.msra.mxu0 0
        %763 = vmatprep.mubr.bf16.mxu0 0
        %764 = vmatmul.mubr.bf16.gmra.mrb[0].mxu0 %v729
        %v765 = vpop.f32.mrb[0].mxu0
        %v766 = vadd.f32 0.0, %v765
        %v767 = vpop.f32.mrb[0].mxu0
        %v768 = vpop.f32.mrb[0].mxu0
        %v769 = vadd.f32 0.0, %v768
        %v770 = vpop.f32.mrb[0].mxu0
        %771 = vdwg.mxu0
        %v772 = vadd.f32 %v721, %v766
        %v773 = vadd.f32 %v722, %v769
        %774 = vst [vmem:[%s708] sm:$0xff] %v772
        %775 = vst [vmem:[%s708 + $0x8] sm:$0xff] %v773
        %776 = vst.msk [vmem:[%s660] sm:$0xff] %vm537, %v669
        %777 = vst.msk [vmem:[%s660 + $0x8] sm:$0xff] %vm537, %v670
        // Predicated region
        $region65: #{seq2seq_forward.26} parent=39 // pred_check
          %p778 = pneg %p403
        $region66: #{seq2seq_forward.26} parent=39 // pred_check_branch
          %780 = sbr.rel (%p778) target = $region68
        $region67: #{seq2seq_forward.26} parent=39 // pred_region
          %v781 = vld [vmem:[#allocation3] sm:$0xff]
          %v782 = vld [vmem:[#allocation3 + $0x8] sm:$0xff]
          %v783 = vrcp.pop %v781
          %v784 = vrcp.pop %v782
          %v785 = vld [vmem:[#allocation4] sm:$0xff]
          %v786 = vld [vmem:[#allocation4 + $0x8] sm:$0xff]
          %788 = vset.pattern.permute.xlu0 0
          %789 = vperm.xlu0 %788, %v783
          %v790 = vpop.permute.xlu0 %789
          %793 = vset.pattern.permute.xlu0 0
          %794 = vperm.xlu0 %793, %v784
          %v795 = vpop.permute.xlu0 %794
          %v797 = vmul.f32 %v785, %v790
          %v798 = vmul.f32 %v786, %v795
          %v799 = vld [vmem:[%s693] sm:$0xff]
          %v800 = vld [vmem:[%s693 + $0x8] sm:$0xff]
          %v801 = vrcp.pop %v799
          %v802 = vrcp.pop %v800
          %v803 = vld [vmem:[%s708] sm:$0xff]
          %v804 = vld [vmem:[%s708 + $0x8] sm:$0xff]
          %806 = vset.pattern.permute.xlu0 0
          %807 = vperm.xlu0 %806, %v801
          %v808 = vpop.permute.xlu0 %807
          %811 = vset.pattern.permute.xlu0 0
          %812 = vperm.xlu0 %811, %v802
          %v813 = vpop.permute.xlu0 %812
          %v815 = vmul.f32 %v803, %v808
          %v816 = vmul.f32 %v804, %v813
          %v817 = vpack.c.bf16 %v798, %v797
          %v818 = vpack.c.bf16 %v816, %v815
          %v821 = vunpack.c.l.b16 %v817
          %v822 = vunpack.c.l.b16 %v818
          %v823 = vunpack.c.h.b16 %v817
          %v824 = vunpack.c.h.b16 %v818
          %v825 = vpack.c.b16 %v822, %v821
          %v826 = vpack.c.b16 %v824, %v823
          %829 = vst [vmem:[%s399] sm:$0xff] %v825
          %830 = vst [vmem:[%s399 + $0x8] sm:$0xff] %v826
        $region68: #{seq2seq_forward.26} parent=39 // pred_fallthru
          _
        %s831 = sand.u32 %s182, 1
        %s832 = scalar_lea.sflag [#allocation7], %s831
        %s833 = sand.u32 %s182, 1
        %s834 = smul.addr %s833, 16
        %s835 = scalar_lea.vmem [#allocation14], %s834
        // Predicated region
        $region69: #{seq2seq_forward.26} parent=39 // pred_check
          %p836 = pneg %p192
        $region70: #{seq2seq_forward.26} parent=39 // pred_check_branch
          %838 = sbr.rel (%p836) target = $region72
        $region71: #{seq2seq_forward.26} parent=39 // pred_region
          %s840 = ssub.s32 256, 256
          %841 = vsyncadd %s832, %s840
          %s842 = smul.addr %s30, 4
          %s843 = smul.addr %s842, 64
          %s844 = scalar_lea.hbm %s5, %s843
          %s845 = sshll.u32 %s835, 4
          %s846 = int_to_ptr.vmem [resolvable:$true] %s845
          %851 = dma.vmem_to_hbm [thread:$0]  %s846, 256, %s844, %s832, 128, 128, 8
        $region72: #{seq2seq_forward.26} parent=39 // pred_fallthru
          _
      $region40: #{seq2seq_forward.26} parent=5 // pred_fallthru
        _
      %p852 = scmp.le.s32.totalorder 2, %s21
      // Predicated region
      $region73: #{seq2seq_forward.26} parent=5 // pred_check
        %p853 = pneg %p852
      $region74: #{seq2seq_forward.26} parent=5 // pred_check_branch
        %855 = sbr.rel (%p853) target = $region76
      $region75: #{seq2seq_forward.26} parent=5 // pred_region
        %s856 = ssub.s32 %s21, 2
        // Predicated region
        $region77: #{seq2seq_forward.26} parent=75 // pred_check
          %p857 = pneg %p198
        $region78: #{seq2seq_forward.26} parent=75 // pred_check_branch
          %859 = sbr.rel (%p857) target = $region80
        $region79: #{seq2seq_forward.26} parent=75 // pred_region
          %s860 = sand.u32 %s183, 1
          %s861 = scalar_lea.sflag [#allocation7], %s860
          %s862 = sand.u32 %s183, 1
          %s863 = smul.addr %s862, 16
          %s864 = scalar_lea.vmem [#allocation14], %s863
          %865 = dma.done %s861, 256
        $region80: #{seq2seq_forward.26} parent=75 // pred_fallthru
          _
      $region76: #{seq2seq_forward.26} parent=5 // pred_fallthru
        _
    $region6: #{seq2seq_forward.26} parent=1 // loop_footer
      %s25 = sadd.s32 1, %s21
    $region7: #{seq2seq_forward.26} parent=1 // loop_footer_branch
      %20 = sbr.rel target = $region3
    $region8: #{seq2seq_forward.26} parent=1 // loop_exit
      _
    %866 = vsyncpa [#allocation6], 1
    %s867 = scalar_lea.sflag [#allocation6], 1
    %868 = vsyncpa %s867, 1
    %869 = vsyncpa [#allocation9], 1
    %s870 = scalar_lea.sflag [#allocation9], 1
    %871 = vsyncpa %s870, 1
    %872 = vsyncpa [#allocation12], 1
    %873 = vsyncpa [#allocation7], 1
    %s874 = scalar_lea.sflag [#allocation7], 1
    %875 = vsyncpa %s874, 1

// kernel: seq2seq_forward.28
$region0: #{seq2seq_forward.28}
  #allocation0 [shape = 'u32[]', space=smem, size = 0x4, offset = 0x4, fixed_abs, tag = 'smem constant byte address 0x4 - core index']
  #allocation1 [shape = 'u32[144,128]{1,0:T(1,128)}', space=vmem, size = 0x12000, scoped, tag = 'internal scratch']
  #allocation2 [shape = 'f32[32,256]{1,0:T(8,128)}', space=vmem, size = 0x8000, scoped, tag = 'scratch operand']
  %s0 = inlined_call_operand.hbm [shape: bf16[32,256], index: 0, kind: input, shape index: {}, may-alias: {0,5}]
  %s1 = inlined_call_operand.hbm [shape: bf16[256,512], index: 1, kind: input, shape index: {}]
  %s2 = inlined_call_operand.hbm [shape: f32[1,512], index: 2, kind: input, shape index: {}]
  %s3 = inlined_call_operand.hbm [shape: bf16[512,256], index: 3, kind: input, shape index: {}]
  %s4 = inlined_call_operand.hbm [shape: f32[1,256], index: 4, kind: input, shape index: {}]
  %s5 = inlined_call_operand.hbm [shape: bf16[32,256], index: 5, kind: input, shape index: {}, may-alias: {0,5}]
  %s6 = inlined_call_operand.hbm [shape: f32[1,256], index: 6, kind: input, shape index: {}]
  %s7 = inlined_call_operand.hbm [shape: f32[1,256], index: 7, kind: input, shape index: {}]
  %s8 = inlined_call_operand.hbm [shape: bf16[32,256], index: 8, kind: output, shape index: {}]
  %s9 = sld [smem:[#allocation0]]
  $region105: #{seq2seq_forward.28} parent=0
    _
  %s11 = ssub.s32 1, %s9
  %s12 = scalar_select 0, %s11, %s9
  $region1: #{seq2seq_forward.28} parent=0
    #allocation3 [shape = 'u8[16384]{0}', space=vmem, size = 0x4000, scoped, tag = 'input window, operand 0, single buffered']
    #allocation4 [shape = 's32[2]{0}', space=sflag, size = 0x8, scoped, tag = 'scoped memory for seq2seq_forward.28']
    #allocation5 [shape = 's32[2]{0}', space=sflag, size = 0x8, scoped, tag = 'scoped memory for seq2seq_forward.28']
    #allocation6 [shape = 'u8[262144]{0}', space=vmem, size = 0x40000, scoped, tag = 'input window, operand 1']
    #allocation7 [shape = 's32[2]{0}', space=sflag, size = 0x8, scoped, tag = 'scoped memory for seq2seq_forward.28']
    #allocation8 [shape = 'u8[2048]{0}', space=vmem, size = 0x800, scoped, tag = 'input window, operand 2']
    #allocation9 [shape = 'u8[262144]{0}', space=vmem, size = 0x40000, scoped, tag = 'input window, operand 3']
    #allocation10 [shape = 's32[2]{0}', space=sflag, size = 0x8, scoped, tag = 'scoped memory for seq2seq_forward.28']
    #allocation11 [shape = 'u8[1024]{0}', space=vmem, size = 0x400, scoped, tag = 'input window, operand 4, single buffered']
    #allocation12 [shape = 'u8[16384]{0}', space=vmem, size = 0x4000, scoped, tag = 'input window, operand 5, single buffered']
    #allocation13 [shape = 's32[1]{0}', space=sflag, size = 0x4, scoped, tag = 'scoped memory for seq2seq_forward.28']
    #allocation14 [shape = 'u8[1024]{0}', space=vmem, size = 0x400, scoped, tag = 'input window, operand 6, single buffered']
    #allocation15 [shape = 'u8[1024]{0}', space=vmem, size = 0x400, scoped, tag = 'input window, operand 7, single buffered']
    #allocation16 [shape = 's32[1]{0}', space=sflag, size = 0x4, scoped, tag = 'scoped memory for seq2seq_forward.28']
    #allocation17 [shape = 'u8[16384]{0}', space=vmem, size = 0x4000, scoped, tag = 'output window, operand 0, single buffered']
    %13 = vsyncpa [#allocation4], 0
    %14 = vsyncpa [#allocation7], 0
    %s15 = scalar_lea.sflag [#allocation7], 1
    %16 = vsyncpa %s15, 0
    %17 = vsyncpa [#allocation10], 0
    %s18 = scalar_lea.sflag [#allocation10], 1
    %19 = vsyncpa %s18, 0
    %20 = vsyncpa [#allocation13], 0
    %21 = vsyncpa [#allocation16], 0
    %22 = vsyncpa [#allocation5], 0
    loop: start=0, step=1, limit=4
    $region2: #{seq2seq_forward.28} parent=1 // loop_pre_header
      _
    $region3: #{seq2seq_forward.28} parent=1 // loop_header
      %s24 = sphi 0, %s28
      %p25 = scmp.ge.s32.totalorder %s24, 4
      %s31 = sphi 0, %s43
      %s32 = sphi 0, %s39
      %s33 = sphi 0, %s31
      %s34 = sphi 0, %s32
      %s35 = sphi 0, %s33
      %s36 = sphi 0, %s34
      %s46 = sphi 0, %s48
      %s49 = sphi 0, %s46
      %s50 = sphi 0, %s49
      %s66 = sphi 0, %s50
      %s72 = sphi 0, %s74
      %s75 = sphi 0, %s72
      %s76 = sphi 0, %s75
      %s92 = sphi 0, %s76
      %s98 = sphi 0, %s100
      %s101 = sphi 0, %s98
      %s102 = sphi 0, %s101
      %s118 = sphi 0, %s102
      %s124 = sphi 0, %s126
      %s127 = sphi 0, %s124
      %s128 = sphi 0, %s127
      %s144 = sphi 0, %s128
      %s148 = sphi 0, %s148
      %s150 = sphi 0, %s148
      %s151 = sphi 0, %s150
      %s165 = sphi 0, %s151
      %s171 = sphi 0, %s173
      %s174 = sphi 0, %s171
      %s175 = sphi 0, %s174
      %s191 = sphi 0, %s175
      %s195 = sphi 0, %s195
      %s197 = sphi 0, %s195
      %s198 = sphi 0, %s197
      %s212 = sphi 0, %s198
      %s216 = sphi 0, %s216
      %s218 = sphi 0, %s216
      %s219 = sphi 0, %s218
      %s233 = sphi 0, %s219
      %s239 = sphi 0, %s241
      %s242 = sphi 0, %s239
      %s243 = sphi 0, %s242
      %s259 = sphi 0, %s243
    $region4: #{seq2seq_forward.28} parent=1 // loop_header_branch
      %27 = sbr.rel (%p25) target = $region8
    $region5: #{seq2seq_forward.28} parent=1 // loop_body
      %s29 = ssub.s32 %s24, 1
      %s30 = ssub.s32 %s24, 2
      %s37 = sadd.s32 1, %s32
      %p38 = scmp.ge.s32.totalorder %s37, 2
      %s39 = scalar_select %p38, 0, %s37
      %s40 = sadd.s32 1, %s31
      %s41 = scalar_select %p38, %s40, %s31
      %p42 = scmp.ge.s32.totalorder %s41, 1
      %s43 = scalar_select %p42, 0, %s41
      %s44 = ssub.s32 %s31, %s43
      %p45 = scmp.eq.s32.totalorder %s44, 0
      %s47 = sadd.s32 %s46, 1
      %s48 = scalar_select %p45, %s46, %s47
      %p51 = pneg %p45
      %p52 = scmp.eq.s32.totalorder %s24, 1
      %p53 = por %p51, %p52
      %p54 = scmp.ne.s32.totalorder %s46, %s49
      %p55 = scmp.eq.s32.totalorder %s24, 0
      %p56 = por %p54, %p55
      %p57 = scmp.ne.s32.totalorder %s46, %s49
      %p58 = scmp.eq.s32.totalorder %s29, 1
      %p59 = por %p57, %p58
      %p60 = scmp.ne.s32.totalorder %s49, %s50
      %p61 = scmp.eq.s32.totalorder %s29, 0
      %p62 = por %p60, %p61
      %p63 = scmp.ne.s32.totalorder %s49, %s50
      %p64 = scmp.eq.s32.totalorder %s30, 1
      %p65 = por %p63, %p64
      %p67 = scmp.ne.s32.totalorder %s50, %s66
      %p68 = scmp.eq.s32.totalorder %s30, 0
      %p69 = por %p67, %p68
      %s70 = ssub.s32 %s32, %s39
      %p71 = scmp.eq.s32.totalorder %s70, 0
      %s73 = sadd.s32 %s72, 1
      %s74 = scalar_select %p71, %s72, %s73
      %p77 = pneg %p71
      %p78 = scmp.eq.s32.totalorder %s24, 1
      %p79 = por %p77, %p78
      %p80 = scmp.ne.s32.totalorder %s72, %s75
      %p81 = scmp.eq.s32.totalorder %s24, 0
      %p82 = por %p80, %p81
      %p83 = scmp.ne.s32.totalorder %s72, %s75
      %p84 = scmp.eq.s32.totalorder %s29, 1
      %p85 = por %p83, %p84
      %p86 = scmp.ne.s32.totalorder %s75, %s76
      %p87 = scmp.eq.s32.totalorder %s29, 0
      %p88 = por %p86, %p87
      %p89 = scmp.ne.s32.totalorder %s75, %s76
      %p90 = scmp.eq.s32.totalorder %s30, 1
      %p91 = por %p89, %p90
      %p93 = scmp.ne.s32.totalorder %s76, %s92
      %p94 = scmp.eq.s32.totalorder %s30, 0
      %p95 = por %p93, %p94
      %s96 = ssub.s32 %s32, %s39
      %p97 = scmp.eq.s32.totalorder %s96, 0
      %s99 = sadd.s32 %s98, 1
      %s100 = scalar_select %p97, %s98, %s99
      %p103 = pneg %p97
      %p104 = scmp.eq.s32.totalorder %s24, 1
      %p105 = por %p103, %p104
      %p106 = scmp.ne.s32.totalorder %s98, %s101
      %p107 = scmp.eq.s32.totalorder %s24, 0
      %p108 = por %p106, %p107
      %p109 = scmp.ne.s32.totalorder %s98, %s101
      %p110 = scmp.eq.s32.totalorder %s29, 1
      %p111 = por %p109, %p110
      %p112 = scmp.ne.s32.totalorder %s101, %s102
      %p113 = scmp.eq.s32.totalorder %s29, 0
      %p114 = por %p112, %p113
      %p115 = scmp.ne.s32.totalorder %s101, %s102
      %p116 = scmp.eq.s32.totalorder %s30, 1
      %p117 = por %p115, %p116
      %p119 = scmp.ne.s32.totalorder %s102, %s118
      %p120 = scmp.eq.s32.totalorder %s30, 0
      %p121 = por %p119, %p120
      %s122 = ssub.s32 %s32, %s39
      %p123 = scmp.eq.s32.totalorder %s122, 0
      %s125 = sadd.s32 %s124, 1
      %s126 = scalar_select %p123, %s124, %s125
      %p129 = pneg %p123
      %p130 = scmp.eq.s32.totalorder %s24, 1
      %p131 = por %p129, %p130
      %p132 = scmp.ne.s32.totalorder %s124, %s127
      %p133 = scmp.eq.s32.totalorder %s24, 0
      %p134 = por %p132, %p133
      %p135 = scmp.ne.s32.totalorder %s124, %s127
      %p136 = scmp.eq.s32.totalorder %s29, 1
      %p137 = por %p135, %p136
      %p138 = scmp.ne.s32.totalorder %s127, %s128
      %p139 = scmp.eq.s32.totalorder %s29, 0
      %p140 = por %p138, %p139
      %p141 = scmp.ne.s32.totalorder %s127, %s128
      %p142 = scmp.eq.s32.totalorder %s30, 1
      %p143 = por %p141, %p142
      %p145 = scmp.ne.s32.totalorder %s128, %s144
      %p146 = scmp.eq.s32.totalorder %s30, 0
      %p147 = por %p145, %p146
      %s149 = sadd.s32 %s148, 1
      %p152 = scmp.eq.s32.totalorder %s24, 1
      %p153 = scmp.ne.s32.totalorder %s148, %s150
      %p154 = scmp.eq.s32.totalorder %s24, 0
      %p155 = por %p153, %p154
      %p156 = scmp.ne.s32.totalorder %s148, %s150
      %p157 = scmp.eq.s32.totalorder %s29, 1
      %p158 = por %p156, %p157
      %p159 = scmp.ne.s32.totalorder %s150, %s151
      %p160 = scmp.eq.s32.totalorder %s29, 0
      %p161 = por %p159, %p160
      %p162 = scmp.ne.s32.totalorder %s150, %s151
      %p163 = scmp.eq.s32.totalorder %s30, 1
      %p164 = por %p162, %p163
      %p166 = scmp.ne.s32.totalorder %s151, %s165
      %p167 = scmp.eq.s32.totalorder %s30, 0
      %p168 = por %p166, %p167
      %s169 = ssub.s32 %s31, %s43
      %p170 = scmp.eq.s32.totalorder %s169, 0
      %s172 = sadd.s32 %s171, 1
      %s173 = scalar_select %p170, %s171, %s172
      %p176 = pneg %p170
      %p177 = scmp.eq.s32.totalorder %s24, 1
      %p178 = por %p176, %p177
      %p179 = scmp.ne.s32.totalorder %s171, %s174
      %p180 = scmp.eq.s32.totalorder %s24, 0
      %p181 = por %p179, %p180
      %p182 = scmp.ne.s32.totalorder %s171, %s174
      %p183 = scmp.eq.s32.totalorder %s29, 1
      %p184 = por %p182, %p183
      %p185 = scmp.ne.s32.totalorder %s174, %s175
      %p186 = scmp.eq.s32.totalorder %s29, 0
      %p187 = por %p185, %p186
      %p188 = scmp.ne.s32.totalorder %s174, %s175
      %p189 = scmp.eq.s32.totalorder %s30, 1
      %p190 = por %p188, %p189
      %p192 = scmp.ne.s32.totalorder %s175, %s191
      %p193 = scmp.eq.s32.totalorder %s30, 0
      %p194 = por %p192, %p193
      %s196 = sadd.s32 %s195, 1
      %p199 = scmp.eq.s32.totalorder %s24, 1
      %p200 = scmp.ne.s32.totalorder %s195, %s197
      %p201 = scmp.eq.s32.totalorder %s24, 0
      %p202 = por %p200, %p201
      %p203 = scmp.ne.s32.totalorder %s195, %s197
      %p204 = scmp.eq.s32.totalorder %s29, 1
      %p205 = por %p203, %p204
      %p206 = scmp.ne.s32.totalorder %s197, %s198
      %p207 = scmp.eq.s32.totalorder %s29, 0
      %p208 = por %p206, %p207
      %p209 = scmp.ne.s32.totalorder %s197, %s198
      %p210 = scmp.eq.s32.totalorder %s30, 1
      %p211 = por %p209, %p210
      %p213 = scmp.ne.s32.totalorder %s198, %s212
      %p214 = scmp.eq.s32.totalorder %s30, 0
      %p215 = por %p213, %p214
      %s217 = sadd.s32 %s216, 1
      %p220 = scmp.eq.s32.totalorder %s24, 1
      %p221 = scmp.ne.s32.totalorder %s216, %s218
      %p222 = scmp.eq.s32.totalorder %s24, 0
      %p223 = por %p221, %p222
      %p224 = scmp.ne.s32.totalorder %s216, %s218
      %p225 = scmp.eq.s32.totalorder %s29, 1
      %p226 = por %p224, %p225
      %p227 = scmp.ne.s32.totalorder %s218, %s219
      %p228 = scmp.eq.s32.totalorder %s29, 0
      %p229 = por %p227, %p228
      %p230 = scmp.ne.s32.totalorder %s218, %s219
      %p231 = scmp.eq.s32.totalorder %s30, 1
      %p232 = por %p230, %p231
      %p234 = scmp.ne.s32.totalorder %s219, %s233
      %p235 = scmp.eq.s32.totalorder %s30, 0
      %p236 = por %p234, %p235
      %s237 = ssub.s32 %s31, %s43
      %p238 = scmp.eq.s32.totalorder %s237, 0
      %s240 = sadd.s32 %s239, 1
      %s241 = scalar_select %p238, %s239, %s240
      %p244 = pneg %p238
      %p245 = scmp.eq.s32.totalorder %s24, 1
      %p246 = por %p244, %p245
      %p247 = scmp.ne.s32.totalorder %s239, %s242
      %p248 = scmp.eq.s32.totalorder %s24, 0
      %p249 = por %p247, %p248
      %p250 = scmp.ne.s32.totalorder %s239, %s242
      %p251 = scmp.eq.s32.totalorder %s29, 1
      %p252 = por %p250, %p251
      %p253 = scmp.ne.s32.totalorder %s242, %s243
      %p254 = scmp.eq.s32.totalorder %s29, 0
      %p255 = por %p253, %p254
      %p256 = scmp.ne.s32.totalorder %s242, %s243
      %p257 = scmp.eq.s32.totalorder %s30, 1
      %p258 = por %p256, %p257
      %p260 = scmp.ne.s32.totalorder %s243, %s259
      %p261 = scmp.eq.s32.totalorder %s30, 0
      %p262 = por %p260, %p261
      %p263 = scmp.le.s32.totalorder 1, %s24
      %p264 = scmp.lt.s32.totalorder %s24, 3
      %p265 = pnand %p263, %p264
      %p266 = pneg %p265
      // Predicated region
      $region9: #{seq2seq_forward.28} parent=5 // pred_check
        _
      $region10: #{seq2seq_forward.28} parent=5 // pred_check_branch
        %268 = sbr.rel (%p265) target = $region12
      $region11: #{seq2seq_forward.28} parent=5 // pred_region
        %s269 = ssub.s32 %s24, 1
        // Predicated region
        $region13: #{seq2seq_forward.28} parent=11 // pred_check
          %p270 = pneg %p62
        $region14: #{seq2seq_forward.28} parent=11 // pred_check_branch
          %272 = sbr.rel (%p270) target = $region16
        $region15: #{seq2seq_forward.28} parent=11 // pred_region
          %s273 = smul.u32 4, %s33
          %s275 = ssub.s32 512, 512
          %276 = vsyncadd [#allocation4], %s275
          %s277 = smul.addr %s273, 2
          %s278 = smul.addr %s277, 64
          %s279 = scalar_lea.hbm %s0, %s278
          %s280 = sshll.u32 [#allocation3], 4
          %s281 = int_to_ptr.vmem [resolvable:$true] %s280
          %286 = dma.hbm_to_vmem [thread:$0]  %s279, 512, %s281, [#allocation4], 128, 128, 8
        $region16: #{seq2seq_forward.28} parent=11 // pred_fallthru
          _
        // Predicated region
        $region17: #{seq2seq_forward.28} parent=11 // pred_check
          %p287 = pneg %p161
        $region18: #{seq2seq_forward.28} parent=11 // pred_check_branch
          %289 = sbr.rel (%p287) target = $region20
        $region19: #{seq2seq_forward.28} parent=11 // pred_region
          %s291 = ssub.s32 32, 32
          %292 = vsyncadd [#allocation10], %s291
          %s294 = sshll.u32 [#allocation11], 4
          %s295 = int_to_ptr.vmem [resolvable:$true] %s294
          %297 = dma.hbm_to_vmem [thread:$0]  %s4, 32, %s295, [#allocation10]
        $region20: #{seq2seq_forward.28} parent=11 // pred_fallthru
          _
        // Predicated region
        $region21: #{seq2seq_forward.28} parent=11 // pred_check
          %p298 = pneg %p187
        $region22: #{seq2seq_forward.28} parent=11 // pred_check_branch
          %300 = sbr.rel (%p298) target = $region24
        $region23: #{seq2seq_forward.28} parent=11 // pred_region
          %s301 = smul.u32 4, %s33
          %s303 = ssub.s32 512, 512
          %304 = vsyncadd [#allocation13], %s303
          %s305 = smul.addr %s301, 2
          %s306 = smul.addr %s305, 64
          %s307 = scalar_lea.hbm %s5, %s306
          %s308 = sshll.u32 [#allocation12], 4
          %s309 = int_to_ptr.vmem [resolvable:$true] %s308
          %314 = dma.hbm_to_vmem [thread:$0]  %s307, 512, %s309, [#allocation13], 128, 128, 8
        $region24: #{seq2seq_forward.28} parent=11 // pred_fallthru
          _
        // Predicated region
        $region25: #{seq2seq_forward.28} parent=11 // pred_check
          %p315 = pneg %p208
        $region26: #{seq2seq_forward.28} parent=11 // pred_check_branch
          %317 = sbr.rel (%p315) target = $region28
        $region27: #{seq2seq_forward.28} parent=11 // pred_region
          %s319 = ssub.s32 32, 32
          %320 = vsyncadd [#allocation13], %s319
          %s322 = sshll.u32 [#allocation14], 4
          %s323 = int_to_ptr.vmem [resolvable:$true] %s322
          %325 = dma.hbm_to_vmem [thread:$0]  %s6, 32, %s323, [#allocation13]
        $region28: #{seq2seq_forward.28} parent=11 // pred_fallthru
          _
        // Predicated region
        $region29: #{seq2seq_forward.28} parent=11 // pred_check
          %p326 = pneg %p229
        $region30: #{seq2seq_forward.28} parent=11 // pred_check_branch
          %328 = sbr.rel (%p326) target = $region32
        $region31: #{seq2seq_forward.28} parent=11 // pred_region
          %s330 = ssub.s32 32, 32
          %331 = vsyncadd [#allocation16], %s330
          %s333 = sshll.u32 [#allocation15], 4
          %s334 = int_to_ptr.vmem [resolvable:$true] %s333
          %336 = dma.hbm_to_vmem [thread:$0]  %s7, 32, %s334, [#allocation16]
        $region32: #{seq2seq_forward.28} parent=11 // pred_fallthru
          _
      $region12: #{seq2seq_forward.28} parent=5 // pred_fallthru
        _
      %p337 = scmp.lt.s32.totalorder %s24, 2
      // Predicated region
      $region33: #{seq2seq_forward.28} parent=5 // pred_check
        %p338 = pneg %p337
      $region34: #{seq2seq_forward.28} parent=5 // pred_check_branch
        %340 = sbr.rel (%p338) target = $region36
      $region35: #{seq2seq_forward.28} parent=5 // pred_region
        // Predicated region
        $region37: #{seq2seq_forward.28} parent=35 // pred_check
          %p341 = pneg %p82
        $region38: #{seq2seq_forward.28} parent=35 // pred_check_branch
          %343 = sbr.rel (%p341) target = $region40
        $region39: #{seq2seq_forward.28} parent=35 // pred_region
          %s344 = sand.u32 %s24, 1
          %s345 = scalar_lea.sflag [#allocation7], %s344
          %s346 = sand.u32 %s72, 1
          %s347 = smul.addr %s346, 256
          %s348 = scalar_lea.vmem [#allocation6], %s347
          %s349 = smul.u32 2, %s32
          %s351 = ssub.s32 4096, 4096
          %352 = vsyncadd %s345, %s351
          %s353 = smul.addr %s349, 64
          %s354 = scalar_lea.hbm %s1, %s353
          %s355 = sshll.u32 %s348, 4
          %s356 = int_to_ptr.vmem [resolvable:$true] %s355
          %361 = dma.hbm_to_vmem [thread:$0]  %s354, 4096, %s356, %s345, 256, 128, 8
        $region40: #{seq2seq_forward.28} parent=35 // pred_fallthru
          _
        // Predicated region
        $region41: #{seq2seq_forward.28} parent=35 // pred_check
          %p362 = pneg %p108
        $region42: #{seq2seq_forward.28} parent=35 // pred_check_branch
          %364 = sbr.rel (%p362) target = $region44
        $region43: #{seq2seq_forward.28} parent=35 // pred_region
          %s365 = sand.u32 %s24, 1
          %s366 = scalar_lea.sflag [#allocation7], %s365
          %s367 = sand.u32 %s98, 1
          %s368 = smul.addr %s367, 2
          %s369 = scalar_lea.vmem [#allocation8], %s368
          %s370 = smul.u32 2, %s32
          %s372 = ssub.s32 32, 32
          %373 = vsyncadd %s366, %s372
          %s374 = smul.addr %s370, 16
          %s375 = scalar_lea.hbm %s2, %s374
          %s377 = sshll.u32 %s369, 4
          %s378 = int_to_ptr.vmem [resolvable:$true] %s377
          %380 = dma.hbm_to_vmem [thread:$0]  %s375, 32, %s378, %s366
        $region44: #{seq2seq_forward.28} parent=35 // pred_fallthru
          _
        // Predicated region
        $region45: #{seq2seq_forward.28} parent=35 // pred_check
          %p381 = pneg %p134
        $region46: #{seq2seq_forward.28} parent=35 // pred_check_branch
          %383 = sbr.rel (%p381) target = $region48
        $region47: #{seq2seq_forward.28} parent=35 // pred_region
          %s384 = sand.u32 %s24, 1
          %s385 = scalar_lea.sflag [#allocation10], %s384
          %s386 = sand.u32 %s124, 1
          %s387 = smul.addr %s386, 256
          %s388 = scalar_lea.vmem [#allocation9], %s387
          %s389 = smul.u32 32, %s32
          %s391 = ssub.s32 4096, 4096
          %392 = vsyncadd %s385, %s391
          %s393 = smul.addr %s389, 2
          %s394 = smul.addr %s393, 64
          %s395 = scalar_lea.hbm %s3, %s394
          %s396 = sshll.u32 %s388, 4
          %s397 = int_to_ptr.vmem [resolvable:$true] %s396
          %402 = dma.hbm_to_vmem [thread:$0]  %s395, 4096, %s397, %s385, 128, 128, 8
        $region48: #{seq2seq_forward.28} parent=35 // pred_fallthru
          _
      $region36: #{seq2seq_forward.28} parent=5 // pred_fallthru
        _
      %p403 = scmp.le.s32.totalorder 1, %s24
      %p404 = scmp.lt.s32.totalorder %s24, 3
      %p405 = pnand %p403, %p404
      %p406 = pneg %p405
      // Predicated region
      $region49: #{seq2seq_forward.28} parent=5 // pred_check
        _
      $region50: #{seq2seq_forward.28} parent=5 // pred_check_branch
        %408 = sbr.rel (%p405) target = $region52
      $region51: #{seq2seq_forward.28} parent=5 // pred_region
        %s409 = ssub.s32 %s24, 1
        // Predicated region
        $region53: #{seq2seq_forward.28} parent=51 // pred_check
          %p410 = pneg %p62
        $region54: #{seq2seq_forward.28} parent=51 // pred_check_branch
          %412 = sbr.rel (%p410) target = $region56
        $region55: #{seq2seq_forward.28} parent=51 // pred_region
          %413 = dma.done [#allocation4], 512
        $region56: #{seq2seq_forward.28} parent=51 // pred_fallthru
          _
        %s414 = sand.u32 %s29, 1
        %s415 = scalar_lea.sflag [#allocation7], %s414
        %s416 = sand.u32 %s75, 1
        %s417 = smul.addr %s416, 256
        %s418 = scalar_lea.vmem [#allocation6], %s417
        // Predicated region
        $region57: #{seq2seq_forward.28} parent=51 // pred_check
          %p419 = pneg %p88
        $region58: #{seq2seq_forward.28} parent=51 // pred_check_branch
          %421 = sbr.rel (%p419) target = $region60
        $region59: #{seq2seq_forward.28} parent=51 // pred_region
          %422 = dma.done %s415, 4096
        $region60: #{seq2seq_forward.28} parent=51 // pred_fallthru
          _
        %s423 = sand.u32 %s29, 1
        %s424 = scalar_lea.sflag [#allocation7], %s423
        %s425 = sand.u32 %s101, 1
        %s426 = smul.addr %s425, 2
        %s427 = scalar_lea.vmem [#allocation8], %s426
        // Predicated region
        $region61: #{seq2seq_forward.28} parent=51 // pred_check
          %p428 = pneg %p114
        $region62: #{seq2seq_forward.28} parent=51 // pred_check_branch
          %430 = sbr.rel (%p428) target = $region64
        $region63: #{seq2seq_forward.28} parent=51 // pred_region
          %431 = dma.done %s424, 32
        $region64: #{seq2seq_forward.28} parent=51 // pred_fallthru
          _
        %s432 = sand.u32 %s29, 1
        %s433 = scalar_lea.sflag [#allocation10], %s432
        %s434 = sand.u32 %s127, 1
        %s435 = smul.addr %s434, 256
        %s436 = scalar_lea.vmem [#allocation9], %s435
        // Predicated region
        $region65: #{seq2seq_forward.28} parent=51 // pred_check
          %p437 = pneg %p140
        $region66: #{seq2seq_forward.28} parent=51 // pred_check_branch
          %439 = sbr.rel (%p437) target = $region68
        $region67: #{seq2seq_forward.28} parent=51 // pred_region
          %440 = dma.done %s433, 4096
        $region68: #{seq2seq_forward.28} parent=51 // pred_fallthru
          _
        // Predicated region
        $region69: #{seq2seq_forward.28} parent=51 // pred_check
          %p441 = pneg %p161
        $region70: #{seq2seq_forward.28} parent=51 // pred_check_branch
          %443 = sbr.rel (%p441) target = $region72
        $region71: #{seq2seq_forward.28} parent=51 // pred_region
          %444 = dma.done [#allocation10], 32
        $region72: #{seq2seq_forward.28} parent=51 // pred_fallthru
          _
        // Predicated region
        $region73: #{seq2seq_forward.28} parent=51 // pred_check
          %p445 = pneg %p187
        $region74: #{seq2seq_forward.28} parent=51 // pred_check_branch
          %447 = sbr.rel (%p445) target = $region76
        $region75: #{seq2seq_forward.28} parent=51 // pred_region
          %448 = dma.done [#allocation13], 512
        $region76: #{seq2seq_forward.28} parent=51 // pred_fallthru
          _
        // Predicated region
        $region77: #{seq2seq_forward.28} parent=51 // pred_check
          %p449 = pneg %p208
        $region78: #{seq2seq_forward.28} parent=51 // pred_check_branch
          %451 = sbr.rel (%p449) target = $region80
        $region79: #{seq2seq_forward.28} parent=51 // pred_region
          %452 = dma.done [#allocation13], 32
        $region80: #{seq2seq_forward.28} parent=51 // pred_fallthru
          _
        // Predicated region
        $region81: #{seq2seq_forward.28} parent=51 // pred_check
          %p453 = pneg %p229
        $region82: #{seq2seq_forward.28} parent=51 // pred_check_branch
          %455 = sbr.rel (%p453) target = $region84
        $region83: #{seq2seq_forward.28} parent=51 // pred_region
          %456 = dma.done [#allocation16], 32
        $region84: #{seq2seq_forward.28} parent=51 // pred_fallthru
          _
        %p457 = pneg %p62
        %p458 = pneg %p59
        %s459 = sand.u32 %s29, 1
        %s460 = scalar_lea.sflag [#allocation7], %s459
        %s461 = sand.u32 %s75, 1
        %s462 = smul.addr %s461, 256
        %s463 = scalar_lea.vmem [#allocation6], %s462
        %p464 = pneg %p88
        %p465 = pneg %p85
        %s466 = sand.u32 %s29, 1
        %s467 = scalar_lea.sflag [#allocation7], %s466
        %s468 = sand.u32 %s101, 1
        %s469 = smul.addr %s468, 2
        %s470 = scalar_lea.vmem [#allocation8], %s469
        %p471 = pneg %p114
        %p472 = pneg %p111
        %s473 = sand.u32 %s29, 1
        %s474 = scalar_lea.sflag [#allocation10], %s473
        %s475 = sand.u32 %s127, 1
        %s476 = smul.addr %s475, 256
        %s477 = scalar_lea.vmem [#allocation9], %s476
        %p478 = pneg %p140
        %p479 = pneg %p137
        %p480 = pneg %p161
        %p481 = pneg %p158
        %p482 = pneg %p187
        %p483 = pneg %p184
        %p484 = pneg %p208
        %p485 = pneg %p205
        %p486 = pneg %p229
        %p487 = pneg %p226
        %p488 = pneg %p255
        %p489 = pneg %p252
        %s490 = smul.u32 4, %s33
        %s491 = smul.u32 2, %s34
        %s492 = smul.u32 2, %s34
        %s493 = smul.u32 32, %s34
        %s494 = smul.u32 4, %s33
        %s495 = smul.u32 4, %s33
        %p496 = scmp.eq.s32.totalorder %s34, 0
        // Predicated region
        $region85: #{seq2seq_forward.28} parent=51 // pred_check
          %p497 = pneg %p496
        $region86: #{seq2seq_forward.28} parent=51 // pred_check_branch
          %499 = sbr.rel (%p497) target = $region88
        $region87: #{seq2seq_forward.28} parent=51 // pred_region
          %500 = vst [vmem:[#allocation2] sm:$0xff] 0.0
          %501 = vst [vmem:[#allocation2 + $0x8] sm:$0xff] 0.0
          %502 = vst [vmem:[#allocation2 + $0x10] sm:$0xff] 0.0
          %503 = vst [vmem:[#allocation2 + $0x18] sm:$0xff] 0.0
          %504 = vst [vmem:[#allocation2 + $0x20] sm:$0xff] 0.0
          %505 = vst [vmem:[#allocation2 + $0x28] sm:$0xff] 0.0
          %506 = vst [vmem:[#allocation2 + $0x30] sm:$0xff] 0.0
          %507 = vst [vmem:[#allocation2 + $0x38] sm:$0xff] 0.0
        $region88: #{seq2seq_forward.28} parent=51 // pred_fallthru
          _
        %v508 = vld [vmem:[#allocation3] sm:$0xff]
        %v509 = vld [vmem:[#allocation3 + $0x8] sm:$0xff]
        %v510 = vld [vmem:[#allocation3 + $0x10] sm:$0xff]
        %v511 = vld [vmem:[#allocation3 + $0x18] sm:$0xff]
        %v512 = vld [vmem:[%s418] sm:$0xff]
        %v513 = vld [vmem:[%s418 + $0x8] sm:$0xff]
        %v514 = vld [vmem:[%s418 + $0x10] sm:$0xff]
        %v515 = vld [vmem:[%s418 + $0x18] sm:$0xff]
        %v516 = vld [vmem:[%s418 + $0x20] sm:$0xff]
        %v517 = vld [vmem:[%s418 + $0x28] sm:$0xff]
        %v518 = vld [vmem:[%s418 + $0x30] sm:$0xff]
        %v519 = vld [vmem:[%s418 + $0x38] sm:$0xff]
        %v520 = vld [vmem:[%s418 + $0x40] sm:$0xff]
        %v521 = vld [vmem:[%s418 + $0x48] sm:$0xff]
        %v522 = vld [vmem:[%s418 + $0x50] sm:$0xff]
        %v523 = vld [vmem:[%s418 + $0x58] sm:$0xff]
        %v524 = vld [vmem:[%s418 + $0x60] sm:$0xff]
        %v525 = vld [vmem:[%s418 + $0x68] sm:$0xff]
        %v526 = vld [vmem:[%s418 + $0x70] sm:$0xff]
        %v527 = vld [vmem:[%s418 + $0x78] sm:$0xff]
        %v528 = vld [vmem:[%s418 + $0x80] sm:$0xff]
        %v529 = vld [vmem:[%s418 + $0x88] sm:$0xff]
        %v530 = vld [vmem:[%s418 + $0x90] sm:$0xff]
        %v531 = vld [vmem:[%s418 + $0x98] sm:$0xff]
        %v532 = vld [vmem:[%s418 + $0xa0] sm:$0xff]
        %v533 = vld [vmem:[%s418 + $0xa8] sm:$0xff]
        %v534 = vld [vmem:[%s418 + $0xb0] sm:$0xff]
        %v535 = vld [vmem:[%s418 + $0xb8] sm:$0xff]
        %v536 = vld [vmem:[%s418 + $0xc0] sm:$0xff]
        %v537 = vld [vmem:[%s418 + $0xc8] sm:$0xff]
        %v538 = vld [vmem:[%s418 + $0xd0] sm:$0xff]
        %v539 = vld [vmem:[%s418 + $0xd8] sm:$0xff]
        %v540 = vld [vmem:[%s418 + $0xe0] sm:$0xff]
        %v541 = vld [vmem:[%s418 + $0xe8] sm:$0xff]
        %v542 = vld [vmem:[%s418 + $0xf0] sm:$0xff]
        %v543 = vld [vmem:[%s418 + $0xf8] sm:$0xff]
        %v544 = vld [vmem:[%s427] sm:$0x3]
        %v546 = vlaneseq
        %v547 = vshrl.u32 %v546, 7
        %v548 = vsub.s32 0, %v547
        %v549 = vrot.slane %v544, %v548
        %v550 = vlaneseq
        %v551 = vshrl.u32 %v550, 7
        %v552 = vsub.s32 1, %v551
        %v553 = vrot.slane %v544, %v552
        %v560 = vunpack.c.l.b16 %v508
        %v561 = vunpack.c.h.b16 %v508
        %v562 = vunpack.c.l.b16 %v509
        %v563 = vunpack.c.h.b16 %v509
        %v564 = vunpack.c.l.b16 %v510
        %v565 = vunpack.c.h.b16 %v510
        %v566 = vunpack.c.l.b16 %v511
        %v567 = vunpack.c.h.b16 %v511
        %v568 = vpack.c.b16 %v562, %v560
        %v569 = vpack.c.b16 %v563, %v561
        %v570 = vpack.c.b16 %v566, %v564
        %v571 = vpack.c.b16 %v567, %v565
        %v608 = vunpack.c.l.b16 %v512
        %v609 = vunpack.c.h.b16 %v512
        %v610 = vunpack.c.l.b16 %v513
        %v611 = vunpack.c.h.b16 %v513
        %v612 = vunpack.c.l.b16 %v514
        %v613 = vunpack.c.h.b16 %v514
        %v614 = vunpack.c.l.b16 %v515
        %v615 = vunpack.c.h.b16 %v515
        %v616 = vunpack.c.l.b16 %v516
        %v617 = vunpack.c.h.b16 %v516
        %v618 = vunpack.c.l.b16 %v517
        %v619 = vunpack.c.h.b16 %v517
        %v620 = vunpack.c.l.b16 %v518
        %v621 = vunpack.c.h.b16 %v518
        %v622 = vunpack.c.l.b16 %v519
        %v623 = vunpack.c.h.b16 %v519
        %v624 = vunpack.c.l.b16 %v520
        %v625 = vunpack.c.h.b16 %v520
        %v626 = vunpack.c.l.b16 %v521
        %v627 = vunpack.c.h.b16 %v521
        %v628 = vunpack.c.l.b16 %v522
        %v629 = vunpack.c.h.b16 %v522
        %v630 = vunpack.c.l.b16 %v523
        %v631 = vunpack.c.h.b16 %v523
        %v632 = vunpack.c.l.b16 %v524
        %v633 = vunpack.c.h.b16 %v524
        %v634 = vunpack.c.l.b16 %v525
        %v635 = vunpack.c.h.b16 %v525
        %v636 = vunpack.c.l.b16 %v526
        %v637 = vunpack.c.h.b16 %v526
        %v638 = vunpack.c.l.b16 %v527
        %v639 = vunpack.c.h.b16 %v527
        %v640 = vunpack.c.l.b16 %v528
        %v641 = vunpack.c.h.b16 %v528
        %v642 = vunpack.c.l.b16 %v529
        %v643 = vunpack.c.h.b16 %v529
        %v644 = vunpack.c.l.b16 %v530
        %v645 = vunpack.c.h.b16 %v530
        %v646 = vunpack.c.l.b16 %v531
        %v647 = vunpack.c.h.b16 %v531
        %v648 = vunpack.c.l.b16 %v532
        %v649 = vunpack.c.h.b16 %v532
        %v650 = vunpack.c.l.b16 %v533
        %v651 = vunpack.c.h.b16 %v533
        %v652 = vunpack.c.l.b16 %v534
        %v653 = vunpack.c.h.b16 %v534
        %v654 = vunpack.c.l.b16 %v535
        %v655 = vunpack.c.h.b16 %v535
        %v656 = vunpack.c.l.b16 %v536
        %v657 = vunpack.c.h.b16 %v536
        %v658 = vunpack.c.l.b16 %v537
        %v659 = vunpack.c.h.b16 %v537
        %v660 = vunpack.c.l.b16 %v538
        %v661 = vunpack.c.h.b16 %v538
        %v662 = vunpack.c.l.b16 %v539
        %v663 = vunpack.c.h.b16 %v539
        %v664 = vunpack.c.l.b16 %v540
        %v665 = vunpack.c.h.b16 %v540
        %v666 = vunpack.c.l.b16 %v541
        %v667 = vunpack.c.h.b16 %v541
        %v668 = vunpack.c.l.b16 %v542
        %v669 = vunpack.c.h.b16 %v542
        %v670 = vunpack.c.l.b16 %v543
        %v671 = vunpack.c.h.b16 %v543
        %v672 = vpack.c.b16 %v610, %v608
        %v673 = vpack.c.b16 %v611, %v609
        %v674 = vpack.c.b16 %v614, %v612
        %v675 = vpack.c.b16 %v615, %v613
        %v676 = vpack.c.b16 %v618, %v616
        %v677 = vpack.c.b16 %v619, %v617
        %v678 = vpack.c.b16 %v622, %v620
        %v679 = vpack.c.b16 %v623, %v621
        %v680 = vpack.c.b16 %v626, %v624
        %v681 = vpack.c.b16 %v627, %v625
        %v682 = vpack.c.b16 %v630, %v628
        %v683 = vpack.c.b16 %v631, %v629
        %v684 = vpack.c.b16 %v634, %v632
        %v685 = vpack.c.b16 %v635, %v633
        %v686 = vpack.c.b16 %v638, %v636
        %v687 = vpack.c.b16 %v639, %v637
        %v688 = vpack.c.b16 %v642, %v640
        %v689 = vpack.c.b16 %v643, %v641
        %v690 = vpack.c.b16 %v646, %v644
        %v691 = vpack.c.b16 %v647, %v645
        %v692 = vpack.c.b16 %v650, %v648
        %v693 = vpack.c.b16 %v651, %v649
        %v694 = vpack.c.b16 %v654, %v652
        %v695 = vpack.c.b16 %v655, %v653
        %v696 = vpack.c.b16 %v658, %v656
        %v697 = vpack.c.b16 %v659, %v657
        %v698 = vpack.c.b16 %v662, %v660
        %v699 = vpack.c.b16 %v663, %v661
        %v700 = vpack.c.b16 %v666, %v664
        %v701 = vpack.c.b16 %v667, %v665
        %v702 = vpack.c.b16 %v670, %v668
        %v703 = vpack.c.b16 %v671, %v669
        %736 = vmatprep.subr.bf16.mxu0 %v673
        %737 = vmatpush1.bf16.msra.mxu0 %v672
        %738 = vmatprep.subr.bf16.mxu0 %v675
        %739 = vmatpush1.bf16.msra.mxu0 %v674
        %740 = vmatprep.subr.bf16.mxu0 %v677
        %741 = vmatpush1.bf16.msra.mxu0 %v676
        %742 = vmatprep.subr.bf16.mxu0 %v679
        %743 = vmatpush1.bf16.msra.mxu0 %v678
        %744 = vmatprep.subr.bf16.mxu0 %v681
        %745 = vmatpush1.bf16.msra.mxu0 %v680
        %746 = vmatprep.subr.bf16.mxu0 %v683
        %747 = vmatpush1.bf16.msra.mxu0 %v682
        %748 = vmatprep.subr.bf16.mxu0 %v685
        %749 = vmatpush1.bf16.msra.mxu0 %v684
        %750 = vmatprep.subr.bf16.mxu0 %v687
        %751 = vmatpush1.bf16.msra.mxu0 %v686
        %752 = vmatprep.subr.bf16.mxu0 %v689
        %753 = vmatpush1.bf16.msra.mxu0 %v688
        %754 = vmatprep.subr.bf16.mxu0 %v691
        %755 = vmatpush1.bf16.msra.mxu0 %v690
        %756 = vmatprep.subr.bf16.mxu0 %v693
        %757 = vmatpush1.bf16.msra.mxu0 %v692
        %758 = vmatprep.subr.bf16.mxu0 %v695
        %759 = vmatpush1.bf16.msra.mxu0 %v694
        %760 = vmatprep.subr.bf16.mxu0 %v697
        %761 = vmatpush1.bf16.msra.mxu0 %v696
        %762 = vmatprep.subr.bf16.mxu0 %v699
        %763 = vmatpush1.bf16.msra.mxu0 %v698
        %764 = vmatprep.subr.bf16.mxu0 %v701
        %765 = vmatpush1.bf16.msra.mxu0 %v700
        %766 = vmatprep.subr.bf16.mxu0 %v703
        %767 = vmatpush1.bf16.msra.mxu0 %v702
        %768 = vmatprep.mubr.bf16.mxu0 %v569
        %769 = vmatmul.mubr.bf16.gmra.mrb[0].mxu0 %v568
        %v770 = vpop.f32.mrb[0].mxu0
        %v771 = vadd.f32 %v549, %v770
        %v772 = vpop.f32.mrb[0].mxu0
        %v773 = vadd.f32 %v553, %v772
        %v774 = vpop.f32.mrb[0].mxu0
        %v775 = vadd.f32 %v549, %v774
        %v776 = vpop.f32.mrb[0].mxu0
        %v777 = vadd.f32 %v553, %v776
        %778 = vmatprep.mubr.bf16.mxu0 %v571
        %779 = vmatmul.mubr.bf16.gmra.mrb[0].mxu0 %v570
        %v780 = vpop.f32.mrb[0].mxu0
        %v781 = vadd.f32 %v549, %v780
        %v782 = vpop.f32.mrb[0].mxu0
        %v783 = vadd.f32 %v553, %v782
        %v784 = vpop.f32.mrb[0].mxu0
        %v785 = vadd.f32 %v549, %v784
        %v786 = vpop.f32.mrb[0].mxu0
        %v787 = vadd.f32 %v553, %v786
        %788 = vdwg.mxu0
        %v789 = vmax.f32 %v771, 0.0
        %v790 = vmax.f32 %v773, 0.0
        %v791 = vmax.f32 %v775, 0.0
        %v792 = vmax.f32 %v777, 0.0
        %v793 = vmax.f32 %v781, 0.0
        %v794 = vmax.f32 %v783, 0.0
        %v795 = vmax.f32 %v785, 0.0
        %v796 = vmax.f32 %v787, 0.0
        %v797 = vpack.c.bf16 %v791, %v789
        %v798 = vpack.c.bf16 %v792, %v790
        %v799 = vpack.c.bf16 %v795, %v793
        %v800 = vpack.c.bf16 %v796, %v794
        %v801 = vld [vmem:[#allocation2] sm:$0xff]
        %v802 = vld [vmem:[#allocation2 + $0x8] sm:$0xff]
        %v803 = vld [vmem:[#allocation2 + $0x10] sm:$0xff]
        %v804 = vld [vmem:[#allocation2 + $0x18] sm:$0xff]
        %v805 = vld [vmem:[#allocation2 + $0x20] sm:$0xff]
        %v806 = vld [vmem:[#allocation2 + $0x28] sm:$0xff]
        %v807 = vld [vmem:[#allocation2 + $0x30] sm:$0xff]
        %v808 = vld [vmem:[#allocation2 + $0x38] sm:$0xff]
        %v809 = vld [vmem:[%s436] sm:$0xff]
        %v810 = vld [vmem:[%s436 + $0x8] sm:$0xff]
        %v811 = vld [vmem:[%s436 + $0x10] sm:$0xff]
        %v812 = vld [vmem:[%s436 + $0x18] sm:$0xff]
        %v813 = vld [vmem:[%s436 + $0x20] sm:$0xff]
        %v814 = vld [vmem:[%s436 + $0x28] sm:$0xff]
        %v815 = vld [vmem:[%s436 + $0x30] sm:$0xff]
        %v816 = vld [vmem:[%s436 + $0x38] sm:$0xff]
        %v817 = vld [vmem:[%s436 + $0x40] sm:$0xff]
        %v818 = vld [vmem:[%s436 + $0x48] sm:$0xff]
        %v819 = vld [vmem:[%s436 + $0x50] sm:$0xff]
        %v820 = vld [vmem:[%s436 + $0x58] sm:$0xff]
        %v821 = vld [vmem:[%s436 + $0x60] sm:$0xff]
        %v822 = vld [vmem:[%s436 + $0x68] sm:$0xff]
        %v823 = vld [vmem:[%s436 + $0x70] sm:$0xff]
        %v824 = vld [vmem:[%s436 + $0x78] sm:$0xff]
        %v825 = vld [vmem:[%s436 + $0x80] sm:$0xff]
        %v826 = vld [vmem:[%s436 + $0x88] sm:$0xff]
        %v827 = vld [vmem:[%s436 + $0x90] sm:$0xff]
        %v828 = vld [vmem:[%s436 + $0x98] sm:$0xff]
        %v829 = vld [vmem:[%s436 + $0xa0] sm:$0xff]
        %v830 = vld [vmem:[%s436 + $0xa8] sm:$0xff]
        %v831 = vld [vmem:[%s436 + $0xb0] sm:$0xff]
        %v832 = vld [vmem:[%s436 + $0xb8] sm:$0xff]
        %v833 = vld [vmem:[%s436 + $0xc0] sm:$0xff]
        %v834 = vld [vmem:[%s436 + $0xc8] sm:$0xff]
        %v835 = vld [vmem:[%s436 + $0xd0] sm:$0xff]
        %v836 = vld [vmem:[%s436 + $0xd8] sm:$0xff]
        %v837 = vld [vmem:[%s436 + $0xe0] sm:$0xff]
        %v838 = vld [vmem:[%s436 + $0xe8] sm:$0xff]
        %v839 = vld [vmem:[%s436 + $0xf0] sm:$0xff]
        %v840 = vld [vmem:[%s436 + $0xf8] sm:$0xff]
        %v873 = vunpack.c.l.b16 %v809
        %v874 = vunpack.c.h.b16 %v809
        %v875 = vunpack.c.l.b16 %v810
        %v876 = vunpack.c.h.b16 %v810
        %v877 = vunpack.c.l.b16 %v811
        %v878 = vunpack.c.h.b16 %v811
        %v879 = vunpack.c.l.b16 %v812
        %v880 = vunpack.c.h.b16 %v812
        %v881 = vunpack.c.l.b16 %v813
        %v882 = vunpack.c.h.b16 %v813
        %v883 = vunpack.c.l.b16 %v814
        %v884 = vunpack.c.h.b16 %v814
        %v885 = vunpack.c.l.b16 %v815
        %v886 = vunpack.c.h.b16 %v815
        %v887 = vunpack.c.l.b16 %v816
        %v888 = vunpack.c.h.b16 %v816
        %v889 = vunpack.c.l.b16 %v817
        %v890 = vunpack.c.h.b16 %v817
        %v891 = vunpack.c.l.b16 %v818
        %v892 = vunpack.c.h.b16 %v818
        %v893 = vunpack.c.l.b16 %v819
        %v894 = vunpack.c.h.b16 %v819
        %v895 = vunpack.c.l.b16 %v820
        %v896 = vunpack.c.h.b16 %v820
        %v897 = vunpack.c.l.b16 %v821
        %v898 = vunpack.c.h.b16 %v821
        %v899 = vunpack.c.l.b16 %v822
        %v900 = vunpack.c.h.b16 %v822
        %v901 = vunpack.c.l.b16 %v823
        %v902 = vunpack.c.h.b16 %v823
        %v903 = vunpack.c.l.b16 %v824
        %v904 = vunpack.c.h.b16 %v824
        %v905 = vunpack.c.l.b16 %v825
        %v906 = vunpack.c.h.b16 %v825
        %v907 = vunpack.c.l.b16 %v826
        %v908 = vunpack.c.h.b16 %v826
        %v909 = vunpack.c.l.b16 %v827
        %v910 = vunpack.c.h.b16 %v827
        %v911 = vunpack.c.l.b16 %v828
        %v912 = vunpack.c.h.b16 %v828
        %v913 = vunpack.c.l.b16 %v829
        %v914 = vunpack.c.h.b16 %v829
        %v915 = vunpack.c.l.b16 %v830
        %v916 = vunpack.c.h.b16 %v830
        %v917 = vunpack.c.l.b16 %v831
        %v918 = vunpack.c.h.b16 %v831
        %v919 = vunpack.c.l.b16 %v832
        %v920 = vunpack.c.h.b16 %v832
        %v921 = vunpack.c.l.b16 %v833
        %v922 = vunpack.c.h.b16 %v833
        %v923 = vunpack.c.l.b16 %v834
        %v924 = vunpack.c.h.b16 %v834
        %v925 = vunpack.c.l.b16 %v835
        %v926 = vunpack.c.h.b16 %v835
        %v927 = vunpack.c.l.b16 %v836
        %v928 = vunpack.c.h.b16 %v836
        %v929 = vunpack.c.l.b16 %v837
        %v930 = vunpack.c.h.b16 %v837
        %v931 = vunpack.c.l.b16 %v838
        %v932 = vunpack.c.h.b16 %v838
        %v933 = vunpack.c.l.b16 %v839
        %v934 = vunpack.c.h.b16 %v839
        %v935 = vunpack.c.l.b16 %v840
        %v936 = vunpack.c.h.b16 %v840
        %v937 = vpack.c.b16 %v875, %v873
        %v938 = vpack.c.b16 %v876, %v874
        %v939 = vpack.c.b16 %v879, %v877
        %v940 = vpack.c.b16 %v880, %v878
        %v941 = vpack.c.b16 %v883, %v881
        %v942 = vpack.c.b16 %v884, %v882
        %v943 = vpack.c.b16 %v887, %v885
        %v944 = vpack.c.b16 %v888, %v886
        %v945 = vpack.c.b16 %v891, %v889
        %v946 = vpack.c.b16 %v892, %v890
        %v947 = vpack.c.b16 %v895, %v893
        %v948 = vpack.c.b16 %v896, %v894
        %v949 = vpack.c.b16 %v899, %v897
        %v950 = vpack.c.b16 %v900, %v898
        %v951 = vpack.c.b16 %v903, %v901
        %v952 = vpack.c.b16 %v904, %v902
        %v953 = vpack.c.b16 %v907, %v905
        %v954 = vpack.c.b16 %v908, %v906
        %v955 = vpack.c.b16 %v911, %v909
        %v956 = vpack.c.b16 %v912, %v910
        %v957 = vpack.c.b16 %v915, %v913
        %v958 = vpack.c.b16 %v916, %v914
        %v959 = vpack.c.b16 %v919, %v917
        %v960 = vpack.c.b16 %v920, %v918
        %v961 = vpack.c.b16 %v923, %v921
        %v962 = vpack.c.b16 %v924, %v922
        %v963 = vpack.c.b16 %v927, %v925
        %v964 = vpack.c.b16 %v928, %v926
        %v965 = vpack.c.b16 %v931, %v929
        %v966 = vpack.c.b16 %v932, %v930
        %v967 = vpack.c.b16 %v935, %v933
        %v968 = vpack.c.b16 %v936, %v934
        %1001 = vmatprep.subr.bf16.mxu0 %v938
        %1002 = vmatpush1.bf16.msra.mxu0 %v937
        %1003 = vmatprep.subr.bf16.mxu0 %v940
        %1004 = vmatpush1.bf16.msra.mxu0 %v939
        %1005 = vmatprep.subr.bf16.mxu0 %v942
        %1006 = vmatpush1.bf16.msra.mxu0 %v941
        %1007 = vmatprep.subr.bf16.mxu0 %v944
        %1008 = vmatpush1.bf16.msra.mxu0 %v943
        %1009 = vmatprep.subr.bf16.mxu0 %v946
        %1010 = vmatpush1.bf16.msra.mxu0 %v945
        %1011 = vmatprep.subr.bf16.mxu0 %v948
        %1012 = vmatpush1.bf16.msra.mxu0 %v947
        %1013 = vmatprep.subr.bf16.mxu0 %v950
        %1014 = vmatpush1.bf16.msra.mxu0 %v949
        %1015 = vmatprep.subr.bf16.mxu0 %v952
        %1016 = vmatpush1.bf16.msra.mxu0 %v951
        %1017 = vmatprep.subr.bf16.mxu0 %v954
        %1018 = vmatpush1.bf16.msra.mxu0 %v953
        %1019 = vmatprep.subr.bf16.mxu0 %v956
        %1020 = vmatpush1.bf16.msra.mxu0 %v955
        %1021 = vmatprep.subr.bf16.mxu0 %v958
        %1022 = vmatpush1.bf16.msra.mxu0 %v957
        %1023 = vmatprep.subr.bf16.mxu0 %v960
        %1024 = vmatpush1.bf16.msra.mxu0 %v959
        %1025 = vmatprep.subr.bf16.mxu0 %v962
        %1026 = vmatpush1.bf16.msra.mxu0 %v961
        %1027 = vmatprep.subr.bf16.mxu0 %v964
        %1028 = vmatpush1.bf16.msra.mxu0 %v963
        %1029 = vmatprep.subr.bf16.mxu0 %v966
        %1030 = vmatpush1.bf16.msra.mxu0 %v965
        %1031 = vmatprep.subr.bf16.mxu0 %v968
        %1032 = vmatpush1.bf16.msra.mxu0 %v967
        %1033 = vmatprep.mubr.bf16.mxu0 %v798
        %1034 = vmatmul.mubr.bf16.gmra.mrb[0].mxu0 %v797
        %v1035 = vpop.f32.mrb[0].mxu0
        %v1036 = vadd.f32 0.0, %v1035
        %v1037 = vpop.f32.mrb[0].mxu0
        %v1038 = vadd.f32 0.0, %v1037
        %v1039 = vpop.f32.mrb[0].mxu0
        %v1040 = vadd.f32 0.0, %v1039
        %v1041 = vpop.f32.mrb[0].mxu0
        %v1042 = vadd.f32 0.0, %v1041
        %1043 = vmatprep.mubr.bf16.mxu0 %v800
        %1044 = vmatmul.mubr.bf16.gmra.mrb[0].mxu0 %v799
        %v1045 = vpop.f32.mrb[0].mxu0
        %v1046 = vadd.f32 0.0, %v1045
        %v1047 = vpop.f32.mrb[0].mxu0
        %v1048 = vadd.f32 0.0, %v1047
        %v1049 = vpop.f32.mrb[0].mxu0
        %v1050 = vadd.f32 0.0, %v1049
        %v1051 = vpop.f32.mrb[0].mxu0
        %v1052 = vadd.f32 0.0, %v1051
        %1053 = vdwg.mxu0
        %v1054 = vadd.f32 %v801, %v1036
        %v1055 = vadd.f32 %v802, %v1038
        %v1056 = vadd.f32 %v803, %v1040
        %v1057 = vadd.f32 %v804, %v1042
        %v1058 = vadd.f32 %v805, %v1046
        %v1059 = vadd.f32 %v806, %v1048
        %v1060 = vadd.f32 %v807, %v1050
        %v1061 = vadd.f32 %v808, %v1052
        %1062 = vst [vmem:[#allocation2] sm:$0xff] %v1054
        %1063 = vst [vmem:[#allocation2 + $0x8] sm:$0xff] %v1055
        %1064 = vst [vmem:[#allocation2 + $0x10] sm:$0xff] %v1056
        %1065 = vst [vmem:[#allocation2 + $0x18] sm:$0xff] %v1057
        %1066 = vst [vmem:[#allocation2 + $0x20] sm:$0xff] %v1058
        %1067 = vst [vmem:[#allocation2 + $0x28] sm:$0xff] %v1059
        %1068 = vst [vmem:[#allocation2 + $0x30] sm:$0xff] %v1060
        %1069 = vst [vmem:[#allocation2 + $0x38] sm:$0xff] %v1061
        %p1070 = scmp.eq.s32.totalorder %s34, 1
        // Predicated region
        $region89: #{seq2seq_forward.28} parent=51 // pred_check
          %p1071 = pneg %p1070
        $region90: #{seq2seq_forward.28} parent=51 // pred_check_branch
          %1073 = sbr.rel (%p1071) target = $region92
        $region91: #{seq2seq_forward.28} parent=51 // pred_region
          %v1074 = vld [vmem:[#allocation2] sm:$0xff]
          %v1075 = vld [vmem:[#allocation2 + $0x8] sm:$0xff]
          %v1076 = vld [vmem:[#allocation2 + $0x10] sm:$0xff]
          %v1077 = vld [vmem:[#allocation2 + $0x18] sm:$0xff]
          %v1078 = vld [vmem:[#allocation2 + $0x20] sm:$0xff]
          %v1079 = vld [vmem:[#allocation2 + $0x28] sm:$0xff]
          %v1080 = vld [vmem:[#allocation2 + $0x30] sm:$0xff]
          %v1081 = vld [vmem:[#allocation2 + $0x38] sm:$0xff]
          %v1082 = vld [vmem:[#allocation11] sm:$0x3]
          %v1084 = vlaneseq
          %v1085 = vshrl.u32 %v1084, 7
          %v1086 = vsub.s32 0, %v1085
          %v1087 = vrot.slane %v1082, %v1086
          %v1088 = vlaneseq
          %v1089 = vshrl.u32 %v1088, 7
          %v1090 = vsub.s32 1, %v1089
          %v1091 = vrot.slane %v1082, %v1090
          %v1094 = vadd.f32 %v1074, %v1087
          %v1095 = vadd.f32 %v1075, %v1091
          %v1096 = vadd.f32 %v1076, %v1087
          %v1097 = vadd.f32 %v1077, %v1091
          %v1098 = vadd.f32 %v1078, %v1087
          %v1099 = vadd.f32 %v1079, %v1091
          %v1100 = vadd.f32 %v1080, %v1087
          %v1101 = vadd.f32 %v1081, %v1091
          %v1102 = vld [vmem:[#allocation12] sm:$0xff]
          %v1103 = vld [vmem:[#allocation12 + $0x8] sm:$0xff]
          %v1104 = vld [vmem:[#allocation12 + $0x10] sm:$0xff]
          %v1105 = vld [vmem:[#allocation12 + $0x18] sm:$0xff]
          %v1106 = vunpack.c.l.bf16 %v1102
          %v1107 = vunpack.c.h.bf16 %v1102
          %v1108 = vunpack.c.l.bf16 %v1103
          %v1109 = vunpack.c.h.bf16 %v1103
          %v1110 = vunpack.c.l.bf16 %v1104
          %v1111 = vunpack.c.h.bf16 %v1104
          %v1112 = vunpack.c.l.bf16 %v1105
          %v1113 = vunpack.c.h.bf16 %v1105
          %v1114 = vadd.f32 %v1094, %v1106
          %v1115 = vadd.f32 %v1095, %v1107
          %v1116 = vadd.f32 %v1096, %v1108
          %v1117 = vadd.f32 %v1097, %v1109
          %v1118 = vadd.f32 %v1098, %v1110
          %v1119 = vadd.f32 %v1099, %v1111
          %v1120 = vadd.f32 %v1100, %v1112
          %v1121 = vadd.f32 %v1101, %v1113
          %v1122 = vadd.f32 %v1114, %v1115
          %1123 = vadd.xlane.f32.xlu0 %v1122
          %v1124 = vpop.xlane.xlu0 %1123
          %v1125 = vadd.f32 %v1116, %v1117
          %1126 = vadd.xlane.f32.xlu0 %v1125
          %v1127 = vpop.xlane.xlu0 %1126
          %v1128 = vadd.f32 %v1118, %v1119
          %1129 = vadd.xlane.f32.xlu0 %v1128
          %v1130 = vpop.xlane.xlu0 %1129
          %v1131 = vadd.f32 %v1120, %v1121
          %1132 = vadd.xlane.f32.xlu0 %v1131
          %v1133 = vpop.xlane.xlu0 %1132
          %v1134 = vmul.f32 %v1114, %v1114
          %v1135 = vmul.f32 %v1115, %v1115
          %v1136 = vmul.f32 %v1116, %v1116
          %v1137 = vmul.f32 %v1117, %v1117
          %v1138 = vmul.f32 %v1118, %v1118
          %v1139 = vmul.f32 %v1119, %v1119
          %v1140 = vmul.f32 %v1120, %v1120
          %v1141 = vmul.f32 %v1121, %v1121
          %v1142 = vadd.f32 %v1134, %v1135
          %1143 = vadd.xlane.f32.xlu0 %v1142
          %v1144 = vpop.xlane.xlu0 %1143
          %v1145 = vadd.f32 %v1136, %v1137
          %1146 = vadd.xlane.f32.xlu0 %v1145
          %v1147 = vpop.xlane.xlu0 %1146
          %v1148 = vadd.f32 %v1138, %v1139
          %1149 = vadd.xlane.f32.xlu0 %v1148
          %v1150 = vpop.xlane.xlu0 %1149
          %v1151 = vadd.f32 %v1140, %v1141
          %1152 = vadd.xlane.f32.xlu0 %v1151
          %v1153 = vpop.xlane.xlu0 %1152
          %v1154 = vmul.f32 %v1124, 0.00390625
          %v1155 = vmul.f32 %v1127, 0.00390625
          %v1156 = vmul.f32 %v1130, 0.00390625
          %v1157 = vmul.f32 %v1133, 0.00390625
          %v1158 = vmul.f32 %v1144, 0.00390625
          %v1159 = vmul.f32 %v1147, 0.00390625
          %v1160 = vmul.f32 %v1150, 0.00390625
          %v1161 = vmul.f32 %v1153, 0.00390625
          %v1162 = vmul.f32 %v1154, %v1154
          %v1163 = vmul.f32 %v1155, %v1155
          %v1164 = vmul.f32 %v1156, %v1156
          %v1165 = vmul.f32 %v1157, %v1157
          %v1166 = vsub.f32 %v1158, %v1162
          %v1167 = vsub.f32 %v1159, %v1163
          %v1168 = vsub.f32 %v1160, %v1164
          %v1169 = vsub.f32 %v1161, %v1165
          %v1170 = vmax.f32 %v1166, 0.0
          %v1171 = vmax.f32 %v1167, 0.0
          %v1172 = vmax.f32 %v1168, 0.0
          %v1173 = vmax.f32 %v1169, 0.0
          %v1174 = vsub.f32 %v1114, %v1154
          %v1175 = vsub.f32 %v1115, %v1154
          %v1176 = vsub.f32 %v1116, %v1155
          %v1177 = vsub.f32 %v1117, %v1155
          %v1178 = vsub.f32 %v1118, %v1156
          %v1179 = vsub.f32 %v1119, %v1156
          %v1180 = vsub.f32 %v1120, %v1157
          %v1181 = vsub.f32 %v1121, %v1157
          %v1182 = vadd.f32 %v1170, 1e-05
          %v1183 = vadd.f32 %v1171, 1e-05
          %v1184 = vadd.f32 %v1172, 1e-05
          %v1185 = vadd.f32 %v1173, 1e-05
          %v1186 = vrsqrt.pop %v1182
          %v1187 = vrsqrt.pop %v1183
          %v1188 = vrsqrt.pop %v1184
          %v1189 = vrsqrt.pop %v1185
          %v1190 = vmul.f32 %v1174, %v1186
          %v1191 = vmul.f32 %v1175, %v1186
          %v1192 = vmul.f32 %v1176, %v1187
          %v1193 = vmul.f32 %v1177, %v1187
          %v1194 = vmul.f32 %v1178, %v1188
          %v1195 = vmul.f32 %v1179, %v1188
          %v1196 = vmul.f32 %v1180, %v1189
          %v1197 = vmul.f32 %v1181, %v1189
          %v1198 = vld [vmem:[#allocation14] sm:$0x3]
          %v1200 = vlaneseq
          %v1201 = vshrl.u32 %v1200, 7
          %v1202 = vsub.s32 0, %v1201
          %v1203 = vrot.slane %v1198, %v1202
          %v1204 = vlaneseq
          %v1205 = vshrl.u32 %v1204, 7
          %v1206 = vsub.s32 1, %v1205
          %v1207 = vrot.slane %v1198, %v1206
          %v1210 = vmul.f32 %v1190, %v1203
          %v1211 = vmul.f32 %v1191, %v1207
          %v1212 = vmul.f32 %v1192, %v1203
          %v1213 = vmul.f32 %v1193, %v1207
          %v1214 = vmul.f32 %v1194, %v1203
          %v1215 = vmul.f32 %v1195, %v1207
          %v1216 = vmul.f32 %v1196, %v1203
          %v1217 = vmul.f32 %v1197, %v1207
          %v1218 = vld [vmem:[#allocation15] sm:$0x3]
          %v1220 = vlaneseq
          %v1221 = vshrl.u32 %v1220, 7
          %v1222 = vsub.s32 0, %v1221
          %v1223 = vrot.slane %v1218, %v1222
          %v1224 = vlaneseq
          %v1225 = vshrl.u32 %v1224, 7
          %v1226 = vsub.s32 1, %v1225
          %v1227 = vrot.slane %v1218, %v1226
          %v1230 = vadd.f32 %v1210, %v1223
          %v1231 = vadd.f32 %v1211, %v1227
          %v1232 = vadd.f32 %v1212, %v1223
          %v1233 = vadd.f32 %v1213, %v1227
          %v1234 = vadd.f32 %v1214, %v1223
          %v1235 = vadd.f32 %v1215, %v1227
          %v1236 = vadd.f32 %v1216, %v1223
          %v1237 = vadd.f32 %v1217, %v1227
          %v1238 = vpack.c.bf16 %v1232, %v1230
          %v1239 = vpack.c.bf16 %v1233, %v1231
          %v1240 = vpack.c.bf16 %v1236, %v1234
          %v1241 = vpack.c.bf16 %v1237, %v1235
          %v1246 = vunpack.c.l.b16 %v1238
          %v1247 = vunpack.c.l.b16 %v1239
          %v1248 = vunpack.c.h.b16 %v1238
          %v1249 = vunpack.c.h.b16 %v1239
          %v1250 = vunpack.c.l.b16 %v1240
          %v1251 = vunpack.c.l.b16 %v1241
          %v1252 = vunpack.c.h.b16 %v1240
          %v1253 = vunpack.c.h.b16 %v1241
          %v1254 = vpack.c.b16 %v1247, %v1246
          %v1255 = vpack.c.b16 %v1249, %v1248
          %v1256 = vpack.c.b16 %v1251, %v1250
          %v1257 = vpack.c.b16 %v1253, %v1252
          %1262 = vst [vmem:[#allocation17] sm:$0xff] %v1254
          %1263 = vst [vmem:[#allocation17 + $0x8] sm:$0xff] %v1255
          %1264 = vst [vmem:[#allocation17 + $0x10] sm:$0xff] %v1256
          %1265 = vst [vmem:[#allocation17 + $0x18] sm:$0xff] %v1257
        $region92: #{seq2seq_forward.28} parent=51 // pred_fallthru
          _
        // Predicated region
        $region93: #{seq2seq_forward.28} parent=51 // pred_check
          %p1266 = pneg %p252
        $region94: #{seq2seq_forward.28} parent=51 // pred_check_branch
          %1268 = sbr.rel (%p1266) target = $region96
        $region95: #{seq2seq_forward.28} parent=51 // pred_region
          %s1269 = smul.u32 4, %s33
          %s1271 = ssub.s32 512, 512
          %1272 = vsyncadd [#allocation5], %s1271
          %s1273 = smul.addr %s1269, 2
          %s1274 = smul.addr %s1273, 64
          %s1275 = scalar_lea.hbm %s8, %s1274
          %s1276 = sshll.u32 [#allocation17], 4
          %s1277 = int_to_ptr.vmem [resolvable:$true] %s1276
          %1282 = dma.vmem_to_hbm [thread:$0]  %s1277, 512, %s1275, [#allocation5], 128, 128, 8
        $region96: #{seq2seq_forward.28} parent=51 // pred_fallthru
          _
        // Predicated region
        $region97: #{seq2seq_forward.28} parent=51 // pred_check
          %p1283 = pneg %p252
        $region98: #{seq2seq_forward.28} parent=51 // pred_check_branch
          %1285 = sbr.rel (%p1283) target = $region100
        $region99: #{seq2seq_forward.28} parent=51 // pred_region
          %1286 = dma.done [#allocation5], 512
        $region100: #{seq2seq_forward.28} parent=51 // pred_fallthru
          _
      $region52: #{seq2seq_forward.28} parent=5 // pred_fallthru
        _
      %p1287 = scmp.le.s32.totalorder 2, %s24
      // Predicated region
      $region101: #{seq2seq_forward.28} parent=5 // pred_check
        %p1288 = pneg %p1287
      $region102: #{seq2seq_forward.28} parent=5 // pred_check_branch
        %1290 = sbr.rel (%p1288) target = $region104
      $region103: #{seq2seq_forward.28} parent=5 // pred_region
        %s1291 = ssub.s32 %s24, 2
      $region104: #{seq2seq_forward.28} parent=5 // pred_fallthru
        _
    $region6: #{seq2seq_forward.28} parent=1 // loop_footer
      %s28 = sadd.s32 1, %s24
    $region7: #{seq2seq_forward.28} parent=1 // loop_footer_branch
      %23 = sbr.rel target = $region3
    $region8: #{seq2seq_forward.28} parent=1 // loop_exit
      _
    %1292 = vsyncpa [#allocation4], 1
    %s1293 = scalar_lea.sflag [#allocation4], 1
    %1294 = vsyncpa %s1293, 1
    %1295 = vsyncpa [#allocation7], 1
    %s1296 = scalar_lea.sflag [#allocation7], 1
    %1297 = vsyncpa %s1296, 1
    %1298 = vsyncpa [#allocation10], 1
    %s1299 = scalar_lea.sflag [#allocation10], 1
    %1300 = vsyncpa %s1299, 1
    %1301 = vsyncpa [#allocation13], 1
    %1302 = vsyncpa [#allocation16], 1
    %1303 = vsyncpa [#allocation5], 1
    %s1304 = scalar_lea.sflag [#allocation5], 1
    %1305 = vsyncpa %s1304, 1

// kernel: seq2seq_forward.25
$region0: #{seq2seq_forward.25}
  #allocation0 [shape = 'u32[]', space=smem, size = 0x4, offset = 0x4, fixed_abs, tag = 'smem constant byte address 0x4 - core index']
  #allocation1 [shape = 'u32[144,128]{1,0:T(1,128)}', space=vmem, size = 0x12000, scoped, tag = 'internal scratch']
  #allocation2 [shape = 'f32[32,384]{1,0:T(8,128)}', space=vmem, size = 0xc000, scoped, tag = 'scratch operand']
  %s0 = inlined_call_operand.hbm [shape: bf16[32,256], index: 0, kind: input, shape index: {}]
  %s1 = inlined_call_operand.hbm [shape: bf16[256,768], index: 1, kind: input, shape index: {}]
  %s2 = inlined_call_operand.hbm [shape: f32[1,768], index: 2, kind: input, shape index: {}]
  %s3 = inlined_call_operand.hbm [shape: bf16[32,768], index: 3, kind: output, shape index: {}]
  %s4 = sld [smem:[#allocation0]]
  $region65: #{seq2seq_forward.25} parent=0
    _
  %s6 = ssub.s32 1, %s4
  %s7 = scalar_select 0, %s6, %s4
  $region1: #{seq2seq_forward.25} parent=0
    #allocation3 [shape = 'u8[16384]{0}', space=vmem, size = 0x4000, scoped, tag = 'input window, operand 0, single buffered']
    #allocation4 [shape = 's32[2]{0}', space=sflag, size = 0x8, scoped, tag = 'scoped memory for seq2seq_forward.25']
    #allocation5 [shape = 's32[2]{0}', space=sflag, size = 0x8, scoped, tag = 'scoped memory for seq2seq_forward.25']
    #allocation6 [shape = 'u8[393216]{0}', space=vmem, size = 0x60000, scoped, tag = 'input window, operand 1']
    #allocation7 [shape = 's32[2]{0}', space=sflag, size = 0x8, scoped, tag = 'scoped memory for seq2seq_forward.25']
    #allocation8 [shape = 'u8[3072]{0}', space=vmem, size = 0xc00, scoped, tag = 'input window, operand 2']
    #allocation9 [shape = 'u8[49152]{0}', space=vmem, size = 0xc000, scoped, tag = 'output window, operand 0']
    %8 = vsyncpa [#allocation4], 0
    %9 = vsyncpa [#allocation7], 0
    %s10 = scalar_lea.sflag [#allocation7], 1
    %11 = vsyncpa %s10, 0
    %12 = vsyncpa [#allocation5], 0
    %s13 = scalar_lea.sflag [#allocation5], 1
    %14 = vsyncpa %s13, 0
    loop: start=0, step=1, limit=4
    $region2: #{seq2seq_forward.25} parent=1 // loop_pre_header
      _
    $region3: #{seq2seq_forward.25} parent=1 // loop_header
      %s16 = sphi 0, %s20
      %p17 = scmp.ge.s32.totalorder %s16, 4
      %s23 = sphi 0, %s42
      %s24 = sphi 0, %s38
      %s25 = sphi 0, %s34
      %s26 = sphi 0, %s23
      %s27 = sphi 0, %s24
      %s28 = sphi 0, %s25
      %s29 = sphi 0, %s26
      %s30 = sphi 0, %s27
      %s31 = sphi 0, %s28
      %s47 = sphi 0, %s49
      %s50 = sphi 0, %s47
      %s51 = sphi 0, %s50
      %s67 = sphi 0, %s51
      %s75 = sphi 0, %s77
      %s78 = sphi 0, %s75
      %s79 = sphi 0, %s78
      %s95 = sphi 0, %s79
      %s101 = sphi 0, %s103
      %s104 = sphi 0, %s101
      %s105 = sphi 0, %s104
      %s121 = sphi 0, %s105
      %s129 = sphi 0, %s131
      %s132 = sphi 0, %s129
      %s133 = sphi 0, %s132
      %s149 = sphi 0, %s133
    $region4: #{seq2seq_forward.25} parent=1 // loop_header_branch
      %19 = sbr.rel (%p17) target = $region8
    $region5: #{seq2seq_forward.25} parent=1 // loop_body
      %s21 = ssub.s32 %s16, 1
      %s22 = ssub.s32 %s16, 2
      %s32 = sadd.s32 1, %s25
      %p33 = scmp.ge.s32.totalorder %s32, 1
      %s34 = scalar_select %p33, 0, %s32
      %s35 = sadd.s32 1, %s24
      %s36 = scalar_select %p33, %s35, %s24
      %p37 = scmp.ge.s32.totalorder %s36, 2
      %s38 = scalar_select %p37, 0, %s36
      %s39 = sadd.s32 1, %s23
      %s40 = scalar_select %p37, %s39, %s23
      %p41 = scmp.ge.s32.totalorder %s40, 1
      %s42 = scalar_select %p41, 0, %s40
      %s43 = ssub.s32 %s23, %s42
      %s44 = ssub.s32 %s25, %s34
      %s45 = sor.u32 %s43, %s44
      %p46 = scmp.eq.s32.totalorder %s45, 0
      %s48 = sadd.s32 %s47, 1
      %s49 = scalar_select %p46, %s47, %s48
      %p52 = pneg %p46
      %p53 = scmp.eq.s32.totalorder %s16, 1
      %p54 = por %p52, %p53
      %p55 = scmp.ne.s32.totalorder %s47, %s50
      %p56 = scmp.eq.s32.totalorder %s16, 0
      %p57 = por %p55, %p56
      %p58 = scmp.ne.s32.totalorder %s47, %s50
      %p59 = scmp.eq.s32.totalorder %s21, 1
      %p60 = por %p58, %p59
      %p61 = scmp.ne.s32.totalorder %s50, %s51
      %p62 = scmp.eq.s32.totalorder %s21, 0
      %p63 = por %p61, %p62
      %p64 = scmp.ne.s32.totalorder %s50, %s51
      %p65 = scmp.eq.s32.totalorder %s22, 1
      %p66 = por %p64, %p65
      %p68 = scmp.ne.s32.totalorder %s51, %s67
      %p69 = scmp.eq.s32.totalorder %s22, 0
      %p70 = por %p68, %p69
      %s71 = ssub.s32 %s25, %s34
      %s72 = ssub.s32 %s24, %s38
      %s73 = sor.u32 %s71, %s72
      %p74 = scmp.eq.s32.totalorder %s73, 0
      %s76 = sadd.s32 %s75, 1
      %s77 = scalar_select %p74, %s75, %s76
      %p80 = pneg %p74
      %p81 = scmp.eq.s32.totalorder %s16, 1
      %p82 = por %p80, %p81
      %p83 = scmp.ne.s32.totalorder %s75, %s78
      %p84 = scmp.eq.s32.totalorder %s16, 0
      %p85 = por %p83, %p84
      %p86 = scmp.ne.s32.totalorder %s75, %s78
      %p87 = scmp.eq.s32.totalorder %s21, 1
      %p88 = por %p86, %p87
      %p89 = scmp.ne.s32.totalorder %s78, %s79
      %p90 = scmp.eq.s32.totalorder %s21, 0
      %p91 = por %p89, %p90
      %p92 = scmp.ne.s32.totalorder %s78, %s79
      %p93 = scmp.eq.s32.totalorder %s22, 1
      %p94 = por %p92, %p93
      %p96 = scmp.ne.s32.totalorder %s79, %s95
      %p97 = scmp.eq.s32.totalorder %s22, 0
      %p98 = por %p96, %p97
      %s99 = ssub.s32 %s24, %s38
      %p100 = scmp.eq.s32.totalorder %s99, 0
      %s102 = sadd.s32 %s101, 1
      %s103 = scalar_select %p100, %s101, %s102
      %p106 = pneg %p100
      %p107 = scmp.eq.s32.totalorder %s16, 1
      %p108 = por %p106, %p107
      %p109 = scmp.ne.s32.totalorder %s101, %s104
      %p110 = scmp.eq.s32.totalorder %s16, 0
      %p111 = por %p109, %p110
      %p112 = scmp.ne.s32.totalorder %s101, %s104
      %p113 = scmp.eq.s32.totalorder %s21, 1
      %p114 = por %p112, %p113
      %p115 = scmp.ne.s32.totalorder %s104, %s105
      %p116 = scmp.eq.s32.totalorder %s21, 0
      %p117 = por %p115, %p116
      %p118 = scmp.ne.s32.totalorder %s104, %s105
      %p119 = scmp.eq.s32.totalorder %s22, 1
      %p120 = por %p118, %p119
      %p122 = scmp.ne.s32.totalorder %s105, %s121
      %p123 = scmp.eq.s32.totalorder %s22, 0
      %p124 = por %p122, %p123
      %s125 = ssub.s32 %s23, %s42
      %s126 = ssub.s32 %s24, %s38
      %s127 = sor.u32 %s125, %s126
      %p128 = scmp.eq.s32.totalorder %s127, 0
      %s130 = sadd.s32 %s129, 1
      %s131 = scalar_select %p128, %s129, %s130
      %p134 = pneg %p128
      %p135 = scmp.eq.s32.totalorder %s16, 1
      %p136 = por %p134, %p135
      %p137 = scmp.ne.s32.totalorder %s129, %s132
      %p138 = scmp.eq.s32.totalorder %s16, 0
      %p139 = por %p137, %p138
      %p140 = scmp.ne.s32.totalorder %s129, %s132
      %p141 = scmp.eq.s32.totalorder %s21, 1
      %p142 = por %p140, %p141
      %p143 = scmp.ne.s32.totalorder %s132, %s133
      %p144 = scmp.eq.s32.totalorder %s21, 0
      %p145 = por %p143, %p144
      %p146 = scmp.ne.s32.totalorder %s132, %s133
      %p147 = scmp.eq.s32.totalorder %s22, 1
      %p148 = por %p146, %p147
      %p150 = scmp.ne.s32.totalorder %s133, %s149
      %p151 = scmp.eq.s32.totalorder %s22, 0
      %p152 = por %p150, %p151
      %p153 = scmp.le.s32.totalorder 1, %s16
      %p154 = scmp.lt.s32.totalorder %s16, 3
      %p155 = pnand %p153, %p154
      %p156 = pneg %p155
      // Predicated region
      $region9: #{seq2seq_forward.25} parent=5 // pred_check
        _
      $region10: #{seq2seq_forward.25} parent=5 // pred_check_branch
        %158 = sbr.rel (%p155) target = $region12
      $region11: #{seq2seq_forward.25} parent=5 // pred_region
        %s159 = ssub.s32 %s16, 1
        // Predicated region
        $region13: #{seq2seq_forward.25} parent=11 // pred_check
          %p160 = pneg %p63
        $region14: #{seq2seq_forward.25} parent=11 // pred_check_branch
          %162 = sbr.rel (%p160) target = $region16
        $region15: #{seq2seq_forward.25} parent=11 // pred_region
          %s163 = smul.u32 4, %s26
          %s164 = smul.u32 2, %s28
          %s166 = ssub.s32 512, 512
          %167 = vsyncadd [#allocation4], %s166
          %s168 = smul.addr %s163, 2
          %s169 = sadd.s32 %s164, %s168
          %s170 = smul.addr %s169, 64
          %s171 = scalar_lea.hbm %s0, %s170
          %s172 = sshll.u32 [#allocation3], 4
          %s173 = int_to_ptr.vmem [resolvable:$true] %s172
          %178 = dma.hbm_to_vmem [thread:$0]  %s171, 512, %s173, [#allocation4], 128, 128, 8
        $region16: #{seq2seq_forward.25} parent=11 // pred_fallthru
          _
      $region12: #{seq2seq_forward.25} parent=5 // pred_fallthru
        _
      %p179 = scmp.lt.s32.totalorder %s16, 2
      // Predicated region
      $region17: #{seq2seq_forward.25} parent=5 // pred_check
        %p180 = pneg %p179
      $region18: #{seq2seq_forward.25} parent=5 // pred_check_branch
        %182 = sbr.rel (%p180) target = $region20
      $region19: #{seq2seq_forward.25} parent=5 // pred_region
        // Predicated region
        $region21: #{seq2seq_forward.25} parent=19 // pred_check
          %p183 = pneg %p85
        $region22: #{seq2seq_forward.25} parent=19 // pred_check_branch
          %185 = sbr.rel (%p183) target = $region24
        $region23: #{seq2seq_forward.25} parent=19 // pred_region
          %s186 = sand.u32 %s16, 1
          %s187 = scalar_lea.sflag [#allocation7], %s186
          %s188 = sand.u32 %s75, 1
          %s189 = smul.addr %s188, 384
          %s190 = scalar_lea.vmem [#allocation6], %s189
          %s191 = smul.u32 32, %s25
          %s192 = smul.u32 3, %s24
          %s194 = ssub.s32 6144, 6144
          %195 = vsyncadd %s187, %s194
          %s196 = smul.addr %s191, 6
          %s197 = sadd.s32 %s192, %s196
          %s198 = smul.addr %s197, 64
          %s199 = scalar_lea.hbm %s1, %s198
          %s200 = sshll.u32 %s190, 4
          %s201 = int_to_ptr.vmem [resolvable:$true] %s200
          %206 = dma.hbm_to_vmem [thread:$0]  %s199, 6144, %s201, %s187, 384, 192, 12
        $region24: #{seq2seq_forward.25} parent=19 // pred_fallthru
          _
        // Predicated region
        $region25: #{seq2seq_forward.25} parent=19 // pred_check
          %p207 = pneg %p111
        $region26: #{seq2seq_forward.25} parent=19 // pred_check_branch
          %209 = sbr.rel (%p207) target = $region28
        $region27: #{seq2seq_forward.25} parent=19 // pred_region
          %s210 = sand.u32 %s16, 1
          %s211 = scalar_lea.sflag [#allocation7], %s210
          %s212 = sand.u32 %s101, 1
          %s213 = smul.addr %s212, 3
          %s214 = scalar_lea.vmem [#allocation8], %s213
          %s215 = smul.u32 3, %s24
          %s217 = ssub.s32 48, 48
          %218 = vsyncadd %s211, %s217
          %s219 = smul.addr %s215, 16
          %s220 = scalar_lea.hbm %s2, %s219
          %s222 = sshll.u32 %s214, 4
          %s223 = int_to_ptr.vmem [resolvable:$true] %s222
          %225 = dma.hbm_to_vmem [thread:$0]  %s220, 48, %s223, %s211
        $region28: #{seq2seq_forward.25} parent=19 // pred_fallthru
          _
      $region20: #{seq2seq_forward.25} parent=5 // pred_fallthru
        _
      %p226 = scmp.le.s32.totalorder 1, %s16
      %p227 = scmp.lt.s32.totalorder %s16, 3
      %p228 = pnand %p226, %p227
      %p229 = pneg %p228
      // Predicated region
      $region29: #{seq2seq_forward.25} parent=5 // pred_check
        _
      $region30: #{seq2seq_forward.25} parent=5 // pred_check_branch
        %231 = sbr.rel (%p228) target = $region32
      $region31: #{seq2seq_forward.25} parent=5 // pred_region
        %s232 = ssub.s32 %s16, 1
        // Predicated region
        $region33: #{seq2seq_forward.25} parent=31 // pred_check
          %p233 = pneg %p63
        $region34: #{seq2seq_forward.25} parent=31 // pred_check_branch
          %235 = sbr.rel (%p233) target = $region36
        $region35: #{seq2seq_forward.25} parent=31 // pred_region
          %236 = dma.done [#allocation4], 512
        $region36: #{seq2seq_forward.25} parent=31 // pred_fallthru
          _
        %s237 = sand.u32 %s21, 1
        %s238 = scalar_lea.sflag [#allocation7], %s237
        %s239 = sand.u32 %s78, 1
        %s240 = smul.addr %s239, 384
        %s241 = scalar_lea.vmem [#allocation6], %s240
        // Predicated region
        $region37: #{seq2seq_forward.25} parent=31 // pred_check
          %p242 = pneg %p91
        $region38: #{seq2seq_forward.25} parent=31 // pred_check_branch
          %244 = sbr.rel (%p242) target = $region40
        $region39: #{seq2seq_forward.25} parent=31 // pred_region
          %245 = dma.done %s238, 6144
        $region40: #{seq2seq_forward.25} parent=31 // pred_fallthru
          _
        %s246 = sand.u32 %s21, 1
        %s247 = scalar_lea.sflag [#allocation7], %s246
        %s248 = sand.u32 %s104, 1
        %s249 = smul.addr %s248, 3
        %s250 = scalar_lea.vmem [#allocation8], %s249
        // Predicated region
        $region41: #{seq2seq_forward.25} parent=31 // pred_check
          %p251 = pneg %p117
        $region42: #{seq2seq_forward.25} parent=31 // pred_check_branch
          %253 = sbr.rel (%p251) target = $region44
        $region43: #{seq2seq_forward.25} parent=31 // pred_region
          %254 = dma.done %s247, 48
        $region44: #{seq2seq_forward.25} parent=31 // pred_fallthru
          _
        %p255 = pneg %p63
        %p256 = pneg %p60
        %s257 = sand.u32 %s21, 1
        %s258 = scalar_lea.sflag [#allocation7], %s257
        %s259 = sand.u32 %s78, 1
        %s260 = smul.addr %s259, 384
        %s261 = scalar_lea.vmem [#allocation6], %s260
        %p262 = pneg %p91
        %p263 = pneg %p88
        %s264 = sand.u32 %s21, 1
        %s265 = scalar_lea.sflag [#allocation7], %s264
        %s266 = sand.u32 %s104, 1
        %s267 = smul.addr %s266, 3
        %s268 = scalar_lea.vmem [#allocation8], %s267
        %p269 = pneg %p117
        %p270 = pneg %p114
        %p271 = pneg %p145
        %p272 = pneg %p142
        %s273 = sand.u32 %s132, 1
        %s274 = scalar_lea.sflag [#allocation5], %s273
        %s275 = sand.u32 %s132, 1
        %s276 = smul.addr %s275, 48
        %s277 = scalar_lea.vmem [#allocation9], %s276
        %s278 = smul.u32 4, %s26
        %s279 = smul.u32 2, %s28
        %s280 = smul.u32 32, %s28
        %s281 = smul.u32 3, %s27
        %s282 = smul.u32 3, %s27
        %s283 = smul.u32 4, %s26
        %s284 = smul.u32 3, %s27
        %p286 = scmp.eq.s32.totalorder %s28, 0
        // Predicated region
        $region45: #{seq2seq_forward.25} parent=31 // pred_check
          %p287 = pneg %p286
        $region46: #{seq2seq_forward.25} parent=31 // pred_check_branch
          %289 = sbr.rel (%p287) target = $region48
        $region47: #{seq2seq_forward.25} parent=31 // pred_region
          %290 = vst [vmem:[#allocation2] sm:$0xff] 0.0
          %291 = vst [vmem:[#allocation2 + $0x8] sm:$0xff] 0.0
          %292 = vst [vmem:[#allocation2 + $0x10] sm:$0xff] 0.0
          %293 = vst [vmem:[#allocation2 + $0x18] sm:$0xff] 0.0
          %294 = vst [vmem:[#allocation2 + $0x20] sm:$0xff] 0.0
          %295 = vst [vmem:[#allocation2 + $0x28] sm:$0xff] 0.0
          %296 = vst [vmem:[#allocation2 + $0x30] sm:$0xff] 0.0
          %297 = vst [vmem:[#allocation2 + $0x38] sm:$0xff] 0.0
          %298 = vst [vmem:[#allocation2 + $0x40] sm:$0xff] 0.0
          %299 = vst [vmem:[#allocation2 + $0x48] sm:$0xff] 0.0
          %300 = vst [vmem:[#allocation2 + $0x50] sm:$0xff] 0.0
          %301 = vst [vmem:[#allocation2 + $0x58] sm:$0xff] 0.0
        $region48: #{seq2seq_forward.25} parent=31 // pred_fallthru
          _
        %v302 = vld [vmem:[#allocation2] sm:$0xff]
        %v303 = vld [vmem:[#allocation2 + $0x8] sm:$0xff]
        %v304 = vld [vmem:[#allocation2 + $0x10] sm:$0xff]
        %v305 = vld [vmem:[#allocation2 + $0x18] sm:$0xff]
        %v306 = vld [vmem:[#allocation2 + $0x20] sm:$0xff]
        %v307 = vld [vmem:[#allocation2 + $0x28] sm:$0xff]
        %v308 = vld [vmem:[#allocation2 + $0x30] sm:$0xff]
        %v309 = vld [vmem:[#allocation2 + $0x38] sm:$0xff]
        %v310 = vld [vmem:[#allocation2 + $0x40] sm:$0xff]
        %v311 = vld [vmem:[#allocation2 + $0x48] sm:$0xff]
        %v312 = vld [vmem:[#allocation2 + $0x50] sm:$0xff]
        %v313 = vld [vmem:[#allocation2 + $0x58] sm:$0xff]
        %v314 = vld [vmem:[#allocation3] sm:$0xff]
        %v315 = vld [vmem:[#allocation3 + $0x8] sm:$0xff]
        %v316 = vld [vmem:[#allocation3 + $0x10] sm:$0xff]
        %v317 = vld [vmem:[#allocation3 + $0x18] sm:$0xff]
        %v318 = vld [vmem:[%s241] sm:$0xff]
        %v319 = vld [vmem:[%s241 + $0x8] sm:$0xf]
        %v320 = vld [vmem:[%s241 + $0xc] sm:$0xff]
        %v321 = vld [vmem:[%s241 + $0x14] sm:$0xf]
        %v322 = vld [vmem:[%s241 + $0x18] sm:$0xff]
        %v323 = vld [vmem:[%s241 + $0x20] sm:$0xf]
        %v324 = vld [vmem:[%s241 + $0x24] sm:$0xff]
        %v325 = vld [vmem:[%s241 + $0x2c] sm:$0xf]
        %v326 = vld [vmem:[%s241 + $0x30] sm:$0xff]
        %v327 = vld [vmem:[%s241 + $0x38] sm:$0xf]
        %v328 = vld [vmem:[%s241 + $0x3c] sm:$0xff]
        %v329 = vld [vmem:[%s241 + $0x44] sm:$0xf]
        %v330 = vld [vmem:[%s241 + $0x48] sm:$0xff]
        %v331 = vld [vmem:[%s241 + $0x50] sm:$0xf]
        %v332 = vld [vmem:[%s241 + $0x54] sm:$0xff]
        %v333 = vld [vmem:[%s241 + $0x5c] sm:$0xf]
        %v334 = vld [vmem:[%s241 + $0x60] sm:$0xff]
        %v335 = vld [vmem:[%s241 + $0x68] sm:$0xf]
        %v336 = vld [vmem:[%s241 + $0x6c] sm:$0xff]
        %v337 = vld [vmem:[%s241 + $0x74] sm:$0xf]
        %v338 = vld [vmem:[%s241 + $0x78] sm:$0xff]
        %v339 = vld [vmem:[%s241 + $0x80] sm:$0xf]
        %v340 = vld [vmem:[%s241 + $0x84] sm:$0xff]
        %v341 = vld [vmem:[%s241 + $0x8c] sm:$0xf]
        %v342 = vld [vmem:[%s241 + $0x90] sm:$0xff]
        %v343 = vld [vmem:[%s241 + $0x98] sm:$0xf]
        %v344 = vld [vmem:[%s241 + $0x9c] sm:$0xff]
        %v345 = vld [vmem:[%s241 + $0xa4] sm:$0xf]
        %v346 = vld [vmem:[%s241 + $0xa8] sm:$0xff]
        %v347 = vld [vmem:[%s241 + $0xb0] sm:$0xf]
        %v348 = vld [vmem:[%s241 + $0xb4] sm:$0xff]
        %v349 = vld [vmem:[%s241 + $0xbc] sm:$0xf]
        %v350 = vld [vmem:[%s241 + $0xc0] sm:$0xff]
        %v351 = vld [vmem:[%s241 + $0xc8] sm:$0xf]
        %v352 = vld [vmem:[%s241 + $0xcc] sm:$0xff]
        %v353 = vld [vmem:[%s241 + $0xd4] sm:$0xf]
        %v354 = vld [vmem:[%s241 + $0xd8] sm:$0xff]
        %v355 = vld [vmem:[%s241 + $0xe0] sm:$0xf]
        %v356 = vld [vmem:[%s241 + $0xe4] sm:$0xff]
        %v357 = vld [vmem:[%s241 + $0xec] sm:$0xf]
        %v358 = vld [vmem:[%s241 + $0xf0] sm:$0xff]
        %v359 = vld [vmem:[%s241 + $0xf8] sm:$0xf]
        %v360 = vld [vmem:[%s241 + $0xfc] sm:$0xff]
        %v361 = vld [vmem:[%s241 + $0x104] sm:$0xf]
        %v362 = vld [vmem:[%s241 + $0x108] sm:$0xff]
        %v363 = vld [vmem:[%s241 + $0x110] sm:$0xf]
        %v364 = vld [vmem:[%s241 + $0x114] sm:$0xff]
        %v365 = vld [vmem:[%s241 + $0x11c] sm:$0xf]
        %v366 = vld [vmem:[%s241 + $0x120] sm:$0xff]
        %v367 = vld [vmem:[%s241 + $0x128] sm:$0xf]
        %v368 = vld [vmem:[%s241 + $0x12c] sm:$0xff]
        %v369 = vld [vmem:[%s241 + $0x134] sm:$0xf]
        %v370 = vld [vmem:[%s241 + $0x138] sm:$0xff]
        %v371 = vld [vmem:[%s241 + $0x140] sm:$0xf]
        %v372 = vld [vmem:[%s241 + $0x144] sm:$0xff]
        %v373 = vld [vmem:[%s241 + $0x14c] sm:$0xf]
        %v374 = vld [vmem:[%s241 + $0x150] sm:$0xff]
        %v375 = vld [vmem:[%s241 + $0x158] sm:$0xf]
        %v376 = vld [vmem:[%s241 + $0x15c] sm:$0xff]
        %v377 = vld [vmem:[%s241 + $0x164] sm:$0xf]
        %v378 = vld [vmem:[%s241 + $0x168] sm:$0xff]
        %v379 = vld [vmem:[%s241 + $0x170] sm:$0xf]
        %v380 = vld [vmem:[%s241 + $0x174] sm:$0xff]
        %v381 = vld [vmem:[%s241 + $0x17c] sm:$0xf]
        %v386 = vunpack.c.l.b16 %v314
        %v387 = vunpack.c.h.b16 %v314
        %v388 = vunpack.c.l.b16 %v315
        %v389 = vunpack.c.h.b16 %v315
        %v390 = vunpack.c.l.b16 %v316
        %v391 = vunpack.c.h.b16 %v316
        %v392 = vunpack.c.l.b16 %v317
        %v393 = vunpack.c.h.b16 %v317
        %v394 = vpack.c.b16 %v388, %v386
        %v395 = vpack.c.b16 %v389, %v387
        %v396 = vpack.c.b16 %v392, %v390
        %v397 = vpack.c.b16 %v393, %v391
        %v466 = vunpack.c.l.b16 %v318
        %v467 = vunpack.c.h.b16 %v318
        %v468 = vunpack.c.l.b16 %v319
        %v469 = vunpack.c.l.b16 %v320
        %v470 = vunpack.c.h.b16 %v320
        %v471 = vunpack.c.l.b16 %v321
        %v472 = vunpack.c.l.b16 %v322
        %v473 = vunpack.c.h.b16 %v322
        %v474 = vunpack.c.l.b16 %v323
        %v475 = vunpack.c.l.b16 %v324
        %v476 = vunpack.c.h.b16 %v324
        %v477 = vunpack.c.l.b16 %v325
        %v478 = vunpack.c.l.b16 %v326
        %v479 = vunpack.c.h.b16 %v326
        %v480 = vunpack.c.l.b16 %v327
        %v481 = vunpack.c.l.b16 %v328
        %v482 = vunpack.c.h.b16 %v328
        %v483 = vunpack.c.l.b16 %v329
        %v484 = vunpack.c.l.b16 %v330
        %v485 = vunpack.c.h.b16 %v330
        %v486 = vunpack.c.l.b16 %v331
        %v487 = vunpack.c.l.b16 %v332
        %v488 = vunpack.c.h.b16 %v332
        %v489 = vunpack.c.l.b16 %v333
        %v490 = vunpack.c.l.b16 %v334
        %v491 = vunpack.c.h.b16 %v334
        %v492 = vunpack.c.l.b16 %v335
        %v493 = vunpack.c.l.b16 %v336
        %v494 = vunpack.c.h.b16 %v336
        %v495 = vunpack.c.l.b16 %v337
        %v496 = vunpack.c.l.b16 %v338
        %v497 = vunpack.c.h.b16 %v338
        %v498 = vunpack.c.l.b16 %v339
        %v499 = vunpack.c.l.b16 %v340
        %v500 = vunpack.c.h.b16 %v340
        %v501 = vunpack.c.l.b16 %v341
        %v502 = vunpack.c.l.b16 %v342
        %v503 = vunpack.c.h.b16 %v342
        %v504 = vunpack.c.l.b16 %v343
        %v505 = vunpack.c.l.b16 %v344
        %v506 = vunpack.c.h.b16 %v344
        %v507 = vunpack.c.l.b16 %v345
        %v508 = vunpack.c.l.b16 %v346
        %v509 = vunpack.c.h.b16 %v346
        %v510 = vunpack.c.l.b16 %v347
        %v511 = vunpack.c.l.b16 %v348
        %v512 = vunpack.c.h.b16 %v348
        %v513 = vunpack.c.l.b16 %v349
        %v514 = vunpack.c.l.b16 %v350
        %v515 = vunpack.c.h.b16 %v350
        %v516 = vunpack.c.l.b16 %v351
        %v517 = vunpack.c.l.b16 %v352
        %v518 = vunpack.c.h.b16 %v352
        %v519 = vunpack.c.l.b16 %v353
        %v520 = vunpack.c.l.b16 %v354
        %v521 = vunpack.c.h.b16 %v354
        %v522 = vunpack.c.l.b16 %v355
        %v523 = vunpack.c.l.b16 %v356
        %v524 = vunpack.c.h.b16 %v356
        %v525 = vunpack.c.l.b16 %v357
        %v526 = vunpack.c.l.b16 %v358
        %v527 = vunpack.c.h.b16 %v358
        %v528 = vunpack.c.l.b16 %v359
        %v529 = vunpack.c.l.b16 %v360
        %v530 = vunpack.c.h.b16 %v360
        %v531 = vunpack.c.l.b16 %v361
        %v532 = vunpack.c.l.b16 %v362
        %v533 = vunpack.c.h.b16 %v362
        %v534 = vunpack.c.l.b16 %v363
        %v535 = vunpack.c.l.b16 %v364
        %v536 = vunpack.c.h.b16 %v364
        %v537 = vunpack.c.l.b16 %v365
        %v538 = vunpack.c.l.b16 %v366
        %v539 = vunpack.c.h.b16 %v366
        %v540 = vunpack.c.l.b16 %v367
        %v541 = vunpack.c.l.b16 %v368
        %v542 = vunpack.c.h.b16 %v368
        %v543 = vunpack.c.l.b16 %v369
        %v544 = vunpack.c.l.b16 %v370
        %v545 = vunpack.c.h.b16 %v370
        %v546 = vunpack.c.l.b16 %v371
        %v547 = vunpack.c.l.b16 %v372
        %v548 = vunpack.c.h.b16 %v372
        %v549 = vunpack.c.l.b16 %v373
        %v550 = vunpack.c.l.b16 %v374
        %v551 = vunpack.c.h.b16 %v374
        %v552 = vunpack.c.l.b16 %v375
        %v553 = vunpack.c.l.b16 %v376
        %v554 = vunpack.c.h.b16 %v376
        %v555 = vunpack.c.l.b16 %v377
        %v556 = vunpack.c.l.b16 %v378
        %v557 = vunpack.c.h.b16 %v378
        %v558 = vunpack.c.l.b16 %v379
        %v559 = vunpack.c.l.b16 %v380
        %v560 = vunpack.c.h.b16 %v380
        %v561 = vunpack.c.l.b16 %v381
        %v562 = vpack.c.b16 %v469, %v466
        %v563 = vpack.c.b16 %v470, %v467
        %v564 = vpack.c.b16 %v471, %v468
        %v565 = vpack.c.b16 %v475, %v472
        %v566 = vpack.c.b16 %v476, %v473
        %v567 = vpack.c.b16 %v477, %v474
        %v568 = vpack.c.b16 %v481, %v478
        %v569 = vpack.c.b16 %v482, %v479
        %v570 = vpack.c.b16 %v483, %v480
        %v571 = vpack.c.b16 %v487, %v484
        %v572 = vpack.c.b16 %v488, %v485
        %v573 = vpack.c.b16 %v489, %v486
        %v574 = vpack.c.b16 %v493, %v490
        %v575 = vpack.c.b16 %v494, %v491
        %v576 = vpack.c.b16 %v495, %v492
        %v577 = vpack.c.b16 %v499, %v496
        %v578 = vpack.c.b16 %v500, %v497
        %v579 = vpack.c.b16 %v501, %v498
        %v580 = vpack.c.b16 %v505, %v502
        %v581 = vpack.c.b16 %v506, %v503
        %v582 = vpack.c.b16 %v507, %v504
        %v583 = vpack.c.b16 %v511, %v508
        %v584 = vpack.c.b16 %v512, %v509
        %v585 = vpack.c.b16 %v513, %v510
        %v586 = vpack.c.b16 %v517, %v514
        %v587 = vpack.c.b16 %v518, %v515
        %v588 = vpack.c.b16 %v519, %v516
        %v589 = vpack.c.b16 %v523, %v520
        %v590 = vpack.c.b16 %v524, %v521
        %v591 = vpack.c.b16 %v525, %v522
        %v592 = vpack.c.b16 %v529, %v526
        %v593 = vpack.c.b16 %v530, %v527
        %v594 = vpack.c.b16 %v531, %v528
        %v595 = vpack.c.b16 %v535, %v532
        %v596 = vpack.c.b16 %v536, %v533
        %v597 = vpack.c.b16 %v537, %v534
        %v598 = vpack.c.b16 %v541, %v538
        %v599 = vpack.c.b16 %v542, %v539
        %v600 = vpack.c.b16 %v543, %v540
        %v601 = vpack.c.b16 %v547, %v544
        %v602 = vpack.c.b16 %v548, %v545
        %v603 = vpack.c.b16 %v549, %v546
        %v604 = vpack.c.b16 %v553, %v550
        %v605 = vpack.c.b16 %v554, %v551
        %v606 = vpack.c.b16 %v555, %v552
        %v607 = vpack.c.b16 %v559, %v556
        %v608 = vpack.c.b16 %v560, %v557
        %v609 = vpack.c.b16 %v561, %v558
        %658 = vmatprep.subr.bf16.mxu0 %v563
        %659 = vmatpush1.bf16.msra.mxu0 %v562
        %660 = vmatprep.subr.bf16.mxu0 %v566
        %661 = vmatpush1.bf16.msra.mxu0 %v565
        %662 = vmatprep.subr.bf16.mxu0 %v569
        %663 = vmatpush1.bf16.msra.mxu0 %v568
        %664 = vmatprep.subr.bf16.mxu0 %v572
        %665 = vmatpush1.bf16.msra.mxu0 %v571
        %666 = vmatprep.subr.bf16.mxu0 %v575
        %667 = vmatpush1.bf16.msra.mxu0 %v574
        %668 = vmatprep.subr.bf16.mxu0 %v578
        %669 = vmatpush1.bf16.msra.mxu0 %v577
        %670 = vmatprep.subr.bf16.mxu0 %v581
        %671 = vmatpush1.bf16.msra.mxu0 %v580
        %672 = vmatprep.subr.bf16.mxu0 %v584
        %673 = vmatpush1.bf16.msra.mxu0 %v583
        %674 = vmatprep.subr.bf16.mxu0 %v587
        %675 = vmatpush1.bf16.msra.mxu0 %v586
        %676 = vmatprep.subr.bf16.mxu0 %v590
        %677 = vmatpush1.bf16.msra.mxu0 %v589
        %678 = vmatprep.subr.bf16.mxu0 %v593
        %679 = vmatpush1.bf16.msra.mxu0 %v592
        %680 = vmatprep.subr.bf16.mxu0 %v596
        %681 = vmatpush1.bf16.msra.mxu0 %v595
        %682 = vmatprep.subr.bf16.mxu0 %v599
        %683 = vmatpush1.bf16.msra.mxu0 %v598
        %684 = vmatprep.subr.bf16.mxu0 %v602
        %685 = vmatpush1.bf16.msra.mxu0 %v601
        %686 = vmatprep.subr.bf16.mxu0 %v605
        %687 = vmatpush1.bf16.msra.mxu0 %v604
        %688 = vmatprep.subr.bf16.mxu0 %v608
        %689 = vmatpush1.bf16.msra.mxu0 %v607
        %690 = vmatprep.mubr.bf16.mxu0 %v395
        %691 = vmatmul.mubr.bf16.gmra.mrb[0].mxu0 %v394
        %v692 = vpop.f32.mrb[0].mxu0
        %v693 = vadd.f32 0.0, %v692
        %v694 = vpop.f32.mrb[0].mxu0
        %v695 = vadd.f32 0.0, %v694
        %v696 = vpop.f32.mrb[0].mxu0
        %v697 = vadd.f32 0.0, %v696
        %v698 = vpop.f32.mrb[0].mxu0
        %v699 = vadd.f32 0.0, %v698
        %700 = vmatprep.mubr.bf16.mxu0 %v397
        %701 = vmatmul.mubr.bf16.gmra.mrb[0].mxu0 %v396
        %v702 = vpop.f32.mrb[0].mxu0
        %v703 = vadd.f32 0.0, %v702
        %v704 = vpop.f32.mrb[0].mxu0
        %v705 = vadd.f32 0.0, %v704
        %v706 = vpop.f32.mrb[0].mxu0
        %v707 = vadd.f32 0.0, %v706
        %v708 = vpop.f32.mrb[0].mxu0
        %v709 = vadd.f32 0.0, %v708
        %710 = vdwg.mxu0
        %711 = vmatprep.subr.bf16.mxu0 0
        %712 = vmatpush1.bf16.msra.mxu0 %v564
        %713 = vmatprep.subr.bf16.mxu0 0
        %714 = vmatpush1.bf16.msra.mxu0 %v567
        %715 = vmatprep.subr.bf16.mxu0 0
        %716 = vmatpush1.bf16.msra.mxu0 %v570
        %717 = vmatprep.subr.bf16.mxu0 0
        %718 = vmatpush1.bf16.msra.mxu0 %v573
        %719 = vmatprep.subr.bf16.mxu0 0
        %720 = vmatpush1.bf16.msra.mxu0 %v576
        %721 = vmatprep.subr.bf16.mxu0 0
        %722 = vmatpush1.bf16.msra.mxu0 %v579
        %723 = vmatprep.subr.bf16.mxu0 0
        %724 = vmatpush1.bf16.msra.mxu0 %v582
        %725 = vmatprep.subr.bf16.mxu0 0
        %726 = vmatpush1.bf16.msra.mxu0 %v585
        %727 = vmatprep.subr.bf16.mxu0 0
        %728 = vmatpush1.bf16.msra.mxu0 %v588
        %729 = vmatprep.subr.bf16.mxu0 0
        %730 = vmatpush1.bf16.msra.mxu0 %v591
        %731 = vmatprep.subr.bf16.mxu0 0
        %732 = vmatpush1.bf16.msra.mxu0 %v594
        %733 = vmatprep.subr.bf16.mxu0 0
        %734 = vmatpush1.bf16.msra.mxu0 %v597
        %735 = vmatprep.subr.bf16.mxu0 0
        %736 = vmatpush1.bf16.msra.mxu0 %v600
        %737 = vmatprep.subr.bf16.mxu0 0
        %738 = vmatpush1.bf16.msra.mxu0 %v603
        %739 = vmatprep.subr.bf16.mxu0 0
        %740 = vmatpush1.bf16.msra.mxu0 %v606
        %741 = vmatprep.subr.bf16.mxu0 0
        %742 = vmatpush1.bf16.msra.mxu0 %v609
        %743 = vmatprep.mubr.bf16.mxu0 %v395
        %744 = vmatmul.mubr.bf16.gmra.mrb[0].mxu0 %v394
        %v745 = vpop.f32.mrb[0].mxu0
        %v746 = vadd.f32 0.0, %v745
        %v747 = vpop.f32.mrb[0].mxu0
        %v748 = vpop.f32.mrb[0].mxu0
        %v749 = vadd.f32 0.0, %v748
        %v750 = vpop.f32.mrb[0].mxu0
        %751 = vmatprep.mubr.bf16.mxu0 %v397
        %752 = vmatmul.mubr.bf16.gmra.mrb[0].mxu0 %v396
        %v753 = vpop.f32.mrb[0].mxu0
        %v754 = vadd.f32 0.0, %v753
        %v755 = vpop.f32.mrb[0].mxu0
        %v756 = vpop.f32.mrb[0].mxu0
        %v757 = vadd.f32 0.0, %v756
        %v758 = vpop.f32.mrb[0].mxu0
        %759 = vdwg.mxu0
        %v760 = vadd.f32 %v302, %v693
        %v761 = vadd.f32 %v303, %v695
        %v762 = vadd.f32 %v304, %v746
        %v763 = vadd.f32 %v305, %v697
        %v764 = vadd.f32 %v306, %v699
        %v765 = vadd.f32 %v307, %v749
        %v766 = vadd.f32 %v308, %v703
        %v767 = vadd.f32 %v309, %v705
        %v768 = vadd.f32 %v310, %v754
        %v769 = vadd.f32 %v311, %v707
        %v770 = vadd.f32 %v312, %v709
        %v771 = vadd.f32 %v313, %v757
        %772 = vst [vmem:[#allocation2] sm:$0xff] %v760
        %773 = vst [vmem:[#allocation2 + $0x8] sm:$0xff] %v761
        %774 = vst [vmem:[#allocation2 + $0x10] sm:$0xff] %v762
        %775 = vst [vmem:[#allocation2 + $0x18] sm:$0xff] %v763
        %776 = vst [vmem:[#allocation2 + $0x20] sm:$0xff] %v764
        %777 = vst [vmem:[#allocation2 + $0x28] sm:$0xff] %v765
        %778 = vst [vmem:[#allocation2 + $0x30] sm:$0xff] %v766
        %779 = vst [vmem:[#allocation2 + $0x38] sm:$0xff] %v767
        %780 = vst [vmem:[#allocation2 + $0x40] sm:$0xff] %v768
        %781 = vst [vmem:[#allocation2 + $0x48] sm:$0xff] %v769
        %782 = vst [vmem:[#allocation2 + $0x50] sm:$0xff] %v770
        %783 = vst [vmem:[#allocation2 + $0x58] sm:$0xff] %v771
        // Predicated region
        $region49: #{seq2seq_forward.25} parent=31 // pred_check
          %p784 = pneg %p286
        $region50: #{seq2seq_forward.25} parent=31 // pred_check_branch
          %786 = sbr.rel (%p784) target = $region52
        $region51: #{seq2seq_forward.25} parent=31 // pred_region
          %v787 = vld [vmem:[#allocation2] sm:$0xff]
          %v788 = vld [vmem:[#allocation2 + $0x8] sm:$0xff]
          %v789 = vld [vmem:[#allocation2 + $0x10] sm:$0xff]
          %v790 = vld [vmem:[#allocation2 + $0x18] sm:$0xff]
          %v791 = vld [vmem:[#allocation2 + $0x20] sm:$0xff]
          %v792 = vld [vmem:[#allocation2 + $0x28] sm:$0xff]
          %v793 = vld [vmem:[#allocation2 + $0x30] sm:$0xff]
          %v794 = vld [vmem:[#allocation2 + $0x38] sm:$0xff]
          %v795 = vld [vmem:[#allocation2 + $0x40] sm:$0xff]
          %v796 = vld [vmem:[#allocation2 + $0x48] sm:$0xff]
          %v797 = vld [vmem:[#allocation2 + $0x50] sm:$0xff]
          %v798 = vld [vmem:[#allocation2 + $0x58] sm:$0xff]
          %v799 = vld [vmem:[%s250] sm:$0x7]
          %v801 = vlaneseq
          %v802 = vshrl.u32 %v801, 7
          %v803 = vsub.s32 0, %v802
          %v804 = vrot.slane %v799, %v803
          %v805 = vlaneseq
          %v806 = vshrl.u32 %v805, 7
          %v807 = vsub.s32 1, %v806
          %v808 = vrot.slane %v799, %v807
          %v809 = vlaneseq
          %v810 = vshrl.u32 %v809, 7
          %v811 = vsub.s32 2, %v810
          %v812 = vrot.slane %v799, %v811
          %v816 = vadd.f32 %v787, %v804
          %v817 = vadd.f32 %v788, %v808
          %v818 = vadd.f32 %v789, %v812
          %v819 = vadd.f32 %v790, %v804
          %v820 = vadd.f32 %v791, %v808
          %v821 = vadd.f32 %v792, %v812
          %v822 = vadd.f32 %v793, %v804
          %v823 = vadd.f32 %v794, %v808
          %v824 = vadd.f32 %v795, %v812
          %v825 = vadd.f32 %v796, %v804
          %v826 = vadd.f32 %v797, %v808
          %v827 = vadd.f32 %v798, %v812
          %v828 = vpack.c.bf16 %v819, %v816
          %v829 = vpack.c.bf16 %v820, %v817
          %v830 = vpack.c.bf16 %v821, %v818
          %v831 = vpack.c.bf16 %v825, %v822
          %v832 = vpack.c.bf16 %v826, %v823
          %v833 = vpack.c.bf16 %v827, %v824
          %v840 = vunpack.c.l.b16 %v828
          %v841 = vunpack.c.l.b16 %v829
          %v842 = vunpack.c.l.b16 %v830
          %v843 = vunpack.c.h.b16 %v828
          %v844 = vunpack.c.h.b16 %v829
          %v845 = vunpack.c.h.b16 %v830
          %v846 = vunpack.c.l.b16 %v831
          %v847 = vunpack.c.l.b16 %v832
          %v848 = vunpack.c.l.b16 %v833
          %v849 = vunpack.c.h.b16 %v831
          %v850 = vunpack.c.h.b16 %v832
          %v851 = vunpack.c.h.b16 %v833
          %v852 = vpack.c.b16 %v841, %v840
          %v853 = vpack.c.b16 %v842, %v842
          %v854 = vpack.c.b16 %v844, %v843
          %v855 = vpack.c.b16 %v845, %v845
          %v856 = vpack.c.b16 %v847, %v846
          %v857 = vpack.c.b16 %v848, %v848
          %v858 = vpack.c.b16 %v850, %v849
          %v859 = vpack.c.b16 %v851, %v851
          %868 = vst [vmem:[%s277] sm:$0xff] %v852
          %869 = vst [vmem:[%s277 + $0x8] sm:$0xf] %v853
          %870 = vst [vmem:[%s277 + $0xc] sm:$0xff] %v854
          %871 = vst [vmem:[%s277 + $0x14] sm:$0xf] %v855
          %872 = vst [vmem:[%s277 + $0x18] sm:$0xff] %v856
          %873 = vst [vmem:[%s277 + $0x20] sm:$0xf] %v857
          %874 = vst [vmem:[%s277 + $0x24] sm:$0xff] %v858
          %875 = vst [vmem:[%s277 + $0x2c] sm:$0xf] %v859
        $region52: #{seq2seq_forward.25} parent=31 // pred_fallthru
          _
        %s876 = sand.u32 %s132, 1
        %s877 = scalar_lea.sflag [#allocation5], %s876
        %s878 = sand.u32 %s132, 1
        %s879 = smul.addr %s878, 48
        %s880 = scalar_lea.vmem [#allocation9], %s879
        // Predicated region
        $region53: #{seq2seq_forward.25} parent=31 // pred_check
          %p881 = pneg %p142
        $region54: #{seq2seq_forward.25} parent=31 // pred_check_branch
          %883 = sbr.rel (%p881) target = $region56
        $region55: #{seq2seq_forward.25} parent=31 // pred_region
          %s884 = smul.u32 4, %s26
          %s885 = smul.u32 3, %s27
          %s887 = ssub.s32 768, 768
          %888 = vsyncadd %s877, %s887
          %s889 = smul.addr %s884, 6
          %s890 = sadd.s32 %s885, %s889
          %s891 = smul.addr %s890, 64
          %s892 = scalar_lea.hbm %s3, %s891
          %s893 = sshll.u32 %s880, 4
          %s894 = int_to_ptr.vmem [resolvable:$true] %s893
          %899 = dma.vmem_to_hbm [thread:$0]  %s894, 768, %s892, %s877, 192, 384, 12
        $region56: #{seq2seq_forward.25} parent=31 // pred_fallthru
          _
      $region32: #{seq2seq_forward.25} parent=5 // pred_fallthru
        _
      %p900 = scmp.le.s32.totalorder 2, %s16
      // Predicated region
      $region57: #{seq2seq_forward.25} parent=5 // pred_check
        %p901 = pneg %p900
      $region58: #{seq2seq_forward.25} parent=5 // pred_check_branch
        %903 = sbr.rel (%p901) target = $region60
      $region59: #{seq2seq_forward.25} parent=5 // pred_region
        %s904 = ssub.s32 %s16, 2
        // Predicated region
        $region61: #{seq2seq_forward.25} parent=59 // pred_check
          %p905 = pneg %p148
        $region62: #{seq2seq_forward.25} parent=59 // pred_check_branch
          %907 = sbr.rel (%p905) target = $region64
        $region63: #{seq2seq_forward.25} parent=59 // pred_region
          %s908 = sand.u32 %s133, 1
          %s909 = scalar_lea.sflag [#allocation5], %s908
          %s910 = sand.u32 %s133, 1
          %s911 = smul.addr %s910, 48
          %s912 = scalar_lea.vmem [#allocation9], %s911
          %913 = dma.done %s909, 768
        $region64: #{seq2seq_forward.25} parent=59 // pred_fallthru
          _
      $region60: #{seq2seq_forward.25} parent=5 // pred_fallthru
        _
    $region6: #{seq2seq_forward.25} parent=1 // loop_footer
      %s20 = sadd.s32 1, %s16
    $region7: #{seq2seq_forward.25} parent=1 // loop_footer_branch
      %15 = sbr.rel target = $region3
    $region8: #{seq2seq_forward.25} parent=1 // loop_exit
      _
    %914 = vsyncpa [#allocation4], 1
    %s915 = scalar_lea.sflag [#allocation4], 1
    %916 = vsyncpa %s915, 1
    %917 = vsyncpa [#allocation7], 1
    %s918 = scalar_lea.sflag [#allocation7], 1
    %919 = vsyncpa %s918, 1
    %920 = vsyncpa [#allocation5], 1
    %s921 = scalar_lea.sflag [#allocation5], 1
    %922 = vsyncpa %s921, 1

// kernel: seq2seq_forward.27
$region0: #{seq2seq_forward.27}
  #allocation0 [shape = 'u32[]', space=smem, size = 0x4, offset = 0x4, fixed_abs, tag = 'smem constant byte address 0x4 - core index']
  #allocation1 [shape = 'u32[144,128]{1,0:T(1,128)}', space=vmem, size = 0x12000, scoped, tag = 'internal scratch']
  #allocation2 [shape = 'f32[32,256]{1,0:T(8,128)}', space=vmem, size = 0x8000, scoped, tag = 'scratch operand']
  %s0 = inlined_call_operand.hbm [shape: bf16[32,256], index: 0, kind: input, shape index: {}]
  %s1 = inlined_call_operand.hbm [shape: bf16[256,256], index: 1, kind: input, shape index: {}]
  %s2 = inlined_call_operand.hbm [shape: f32[1,256], index: 2, kind: input, shape index: {}]
  %s3 = inlined_call_operand.hbm [shape: bf16[32,256], index: 3, kind: input, shape index: {}]
  %s4 = inlined_call_operand.hbm [shape: f32[1,256], index: 4, kind: input, shape index: {}]
  %s5 = inlined_call_operand.hbm [shape: f32[1,256], index: 5, kind: input, shape index: {}]
  %s6 = inlined_call_operand.hbm [shape: bf16[32,256], index: 6, kind: output, shape index: {}]
  %s7 = sld [smem:[#allocation0]]
  $region66: #{seq2seq_forward.27} parent=0
    _
  %s9 = ssub.s32 1, %s7
  %s10 = scalar_select 0, %s9, %s7
  $region1: #{seq2seq_forward.27} parent=0
    #allocation3 [shape = 'u8[16384]{0}', space=vmem, size = 0x4000, scoped, tag = 'input window, operand 0, single buffered']
    #allocation4 [shape = 's32[1]{0}', space=sflag, size = 0x4, scoped, tag = 'scoped memory for seq2seq_forward.27']
    #allocation5 [shape = 's32[1]{0}', space=sflag, size = 0x4, scoped, tag = 'scoped memory for seq2seq_forward.27']
    #allocation6 [shape = 'u8[131072]{0}', space=vmem, size = 0x20000, scoped, tag = 'input window, operand 1, single buffered']
    #allocation7 [shape = 's32[1]{0}', space=sflag, size = 0x4, scoped, tag = 'scoped memory for seq2seq_forward.27']
    #allocation8 [shape = 'u8[1024]{0}', space=vmem, size = 0x400, scoped, tag = 'input window, operand 2, single buffered']
    #allocation9 [shape = 'u8[16384]{0}', space=vmem, size = 0x4000, scoped, tag = 'input window, operand 3, single buffered']
    #allocation10 [shape = 's32[1]{0}', space=sflag, size = 0x4, scoped, tag = 'scoped memory for seq2seq_forward.27']
    #allocation11 [shape = 'u8[1024]{0}', space=vmem, size = 0x400, scoped, tag = 'input window, operand 4, single buffered']
    #allocation12 [shape = 'u8[1024]{0}', space=vmem, size = 0x400, scoped, tag = 'input window, operand 5, single buffered']
    #allocation13 [shape = 's32[1]{0}', space=sflag, size = 0x4, scoped, tag = 'scoped memory for seq2seq_forward.27']
    #allocation14 [shape = 'u8[16384]{0}', space=vmem, size = 0x4000, scoped, tag = 'output window, operand 0, single buffered']
    %11 = vsyncpa [#allocation4], 0
    %12 = vsyncpa [#allocation7], 0
    %13 = vsyncpa [#allocation10], 0
    %14 = vsyncpa [#allocation13], 0
    %15 = vsyncpa [#allocation5], 0
    // Predicated region
    $region2: #{seq2seq_forward.27} parent=1 // pred_check
      _
    $region3: #{seq2seq_forward.27} parent=1 // pred_check_branch
      %17 = sbr.rel (0) target = $region5
    $region4: #{seq2seq_forward.27} parent=1 // pred_region
      %s19 = ssub.s32 512, 512
      %20 = vsyncadd [#allocation4], %s19
      %s21 = sshll.u32 [#allocation3], 4
      %s22 = int_to_ptr.vmem [resolvable:$true] %s21
      %27 = dma.hbm_to_vmem [thread:$0]  %s0, 512, %s22, [#allocation4], 128, 128, 8
    $region5: #{seq2seq_forward.27} parent=1 // pred_fallthru
      _
    // Predicated region
    $region6: #{seq2seq_forward.27} parent=1 // pred_check
      _
    $region7: #{seq2seq_forward.27} parent=1 // pred_check_branch
      %29 = sbr.rel (0) target = $region9
    $region8: #{seq2seq_forward.27} parent=1 // pred_region
      %s31 = ssub.s32 4096, 4096
      %32 = vsyncadd [#allocation7], %s31
      %s33 = sshll.u32 [#allocation6], 4
      %s34 = int_to_ptr.vmem [resolvable:$true] %s33
      %39 = dma.hbm_to_vmem [thread:$0]  %s1, 4096, %s34, [#allocation7], 128, 128, 8
    $region9: #{seq2seq_forward.27} parent=1 // pred_fallthru
      _
    // Predicated region
    $region10: #{seq2seq_forward.27} parent=1 // pred_check
      _
    $region11: #{seq2seq_forward.27} parent=1 // pred_check_branch
      %41 = sbr.rel (0) target = $region13
    $region12: #{seq2seq_forward.27} parent=1 // pred_region
      %s43 = ssub.s32 32, 32
      %44 = vsyncadd [#allocation7], %s43
      %s46 = sshll.u32 [#allocation8], 4
      %s47 = int_to_ptr.vmem [resolvable:$true] %s46
      %49 = dma.hbm_to_vmem [thread:$0]  %s2, 32, %s47, [#allocation7]
    $region13: #{seq2seq_forward.27} parent=1 // pred_fallthru
      _
    // Predicated region
    $region14: #{seq2seq_forward.27} parent=1 // pred_check
      _
    $region15: #{seq2seq_forward.27} parent=1 // pred_check_branch
      %51 = sbr.rel (0) target = $region17
    $region16: #{seq2seq_forward.27} parent=1 // pred_region
      %s53 = ssub.s32 512, 512
      %54 = vsyncadd [#allocation10], %s53
      %s55 = sshll.u32 [#allocation9], 4
      %s56 = int_to_ptr.vmem [resolvable:$true] %s55
      %61 = dma.hbm_to_vmem [thread:$0]  %s3, 512, %s56, [#allocation10], 128, 128, 8
    $region17: #{seq2seq_forward.27} parent=1 // pred_fallthru
      _
    // Predicated region
    $region18: #{seq2seq_forward.27} parent=1 // pred_check
      _
    $region19: #{seq2seq_forward.27} parent=1 // pred_check_branch
      %63 = sbr.rel (0) target = $region21
    $region20: #{seq2seq_forward.27} parent=1 // pred_region
      %s65 = ssub.s32 32, 32
      %66 = vsyncadd [#allocation10], %s65
      %s68 = sshll.u32 [#allocation11], 4
      %s69 = int_to_ptr.vmem [resolvable:$true] %s68
      %71 = dma.hbm_to_vmem [thread:$0]  %s4, 32, %s69, [#allocation10]
    $region21: #{seq2seq_forward.27} parent=1 // pred_fallthru
      _
    // Predicated region
    $region22: #{seq2seq_forward.27} parent=1 // pred_check
      _
    $region23: #{seq2seq_forward.27} parent=1 // pred_check_branch
      %73 = sbr.rel (0) target = $region25
    $region24: #{seq2seq_forward.27} parent=1 // pred_region
      %s75 = ssub.s32 32, 32
      %76 = vsyncadd [#allocation13], %s75
      %s78 = sshll.u32 [#allocation12], 4
      %s79 = int_to_ptr.vmem [resolvable:$true] %s78
      %81 = dma.hbm_to_vmem [thread:$0]  %s5, 32, %s79, [#allocation13]
    $region25: #{seq2seq_forward.27} parent=1 // pred_fallthru
      _
    // Predicated region
    $region26: #{seq2seq_forward.27} parent=1 // pred_check
      _
    $region27: #{seq2seq_forward.27} parent=1 // pred_check_branch
      %83 = sbr.rel (0) target = $region29
    $region28: #{seq2seq_forward.27} parent=1 // pred_region
      %84 = dma.done [#allocation4], 512
    $region29: #{seq2seq_forward.27} parent=1 // pred_fallthru
      _
    // Predicated region
    $region30: #{seq2seq_forward.27} parent=1 // pred_check
      _
    $region31: #{seq2seq_forward.27} parent=1 // pred_check_branch
      %86 = sbr.rel (0) target = $region33
    $region32: #{seq2seq_forward.27} parent=1 // pred_region
      %87 = dma.done [#allocation7], 4096
    $region33: #{seq2seq_forward.27} parent=1 // pred_fallthru
      _
    // Predicated region
    $region34: #{seq2seq_forward.27} parent=1 // pred_check
      _
    $region35: #{seq2seq_forward.27} parent=1 // pred_check_branch
      %89 = sbr.rel (0) target = $region37
    $region36: #{seq2seq_forward.27} parent=1 // pred_region
      %90 = dma.done [#allocation7], 32
    $region37: #{seq2seq_forward.27} parent=1 // pred_fallthru
      _
    // Predicated region
    $region38: #{seq2seq_forward.27} parent=1 // pred_check
      _
    $region39: #{seq2seq_forward.27} parent=1 // pred_check_branch
      %92 = sbr.rel (0) target = $region41
    $region40: #{seq2seq_forward.27} parent=1 // pred_region
      %93 = dma.done [#allocation10], 512
    $region41: #{seq2seq_forward.27} parent=1 // pred_fallthru
      _
    // Predicated region
    $region42: #{seq2seq_forward.27} parent=1 // pred_check
      _
    $region43: #{seq2seq_forward.27} parent=1 // pred_check_branch
      %95 = sbr.rel (0) target = $region45
    $region44: #{seq2seq_forward.27} parent=1 // pred_region
      %96 = dma.done [#allocation10], 32
    $region45: #{seq2seq_forward.27} parent=1 // pred_fallthru
      _
    // Predicated region
    $region46: #{seq2seq_forward.27} parent=1 // pred_check
      _
    $region47: #{seq2seq_forward.27} parent=1 // pred_check_branch
      %98 = sbr.rel (0) target = $region49
    $region48: #{seq2seq_forward.27} parent=1 // pred_region
      %99 = dma.done [#allocation13], 32
    $region49: #{seq2seq_forward.27} parent=1 // pred_fallthru
      _
    %p100 = scmp.eq.s32.totalorder 0, 0
    // Predicated region
    $region50: #{seq2seq_forward.27} parent=1 // pred_check
      %p101 = pneg %p100
    $region51: #{seq2seq_forward.27} parent=1 // pred_check_branch
      %103 = sbr.rel (%p101) target = $region53
    $region52: #{seq2seq_forward.27} parent=1 // pred_region
      %104 = vst [vmem:[#allocation2] sm:$0xff] 0.0
      %105 = vst [vmem:[#allocation2 + $0x8] sm:$0xff] 0.0
      %106 = vst [vmem:[#allocation2 + $0x10] sm:$0xff] 0.0
      %107 = vst [vmem:[#allocation2 + $0x18] sm:$0xff] 0.0
      %108 = vst [vmem:[#allocation2 + $0x20] sm:$0xff] 0.0
      %109 = vst [vmem:[#allocation2 + $0x28] sm:$0xff] 0.0
      %110 = vst [vmem:[#allocation2 + $0x30] sm:$0xff] 0.0
      %111 = vst [vmem:[#allocation2 + $0x38] sm:$0xff] 0.0
    $region53: #{seq2seq_forward.27} parent=1 // pred_fallthru
      _
    %v112 = vld [vmem:[#allocation2] sm:$0xff]
    %v113 = vld [vmem:[#allocation2 + $0x8] sm:$0xff]
    %v114 = vld [vmem:[#allocation2 + $0x10] sm:$0xff]
    %v115 = vld [vmem:[#allocation2 + $0x18] sm:$0xff]
    %v116 = vld [vmem:[#allocation2 + $0x20] sm:$0xff]
    %v117 = vld [vmem:[#allocation2 + $0x28] sm:$0xff]
    %v118 = vld [vmem:[#allocation2 + $0x30] sm:$0xff]
    %v119 = vld [vmem:[#allocation2 + $0x38] sm:$0xff]
    %v120 = vld [vmem:[#allocation3] sm:$0xff]
    %v121 = vld [vmem:[#allocation3 + $0x8] sm:$0xff]
    %v122 = vld [vmem:[#allocation3 + $0x10] sm:$0xff]
    %v123 = vld [vmem:[#allocation3 + $0x18] sm:$0xff]
    %v124 = vld [vmem:[#allocation6] sm:$0xff]
    %v125 = vld [vmem:[#allocation6 + $0x8] sm:$0xff]
    %v126 = vld [vmem:[#allocation6 + $0x10] sm:$0xff]
    %v127 = vld [vmem:[#allocation6 + $0x18] sm:$0xff]
    %v128 = vld [vmem:[#allocation6 + $0x20] sm:$0xff]
    %v129 = vld [vmem:[#allocation6 + $0x28] sm:$0xff]
    %v130 = vld [vmem:[#allocation6 + $0x30] sm:$0xff]
    %v131 = vld [vmem:[#allocation6 + $0x38] sm:$0xff]
    %v132 = vld [vmem:[#allocation6 + $0x40] sm:$0xff]
    %v133 = vld [vmem:[#allocation6 + $0x48] sm:$0xff]
    %v134 = vld [vmem:[#allocation6 + $0x50] sm:$0xff]
    %v135 = vld [vmem:[#allocation6 + $0x58] sm:$0xff]
    %v136 = vld [vmem:[#allocation6 + $0x60] sm:$0xff]
    %v137 = vld [vmem:[#allocation6 + $0x68] sm:$0xff]
    %v138 = vld [vmem:[#allocation6 + $0x70] sm:$0xff]
    %v139 = vld [vmem:[#allocation6 + $0x78] sm:$0xff]
    %v140 = vld [vmem:[#allocation6 + $0x80] sm:$0xff]
    %v141 = vld [vmem:[#allocation6 + $0x88] sm:$0xff]
    %v142 = vld [vmem:[#allocation6 + $0x90] sm:$0xff]
    %v143 = vld [vmem:[#allocation6 + $0x98] sm:$0xff]
    %v144 = vld [vmem:[#allocation6 + $0xa0] sm:$0xff]
    %v145 = vld [vmem:[#allocation6 + $0xa8] sm:$0xff]
    %v146 = vld [vmem:[#allocation6 + $0xb0] sm:$0xff]
    %v147 = vld [vmem:[#allocation6 + $0xb8] sm:$0xff]
    %v148 = vld [vmem:[#allocation6 + $0xc0] sm:$0xff]
    %v149 = vld [vmem:[#allocation6 + $0xc8] sm:$0xff]
    %v150 = vld [vmem:[#allocation6 + $0xd0] sm:$0xff]
    %v151 = vld [vmem:[#allocation6 + $0xd8] sm:$0xff]
    %v152 = vld [vmem:[#allocation6 + $0xe0] sm:$0xff]
    %v153 = vld [vmem:[#allocation6 + $0xe8] sm:$0xff]
    %v154 = vld [vmem:[#allocation6 + $0xf0] sm:$0xff]
    %v155 = vld [vmem:[#allocation6 + $0xf8] sm:$0xff]
    %v160 = vunpack.c.l.b16 %v120
    %v161 = vunpack.c.h.b16 %v120
    %v162 = vunpack.c.l.b16 %v121
    %v163 = vunpack.c.h.b16 %v121
    %v164 = vunpack.c.l.b16 %v122
    %v165 = vunpack.c.h.b16 %v122
    %v166 = vunpack.c.l.b16 %v123
    %v167 = vunpack.c.h.b16 %v123
    %v168 = vpack.c.b16 %v162, %v160
    %v169 = vpack.c.b16 %v163, %v161
    %v170 = vpack.c.b16 %v166, %v164
    %v171 = vpack.c.b16 %v167, %v165
    %v208 = vunpack.c.l.b16 %v124
    %v209 = vunpack.c.h.b16 %v124
    %v210 = vunpack.c.l.b16 %v125
    %v211 = vunpack.c.h.b16 %v125
    %v212 = vunpack.c.l.b16 %v126
    %v213 = vunpack.c.h.b16 %v126
    %v214 = vunpack.c.l.b16 %v127
    %v215 = vunpack.c.h.b16 %v127
    %v216 = vunpack.c.l.b16 %v128
    %v217 = vunpack.c.h.b16 %v128
    %v218 = vunpack.c.l.b16 %v129
    %v219 = vunpack.c.h.b16 %v129
    %v220 = vunpack.c.l.b16 %v130
    %v221 = vunpack.c.h.b16 %v130
    %v222 = vunpack.c.l.b16 %v131
    %v223 = vunpack.c.h.b16 %v131
    %v224 = vunpack.c.l.b16 %v132
    %v225 = vunpack.c.h.b16 %v132
    %v226 = vunpack.c.l.b16 %v133
    %v227 = vunpack.c.h.b16 %v133
    %v228 = vunpack.c.l.b16 %v134
    %v229 = vunpack.c.h.b16 %v134
    %v230 = vunpack.c.l.b16 %v135
    %v231 = vunpack.c.h.b16 %v135
    %v232 = vunpack.c.l.b16 %v136
    %v233 = vunpack.c.h.b16 %v136
    %v234 = vunpack.c.l.b16 %v137
    %v235 = vunpack.c.h.b16 %v137
    %v236 = vunpack.c.l.b16 %v138
    %v237 = vunpack.c.h.b16 %v138
    %v238 = vunpack.c.l.b16 %v139
    %v239 = vunpack.c.h.b16 %v139
    %v240 = vunpack.c.l.b16 %v140
    %v241 = vunpack.c.h.b16 %v140
    %v242 = vunpack.c.l.b16 %v141
    %v243 = vunpack.c.h.b16 %v141
    %v244 = vunpack.c.l.b16 %v142
    %v245 = vunpack.c.h.b16 %v142
    %v246 = vunpack.c.l.b16 %v143
    %v247 = vunpack.c.h.b16 %v143
    %v248 = vunpack.c.l.b16 %v144
    %v249 = vunpack.c.h.b16 %v144
    %v250 = vunpack.c.l.b16 %v145
    %v251 = vunpack.c.h.b16 %v145
    %v252 = vunpack.c.l.b16 %v146
    %v253 = vunpack.c.h.b16 %v146
    %v254 = vunpack.c.l.b16 %v147
    %v255 = vunpack.c.h.b16 %v147
    %v256 = vunpack.c.l.b16 %v148
    %v257 = vunpack.c.h.b16 %v148
    %v258 = vunpack.c.l.b16 %v149
    %v259 = vunpack.c.h.b16 %v149
    %v260 = vunpack.c.l.b16 %v150
    %v261 = vunpack.c.h.b16 %v150
    %v262 = vunpack.c.l.b16 %v151
    %v263 = vunpack.c.h.b16 %v151
    %v264 = vunpack.c.l.b16 %v152
    %v265 = vunpack.c.h.b16 %v152
    %v266 = vunpack.c.l.b16 %v153
    %v267 = vunpack.c.h.b16 %v153
    %v268 = vunpack.c.l.b16 %v154
    %v269 = vunpack.c.h.b16 %v154
    %v270 = vunpack.c.l.b16 %v155
    %v271 = vunpack.c.h.b16 %v155
    %v272 = vpack.c.b16 %v210, %v208
    %v273 = vpack.c.b16 %v211, %v209
    %v274 = vpack.c.b16 %v214, %v212
    %v275 = vpack.c.b16 %v215, %v213
    %v276 = vpack.c.b16 %v218, %v216
    %v277 = vpack.c.b16 %v219, %v217
    %v278 = vpack.c.b16 %v222, %v220
    %v279 = vpack.c.b16 %v223, %v221
    %v280 = vpack.c.b16 %v226, %v224
    %v281 = vpack.c.b16 %v227, %v225
    %v282 = vpack.c.b16 %v230, %v228
    %v283 = vpack.c.b16 %v231, %v229
    %v284 = vpack.c.b16 %v234, %v232
    %v285 = vpack.c.b16 %v235, %v233
    %v286 = vpack.c.b16 %v238, %v236
    %v287 = vpack.c.b16 %v239, %v237
    %v288 = vpack.c.b16 %v242, %v240
    %v289 = vpack.c.b16 %v243, %v241
    %v290 = vpack.c.b16 %v246, %v244
    %v291 = vpack.c.b16 %v247, %v245
    %v292 = vpack.c.b16 %v250, %v248
    %v293 = vpack.c.b16 %v251, %v249
    %v294 = vpack.c.b16 %v254, %v252
    %v295 = vpack.c.b16 %v255, %v253
    %v296 = vpack.c.b16 %v258, %v256
    %v297 = vpack.c.b16 %v259, %v257
    %v298 = vpack.c.b16 %v262, %v260
    %v299 = vpack.c.b16 %v263, %v261
    %v300 = vpack.c.b16 %v266, %v264
    %v301 = vpack.c.b16 %v267, %v265
    %v302 = vpack.c.b16 %v270, %v268
    %v303 = vpack.c.b16 %v271, %v269
    %336 = vmatprep.subr.bf16.mxu0 %v273
    %337 = vmatpush1.bf16.msra.mxu0 %v272
    %338 = vmatprep.subr.bf16.mxu0 %v275
    %339 = vmatpush1.bf16.msra.mxu0 %v274
    %340 = vmatprep.subr.bf16.mxu0 %v277
    %341 = vmatpush1.bf16.msra.mxu0 %v276
    %342 = vmatprep.subr.bf16.mxu0 %v279
    %343 = vmatpush1.bf16.msra.mxu0 %v278
    %344 = vmatprep.subr.bf16.mxu0 %v281
    %345 = vmatpush1.bf16.msra.mxu0 %v280
    %346 = vmatprep.subr.bf16.mxu0 %v283
    %347 = vmatpush1.bf16.msra.mxu0 %v282
    %348 = vmatprep.subr.bf16.mxu0 %v285
    %349 = vmatpush1.bf16.msra.mxu0 %v284
    %350 = vmatprep.subr.bf16.mxu0 %v287
    %351 = vmatpush1.bf16.msra.mxu0 %v286
    %352 = vmatprep.subr.bf16.mxu0 %v289
    %353 = vmatpush1.bf16.msra.mxu0 %v288
    %354 = vmatprep.subr.bf16.mxu0 %v291
    %355 = vmatpush1.bf16.msra.mxu0 %v290
    %356 = vmatprep.subr.bf16.mxu0 %v293
    %357 = vmatpush1.bf16.msra.mxu0 %v292
    %358 = vmatprep.subr.bf16.mxu0 %v295
    %359 = vmatpush1.bf16.msra.mxu0 %v294
    %360 = vmatprep.subr.bf16.mxu0 %v297
    %361 = vmatpush1.bf16.msra.mxu0 %v296
    %362 = vmatprep.subr.bf16.mxu0 %v299
    %363 = vmatpush1.bf16.msra.mxu0 %v298
    %364 = vmatprep.subr.bf16.mxu0 %v301
    %365 = vmatpush1.bf16.msra.mxu0 %v300
    %366 = vmatprep.subr.bf16.mxu0 %v303
    %367 = vmatpush1.bf16.msra.mxu0 %v302
    %368 = vmatprep.mubr.bf16.mxu0 %v169
    %369 = vmatmul.mubr.bf16.gmra.mrb[0].mxu0 %v168
    %v370 = vpop.f32.mrb[0].mxu0
    %v371 = vadd.f32 0.0, %v370
    %v372 = vpop.f32.mrb[0].mxu0
    %v373 = vadd.f32 0.0, %v372
    %v374 = vpop.f32.mrb[0].mxu0
    %v375 = vadd.f32 0.0, %v374
    %v376 = vpop.f32.mrb[0].mxu0
    %v377 = vadd.f32 0.0, %v376
    %378 = vmatprep.mubr.bf16.mxu0 %v171
    %379 = vmatmul.mubr.bf16.gmra.mrb[0].mxu0 %v170
    %v380 = vpop.f32.mrb[0].mxu0
    %v381 = vadd.f32 0.0, %v380
    %v382 = vpop.f32.mrb[0].mxu0
    %v383 = vadd.f32 0.0, %v382
    %v384 = vpop.f32.mrb[0].mxu0
    %v385 = vadd.f32 0.0, %v384
    %v386 = vpop.f32.mrb[0].mxu0
    %v387 = vadd.f32 0.0, %v386
    %388 = vdwg.mxu0
    %v389 = vadd.f32 %v112, %v371
    %v390 = vadd.f32 %v113, %v373
    %v391 = vadd.f32 %v114, %v375
    %v392 = vadd.f32 %v115, %v377
    %v393 = vadd.f32 %v116, %v381
    %v394 = vadd.f32 %v117, %v383
    %v395 = vadd.f32 %v118, %v385
    %v396 = vadd.f32 %v119, %v387
    %397 = vst [vmem:[#allocation2] sm:$0xff] %v389
    %398 = vst [vmem:[#allocation2 + $0x8] sm:$0xff] %v390
    %399 = vst [vmem:[#allocation2 + $0x10] sm:$0xff] %v391
    %400 = vst [vmem:[#allocation2 + $0x18] sm:$0xff] %v392
    %401 = vst [vmem:[#allocation2 + $0x20] sm:$0xff] %v393
    %402 = vst [vmem:[#allocation2 + $0x28] sm:$0xff] %v394
    %403 = vst [vmem:[#allocation2 + $0x30] sm:$0xff] %v395
    %404 = vst [vmem:[#allocation2 + $0x38] sm:$0xff] %v396
    // Predicated region
    $region54: #{seq2seq_forward.27} parent=1 // pred_check
      %p405 = pneg %p100
    $region55: #{seq2seq_forward.27} parent=1 // pred_check_branch
      %407 = sbr.rel (%p405) target = $region57
    $region56: #{seq2seq_forward.27} parent=1 // pred_region
      %v408 = vld [vmem:[#allocation2] sm:$0xff]
      %v409 = vld [vmem:[#allocation2 + $0x8] sm:$0xff]
      %v410 = vld [vmem:[#allocation2 + $0x10] sm:$0xff]
      %v411 = vld [vmem:[#allocation2 + $0x18] sm:$0xff]
      %v412 = vld [vmem:[#allocation2 + $0x20] sm:$0xff]
      %v413 = vld [vmem:[#allocation2 + $0x28] sm:$0xff]
      %v414 = vld [vmem:[#allocation2 + $0x30] sm:$0xff]
      %v415 = vld [vmem:[#allocation2 + $0x38] sm:$0xff]
      %v416 = vld [vmem:[#allocation8] sm:$0x3]
      %v418 = vlaneseq
      %v419 = vshrl.u32 %v418, 7
      %v420 = vsub.s32 0, %v419
      %v421 = vrot.slane %v416, %v420
      %v422 = vlaneseq
      %v423 = vshrl.u32 %v422, 7
      %v424 = vsub.s32 1, %v423
      %v425 = vrot.slane %v416, %v424
      %v428 = vadd.f32 %v408, %v421
      %v429 = vadd.f32 %v409, %v425
      %v430 = vadd.f32 %v410, %v421
      %v431 = vadd.f32 %v411, %v425
      %v432 = vadd.f32 %v412, %v421
      %v433 = vadd.f32 %v413, %v425
      %v434 = vadd.f32 %v414, %v421
      %v435 = vadd.f32 %v415, %v425
      %v436 = vld [vmem:[#allocation9] sm:$0xff]
      %v437 = vld [vmem:[#allocation9 + $0x8] sm:$0xff]
      %v438 = vld [vmem:[#allocation9 + $0x10] sm:$0xff]
      %v439 = vld [vmem:[#allocation9 + $0x18] sm:$0xff]
      %v440 = vunpack.c.l.bf16 %v436
      %v441 = vunpack.c.h.bf16 %v436
      %v442 = vunpack.c.l.bf16 %v437
      %v443 = vunpack.c.h.bf16 %v437
      %v444 = vunpack.c.l.bf16 %v438
      %v445 = vunpack.c.h.bf16 %v438
      %v446 = vunpack.c.l.bf16 %v439
      %v447 = vunpack.c.h.bf16 %v439
      %v448 = vadd.f32 %v428, %v440
      %v449 = vadd.f32 %v429, %v441
      %v450 = vadd.f32 %v430, %v442
      %v451 = vadd.f32 %v431, %v443
      %v452 = vadd.f32 %v432, %v444
      %v453 = vadd.f32 %v433, %v445
      %v454 = vadd.f32 %v434, %v446
      %v455 = vadd.f32 %v435, %v447
      %v456 = vadd.f32 %v448, %v449
      %457 = vadd.xlane.f32.xlu0 %v456
      %v458 = vpop.xlane.xlu0 %457
      %v459 = vadd.f32 %v450, %v451
      %460 = vadd.xlane.f32.xlu0 %v459
      %v461 = vpop.xlane.xlu0 %460
      %v462 = vadd.f32 %v452, %v453
      %463 = vadd.xlane.f32.xlu0 %v462
      %v464 = vpop.xlane.xlu0 %463
      %v465 = vadd.f32 %v454, %v455
      %466 = vadd.xlane.f32.xlu0 %v465
      %v467 = vpop.xlane.xlu0 %466
      %v468 = vmul.f32 %v448, %v448
      %v469 = vmul.f32 %v449, %v449
      %v470 = vmul.f32 %v450, %v450
      %v471 = vmul.f32 %v451, %v451
      %v472 = vmul.f32 %v452, %v452
      %v473 = vmul.f32 %v453, %v453
      %v474 = vmul.f32 %v454, %v454
      %v475 = vmul.f32 %v455, %v455
      %v476 = vadd.f32 %v468, %v469
      %477 = vadd.xlane.f32.xlu0 %v476
      %v478 = vpop.xlane.xlu0 %477
      %v479 = vadd.f32 %v470, %v471
      %480 = vadd.xlane.f32.xlu0 %v479
      %v481 = vpop.xlane.xlu0 %480
      %v482 = vadd.f32 %v472, %v473
      %483 = vadd.xlane.f32.xlu0 %v482
      %v484 = vpop.xlane.xlu0 %483
      %v485 = vadd.f32 %v474, %v475
      %486 = vadd.xlane.f32.xlu0 %v485
      %v487 = vpop.xlane.xlu0 %486
      %v488 = vmul.f32 %v458, 0.00390625
      %v489 = vmul.f32 %v461, 0.00390625
      %v490 = vmul.f32 %v464, 0.00390625
      %v491 = vmul.f32 %v467, 0.00390625
      %v492 = vmul.f32 %v478, 0.00390625
      %v493 = vmul.f32 %v481, 0.00390625
      %v494 = vmul.f32 %v484, 0.00390625
      %v495 = vmul.f32 %v487, 0.00390625
      %v496 = vmul.f32 %v488, %v488
      %v497 = vmul.f32 %v489, %v489
      %v498 = vmul.f32 %v490, %v490
      %v499 = vmul.f32 %v491, %v491
      %v500 = vsub.f32 %v492, %v496
      %v501 = vsub.f32 %v493, %v497
      %v502 = vsub.f32 %v494, %v498
      %v503 = vsub.f32 %v495, %v499
      %v504 = vmax.f32 %v500, 0.0
      %v505 = vmax.f32 %v501, 0.0
      %v506 = vmax.f32 %v502, 0.0
      %v507 = vmax.f32 %v503, 0.0
      %v508 = vsub.f32 %v448, %v488
      %v509 = vsub.f32 %v449, %v488
      %v510 = vsub.f32 %v450, %v489
      %v511 = vsub.f32 %v451, %v489
      %v512 = vsub.f32 %v452, %v490
      %v513 = vsub.f32 %v453, %v490
      %v514 = vsub.f32 %v454, %v491
      %v515 = vsub.f32 %v455, %v491
      %v516 = vadd.f32 %v504, 1e-05
      %v517 = vadd.f32 %v505, 1e-05
      %v518 = vadd.f32 %v506, 1e-05
      %v519 = vadd.f32 %v507, 1e-05
      %v520 = vrsqrt.pop %v516
      %v521 = vrsqrt.pop %v517
      %v522 = vrsqrt.pop %v518
      %v523 = vrsqrt.pop %v519
      %v524 = vmul.f32 %v508, %v520
      %v525 = vmul.f32 %v509, %v520
      %v526 = vmul.f32 %v510, %v521
      %v527 = vmul.f32 %v511, %v521
      %v528 = vmul.f32 %v512, %v522
      %v529 = vmul.f32 %v513, %v522
      %v530 = vmul.f32 %v514, %v523
      %v531 = vmul.f32 %v515, %v523
      %v532 = vld [vmem:[#allocation11] sm:$0x3]
      %v534 = vlaneseq
      %v535 = vshrl.u32 %v534, 7
      %v536 = vsub.s32 0, %v535
      %v537 = vrot.slane %v532, %v536
      %v538 = vlaneseq
      %v539 = vshrl.u32 %v538, 7
      %v540 = vsub.s32 1, %v539
      %v541 = vrot.slane %v532, %v540
      %v544 = vmul.f32 %v524, %v537
      %v545 = vmul.f32 %v525, %v541
      %v546 = vmul.f32 %v526, %v537
      %v547 = vmul.f32 %v527, %v541
      %v548 = vmul.f32 %v528, %v537
      %v549 = vmul.f32 %v529, %v541
      %v550 = vmul.f32 %v530, %v537
      %v551 = vmul.f32 %v531, %v541
      %v552 = vld [vmem:[#allocation12] sm:$0x3]
      %v554 = vlaneseq
      %v555 = vshrl.u32 %v554, 7
      %v556 = vsub.s32 0, %v555
      %v557 = vrot.slane %v552, %v556
      %v558 = vlaneseq
      %v559 = vshrl.u32 %v558, 7
      %v560 = vsub.s32 1, %v559
      %v561 = vrot.slane %v552, %v560
      %v564 = vadd.f32 %v544, %v557
      %v565 = vadd.f32 %v545, %v561
      %v566 = vadd.f32 %v546, %v557
      %v567 = vadd.f32 %v547, %v561
      %v568 = vadd.f32 %v548, %v557
      %v569 = vadd.f32 %v549, %v561
      %v570 = vadd.f32 %v550, %v557
      %v571 = vadd.f32 %v551, %v561
      %v572 = vpack.c.bf16 %v566, %v564
      %v573 = vpack.c.bf16 %v567, %v565
      %v574 = vpack.c.bf16 %v570, %v568
      %v575 = vpack.c.bf16 %v571, %v569
      %v580 = vunpack.c.l.b16 %v572
      %v581 = vunpack.c.l.b16 %v573
      %v582 = vunpack.c.h.b16 %v572
      %v583 = vunpack.c.h.b16 %v573
      %v584 = vunpack.c.l.b16 %v574
      %v585 = vunpack.c.l.b16 %v575
      %v586 = vunpack.c.h.b16 %v574
      %v587 = vunpack.c.h.b16 %v575
      %v588 = vpack.c.b16 %v581, %v580
      %v589 = vpack.c.b16 %v583, %v582
      %v590 = vpack.c.b16 %v585, %v584
      %v591 = vpack.c.b16 %v587, %v586
      %596 = vst [vmem:[#allocation14] sm:$0xff] %v588
      %597 = vst [vmem:[#allocation14 + $0x8] sm:$0xff] %v589
      %598 = vst [vmem:[#allocation14 + $0x10] sm:$0xff] %v590
      %599 = vst [vmem:[#allocation14 + $0x18] sm:$0xff] %v591
    $region57: #{seq2seq_forward.27} parent=1 // pred_fallthru
      _
    // Predicated region
    $region58: #{seq2seq_forward.27} parent=1 // pred_check
      _
    $region59: #{seq2seq_forward.27} parent=1 // pred_check_branch
      %601 = sbr.rel (0) target = $region61
    $region60: #{seq2seq_forward.27} parent=1 // pred_region
      %s603 = ssub.s32 512, 512
      %604 = vsyncadd [#allocation5], %s603
      %s605 = sshll.u32 [#allocation14], 4
      %s606 = int_to_ptr.vmem [resolvable:$true] %s605
      %611 = dma.vmem_to_hbm [thread:$0]  %s606, 512, %s6, [#allocation5], 128, 128, 8
    $region61: #{seq2seq_forward.27} parent=1 // pred_fallthru
      _
    // Predicated region
    $region62: #{seq2seq_forward.27} parent=1 // pred_check
      _
    $region63: #{seq2seq_forward.27} parent=1 // pred_check_branch
      %613 = sbr.rel (0) target = $region65
    $region64: #{seq2seq_forward.27} parent=1 // pred_region
      %614 = dma.done [#allocation5], 512
    $region65: #{seq2seq_forward.27} parent=1 // pred_fallthru
      _
    %615 = vsyncpa [#allocation4], 1
    %616 = vsyncpa [#allocation7], 1
    %617 = vsyncpa [#allocation10], 1
    %618 = vsyncpa [#allocation13], 1
    %619 = vsyncpa [#allocation5], 1

// kernel: seq2seq_forward.37
$region0: #{seq2seq_forward.37}
  #allocation0 [shape = 'u32[]', space=smem, size = 0x4, offset = 0x4, fixed_abs, tag = 'smem constant byte address 0x4 - core index']
  #allocation1 [shape = 'u32[144,128]{1,0:T(1,128)}', space=vmem, size = 0x12000, scoped, tag = 'internal scratch']
  #allocation2 [shape = 'f32[32,512]{1,0:T(8,128)}', space=vmem, size = 0x10000, scoped, tag = 'scratch operand']
  %s0 = inlined_call_operand.hbm [shape: bf16[32,256], index: 0, kind: input, shape index: {}]
  %s1 = inlined_call_operand.hbm [shape: bf16[256,512], index: 1, kind: input, shape index: {}]
  %s2 = inlined_call_operand.hbm [shape: f32[1,512], index: 2, kind: input, shape index: {}]
  %s3 = inlined_call_operand.hbm [shape: bf16[32,512], index: 3, kind: output, shape index: {}]
  %s4 = sld [smem:[#allocation0]]
  $region42: #{seq2seq_forward.37} parent=0
    _
  %s6 = ssub.s32 1, %s4
  %s7 = scalar_select 0, %s6, %s4
  $region1: #{seq2seq_forward.37} parent=0
    #allocation3 [shape = 'u8[16384]{0}', space=vmem, size = 0x4000, scoped, tag = 'input window, operand 0, single buffered']
    #allocation4 [shape = 's32[1]{0}', space=sflag, size = 0x4, scoped, tag = 'scoped memory for seq2seq_forward.37']
    #allocation5 [shape = 's32[1]{0}', space=sflag, size = 0x4, scoped, tag = 'scoped memory for seq2seq_forward.37']
    #allocation6 [shape = 'u8[262144]{0}', space=vmem, size = 0x40000, scoped, tag = 'input window, operand 1, single buffered']
    #allocation7 [shape = 's32[1]{0}', space=sflag, size = 0x4, scoped, tag = 'scoped memory for seq2seq_forward.37']
    #allocation8 [shape = 'u8[2048]{0}', space=vmem, size = 0x800, scoped, tag = 'input window, operand 2, single buffered']
    #allocation9 [shape = 'u8[32768]{0}', space=vmem, size = 0x8000, scoped, tag = 'output window, operand 0, single buffered']
    %8 = vsyncpa [#allocation4], 0
    %9 = vsyncpa [#allocation7], 0
    %10 = vsyncpa [#allocation5], 0
    // Predicated region
    $region2: #{seq2seq_forward.37} parent=1 // pred_check
      _
    $region3: #{seq2seq_forward.37} parent=1 // pred_check_branch
      %12 = sbr.rel (0) target = $region5
    $region4: #{seq2seq_forward.37} parent=1 // pred_region
      %s14 = ssub.s32 512, 512
      %15 = vsyncadd [#allocation4], %s14
      %s16 = sshll.u32 [#allocation3], 4
      %s17 = int_to_ptr.vmem [resolvable:$true] %s16
      %22 = dma.hbm_to_vmem [thread:$0]  %s0, 512, %s17, [#allocation4], 128, 128, 8
    $region5: #{seq2seq_forward.37} parent=1 // pred_fallthru
      _
    // Predicated region
    $region6: #{seq2seq_forward.37} parent=1 // pred_check
      _
    $region7: #{seq2seq_forward.37} parent=1 // pred_check_branch
      %24 = sbr.rel (0) target = $region9
    $region8: #{seq2seq_forward.37} parent=1 // pred_region
      %s26 = ssub.s32 8192, 8192
      %27 = vsyncadd [#allocation7], %s26
      %s28 = sshll.u32 [#allocation6], 4
      %s29 = int_to_ptr.vmem [resolvable:$true] %s28
      %34 = dma.hbm_to_vmem [thread:$0]  %s1, 8192, %s29, [#allocation7], 256, 256, 16
    $region9: #{seq2seq_forward.37} parent=1 // pred_fallthru
      _
    // Predicated region
    $region10: #{seq2seq_forward.37} parent=1 // pred_check
      _
    $region11: #{seq2seq_forward.37} parent=1 // pred_check_branch
      %36 = sbr.rel (0) target = $region13
    $region12: #{seq2seq_forward.37} parent=1 // pred_region
      %s38 = ssub.s32 64, 64
      %39 = vsyncadd [#allocation7], %s38
      %s41 = sshll.u32 [#allocation8], 4
      %s42 = int_to_ptr.vmem [resolvable:$true] %s41
      %44 = dma.hbm_to_vmem [thread:$0]  %s2, 64, %s42, [#allocation7]
    $region13: #{seq2seq_forward.37} parent=1 // pred_fallthru
      _
    // Predicated region
    $region14: #{seq2seq_forward.37} parent=1 // pred_check
      _
    $region15: #{seq2seq_forward.37} parent=1 // pred_check_branch
      %46 = sbr.rel (0) target = $region17
    $region16: #{seq2seq_forward.37} parent=1 // pred_region
      %47 = dma.done [#allocation4], 512
    $region17: #{seq2seq_forward.37} parent=1 // pred_fallthru
      _
    // Predicated region
    $region18: #{seq2seq_forward.37} parent=1 // pred_check
      _
    $region19: #{seq2seq_forward.37} parent=1 // pred_check_branch
      %49 = sbr.rel (0) target = $region21
    $region20: #{seq2seq_forward.37} parent=1 // pred_region
      %50 = dma.done [#allocation7], 8192
    $region21: #{seq2seq_forward.37} parent=1 // pred_fallthru
      _
    // Predicated region
    $region22: #{seq2seq_forward.37} parent=1 // pred_check
      _
    $region23: #{seq2seq_forward.37} parent=1 // pred_check_branch
      %52 = sbr.rel (0) target = $region25
    $region24: #{seq2seq_forward.37} parent=1 // pred_region
      %53 = dma.done [#allocation7], 64
    $region25: #{seq2seq_forward.37} parent=1 // pred_fallthru
      _
    %p54 = scmp.eq.s32.totalorder 0, 0
    // Predicated region
    $region26: #{seq2seq_forward.37} parent=1 // pred_check
      %p55 = pneg %p54
    $region27: #{seq2seq_forward.37} parent=1 // pred_check_branch
      %57 = sbr.rel (%p55) target = $region29
    $region28: #{seq2seq_forward.37} parent=1 // pred_region
      %58 = vst [vmem:[#allocation2] sm:$0xff] 0.0
      %59 = vst [vmem:[#allocation2 + $0x8] sm:$0xff] 0.0
      %60 = vst [vmem:[#allocation2 + $0x10] sm:$0xff] 0.0
      %61 = vst [vmem:[#allocation2 + $0x18] sm:$0xff] 0.0
      %62 = vst [vmem:[#allocation2 + $0x20] sm:$0xff] 0.0
      %63 = vst [vmem:[#allocation2 + $0x28] sm:$0xff] 0.0
      %64 = vst [vmem:[#allocation2 + $0x30] sm:$0xff] 0.0
      %65 = vst [vmem:[#allocation2 + $0x38] sm:$0xff] 0.0
      %66 = vst [vmem:[#allocation2 + $0x40] sm:$0xff] 0.0
      %67 = vst [vmem:[#allocation2 + $0x48] sm:$0xff] 0.0
      %68 = vst [vmem:[#allocation2 + $0x50] sm:$0xff] 0.0
      %69 = vst [vmem:[#allocation2 + $0x58] sm:$0xff] 0.0
      %70 = vst [vmem:[#allocation2 + $0x60] sm:$0xff] 0.0
      %71 = vst [vmem:[#allocation2 + $0x68] sm:$0xff] 0.0
      %72 = vst [vmem:[#allocation2 + $0x70] sm:$0xff] 0.0
      %73 = vst [vmem:[#allocation2 + $0x78] sm:$0xff] 0.0
    $region29: #{seq2seq_forward.37} parent=1 // pred_fallthru
      _
    %v74 = vld [vmem:[#allocation2] sm:$0xff]
    %v75 = vld [vmem:[#allocation2 + $0x8] sm:$0xff]
    %v76 = vld [vmem:[#allocation2 + $0x10] sm:$0xff]
    %v77 = vld [vmem:[#allocation2 + $0x18] sm:$0xff]
    %v78 = vld [vmem:[#allocation2 + $0x20] sm:$0xff]
    %v79 = vld [vmem:[#allocation2 + $0x28] sm:$0xff]
    %v80 = vld [vmem:[#allocation2 + $0x30] sm:$0xff]
    %v81 = vld [vmem:[#allocation2 + $0x38] sm:$0xff]
    %v82 = vld [vmem:[#allocation2 + $0x40] sm:$0xff]
    %v83 = vld [vmem:[#allocation2 + $0x48] sm:$0xff]
    %v84 = vld [vmem:[#allocation2 + $0x50] sm:$0xff]
    %v85 = vld [vmem:[#allocation2 + $0x58] sm:$0xff]
    %v86 = vld [vmem:[#allocation2 + $0x60] sm:$0xff]
    %v87 = vld [vmem:[#allocation2 + $0x68] sm:$0xff]
    %v88 = vld [vmem:[#allocation2 + $0x70] sm:$0xff]
    %v89 = vld [vmem:[#allocation2 + $0x78] sm:$0xff]
    %v90 = vld [vmem:[#allocation3] sm:$0xff]
    %v91 = vld [vmem:[#allocation3 + $0x8] sm:$0xff]
    %v92 = vld [vmem:[#allocation3 + $0x10] sm:$0xff]
    %v93 = vld [vmem:[#allocation3 + $0x18] sm:$0xff]
    %v94 = vld [vmem:[#allocation6] sm:$0xff]
    %v95 = vld [vmem:[#allocation6 + $0x8] sm:$0xff]
    %v96 = vld [vmem:[#allocation6 + $0x10] sm:$0xff]
    %v97 = vld [vmem:[#allocation6 + $0x18] sm:$0xff]
    %v98 = vld [vmem:[#allocation6 + $0x20] sm:$0xff]
    %v99 = vld [vmem:[#allocation6 + $0x28] sm:$0xff]
    %v100 = vld [vmem:[#allocation6 + $0x30] sm:$0xff]
    %v101 = vld [vmem:[#allocation6 + $0x38] sm:$0xff]
    %v102 = vld [vmem:[#allocation6 + $0x40] sm:$0xff]
    %v103 = vld [vmem:[#allocation6 + $0x48] sm:$0xff]
    %v104 = vld [vmem:[#allocation6 + $0x50] sm:$0xff]
    %v105 = vld [vmem:[#allocation6 + $0x58] sm:$0xff]
    %v106 = vld [vmem:[#allocation6 + $0x60] sm:$0xff]
    %v107 = vld [vmem:[#allocation6 + $0x68] sm:$0xff]
    %v108 = vld [vmem:[#allocation6 + $0x70] sm:$0xff]
    %v109 = vld [vmem:[#allocation6 + $0x78] sm:$0xff]
    %v110 = vld [vmem:[#allocation6 + $0x80] sm:$0xff]
    %v111 = vld [vmem:[#allocation6 + $0x88] sm:$0xff]
    %v112 = vld [vmem:[#allocation6 + $0x90] sm:$0xff]
    %v113 = vld [vmem:[#allocation6 + $0x98] sm:$0xff]
    %v114 = vld [vmem:[#allocation6 + $0xa0] sm:$0xff]
    %v115 = vld [vmem:[#allocation6 + $0xa8] sm:$0xff]
    %v116 = vld [vmem:[#allocation6 + $0xb0] sm:$0xff]
    %v117 = vld [vmem:[#allocation6 + $0xb8] sm:$0xff]
    %v118 = vld [vmem:[#allocation6 + $0xc0] sm:$0xff]
    %v119 = vld [vmem:[#allocation6 + $0xc8] sm:$0xff]
    %v120 = vld [vmem:[#allocation6 + $0xd0] sm:$0xff]
    %v121 = vld [vmem:[#allocation6 + $0xd8] sm:$0xff]
    %v122 = vld [vmem:[#allocation6 + $0xe0] sm:$0xff]
    %v123 = vld [vmem:[#allocation6 + $0xe8] sm:$0xff]
    %v124 = vld [vmem:[#allocation6 + $0xf0] sm:$0xff]
    %v125 = vld [vmem:[#allocation6 + $0xf8] sm:$0xff]
    %v126 = vld [vmem:[#allocation6 + $0x100] sm:$0xff]
    %v127 = vld [vmem:[#allocation6 + $0x108] sm:$0xff]
    %v128 = vld [vmem:[#allocation6 + $0x110] sm:$0xff]
    %v129 = vld [vmem:[#allocation6 + $0x118] sm:$0xff]
    %v130 = vld [vmem:[#allocation6 + $0x120] sm:$0xff]
    %v131 = vld [vmem:[#allocation6 + $0x128] sm:$0xff]
    %v132 = vld [vmem:[#allocation6 + $0x130] sm:$0xff]
    %v133 = vld [vmem:[#allocation6 + $0x138] sm:$0xff]
    %v134 = vld [vmem:[#allocation6 + $0x140] sm:$0xff]
    %v135 = vld [vmem:[#allocation6 + $0x148] sm:$0xff]
    %v136 = vld [vmem:[#allocation6 + $0x150] sm:$0xff]
    %v137 = vld [vmem:[#allocation6 + $0x158] sm:$0xff]
    %v138 = vld [vmem:[#allocation6 + $0x160] sm:$0xff]
    %v139 = vld [vmem:[#allocation6 + $0x168] sm:$0xff]
    %v140 = vld [vmem:[#allocation6 + $0x170] sm:$0xff]
    %v141 = vld [vmem:[#allocation6 + $0x178] sm:$0xff]
    %v142 = vld [vmem:[#allocation6 + $0x180] sm:$0xff]
    %v143 = vld [vmem:[#allocation6 + $0x188] sm:$0xff]
    %v144 = vld [vmem:[#allocation6 + $0x190] sm:$0xff]
    %v145 = vld [vmem:[#allocation6 + $0x198] sm:$0xff]
    %v146 = vld [vmem:[#allocation6 + $0x1a0] sm:$0xff]
    %v147 = vld [vmem:[#allocation6 + $0x1a8] sm:$0xff]
    %v148 = vld [vmem:[#allocation6 + $0x1b0] sm:$0xff]
    %v149 = vld [vmem:[#allocation6 + $0x1b8] sm:$0xff]
    %v150 = vld [vmem:[#allocation6 + $0x1c0] sm:$0xff]
    %v151 = vld [vmem:[#allocation6 + $0x1c8] sm:$0xff]
    %v152 = vld [vmem:[#allocation6 + $0x1d0] sm:$0xff]
    %v153 = vld [vmem:[#allocation6 + $0x1d8] sm:$0xff]
    %v154 = vld [vmem:[#allocation6 + $0x1e0] sm:$0xff]
    %v155 = vld [vmem:[#allocation6 + $0x1e8] sm:$0xff]
    %v156 = vld [vmem:[#allocation6 + $0x1f0] sm:$0xff]
    %v157 = vld [vmem:[#allocation6 + $0x1f8] sm:$0xff]
    %v162 = vunpack.c.l.b16 %v90
    %v163 = vunpack.c.h.b16 %v90
    %v164 = vunpack.c.l.b16 %v91
    %v165 = vunpack.c.h.b16 %v91
    %v166 = vunpack.c.l.b16 %v92
    %v167 = vunpack.c.h.b16 %v92
    %v168 = vunpack.c.l.b16 %v93
    %v169 = vunpack.c.h.b16 %v93
    %v170 = vpack.c.b16 %v164, %v162
    %v171 = vpack.c.b16 %v165, %v163
    %v172 = vpack.c.b16 %v168, %v166
    %v173 = vpack.c.b16 %v169, %v167
    %v242 = vunpack.c.l.b16 %v94
    %v243 = vunpack.c.h.b16 %v94
    %v244 = vunpack.c.l.b16 %v95
    %v245 = vunpack.c.h.b16 %v95
    %v246 = vunpack.c.l.b16 %v96
    %v247 = vunpack.c.h.b16 %v96
    %v248 = vunpack.c.l.b16 %v97
    %v249 = vunpack.c.h.b16 %v97
    %v250 = vunpack.c.l.b16 %v98
    %v251 = vunpack.c.h.b16 %v98
    %v252 = vunpack.c.l.b16 %v99
    %v253 = vunpack.c.h.b16 %v99
    %v254 = vunpack.c.l.b16 %v100
    %v255 = vunpack.c.h.b16 %v100
    %v256 = vunpack.c.l.b16 %v101
    %v257 = vunpack.c.h.b16 %v101
    %v258 = vunpack.c.l.b16 %v102
    %v259 = vunpack.c.h.b16 %v102
    %v260 = vunpack.c.l.b16 %v103
    %v261 = vunpack.c.h.b16 %v103
    %v262 = vunpack.c.l.b16 %v104
    %v263 = vunpack.c.h.b16 %v104
    %v264 = vunpack.c.l.b16 %v105
    %v265 = vunpack.c.h.b16 %v105
    %v266 = vunpack.c.l.b16 %v106
    %v267 = vunpack.c.h.b16 %v106
    %v268 = vunpack.c.l.b16 %v107
    %v269 = vunpack.c.h.b16 %v107
    %v270 = vunpack.c.l.b16 %v108
    %v271 = vunpack.c.h.b16 %v108
    %v272 = vunpack.c.l.b16 %v109
    %v273 = vunpack.c.h.b16 %v109
    %v274 = vunpack.c.l.b16 %v110
    %v275 = vunpack.c.h.b16 %v110
    %v276 = vunpack.c.l.b16 %v111
    %v277 = vunpack.c.h.b16 %v111
    %v278 = vunpack.c.l.b16 %v112
    %v279 = vunpack.c.h.b16 %v112
    %v280 = vunpack.c.l.b16 %v113
    %v281 = vunpack.c.h.b16 %v113
    %v282 = vunpack.c.l.b16 %v114
    %v283 = vunpack.c.h.b16 %v114
    %v284 = vunpack.c.l.b16 %v115
    %v285 = vunpack.c.h.b16 %v115
    %v286 = vunpack.c.l.b16 %v116
    %v287 = vunpack.c.h.b16 %v116
    %v288 = vunpack.c.l.b16 %v117
    %v289 = vunpack.c.h.b16 %v117
    %v290 = vunpack.c.l.b16 %v118
    %v291 = vunpack.c.h.b16 %v118
    %v292 = vunpack.c.l.b16 %v119
    %v293 = vunpack.c.h.b16 %v119
    %v294 = vunpack.c.l.b16 %v120
    %v295 = vunpack.c.h.b16 %v120
    %v296 = vunpack.c.l.b16 %v121
    %v297 = vunpack.c.h.b16 %v121
    %v298 = vunpack.c.l.b16 %v122
    %v299 = vunpack.c.h.b16 %v122
    %v300 = vunpack.c.l.b16 %v123
    %v301 = vunpack.c.h.b16 %v123
    %v302 = vunpack.c.l.b16 %v124
    %v303 = vunpack.c.h.b16 %v124
    %v304 = vunpack.c.l.b16 %v125
    %v305 = vunpack.c.h.b16 %v125
    %v306 = vunpack.c.l.b16 %v126
    %v307 = vunpack.c.h.b16 %v126
    %v308 = vunpack.c.l.b16 %v127
    %v309 = vunpack.c.h.b16 %v127
    %v310 = vunpack.c.l.b16 %v128
    %v311 = vunpack.c.h.b16 %v128
    %v312 = vunpack.c.l.b16 %v129
    %v313 = vunpack.c.h.b16 %v129
    %v314 = vunpack.c.l.b16 %v130
    %v315 = vunpack.c.h.b16 %v130
    %v316 = vunpack.c.l.b16 %v131
    %v317 = vunpack.c.h.b16 %v131
    %v318 = vunpack.c.l.b16 %v132
    %v319 = vunpack.c.h.b16 %v132
    %v320 = vunpack.c.l.b16 %v133
    %v321 = vunpack.c.h.b16 %v133
    %v322 = vunpack.c.l.b16 %v134
    %v323 = vunpack.c.h.b16 %v134
    %v324 = vunpack.c.l.b16 %v135
    %v325 = vunpack.c.h.b16 %v135
    %v326 = vunpack.c.l.b16 %v136
    %v327 = vunpack.c.h.b16 %v136
    %v328 = vunpack.c.l.b16 %v137
    %v329 = vunpack.c.h.b16 %v137
    %v330 = vunpack.c.l.b16 %v138
    %v331 = vunpack.c.h.b16 %v138
    %v332 = vunpack.c.l.b16 %v139
    %v333 = vunpack.c.h.b16 %v139
    %v334 = vunpack.c.l.b16 %v140
    %v335 = vunpack.c.h.b16 %v140
    %v336 = vunpack.c.l.b16 %v141
    %v337 = vunpack.c.h.b16 %v141
    %v338 = vunpack.c.l.b16 %v142
    %v339 = vunpack.c.h.b16 %v142
    %v340 = vunpack.c.l.b16 %v143
    %v341 = vunpack.c.h.b16 %v143
    %v342 = vunpack.c.l.b16 %v144
    %v343 = vunpack.c.h.b16 %v144
    %v344 = vunpack.c.l.b16 %v145
    %v345 = vunpack.c.h.b16 %v145
    %v346 = vunpack.c.l.b16 %v146
    %v347 = vunpack.c.h.b16 %v146
    %v348 = vunpack.c.l.b16 %v147
    %v349 = vunpack.c.h.b16 %v147
    %v350 = vunpack.c.l.b16 %v148
    %v351 = vunpack.c.h.b16 %v148
    %v352 = vunpack.c.l.b16 %v149
    %v353 = vunpack.c.h.b16 %v149
    %v354 = vunpack.c.l.b16 %v150
    %v355 = vunpack.c.h.b16 %v150
    %v356 = vunpack.c.l.b16 %v151
    %v357 = vunpack.c.h.b16 %v151
    %v358 = vunpack.c.l.b16 %v152
    %v359 = vunpack.c.h.b16 %v152
    %v360 = vunpack.c.l.b16 %v153
    %v361 = vunpack.c.h.b16 %v153
    %v362 = vunpack.c.l.b16 %v154
    %v363 = vunpack.c.h.b16 %v154
    %v364 = vunpack.c.l.b16 %v155
    %v365 = vunpack.c.h.b16 %v155
    %v366 = vunpack.c.l.b16 %v156
    %v367 = vunpack.c.h.b16 %v156
    %v368 = vunpack.c.l.b16 %v157
    %v369 = vunpack.c.h.b16 %v157
    %v370 = vpack.c.b16 %v246, %v242
    %v371 = vpack.c.b16 %v247, %v243
    %v372 = vpack.c.b16 %v248, %v244
    %v373 = vpack.c.b16 %v249, %v245
    %v374 = vpack.c.b16 %v254, %v250
    %v375 = vpack.c.b16 %v255, %v251
    %v376 = vpack.c.b16 %v256, %v252
    %v377 = vpack.c.b16 %v257, %v253
    %v378 = vpack.c.b16 %v262, %v258
    %v379 = vpack.c.b16 %v263, %v259
    %v380 = vpack.c.b16 %v264, %v260
    %v381 = vpack.c.b16 %v265, %v261
    %v382 = vpack.c.b16 %v270, %v266
    %v383 = vpack.c.b16 %v271, %v267
    %v384 = vpack.c.b16 %v272, %v268
    %v385 = vpack.c.b16 %v273, %v269
    %v386 = vpack.c.b16 %v278, %v274
    %v387 = vpack.c.b16 %v279, %v275
    %v388 = vpack.c.b16 %v280, %v276
    %v389 = vpack.c.b16 %v281, %v277
    %v390 = vpack.c.b16 %v286, %v282
    %v391 = vpack.c.b16 %v287, %v283
    %v392 = vpack.c.b16 %v288, %v284
    %v393 = vpack.c.b16 %v289, %v285
    %v394 = vpack.c.b16 %v294, %v290
    %v395 = vpack.c.b16 %v295, %v291
    %v396 = vpack.c.b16 %v296, %v292
    %v397 = vpack.c.b16 %v297, %v293
    %v398 = vpack.c.b16 %v302, %v298
    %v399 = vpack.c.b16 %v303, %v299
    %v400 = vpack.c.b16 %v304, %v300
    %v401 = vpack.c.b16 %v305, %v301
    %v402 = vpack.c.b16 %v310, %v306
    %v403 = vpack.c.b16 %v311, %v307
    %v404 = vpack.c.b16 %v312, %v308
    %v405 = vpack.c.b16 %v313, %v309
    %v406 = vpack.c.b16 %v318, %v314
    %v407 = vpack.c.b16 %v319, %v315
    %v408 = vpack.c.b16 %v320, %v316
    %v409 = vpack.c.b16 %v321, %v317
    %v410 = vpack.c.b16 %v326, %v322
    %v411 = vpack.c.b16 %v327, %v323
    %v412 = vpack.c.b16 %v328, %v324
    %v413 = vpack.c.b16 %v329, %v325
    %v414 = vpack.c.b16 %v334, %v330
    %v415 = vpack.c.b16 %v335, %v331
    %v416 = vpack.c.b16 %v336, %v332
    %v417 = vpack.c.b16 %v337, %v333
    %v418 = vpack.c.b16 %v342, %v338
    %v419 = vpack.c.b16 %v343, %v339
    %v420 = vpack.c.b16 %v344, %v340
    %v421 = vpack.c.b16 %v345, %v341
    %v422 = vpack.c.b16 %v350, %v346
    %v423 = vpack.c.b16 %v351, %v347
    %v424 = vpack.c.b16 %v352, %v348
    %v425 = vpack.c.b16 %v353, %v349
    %v426 = vpack.c.b16 %v358, %v354
    %v427 = vpack.c.b16 %v359, %v355
    %v428 = vpack.c.b16 %v360, %v356
    %v429 = vpack.c.b16 %v361, %v357
    %v430 = vpack.c.b16 %v366, %v362
    %v431 = vpack.c.b16 %v367, %v363
    %v432 = vpack.c.b16 %v368, %v364
    %v433 = vpack.c.b16 %v369, %v365
    %498 = vmatprep.subr.bf16.mxu0 %v371
    %499 = vmatpush1.bf16.msra.mxu0 %v370
    %500 = vmatprep.subr.bf16.mxu0 %v375
    %501 = vmatpush1.bf16.msra.mxu0 %v374
    %502 = vmatprep.subr.bf16.mxu0 %v379
    %503 = vmatpush1.bf16.msra.mxu0 %v378
    %504 = vmatprep.subr.bf16.mxu0 %v383
    %505 = vmatpush1.bf16.msra.mxu0 %v382
    %506 = vmatprep.subr.bf16.mxu0 %v387
    %507 = vmatpush1.bf16.msra.mxu0 %v386
    %508 = vmatprep.subr.bf16.mxu0 %v391
    %509 = vmatpush1.bf16.msra.mxu0 %v390
    %510 = vmatprep.subr.bf16.mxu0 %v395
    %511 = vmatpush1.bf16.msra.mxu0 %v394
    %512 = vmatprep.subr.bf16.mxu0 %v399
    %513 = vmatpush1.bf16.msra.mxu0 %v398
    %514 = vmatprep.subr.bf16.mxu0 %v403
    %515 = vmatpush1.bf16.msra.mxu0 %v402
    %516 = vmatprep.subr.bf16.mxu0 %v407
    %517 = vmatpush1.bf16.msra.mxu0 %v406
    %518 = vmatprep.subr.bf16.mxu0 %v411
    %519 = vmatpush1.bf16.msra.mxu0 %v410
    %520 = vmatprep.subr.bf16.mxu0 %v415
    %521 = vmatpush1.bf16.msra.mxu0 %v414
    %522 = vmatprep.subr.bf16.mxu0 %v419
    %523 = vmatpush1.bf16.msra.mxu0 %v418
    %524 = vmatprep.subr.bf16.mxu0 %v423
    %525 = vmatpush1.bf16.msra.mxu0 %v422
    %526 = vmatprep.subr.bf16.mxu0 %v427
    %527 = vmatpush1.bf16.msra.mxu0 %v426
    %528 = vmatprep.subr.bf16.mxu0 %v431
    %529 = vmatpush1.bf16.msra.mxu0 %v430
    %530 = vmatprep.mubr.bf16.mxu0 %v171
    %531 = vmatmul.mubr.bf16.gmra.mrb[0].mxu0 %v170
    %v532 = vpop.f32.mrb[0].mxu0
    %v533 = vadd.f32 0.0, %v532
    %v534 = vpop.f32.mrb[0].mxu0
    %v535 = vadd.f32 0.0, %v534
    %v536 = vpop.f32.mrb[0].mxu0
    %v537 = vadd.f32 0.0, %v536
    %v538 = vpop.f32.mrb[0].mxu0
    %v539 = vadd.f32 0.0, %v538
    %540 = vmatprep.mubr.bf16.mxu0 %v173
    %541 = vmatmul.mubr.bf16.gmra.mrb[0].mxu0 %v172
    %v542 = vpop.f32.mrb[0].mxu0
    %v543 = vadd.f32 0.0, %v542
    %v544 = vpop.f32.mrb[0].mxu0
    %v545 = vadd.f32 0.0, %v544
    %v546 = vpop.f32.mrb[0].mxu0
    %v547 = vadd.f32 0.0, %v546
    %v548 = vpop.f32.mrb[0].mxu0
    %v549 = vadd.f32 0.0, %v548
    %550 = vdwg.mxu0
    %551 = vmatprep.subr.bf16.mxu0 %v373
    %552 = vmatpush1.bf16.msra.mxu0 %v372
    %553 = vmatprep.subr.bf16.mxu0 %v377
    %554 = vmatpush1.bf16.msra.mxu0 %v376
    %555 = vmatprep.subr.bf16.mxu0 %v381
    %556 = vmatpush1.bf16.msra.mxu0 %v380
    %557 = vmatprep.subr.bf16.mxu0 %v385
    %558 = vmatpush1.bf16.msra.mxu0 %v384
    %559 = vmatprep.subr.bf16.mxu0 %v389
    %560 = vmatpush1.bf16.msra.mxu0 %v388
    %561 = vmatprep.subr.bf16.mxu0 %v393
    %562 = vmatpush1.bf16.msra.mxu0 %v392
    %563 = vmatprep.subr.bf16.mxu0 %v397
    %564 = vmatpush1.bf16.msra.mxu0 %v396
    %565 = vmatprep.subr.bf16.mxu0 %v401
    %566 = vmatpush1.bf16.msra.mxu0 %v400
    %567 = vmatprep.subr.bf16.mxu0 %v405
    %568 = vmatpush1.bf16.msra.mxu0 %v404
    %569 = vmatprep.subr.bf16.mxu0 %v409
    %570 = vmatpush1.bf16.msra.mxu0 %v408
    %571 = vmatprep.subr.bf16.mxu0 %v413
    %572 = vmatpush1.bf16.msra.mxu0 %v412
    %573 = vmatprep.subr.bf16.mxu0 %v417
    %574 = vmatpush1.bf16.msra.mxu0 %v416
    %575 = vmatprep.subr.bf16.mxu0 %v421
    %576 = vmatpush1.bf16.msra.mxu0 %v420
    %577 = vmatprep.subr.bf16.mxu0 %v425
    %578 = vmatpush1.bf16.msra.mxu0 %v424
    %579 = vmatprep.subr.bf16.mxu0 %v429
    %580 = vmatpush1.bf16.msra.mxu0 %v428
    %581 = vmatprep.subr.bf16.mxu0 %v433
    %582 = vmatpush1.bf16.msra.mxu0 %v432
    %583 = vmatprep.mubr.bf16.mxu0 %v171
    %584 = vmatmul.mubr.bf16.gmra.mrb[0].mxu0 %v170
    %v585 = vpop.f32.mrb[0].mxu0
    %v586 = vadd.f32 0.0, %v585
    %v587 = vpop.f32.mrb[0].mxu0
    %v588 = vadd.f32 0.0, %v587
    %v589 = vpop.f32.mrb[0].mxu0
    %v590 = vadd.f32 0.0, %v589
    %v591 = vpop.f32.mrb[0].mxu0
    %v592 = vadd.f32 0.0, %v591
    %593 = vmatprep.mubr.bf16.mxu0 %v173
    %594 = vmatmul.mubr.bf16.gmra.mrb[0].mxu0 %v172
    %v595 = vpop.f32.mrb[0].mxu0
    %v596 = vadd.f32 0.0, %v595
    %v597 = vpop.f32.mrb[0].mxu0
    %v598 = vadd.f32 0.0, %v597
    %v599 = vpop.f32.mrb[0].mxu0
    %v600 = vadd.f32 0.0, %v599
    %v601 = vpop.f32.mrb[0].mxu0
    %v602 = vadd.f32 0.0, %v601
    %603 = vdwg.mxu0
    %v604 = vadd.f32 %v74, %v533
    %v605 = vadd.f32 %v75, %v535
    %v606 = vadd.f32 %v76, %v586
    %v607 = vadd.f32 %v77, %v588
    %v608 = vadd.f32 %v78, %v537
    %v609 = vadd.f32 %v79, %v539
    %v610 = vadd.f32 %v80, %v590
    %v611 = vadd.f32 %v81, %v592
    %v612 = vadd.f32 %v82, %v543
    %v613 = vadd.f32 %v83, %v545
    %v614 = vadd.f32 %v84, %v596
    %v615 = vadd.f32 %v85, %v598
    %v616 = vadd.f32 %v86, %v547
    %v617 = vadd.f32 %v87, %v549
    %v618 = vadd.f32 %v88, %v600
    %v619 = vadd.f32 %v89, %v602
    %620 = vst [vmem:[#allocation2] sm:$0xff] %v604
    %621 = vst [vmem:[#allocation2 + $0x8] sm:$0xff] %v605
    %622 = vst [vmem:[#allocation2 + $0x10] sm:$0xff] %v606
    %623 = vst [vmem:[#allocation2 + $0x18] sm:$0xff] %v607
    %624 = vst [vmem:[#allocation2 + $0x20] sm:$0xff] %v608
    %625 = vst [vmem:[#allocation2 + $0x28] sm:$0xff] %v609
    %626 = vst [vmem:[#allocation2 + $0x30] sm:$0xff] %v610
    %627 = vst [vmem:[#allocation2 + $0x38] sm:$0xff] %v611
    %628 = vst [vmem:[#allocation2 + $0x40] sm:$0xff] %v612
    %629 = vst [vmem:[#allocation2 + $0x48] sm:$0xff] %v613
    %630 = vst [vmem:[#allocation2 + $0x50] sm:$0xff] %v614
    %631 = vst [vmem:[#allocation2 + $0x58] sm:$0xff] %v615
    %632 = vst [vmem:[#allocation2 + $0x60] sm:$0xff] %v616
    %633 = vst [vmem:[#allocation2 + $0x68] sm:$0xff] %v617
    %634 = vst [vmem:[#allocation2 + $0x70] sm:$0xff] %v618
    %635 = vst [vmem:[#allocation2 + $0x78] sm:$0xff] %v619
    // Predicated region
    $region30: #{seq2seq_forward.37} parent=1 // pred_check
      %p636 = pneg %p54
    $region31: #{seq2seq_forward.37} parent=1 // pred_check_branch
      %638 = sbr.rel (%p636) target = $region33
    $region32: #{seq2seq_forward.37} parent=1 // pred_region
      %v639 = vld [vmem:[#allocation2] sm:$0xff]
      %v640 = vld [vmem:[#allocation2 + $0x8] sm:$0xff]
      %v641 = vld [vmem:[#allocation2 + $0x10] sm:$0xff]
      %v642 = vld [vmem:[#allocation2 + $0x18] sm:$0xff]
      %v643 = vld [vmem:[#allocation2 + $0x20] sm:$0xff]
      %v644 = vld [vmem:[#allocation2 + $0x28] sm:$0xff]
      %v645 = vld [vmem:[#allocation2 + $0x30] sm:$0xff]
      %v646 = vld [vmem:[#allocation2 + $0x38] sm:$0xff]
      %v647 = vld [vmem:[#allocation2 + $0x40] sm:$0xff]
      %v648 = vld [vmem:[#allocation2 + $0x48] sm:$0xff]
      %v649 = vld [vmem:[#allocation2 + $0x50] sm:$0xff]
      %v650 = vld [vmem:[#allocation2 + $0x58] sm:$0xff]
      %v651 = vld [vmem:[#allocation2 + $0x60] sm:$0xff]
      %v652 = vld [vmem:[#allocation2 + $0x68] sm:$0xff]
      %v653 = vld [vmem:[#allocation2 + $0x70] sm:$0xff]
      %v654 = vld [vmem:[#allocation2 + $0x78] sm:$0xff]
      %v655 = vld [vmem:[#allocation8] sm:$0xf]
      %v657 = vlaneseq
      %v658 = vshrl.u32 %v657, 7
      %v659 = vsub.s32 0, %v658
      %v660 = vrot.slane %v655, %v659
      %v661 = vlaneseq
      %v662 = vshrl.u32 %v661, 7
      %v663 = vsub.s32 1, %v662
      %v664 = vrot.slane %v655, %v663
      %v665 = vlaneseq
      %v666 = vshrl.u32 %v665, 7
      %v667 = vsub.s32 2, %v666
      %v668 = vrot.slane %v655, %v667
      %v669 = vlaneseq
      %v670 = vshrl.u32 %v669, 7
      %v671 = vsub.s32 3, %v670
      %v672 = vrot.slane %v655, %v671
      %v677 = vadd.f32 %v639, %v660
      %v678 = vadd.f32 %v640, %v664
      %v679 = vadd.f32 %v641, %v668
      %v680 = vadd.f32 %v642, %v672
      %v681 = vadd.f32 %v643, %v660
      %v682 = vadd.f32 %v644, %v664
      %v683 = vadd.f32 %v645, %v668
      %v684 = vadd.f32 %v646, %v672
      %v685 = vadd.f32 %v647, %v660
      %v686 = vadd.f32 %v648, %v664
      %v687 = vadd.f32 %v649, %v668
      %v688 = vadd.f32 %v650, %v672
      %v689 = vadd.f32 %v651, %v660
      %v690 = vadd.f32 %v652, %v664
      %v691 = vadd.f32 %v653, %v668
      %v692 = vadd.f32 %v654, %v672
      %v693 = vpack.c.bf16 %v681, %v677
      %v694 = vpack.c.bf16 %v682, %v678
      %v695 = vpack.c.bf16 %v683, %v679
      %v696 = vpack.c.bf16 %v684, %v680
      %v697 = vpack.c.bf16 %v689, %v685
      %v698 = vpack.c.bf16 %v690, %v686
      %v699 = vpack.c.bf16 %v691, %v687
      %v700 = vpack.c.bf16 %v692, %v688
      %v709 = vunpack.c.l.b16 %v693
      %v710 = vunpack.c.l.b16 %v694
      %v711 = vunpack.c.l.b16 %v695
      %v712 = vunpack.c.l.b16 %v696
      %v713 = vunpack.c.h.b16 %v693
      %v714 = vunpack.c.h.b16 %v694
      %v715 = vunpack.c.h.b16 %v695
      %v716 = vunpack.c.h.b16 %v696
      %v717 = vunpack.c.l.b16 %v697
      %v718 = vunpack.c.l.b16 %v698
      %v719 = vunpack.c.l.b16 %v699
      %v720 = vunpack.c.l.b16 %v700
      %v721 = vunpack.c.h.b16 %v697
      %v722 = vunpack.c.h.b16 %v698
      %v723 = vunpack.c.h.b16 %v699
      %v724 = vunpack.c.h.b16 %v700
      %v725 = vpack.c.b16 %v710, %v709
      %v726 = vpack.c.b16 %v712, %v711
      %v727 = vpack.c.b16 %v714, %v713
      %v728 = vpack.c.b16 %v716, %v715
      %v729 = vpack.c.b16 %v718, %v717
      %v730 = vpack.c.b16 %v720, %v719
      %v731 = vpack.c.b16 %v722, %v721
      %v732 = vpack.c.b16 %v724, %v723
      %741 = vst [vmem:[#allocation9] sm:$0xff] %v725
      %742 = vst [vmem:[#allocation9 + $0x8] sm:$0xff] %v726
      %743 = vst [vmem:[#allocation9 + $0x10] sm:$0xff] %v727
      %744 = vst [vmem:[#allocation9 + $0x18] sm:$0xff] %v728
      %745 = vst [vmem:[#allocation9 + $0x20] sm:$0xff] %v729
      %746 = vst [vmem:[#allocation9 + $0x28] sm:$0xff] %v730
      %747 = vst [vmem:[#allocation9 + $0x30] sm:$0xff] %v731
      %748 = vst [vmem:[#allocation9 + $0x38] sm:$0xff] %v732
    $region33: #{seq2seq_forward.37} parent=1 // pred_fallthru
      _
    // Predicated region
    $region34: #{seq2seq_forward.37} parent=1 // pred_check
      _
    $region35: #{seq2seq_forward.37} parent=1 // pred_check_branch
      %750 = sbr.rel (0) target = $region37
    $region36: #{seq2seq_forward.37} parent=1 // pred_region
      %s752 = ssub.s32 1024, 1024
      %753 = vsyncadd [#allocation5], %s752
      %s754 = sshll.u32 [#allocation9], 4
      %s755 = int_to_ptr.vmem [resolvable:$true] %s754
      %760 = dma.vmem_to_hbm [thread:$0]  %s755, 1024, %s3, [#allocation5], 256, 256, 16
    $region37: #{seq2seq_forward.37} parent=1 // pred_fallthru
      _
    // Predicated region
    $region38: #{seq2seq_forward.37} parent=1 // pred_check
      _
    $region39: #{seq2seq_forward.37} parent=1 // pred_check_branch
      %762 = sbr.rel (0) target = $region41
    $region40: #{seq2seq_forward.37} parent=1 // pred_region
      %763 = dma.done [#allocation5], 1024
    $region41: #{seq2seq_forward.37} parent=1 // pred_fallthru
      _
    %764 = vsyncpa [#allocation4], 1
    %765 = vsyncpa [#allocation7], 1
    %766 = vsyncpa [#allocation5], 1

// kernel: seq2seq_forward.38
$region0: #{seq2seq_forward.38}
  #allocation0 [shape = 'u32[]', space=smem, size = 0x4, offset = 0x4, fixed_abs, tag = 'smem constant byte address 0x4 - core index']
  #allocation1 [shape = 'u32[144,128]{1,0:T(1,128)}', space=vmem, size = 0x12000, scoped, tag = 'internal scratch']
  #allocation2 [shape = 'f32[2,16,1]{2,1,0:T(8,128)}', space=vmem, size = 0x4000, scoped, tag = 'scratch operand']
  #allocation3 [shape = 'f32[2,16,1]{2,1,0:T(8,128)}', space=vmem, size = 0x4000, scoped, tag = 'scratch operand']
  #allocation4 [shape = 'f32[2,16,128]{2,1,0:T(8,128)}', space=vmem, size = 0x4000, scoped, tag = 'scratch operand']
  %s0 = inlined_call_operand.hbm [shape: bf16[2,16,256], index: 0, kind: input, shape index: {}]
  %s1 = inlined_call_operand.hbm [shape: bf16[2,16,512], index: 1, kind: input, shape index: {}, may-alias: {1,2}]
  %s2 = inlined_call_operand.hbm [shape: bf16[2,16,512], index: 2, kind: input, shape index: {}, may-alias: {1,2}]
  %s3 = inlined_call_operand.hbm [shape: bf16[16,16], index: 3, kind: input, shape index: {}]
  %s4 = inlined_call_operand.hbm [shape: f32[2,1,16], index: 4, kind: input, shape index: {}]
  %s5 = inlined_call_operand.hbm [shape: bf16[2,16,256], index: 5, kind: output, shape index: {}]
  %s6 = sld [smem:[#allocation0]]
  $region81: #{seq2seq_forward.38} parent=0
    _
  %s8 = ssub.s32 1, %s6
  %s9 = scalar_select 0, %s8, %s6
  $region1: #{seq2seq_forward.38} parent=0
    #allocation5 [shape = 'u8[16384]{0}', space=vmem, size = 0x4000, scoped, tag = 'input window, operand 0']
    #allocation6 [shape = 's32[2]{0}', space=sflag, size = 0x8, scoped, tag = 'scoped memory for seq2seq_forward.38']
    #allocation7 [shape = 's32[2]{0}', space=sflag, size = 0x8, scoped, tag = 'scoped memory for seq2seq_forward.38']
    #allocation8 [shape = 'u8[16384]{0}', space=vmem, size = 0x4000, scoped, tag = 'input window, operand 1']
    #allocation9 [shape = 's32[2]{0}', space=sflag, size = 0x8, scoped, tag = 'scoped memory for seq2seq_forward.38']
    #allocation10 [shape = 'u8[16384]{0}', space=vmem, size = 0x4000, scoped, tag = 'input window, operand 2']
    #allocation11 [shape = 'u8[4096]{0}', space=vmem, size = 0x1000, scoped, tag = 'input window, operand 3, single buffered']
    #allocation12 [shape = 's32[1]{0}', space=sflag, size = 0x4, scoped, tag = 'scoped memory for seq2seq_forward.38']
    #allocation13 [shape = 'u8[1024]{0}', space=vmem, size = 0x400, scoped, tag = 'input window, operand 4']
    #allocation14 [shape = 'u8[16384]{0}', space=vmem, size = 0x4000, scoped, tag = 'output window, operand 0']
    %10 = vsyncpa [#allocation6], 0
    %s11 = scalar_lea.sflag [#allocation6], 1
    %12 = vsyncpa %s11, 0
    %13 = vsyncpa [#allocation9], 0
    %s14 = scalar_lea.sflag [#allocation9], 1
    %15 = vsyncpa %s14, 0
    %16 = vsyncpa [#allocation12], 0
    %17 = vsyncpa [#allocation7], 0
    %s18 = scalar_lea.sflag [#allocation7], 1
    %19 = vsyncpa %s18, 0
    loop: start=0, step=1, limit=4
    $region2: #{seq2seq_forward.38} parent=1 // loop_pre_header
      _
    $region3: #{seq2seq_forward.38} parent=1 // loop_header
      %s21 = sphi 0, %s25
      %p22 = scmp.ge.s32.totalorder %s21, 4
      %s28 = sphi 0, %s40
      %s29 = sphi 0, %s36
      %s30 = sphi 0, %s28
      %s31 = sphi 0, %s29
      %s32 = sphi 0, %s30
      %s33 = sphi 0, %s31
      %s43 = sphi 0, %s45
      %s46 = sphi 0, %s43
      %s47 = sphi 0, %s46
      %s63 = sphi 0, %s47
      %s71 = sphi 0, %s73
      %s74 = sphi 0, %s71
      %s75 = sphi 0, %s74
      %s91 = sphi 0, %s75
      %s99 = sphi 0, %s101
      %s102 = sphi 0, %s99
      %s103 = sphi 0, %s102
      %s119 = sphi 0, %s103
      %s125 = sphi 0, %s127
      %s128 = sphi 0, %s125
      %s129 = sphi 0, %s128
      %s145 = sphi 0, %s129
      %s153 = sphi 0, %s155
      %s156 = sphi 0, %s153
      %s157 = sphi 0, %s156
      %s173 = sphi 0, %s157
      %s179 = sphi 0, %s181
      %s182 = sphi 0, %s179
      %s183 = sphi 0, %s182
      %s199 = sphi 0, %s183
    $region4: #{seq2seq_forward.38} parent=1 // loop_header_branch
      %24 = sbr.rel (%p22) target = $region8
    $region5: #{seq2seq_forward.38} parent=1 // loop_body
      %s26 = ssub.s32 %s21, 1
      %s27 = ssub.s32 %s21, 2
      %s34 = sadd.s32 1, %s29
      %p35 = scmp.ge.s32.totalorder %s34, 1
      %s36 = scalar_select %p35, 0, %s34
      %s37 = sadd.s32 1, %s28
      %s38 = scalar_select %p35, %s37, %s28
      %p39 = scmp.ge.s32.totalorder %s38, 2
      %s40 = scalar_select %p39, 0, %s38
      %s41 = ssub.s32 %s28, %s40
      %p42 = scmp.eq.s32.totalorder %s41, 0
      %s44 = sadd.s32 %s43, 1
      %s45 = scalar_select %p42, %s43, %s44
      %p48 = pneg %p42
      %p49 = scmp.eq.s32.totalorder %s21, 1
      %p50 = por %p48, %p49
      %p51 = scmp.ne.s32.totalorder %s43, %s46
      %p52 = scmp.eq.s32.totalorder %s21, 0
      %p53 = por %p51, %p52
      %p54 = scmp.ne.s32.totalorder %s43, %s46
      %p55 = scmp.eq.s32.totalorder %s26, 1
      %p56 = por %p54, %p55
      %p57 = scmp.ne.s32.totalorder %s46, %s47
      %p58 = scmp.eq.s32.totalorder %s26, 0
      %p59 = por %p57, %p58
      %p60 = scmp.ne.s32.totalorder %s46, %s47
      %p61 = scmp.eq.s32.totalorder %s27, 1
      %p62 = por %p60, %p61
      %p64 = scmp.ne.s32.totalorder %s47, %s63
      %p65 = scmp.eq.s32.totalorder %s27, 0
      %p66 = por %p64, %p65
      %s67 = ssub.s32 %s28, %s40
      %s68 = ssub.s32 %s29, %s36
      %s69 = sor.u32 %s67, %s68
      %p70 = scmp.eq.s32.totalorder %s69, 0
      %s72 = sadd.s32 %s71, 1
      %s73 = scalar_select %p70, %s71, %s72
      %p76 = pneg %p70
      %p77 = scmp.eq.s32.totalorder %s21, 1
      %p78 = por %p76, %p77
      %p79 = scmp.ne.s32.totalorder %s71, %s74
      %p80 = scmp.eq.s32.totalorder %s21, 0
      %p81 = por %p79, %p80
      %p82 = scmp.ne.s32.totalorder %s71, %s74
      %p83 = scmp.eq.s32.totalorder %s26, 1
      %p84 = por %p82, %p83
      %p85 = scmp.ne.s32.totalorder %s74, %s75
      %p86 = scmp.eq.s32.totalorder %s26, 0
      %p87 = por %p85, %p86
      %p88 = scmp.ne.s32.totalorder %s74, %s75
      %p89 = scmp.eq.s32.totalorder %s27, 1
      %p90 = por %p88, %p89
      %p92 = scmp.ne.s32.totalorder %s75, %s91
      %p93 = scmp.eq.s32.totalorder %s27, 0
      %p94 = por %p92, %p93
      %s95 = ssub.s32 %s28, %s40
      %s96 = ssub.s32 %s29, %s36
      %s97 = sor.u32 %s95, %s96
      %p98 = scmp.eq.s32.totalorder %s97, 0
      %s100 = sadd.s32 %s99, 1
      %s101 = scalar_select %p98, %s99, %s100
      %p104 = pneg %p98
      %p105 = scmp.eq.s32.totalorder %s21, 1
      %p106 = por %p104, %p105
      %p107 = scmp.ne.s32.totalorder %s99, %s102
      %p108 = scmp.eq.s32.totalorder %s21, 0
      %p109 = por %p107, %p108
      %p110 = scmp.ne.s32.totalorder %s99, %s102
      %p111 = scmp.eq.s32.totalorder %s26, 1
      %p112 = por %p110, %p111
      %p113 = scmp.ne.s32.totalorder %s102, %s103
      %p114 = scmp.eq.s32.totalorder %s26, 0
      %p115 = por %p113, %p114
      %p116 = scmp.ne.s32.totalorder %s102, %s103
      %p117 = scmp.eq.s32.totalorder %s27, 1
      %p118 = por %p116, %p117
      %p120 = scmp.ne.s32.totalorder %s103, %s119
      %p121 = scmp.eq.s32.totalorder %s27, 0
      %p122 = por %p120, %p121
      %s123 = ssub.s32 %s29, %s36
      %p124 = scmp.eq.s32.totalorder %s123, 0
      %s126 = sadd.s32 %s125, 1
      %s127 = scalar_select %p124, %s125, %s126
      %p130 = pneg %p124
      %p131 = scmp.eq.s32.totalorder %s21, 1
      %p132 = por %p130, %p131
      %p133 = scmp.ne.s32.totalorder %s125, %s128
      %p134 = scmp.eq.s32.totalorder %s21, 0
      %p135 = por %p133, %p134
      %p136 = scmp.ne.s32.totalorder %s125, %s128
      %p137 = scmp.eq.s32.totalorder %s26, 1
      %p138 = por %p136, %p137
      %p139 = scmp.ne.s32.totalorder %s128, %s129
      %p140 = scmp.eq.s32.totalorder %s26, 0
      %p141 = por %p139, %p140
      %p142 = scmp.ne.s32.totalorder %s128, %s129
      %p143 = scmp.eq.s32.totalorder %s27, 1
      %p144 = por %p142, %p143
      %p146 = scmp.ne.s32.totalorder %s129, %s145
      %p147 = scmp.eq.s32.totalorder %s27, 0
      %p148 = por %p146, %p147
      %s149 = ssub.s32 %s28, %s40
      %s150 = ssub.s32 %s29, %s36
      %s151 = sor.u32 %s149, %s150
      %p152 = scmp.eq.s32.totalorder %s151, 0
      %s154 = sadd.s32 %s153, 1
      %s155 = scalar_select %p152, %s153, %s154
      %p158 = pneg %p152
      %p159 = scmp.eq.s32.totalorder %s21, 1
      %p160 = por %p158, %p159
      %p161 = scmp.ne.s32.totalorder %s153, %s156
      %p162 = scmp.eq.s32.totalorder %s21, 0
      %p163 = por %p161, %p162
      %p164 = scmp.ne.s32.totalorder %s153, %s156
      %p165 = scmp.eq.s32.totalorder %s26, 1
      %p166 = por %p164, %p165
      %p167 = scmp.ne.s32.totalorder %s156, %s157
      %p168 = scmp.eq.s32.totalorder %s26, 0
      %p169 = por %p167, %p168
      %p170 = scmp.ne.s32.totalorder %s156, %s157
      %p171 = scmp.eq.s32.totalorder %s27, 1
      %p172 = por %p170, %p171
      %p174 = scmp.ne.s32.totalorder %s157, %s173
      %p175 = scmp.eq.s32.totalorder %s27, 0
      %p176 = por %p174, %p175
      %s177 = ssub.s32 %s28, %s40
      %p178 = scmp.eq.s32.totalorder %s177, 0
      %s180 = sadd.s32 %s179, 1
      %s181 = scalar_select %p178, %s179, %s180
      %p184 = pneg %p178
      %p185 = scmp.eq.s32.totalorder %s21, 1
      %p186 = por %p184, %p185
      %p187 = scmp.ne.s32.totalorder %s179, %s182
      %p188 = scmp.eq.s32.totalorder %s21, 0
      %p189 = por %p187, %p188
      %p190 = scmp.ne.s32.totalorder %s179, %s182
      %p191 = scmp.eq.s32.totalorder %s26, 1
      %p192 = por %p190, %p191
      %p193 = scmp.ne.s32.totalorder %s182, %s183
      %p194 = scmp.eq.s32.totalorder %s26, 0
      %p195 = por %p193, %p194
      %p196 = scmp.ne.s32.totalorder %s182, %s183
      %p197 = scmp.eq.s32.totalorder %s27, 1
      %p198 = por %p196, %p197
      %p200 = scmp.ne.s32.totalorder %s183, %s199
      %p201 = scmp.eq.s32.totalorder %s27, 0
      %p202 = por %p200, %p201
      %p203 = scmp.le.s32.totalorder 1, %s21
      %p204 = scmp.lt.s32.totalorder %s21, 3
      %p205 = pnand %p203, %p204
      %p206 = pneg %p205
      // Predicated region
      $region9: #{seq2seq_forward.38} parent=5 // pred_check
        _
      $region10: #{seq2seq_forward.38} parent=5 // pred_check_branch
        %208 = sbr.rel (%p205) target = $region12
      $region11: #{seq2seq_forward.38} parent=5 // pred_region
        %s209 = ssub.s32 %s21, 1
        // Predicated region
        $region13: #{seq2seq_forward.38} parent=11 // pred_check
          %p210 = pneg %p141
        $region14: #{seq2seq_forward.38} parent=11 // pred_check_branch
          %212 = sbr.rel (%p210) target = $region16
        $region15: #{seq2seq_forward.38} parent=11 // pred_region
          %s214 = ssub.s32 128, 128
          %215 = vsyncadd [#allocation12], %s214
          %s216 = smul.addr %s31, 64
          %s217 = scalar_lea.hbm %s3, %s216
          %s218 = sshll.u32 [#allocation11], 4
          %s219 = int_to_ptr.vmem [resolvable:$true] %s218
          %224 = dma.hbm_to_vmem [thread:$0]  %s217, 128, %s219, [#allocation12], 64, 64, 4
        $region16: #{seq2seq_forward.38} parent=11 // pred_fallthru
          _
      $region12: #{seq2seq_forward.38} parent=5 // pred_fallthru
        _
      %p225 = scmp.lt.s32.totalorder %s21, 2
      // Predicated region
      $region17: #{seq2seq_forward.38} parent=5 // pred_check
        %p226 = pneg %p225
      $region18: #{seq2seq_forward.38} parent=5 // pred_check_branch
        %228 = sbr.rel (%p226) target = $region20
      $region19: #{seq2seq_forward.38} parent=5 // pred_region
        // Predicated region
        $region21: #{seq2seq_forward.38} parent=19 // pred_check
          %p229 = pneg %p53
        $region22: #{seq2seq_forward.38} parent=19 // pred_check_branch
          %231 = sbr.rel (%p229) target = $region24
        $region23: #{seq2seq_forward.38} parent=19 // pred_region
          %s232 = sand.u32 %s21, 1
          %s233 = scalar_lea.sflag [#allocation6], %s232
          %s234 = sand.u32 %s43, 1
          %s235 = smul.addr %s234, 16
          %s236 = scalar_lea.vmem [#allocation5], %s235
          %s238 = ssub.s32 256, 256
          %239 = vsyncadd %s233, %s238
          %s240 = smul.addr %s28, 4
          %s241 = smul.addr %s240, 64
          %s242 = scalar_lea.hbm %s0, %s241
          %s243 = sshll.u32 %s236, 4
          %s244 = int_to_ptr.vmem [resolvable:$true] %s243
          %249 = dma.hbm_to_vmem [thread:$0]  %s242, 256, %s244, %s233, 128, 128, 8
        $region24: #{seq2seq_forward.38} parent=19 // pred_fallthru
          _
        // Predicated region
        $region25: #{seq2seq_forward.38} parent=19 // pred_check
          %p250 = pneg %p81
        $region26: #{seq2seq_forward.38} parent=19 // pred_check_branch
          %252 = sbr.rel (%p250) target = $region28
        $region27: #{seq2seq_forward.38} parent=19 // pred_region
          %s253 = sand.u32 %s21, 1
          %s254 = scalar_lea.sflag [#allocation9], %s253
          %s255 = sand.u32 %s71, 1
          %s256 = smul.addr %s255, 16
          %s257 = scalar_lea.vmem [#allocation8], %s256
          %s258 = smul.u32 2, %s29
          %s260 = ssub.s32 256, 256
          %261 = vsyncadd %s254, %s260
          %s262 = smul.addr %s258, 4
          %s263 = smul.addr %s28, 8
          %s264 = sadd.s32 %s262, %s263
          %s265 = smul.addr %s264, 64
          %s266 = scalar_lea.hbm %s1, %s265
          %s267 = sshll.u32 %s257, 4
          %s268 = int_to_ptr.vmem [resolvable:$true] %s267
          %273 = dma.hbm_to_vmem [thread:$0]  %s266, 256, %s268, %s254, 256, 128, 8
        $region28: #{seq2seq_forward.38} parent=19 // pred_fallthru
          _
        // Predicated region
        $region29: #{seq2seq_forward.38} parent=19 // pred_check
          %p274 = pneg %p109
        $region30: #{seq2seq_forward.38} parent=19 // pred_check_branch
          %276 = sbr.rel (%p274) target = $region32
        $region31: #{seq2seq_forward.38} parent=19 // pred_region
          %s277 = sand.u32 %s21, 1
          %s278 = scalar_lea.sflag [#allocation9], %s277
          %s279 = sand.u32 %s99, 1
          %s280 = smul.addr %s279, 16
          %s281 = scalar_lea.vmem [#allocation10], %s280
          %s282 = smul.u32 2, %s29
          %s284 = ssub.s32 256, 256
          %285 = vsyncadd %s278, %s284
          %s286 = smul.addr %s282, 4
          %s287 = sadd.s32 2, %s286
          %s288 = smul.addr %s28, 8
          %s289 = sadd.s32 %s287, %s288
          %s290 = smul.addr %s289, 64
          %s291 = scalar_lea.hbm %s2, %s290
          %s292 = sshll.u32 %s281, 4
          %s293 = int_to_ptr.vmem [resolvable:$true] %s292
          %298 = dma.hbm_to_vmem [thread:$0]  %s291, 256, %s293, %s278, 256, 128, 8
        $region32: #{seq2seq_forward.38} parent=19 // pred_fallthru
          _
        // Predicated region
        $region33: #{seq2seq_forward.38} parent=19 // pred_check
          %p299 = pneg %p163
        $region34: #{seq2seq_forward.38} parent=19 // pred_check_branch
          %301 = sbr.rel (%p299) target = $region36
        $region35: #{seq2seq_forward.38} parent=19 // pred_region
          %s302 = sand.u32 %s21, 1
          %s303 = scalar_lea.sflag [#allocation6], %s302
          %s304 = sand.u32 %s153, 1
          %s305 = scalar_lea.vmem [#allocation13], %s304
          %s307 = ssub.s32 16, 16
          %308 = vsyncadd %s303, %s307
          %s309 = sadd.s32 %s29, %s28
          %s310 = smul.addr %s309, 16
          %s311 = scalar_lea.hbm %s4, %s310
          %s313 = sshll.u32 %s305, 4
          %s314 = int_to_ptr.vmem [resolvable:$true] %s313
          %316 = dma.hbm_to_vmem [thread:$0]  %s311, 16, %s314, %s303
        $region36: #{seq2seq_forward.38} parent=19 // pred_fallthru
          _
      $region20: #{seq2seq_forward.38} parent=5 // pred_fallthru
        _
      %p317 = scmp.le.s32.totalorder 1, %s21
      %p318 = scmp.lt.s32.totalorder %s21, 3
      %p319 = pnand %p317, %p318
      %p320 = pneg %p319
      // Predicated region
      $region37: #{seq2seq_forward.38} parent=5 // pred_check
        _
      $region38: #{seq2seq_forward.38} parent=5 // pred_check_branch
        %322 = sbr.rel (%p319) target = $region40
      $region39: #{seq2seq_forward.38} parent=5 // pred_region
        %s323 = ssub.s32 %s21, 1
        %s324 = sand.u32 %s26, 1
        %s325 = scalar_lea.sflag [#allocation6], %s324
        %s326 = sand.u32 %s46, 1
        %s327 = smul.addr %s326, 16
        %s328 = scalar_lea.vmem [#allocation5], %s327
        // Predicated region
        $region41: #{seq2seq_forward.38} parent=39 // pred_check
          %p329 = pneg %p59
        $region42: #{seq2seq_forward.38} parent=39 // pred_check_branch
          %331 = sbr.rel (%p329) target = $region44
        $region43: #{seq2seq_forward.38} parent=39 // pred_region
          %332 = dma.done %s325, 256
        $region44: #{seq2seq_forward.38} parent=39 // pred_fallthru
          _
        %s333 = sand.u32 %s26, 1
        %s334 = scalar_lea.sflag [#allocation9], %s333
        %s335 = sand.u32 %s74, 1
        %s336 = smul.addr %s335, 16
        %s337 = scalar_lea.vmem [#allocation8], %s336
        // Predicated region
        $region45: #{seq2seq_forward.38} parent=39 // pred_check
          %p338 = pneg %p87
        $region46: #{seq2seq_forward.38} parent=39 // pred_check_branch
          %340 = sbr.rel (%p338) target = $region48
        $region47: #{seq2seq_forward.38} parent=39 // pred_region
          %341 = dma.done %s334, 256
        $region48: #{seq2seq_forward.38} parent=39 // pred_fallthru
          _
        %s342 = sand.u32 %s26, 1
        %s343 = scalar_lea.sflag [#allocation9], %s342
        %s344 = sand.u32 %s102, 1
        %s345 = smul.addr %s344, 16
        %s346 = scalar_lea.vmem [#allocation10], %s345
        // Predicated region
        $region49: #{seq2seq_forward.38} parent=39 // pred_check
          %p347 = pneg %p115
        $region50: #{seq2seq_forward.38} parent=39 // pred_check_branch
          %349 = sbr.rel (%p347) target = $region52
        $region51: #{seq2seq_forward.38} parent=39 // pred_region
          %350 = dma.done %s343, 256
        $region52: #{seq2seq_forward.38} parent=39 // pred_fallthru
          _
        // Predicated region
        $region53: #{seq2seq_forward.38} parent=39 // pred_check
          %p351 = pneg %p141
        $region54: #{seq2seq_forward.38} parent=39 // pred_check_branch
          %353 = sbr.rel (%p351) target = $region56
        $region55: #{seq2seq_forward.38} parent=39 // pred_region
          %354 = dma.done [#allocation12], 128
        $region56: #{seq2seq_forward.38} parent=39 // pred_fallthru
          _
        %s355 = sand.u32 %s26, 1
        %s356 = scalar_lea.sflag [#allocation6], %s355
        %s357 = sand.u32 %s156, 1
        %s358 = scalar_lea.vmem [#allocation13], %s357
        // Predicated region
        $region57: #{seq2seq_forward.38} parent=39 // pred_check
          %p359 = pneg %p169
        $region58: #{seq2seq_forward.38} parent=39 // pred_check_branch
          %361 = sbr.rel (%p359) target = $region60
        $region59: #{seq2seq_forward.38} parent=39 // pred_region
          %362 = dma.done %s356, 16
        $region60: #{seq2seq_forward.38} parent=39 // pred_fallthru
          _
        %s363 = sand.u32 %s26, 1
        %s364 = scalar_lea.sflag [#allocation6], %s363
        %s365 = sand.u32 %s46, 1
        %s366 = smul.addr %s365, 16
        %s367 = scalar_lea.vmem [#allocation5], %s366
        %p368 = pneg %p59
        %p369 = pneg %p56
        %s370 = sand.u32 %s26, 1
        %s371 = scalar_lea.sflag [#allocation9], %s370
        %s372 = sand.u32 %s74, 1
        %s373 = smul.addr %s372, 16
        %s374 = scalar_lea.vmem [#allocation8], %s373
        %p375 = pneg %p87
        %p376 = pneg %p84
        %s377 = sand.u32 %s26, 1
        %s378 = scalar_lea.sflag [#allocation9], %s377
        %s379 = sand.u32 %s102, 1
        %s380 = smul.addr %s379, 16
        %s381 = scalar_lea.vmem [#allocation10], %s380
        %p382 = pneg %p115
        %p383 = pneg %p112
        %p384 = pneg %p141
        %p385 = pneg %p138
        %s386 = sand.u32 %s26, 1
        %s387 = scalar_lea.sflag [#allocation6], %s386
        %s388 = sand.u32 %s156, 1
        %s389 = scalar_lea.vmem [#allocation13], %s388
        %p390 = pneg %p169
        %p391 = pneg %p166
        %p392 = pneg %p195
        %p393 = pneg %p192
        %s394 = sand.u32 %s182, 1
        %s395 = scalar_lea.sflag [#allocation7], %s394
        %s396 = sand.u32 %s182, 1
        %s397 = smul.addr %s396, 16
        %s398 = scalar_lea.vmem [#allocation14], %s397
        %s399 = smul.u32 2, %s31
        %s400 = smul.u32 2, %s31
        %p402 = scmp.eq.s32.totalorder %s31, 0
        // Predicated region
        $region61: #{seq2seq_forward.38} parent=39 // pred_check
          %p403 = pneg %p402
        $region62: #{seq2seq_forward.38} parent=39 // pred_check_branch
          %405 = sbr.rel (%p403) target = $region64
        $region63: #{seq2seq_forward.38} parent=39 // pred_region
          %vm406 = vcmask 7168
          %407 = vst.msk [vmem:[#allocation2] sm:$0xff] %vm406, -1e+30
          %408 = vst.msk [vmem:[#allocation2 + $0x8] sm:$0xff] %vm406, -1e+30
          %409 = vst.msk [vmem:[#allocation2 + $0x10] sm:$0xff] %vm406, -1e+30
          %410 = vst.msk [vmem:[#allocation2 + $0x18] sm:$0xff] %vm406, -1e+30
          %411 = vst.msk [vmem:[#allocation3] sm:$0xff] %vm406, 0.0
          %412 = vst.msk [vmem:[#allocation3 + $0x8] sm:$0xff] %vm406, 0.0
          %413 = vst.msk [vmem:[#allocation3 + $0x10] sm:$0xff] %vm406, 0.0
          %414 = vst.msk [vmem:[#allocation3 + $0x18] sm:$0xff] %vm406, 0.0
          %415 = vst [vmem:[#allocation4] sm:$0xff] 0.0
          %416 = vst [vmem:[#allocation4 + $0x8] sm:$0xff] 0.0
          %417 = vst [vmem:[#allocation4 + $0x10] sm:$0xff] 0.0
          %418 = vst [vmem:[#allocation4 + $0x18] sm:$0xff] 0.0
        $region64: #{seq2seq_forward.38} parent=39 // pred_fallthru
          _
        %v419 = vld [vmem:[%s328] sm:$0xff]
        %v420 = vld [vmem:[%s328 + $0x8] sm:$0xff]
        %v421 = vld [vmem:[%s337] sm:$0xff]
        %v422 = vld [vmem:[%s337 + $0x8] sm:$0xff]
        %v423 = vld [vmem:[%s346] sm:$0xff]
        %v424 = vld [vmem:[%s346 + $0x8] sm:$0xff]
        %v425 = vld [vmem:[#allocation11] sm:$0xf]
        %v426 = vld [vmem:[#allocation11 + $0x4] sm:$0xf]
        %v427 = vunpack.c.l.bf16 %v425
        %v428 = vunpack.c.l.bf16 %v426
        %v429 = vld [vmem:[%s358] sm:$0x1]
        %v431 = vlaneseq
        %v432 = vshrl.u32 %v431, 7
        %v433 = vsub.s32 0, %v432
        %v434 = vrot.slane %v429, %v433
        %v436 = vadd.f32 %v427, %v434
        %v437 = vadd.f32 %v428, %v434
        %v440 = vunpack.c.l.b16 %v419
        %v441 = vunpack.c.l.b16 %v420
        %v442 = vpack.c.b16 %v441, %v440
        %v446 = vunpack.c.l.b16 %v421
        %v447 = vunpack.c.l.b16 %v422
        %v448 = vpack.c.b16 %v447, %v446
        %450 = vmatprep.subr.bf16.mxu0 0
        %451 = vmatpush1.bf16.xpose.msra.mxu0 %v448
        %452 = vmatprep.subr.bf16.mxu0 0
        %453 = vmatpush1.bf16.xpose.msra.mxu0 0
        %454 = vmatprep.subr.bf16.mxu0 0
        %455 = vmatpush1.bf16.xpose.msra.mxu0 0
        %456 = vmatprep.subr.bf16.mxu0 0
        %457 = vmatpush1.bf16.xpose.msra.mxu0 0
        %458 = vmatprep.subr.bf16.mxu0 0
        %459 = vmatpush1.bf16.xpose.msra.mxu0 0
        %460 = vmatprep.subr.bf16.mxu0 0
        %461 = vmatpush1.bf16.xpose.msra.mxu0 0
        %462 = vmatprep.subr.bf16.mxu0 0
        %463 = vmatpush1.bf16.xpose.msra.mxu0 0
        %464 = vmatprep.subr.bf16.mxu0 0
        %465 = vmatpush1.bf16.xpose.msra.mxu0 0
        %466 = vmatprep.subr.bf16.mxu0 0
        %467 = vmatpush1.bf16.xpose.msra.mxu0 0
        %468 = vmatprep.subr.bf16.mxu0 0
        %469 = vmatpush1.bf16.xpose.msra.mxu0 0
        %470 = vmatprep.subr.bf16.mxu0 0
        %471 = vmatpush1.bf16.xpose.msra.mxu0 0
        %472 = vmatprep.subr.bf16.mxu0 0
        %473 = vmatpush1.bf16.xpose.msra.mxu0 0
        %474 = vmatprep.subr.bf16.mxu0 0
        %475 = vmatpush1.bf16.xpose.msra.mxu0 0
        %476 = vmatprep.subr.bf16.mxu0 0
        %477 = vmatpush1.bf16.xpose.msra.mxu0 0
        %478 = vmatprep.subr.bf16.mxu0 0
        %479 = vmatpush1.bf16.xpose.msra.mxu0 0
        %480 = vmatprep.subr.bf16.mxu0 0
        %481 = vmatpush1.bf16.xpose.msra.mxu0 0
        %482 = vmatprep.mubr.bf16.mxu0 0
        %483 = vmatmul.mubr.bf16.gmra.mrb[0].mxu0 %v442
        %v484 = vpop.f32.mrb[0].mxu0
        %v485 = vadd.f32 %v436, %v484
        %v486 = vpop.f32.mrb[0].mxu0
        %v487 = vpop.f32.mrb[0].mxu0
        %v488 = vadd.f32 %v437, %v487
        %v489 = vpop.f32.mrb[0].mxu0
        %490 = vdwg.mxu0
        %v491 = vld [vmem:[#allocation2] sm:$0xff]
        %v492 = vld [vmem:[#allocation2 + $0x8] sm:$0xff]
        %vm493 = vcmask 130048
        %v494 = vsel %vm493, %v485, -inf
        %495 = vmax.xlane.f32.xlu0 %v494
        %v496 = vpop.xlane.xlu0 %495
        %v497 = vsel %vm493, %v488, -inf
        %498 = vmax.xlane.f32.xlu0 %v497
        %v499 = vpop.xlane.xlu0 %498
        %v500 = vmax.f32 %v491, %v496
        %v501 = vmax.f32 %v492, %v499
        %v502 = vsub.f32 %v491, %v500
        %v503 = vsub.f32 %v492, %v501
        %v504 = vmul.f32 %v502, 1.442695
        %v505 = vpow.pop %v504
        %v506 = vmul.f32 %v503, 1.442695
        %v507 = vpow.pop %v506
        %509 = vset.pattern.permute.xlu0 0
        %510 = vperm.xlu0 %509, %v500
        %v511 = vpop.permute.xlu0 %510
        %514 = vset.pattern.permute.xlu0 0
        %515 = vperm.xlu0 %514, %v501
        %v516 = vpop.permute.xlu0 %515
        %v518 = vsub.f32 %v485, %v511
        %v519 = vsub.f32 %v488, %v516
        %v520 = vmul.f32 %v518, 1.442695
        %v521 = vpow.pop %v520
        %v522 = vmul.f32 %v519, 1.442695
        %v523 = vpow.pop %v522
        %v524 = vld [vmem:[#allocation3] sm:$0xff]
        %v525 = vld [vmem:[#allocation3 + $0x8] sm:$0xff]
        %v526 = vmul.f32 %v505, %v524
        %v527 = vmul.f32 %v507, %v525
        %v528 = vsel %vm493, %v521, 0.0
        %529 = vadd.xlane.f32.xlu0 %v528
        %v530 = vpop.xlane.xlu0 %529
        %v531 = vsel %vm493, %v523, 0.0
        %532 = vadd.xlane.f32.xlu0 %v531
        %v533 = vpop.xlane.xlu0 %532
        %v534 = vadd.f32 %v526, %v530
        %v535 = vadd.f32 %v527, %v533
        %vm536 = vcmask 7168
        %537 = vst.msk [vmem:[#allocation3] sm:$0xff] %vm536, %v534
        %538 = vst.msk [vmem:[#allocation3 + $0x8] sm:$0xff] %vm536, %v535
        %v539 = vld [vmem:[#allocation4] sm:$0xff]
        %v540 = vld [vmem:[#allocation4 + $0x8] sm:$0xff]
        %542 = vset.pattern.permute.xlu0 0
        %543 = vperm.xlu0 %542, %v505
        %v544 = vpop.permute.xlu0 %543
        %547 = vset.pattern.permute.xlu0 0
        %548 = vperm.xlu0 %547, %v507
        %v549 = vpop.permute.xlu0 %548
        %v551 = vmul.f32 %v544, %v539
        %v552 = vmul.f32 %v549, %v540
        %v553 = vpack.c.bf16 %v523, %v521
        %v556 = vunpack.c.l.b16 %v423
        %v557 = vunpack.c.l.b16 %v424
        %v558 = vpack.c.b16 %v557, %v556
        %v561 = vsel %vm493, %v553, 0
        %563 = vmatprep.subr.bf16.mxu0 0
        %564 = vmatpush1.bf16.msra.mxu0 %v558
        %565 = vmatprep.subr.bf16.mxu0 0
        %566 = vmatpush1.bf16.msra.mxu0 0
        %567 = vmatprep.subr.bf16.mxu0 0
        %568 = vmatpush1.bf16.msra.mxu0 0
        %569 = vmatprep.subr.bf16.mxu0 0
        %570 = vmatpush1.bf16.msra.mxu0 0
        %571 = vmatprep.subr.bf16.mxu0 0
        %572 = vmatpush1.bf16.msra.mxu0 0
        %573 = vmatprep.subr.bf16.mxu0 0
        %574 = vmatpush1.bf16.msra.mxu0 0
        %575 = vmatprep.subr.bf16.mxu0 0
        %576 = vmatpush1.bf16.msra.mxu0 0
        %577 = vmatprep.subr.bf16.mxu0 0
        %578 = vmatpush1.bf16.msra.mxu0 0
        %579 = vmatprep.subr.bf16.mxu0 0
        %580 = vmatpush1.bf16.msra.mxu0 0
        %581 = vmatprep.subr.bf16.mxu0 0
        %582 = vmatpush1.bf16.msra.mxu0 0
        %583 = vmatprep.subr.bf16.mxu0 0
        %584 = vmatpush1.bf16.msra.mxu0 0
        %585 = vmatprep.subr.bf16.mxu0 0
        %586 = vmatpush1.bf16.msra.mxu0 0
        %587 = vmatprep.subr.bf16.mxu0 0
        %588 = vmatpush1.bf16.msra.mxu0 0
        %589 = vmatprep.subr.bf16.mxu0 0
        %590 = vmatpush1.bf16.msra.mxu0 0
        %591 = vmatprep.subr.bf16.mxu0 0
        %592 = vmatpush1.bf16.msra.mxu0 0
        %593 = vmatprep.subr.bf16.mxu0 0
        %594 = vmatpush1.bf16.msra.mxu0 0
        %595 = vmatprep.mubr.bf16.mxu0 0
        %596 = vmatmul.mubr.bf16.gmra.mrb[0].mxu0 %v561
        %v597 = vpop.f32.mrb[0].mxu0
        %v598 = vadd.f32 0.0, %v597
        %v599 = vpop.f32.mrb[0].mxu0
        %v600 = vpop.f32.mrb[0].mxu0
        %v601 = vadd.f32 0.0, %v600
        %v602 = vpop.f32.mrb[0].mxu0
        %603 = vdwg.mxu0
        %v604 = vadd.f32 %v551, %v598
        %v605 = vadd.f32 %v552, %v601
        %606 = vst [vmem:[#allocation4] sm:$0xff] %v604
        %607 = vst [vmem:[#allocation4 + $0x8] sm:$0xff] %v605
        %608 = vst.msk [vmem:[#allocation2] sm:$0xff] %vm536, %v500
        %609 = vst.msk [vmem:[#allocation2 + $0x8] sm:$0xff] %vm536, %v501
        %v610 = vunpack.c.h.b16 %v419
        %v611 = vunpack.c.h.b16 %v420
        %v612 = vpack.c.b16 %v611, %v610
        %v614 = vunpack.c.h.b16 %v421
        %v615 = vunpack.c.h.b16 %v422
        %v616 = vpack.c.b16 %v615, %v614
        %618 = vmatprep.subr.bf16.mxu0 0
        %619 = vmatpush1.bf16.xpose.msra.mxu0 %v616
        %620 = vmatprep.subr.bf16.mxu0 0
        %621 = vmatpush1.bf16.xpose.msra.mxu0 0
        %622 = vmatprep.subr.bf16.mxu0 0
        %623 = vmatpush1.bf16.xpose.msra.mxu0 0
        %624 = vmatprep.subr.bf16.mxu0 0
        %625 = vmatpush1.bf16.xpose.msra.mxu0 0
        %626 = vmatprep.subr.bf16.mxu0 0
        %627 = vmatpush1.bf16.xpose.msra.mxu0 0
        %628 = vmatprep.subr.bf16.mxu0 0
        %629 = vmatpush1.bf16.xpose.msra.mxu0 0
        %630 = vmatprep.subr.bf16.mxu0 0
        %631 = vmatpush1.bf16.xpose.msra.mxu0 0
        %632 = vmatprep.subr.bf16.mxu0 0
        %633 = vmatpush1.bf16.xpose.msra.mxu0 0
        %634 = vmatprep.subr.bf16.mxu0 0
        %635 = vmatpush1.bf16.xpose.msra.mxu0 0
        %636 = vmatprep.subr.bf16.mxu0 0
        %637 = vmatpush1.bf16.xpose.msra.mxu0 0
        %638 = vmatprep.subr.bf16.mxu0 0
        %639 = vmatpush1.bf16.xpose.msra.mxu0 0
        %640 = vmatprep.subr.bf16.mxu0 0
        %641 = vmatpush1.bf16.xpose.msra.mxu0 0
        %642 = vmatprep.subr.bf16.mxu0 0
        %643 = vmatpush1.bf16.xpose.msra.mxu0 0
        %644 = vmatprep.subr.bf16.mxu0 0
        %645 = vmatpush1.bf16.xpose.msra.mxu0 0
        %646 = vmatprep.subr.bf16.mxu0 0
        %647 = vmatpush1.bf16.xpose.msra.mxu0 0
        %648 = vmatprep.subr.bf16.mxu0 0
        %649 = vmatpush1.bf16.xpose.msra.mxu0 0
        %650 = vmatprep.mubr.bf16.mxu0 0
        %651 = vmatmul.mubr.bf16.gmra.mrb[0].mxu0 %v612
        %v652 = vpop.f32.mrb[0].mxu0
        %v653 = vadd.f32 %v436, %v652
        %v654 = vpop.f32.mrb[0].mxu0
        %v655 = vpop.f32.mrb[0].mxu0
        %v656 = vadd.f32 %v437, %v655
        %v657 = vpop.f32.mrb[0].mxu0
        %658 = vdwg.mxu0
        %s659 = scalar_lea.vmem [#allocation2], 16
        %v660 = vld [vmem:[%s659] sm:$0xff]
        %v661 = vld [vmem:[%s659 + $0x8] sm:$0xff]
        %v662 = vsel %vm493, %v653, -inf
        %663 = vmax.xlane.f32.xlu0 %v662
        %v664 = vpop.xlane.xlu0 %663
        %v665 = vsel %vm493, %v656, -inf
        %666 = vmax.xlane.f32.xlu0 %v665
        %v667 = vpop.xlane.xlu0 %666
        %v668 = vmax.f32 %v660, %v664
        %v669 = vmax.f32 %v661, %v667
        %v670 = vsub.f32 %v660, %v668
        %v671 = vsub.f32 %v661, %v669
        %v672 = vmul.f32 %v670, 1.442695
        %v673 = vpow.pop %v672
        %v674 = vmul.f32 %v671, 1.442695
        %v675 = vpow.pop %v674
        %677 = vset.pattern.permute.xlu0 0
        %678 = vperm.xlu0 %677, %v668
        %v679 = vpop.permute.xlu0 %678
        %682 = vset.pattern.permute.xlu0 0
        %683 = vperm.xlu0 %682, %v669
        %v684 = vpop.permute.xlu0 %683
        %v686 = vsub.f32 %v653, %v679
        %v687 = vsub.f32 %v656, %v684
        %v688 = vmul.f32 %v686, 1.442695
        %v689 = vpow.pop %v688
        %v690 = vmul.f32 %v687, 1.442695
        %v691 = vpow.pop %v690
        %s692 = scalar_lea.vmem [#allocation3], 16
        %v693 = vld [vmem:[%s692] sm:$0xff]
        %v694 = vld [vmem:[%s692 + $0x8] sm:$0xff]
        %v695 = vmul.f32 %v673, %v693
        %v696 = vmul.f32 %v675, %v694
        %v697 = vsel %vm493, %v689, 0.0
        %698 = vadd.xlane.f32.xlu0 %v697
        %v699 = vpop.xlane.xlu0 %698
        %v700 = vsel %vm493, %v691, 0.0
        %701 = vadd.xlane.f32.xlu0 %v700
        %v702 = vpop.xlane.xlu0 %701
        %v703 = vadd.f32 %v695, %v699
        %v704 = vadd.f32 %v696, %v702
        %705 = vst.msk [vmem:[%s692] sm:$0xff] %vm536, %v703
        %706 = vst.msk [vmem:[%s692 + $0x8] sm:$0xff] %vm536, %v704
        %s707 = scalar_lea.vmem [#allocation4], 16
        %v708 = vld [vmem:[%s707] sm:$0xff]
        %v709 = vld [vmem:[%s707 + $0x8] sm:$0xff]
        %711 = vset.pattern.permute.xlu0 0
        %712 = vperm.xlu0 %711, %v673
        %v713 = vpop.permute.xlu0 %712
        %716 = vset.pattern.permute.xlu0 0
        %717 = vperm.xlu0 %716, %v675
        %v718 = vpop.permute.xlu0 %717
        %v720 = vmul.f32 %v713, %v708
        %v721 = vmul.f32 %v718, %v709
        %v722 = vpack.c.bf16 %v691, %v689
        %v723 = vunpack.c.h.b16 %v423
        %v724 = vunpack.c.h.b16 %v424
        %v725 = vpack.c.b16 %v724, %v723
        %v728 = vsel %vm493, %v722, 0
        %730 = vmatprep.subr.bf16.mxu0 0
        %731 = vmatpush1.bf16.msra.mxu0 %v725
        %732 = vmatprep.subr.bf16.mxu0 0
        %733 = vmatpush1.bf16.msra.mxu0 0
        %734 = vmatprep.subr.bf16.mxu0 0
        %735 = vmatpush1.bf16.msra.mxu0 0
        %736 = vmatprep.subr.bf16.mxu0 0
        %737 = vmatpush1.bf16.msra.mxu0 0
        %738 = vmatprep.subr.bf16.mxu0 0
        %739 = vmatpush1.bf16.msra.mxu0 0
        %740 = vmatprep.subr.bf16.mxu0 0
        %741 = vmatpush1.bf16.msra.mxu0 0
        %742 = vmatprep.subr.bf16.mxu0 0
        %743 = vmatpush1.bf16.msra.mxu0 0
        %744 = vmatprep.subr.bf16.mxu0 0
        %745 = vmatpush1.bf16.msra.mxu0 0
        %746 = vmatprep.subr.bf16.mxu0 0
        %747 = vmatpush1.bf16.msra.mxu0 0
        %748 = vmatprep.subr.bf16.mxu0 0
        %749 = vmatpush1.bf16.msra.mxu0 0
        %750 = vmatprep.subr.bf16.mxu0 0
        %751 = vmatpush1.bf16.msra.mxu0 0
        %752 = vmatprep.subr.bf16.mxu0 0
        %753 = vmatpush1.bf16.msra.mxu0 0
        %754 = vmatprep.subr.bf16.mxu0 0
        %755 = vmatpush1.bf16.msra.mxu0 0
        %756 = vmatprep.subr.bf16.mxu0 0
        %757 = vmatpush1.bf16.msra.mxu0 0
        %758 = vmatprep.subr.bf16.mxu0 0
        %759 = vmatpush1.bf16.msra.mxu0 0
        %760 = vmatprep.subr.bf16.mxu0 0
        %761 = vmatpush1.bf16.msra.mxu0 0
        %762 = vmatprep.mubr.bf16.mxu0 0
        %763 = vmatmul.mubr.bf16.gmra.mrb[0].mxu0 %v728
        %v764 = vpop.f32.mrb[0].mxu0
        %v765 = vadd.f32 0.0, %v764
        %v766 = vpop.f32.mrb[0].mxu0
        %v767 = vpop.f32.mrb[0].mxu0
        %v768 = vadd.f32 0.0, %v767
        %v769 = vpop.f32.mrb[0].mxu0
        %770 = vdwg.mxu0
        %v771 = vadd.f32 %v720, %v765
        %v772 = vadd.f32 %v721, %v768
        %773 = vst [vmem:[%s707] sm:$0xff] %v771
        %774 = vst [vmem:[%s707 + $0x8] sm:$0xff] %v772
        %775 = vst.msk [vmem:[%s659] sm:$0xff] %vm536, %v668
        %776 = vst.msk [vmem:[%s659 + $0x8] sm:$0xff] %vm536, %v669
        // Predicated region
        $region65: #{seq2seq_forward.38} parent=39 // pred_check
          %p777 = pneg %p402
        $region66: #{seq2seq_forward.38} parent=39 // pred_check_branch
          %779 = sbr.rel (%p777) target = $region68
        $region67: #{seq2seq_forward.38} parent=39 // pred_region
          %v780 = vld [vmem:[#allocation3] sm:$0xff]
          %v781 = vld [vmem:[#allocation3 + $0x8] sm:$0xff]
          %v782 = vrcp.pop %v780
          %v783 = vrcp.pop %v781
          %v784 = vld [vmem:[#allocation4] sm:$0xff]
          %v785 = vld [vmem:[#allocation4 + $0x8] sm:$0xff]
          %787 = vset.pattern.permute.xlu0 0
          %788 = vperm.xlu0 %787, %v782
          %v789 = vpop.permute.xlu0 %788
          %792 = vset.pattern.permute.xlu0 0
          %793 = vperm.xlu0 %792, %v783
          %v794 = vpop.permute.xlu0 %793
          %v796 = vmul.f32 %v784, %v789
          %v797 = vmul.f32 %v785, %v794
          %v798 = vld [vmem:[%s692] sm:$0xff]
          %v799 = vld [vmem:[%s692 + $0x8] sm:$0xff]
          %v800 = vrcp.pop %v798
          %v801 = vrcp.pop %v799
          %v802 = vld [vmem:[%s707] sm:$0xff]
          %v803 = vld [vmem:[%s707 + $0x8] sm:$0xff]
          %805 = vset.pattern.permute.xlu0 0
          %806 = vperm.xlu0 %805, %v800
          %v807 = vpop.permute.xlu0 %806
          %810 = vset.pattern.permute.xlu0 0
          %811 = vperm.xlu0 %810, %v801
          %v812 = vpop.permute.xlu0 %811
          %v814 = vmul.f32 %v802, %v807
          %v815 = vmul.f32 %v803, %v812
          %v816 = vpack.c.bf16 %v797, %v796
          %v817 = vpack.c.bf16 %v815, %v814
          %v820 = vunpack.c.l.b16 %v816
          %v821 = vunpack.c.l.b16 %v817
          %v822 = vunpack.c.h.b16 %v816
          %v823 = vunpack.c.h.b16 %v817
          %v824 = vpack.c.b16 %v821, %v820
          %v825 = vpack.c.b16 %v823, %v822
          %828 = vst [vmem:[%s398] sm:$0xff] %v824
          %829 = vst [vmem:[%s398 + $0x8] sm:$0xff] %v825
        $region68: #{seq2seq_forward.38} parent=39 // pred_fallthru
          _
        %s830 = sand.u32 %s182, 1
        %s831 = scalar_lea.sflag [#allocation7], %s830
        %s832 = sand.u32 %s182, 1
        %s833 = smul.addr %s832, 16
        %s834 = scalar_lea.vmem [#allocation14], %s833
        // Predicated region
        $region69: #{seq2seq_forward.38} parent=39 // pred_check
          %p835 = pneg %p192
        $region70: #{seq2seq_forward.38} parent=39 // pred_check_branch
          %837 = sbr.rel (%p835) target = $region72
        $region71: #{seq2seq_forward.38} parent=39 // pred_region
          %s839 = ssub.s32 256, 256
          %840 = vsyncadd %s831, %s839
          %s841 = smul.addr %s30, 4
          %s842 = smul.addr %s841, 64
          %s843 = scalar_lea.hbm %s5, %s842
          %s844 = sshll.u32 %s834, 4
          %s845 = int_to_ptr.vmem [resolvable:$true] %s844
          %850 = dma.vmem_to_hbm [thread:$0]  %s845, 256, %s843, %s831, 128, 128, 8
        $region72: #{seq2seq_forward.38} parent=39 // pred_fallthru
          _
      $region40: #{seq2seq_forward.38} parent=5 // pred_fallthru
        _
      %p851 = scmp.le.s32.totalorder 2, %s21
      // Predicated region
      $region73: #{seq2seq_forward.38} parent=5 // pred_check
        %p852 = pneg %p851
      $region74: #{seq2seq_forward.38} parent=5 // pred_check_branch
        %854 = sbr.rel (%p852) target = $region76
      $region75: #{seq2seq_forward.38} parent=5 // pred_region
        %s855 = ssub.s32 %s21, 2
        // Predicated region
        $region77: #{seq2seq_forward.38} parent=75 // pred_check
          %p856 = pneg %p198
        $region78: #{seq2seq_forward.38} parent=75 // pred_check_branch
          %858 = sbr.rel (%p856) target = $region80
        $region79: #{seq2seq_forward.38} parent=75 // pred_region
          %s859 = sand.u32 %s183, 1
          %s860 = scalar_lea.sflag [#allocation7], %s859
          %s861 = sand.u32 %s183, 1
          %s862 = smul.addr %s861, 16
          %s863 = scalar_lea.vmem [#allocation14], %s862
          %864 = dma.done %s860, 256
        $region80: #{seq2seq_forward.38} parent=75 // pred_fallthru
          _
      $region76: #{seq2seq_forward.38} parent=5 // pred_fallthru
        _
    $region6: #{seq2seq_forward.38} parent=1 // loop_footer
      %s25 = sadd.s32 1, %s21
    $region7: #{seq2seq_forward.38} parent=1 // loop_footer_branch
      %20 = sbr.rel target = $region3
    $region8: #{seq2seq_forward.38} parent=1 // loop_exit
      _
    %865 = vsyncpa [#allocation6], 1
    %s866 = scalar_lea.sflag [#allocation6], 1
    %867 = vsyncpa %s866, 1
    %868 = vsyncpa [#allocation9], 1
    %s869 = scalar_lea.sflag [#allocation9], 1
    %870 = vsyncpa %s869, 1
    %871 = vsyncpa [#allocation12], 1
    %872 = vsyncpa [#allocation7], 1
    %s873 = scalar_lea.sflag [#allocation7], 1
    %874 = vsyncpa %s873, 1

// kernel: seq2seq_forward.36
$region0: #{seq2seq_forward.36}
  #allocation0 [shape = 'u32[]', space=smem, size = 0x4, offset = 0x4, fixed_abs, tag = 'smem constant byte address 0x4 - core index']
  #allocation1 [shape = 'u32[144,128]{1,0:T(1,128)}', space=vmem, size = 0x12000, scoped, tag = 'internal scratch']
  #allocation2 [shape = 'f32[32,256]{1,0:T(8,128)}', space=vmem, size = 0x8000, scoped, tag = 'scratch operand']
  %s0 = inlined_call_operand.hbm [shape: bf16[32,256], index: 0, kind: input, shape index: {}]
  %s1 = inlined_call_operand.hbm [shape: bf16[256,256], index: 1, kind: input, shape index: {}]
  %s2 = inlined_call_operand.hbm [shape: f32[1,256], index: 2, kind: input, shape index: {}]
  %s3 = inlined_call_operand.hbm [shape: bf16[32,256], index: 3, kind: output, shape index: {}]
  %s4 = sld [smem:[#allocation0]]
  $region42: #{seq2seq_forward.36} parent=0
    _
  %s6 = ssub.s32 1, %s4
  %s7 = scalar_select 0, %s6, %s4
  $region1: #{seq2seq_forward.36} parent=0
    #allocation3 [shape = 'u8[16384]{0}', space=vmem, size = 0x4000, scoped, tag = 'input window, operand 0, single buffered']
    #allocation4 [shape = 's32[1]{0}', space=sflag, size = 0x4, scoped, tag = 'scoped memory for seq2seq_forward.36']
    #allocation5 [shape = 's32[1]{0}', space=sflag, size = 0x4, scoped, tag = 'scoped memory for seq2seq_forward.36']
    #allocation6 [shape = 'u8[131072]{0}', space=vmem, size = 0x20000, scoped, tag = 'input window, operand 1, single buffered']
    #allocation7 [shape = 's32[1]{0}', space=sflag, size = 0x4, scoped, tag = 'scoped memory for seq2seq_forward.36']
    #allocation8 [shape = 'u8[1024]{0}', space=vmem, size = 0x400, scoped, tag = 'input window, operand 2, single buffered']
    #allocation9 [shape = 'u8[16384]{0}', space=vmem, size = 0x4000, scoped, tag = 'output window, operand 0, single buffered']
    %8 = vsyncpa [#allocation4], 0
    %9 = vsyncpa [#allocation7], 0
    %10 = vsyncpa [#allocation5], 0
    // Predicated region
    $region2: #{seq2seq_forward.36} parent=1 // pred_check
      _
    $region3: #{seq2seq_forward.36} parent=1 // pred_check_branch
      %12 = sbr.rel (0) target = $region5
    $region4: #{seq2seq_forward.36} parent=1 // pred_region
      %s14 = ssub.s32 512, 512
      %15 = vsyncadd [#allocation4], %s14
      %s16 = sshll.u32 [#allocation3], 4
      %s17 = int_to_ptr.vmem [resolvable:$true] %s16
      %22 = dma.hbm_to_vmem [thread:$0]  %s0, 512, %s17, [#allocation4], 128, 128, 8
    $region5: #{seq2seq_forward.36} parent=1 // pred_fallthru
      _
    // Predicated region
    $region6: #{seq2seq_forward.36} parent=1 // pred_check
      _
    $region7: #{seq2seq_forward.36} parent=1 // pred_check_branch
      %24 = sbr.rel (0) target = $region9
    $region8: #{seq2seq_forward.36} parent=1 // pred_region
      %s26 = ssub.s32 4096, 4096
      %27 = vsyncadd [#allocation7], %s26
      %s28 = sshll.u32 [#allocation6], 4
      %s29 = int_to_ptr.vmem [resolvable:$true] %s28
      %34 = dma.hbm_to_vmem [thread:$0]  %s1, 4096, %s29, [#allocation7], 128, 128, 8
    $region9: #{seq2seq_forward.36} parent=1 // pred_fallthru
      _
    // Predicated region
    $region10: #{seq2seq_forward.36} parent=1 // pred_check
      _
    $region11: #{seq2seq_forward.36} parent=1 // pred_check_branch
      %36 = sbr.rel (0) target = $region13
    $region12: #{seq2seq_forward.36} parent=1 // pred_region
      %s38 = ssub.s32 32, 32
      %39 = vsyncadd [#allocation7], %s38
      %s41 = sshll.u32 [#allocation8], 4
      %s42 = int_to_ptr.vmem [resolvable:$true] %s41
      %44 = dma.hbm_to_vmem [thread:$0]  %s2, 32, %s42, [#allocation7]
    $region13: #{seq2seq_forward.36} parent=1 // pred_fallthru
      _
    // Predicated region
    $region14: #{seq2seq_forward.36} parent=1 // pred_check
      _
    $region15: #{seq2seq_forward.36} parent=1 // pred_check_branch
      %46 = sbr.rel (0) target = $region17
    $region16: #{seq2seq_forward.36} parent=1 // pred_region
      %47 = dma.done [#allocation4], 512
    $region17: #{seq2seq_forward.36} parent=1 // pred_fallthru
      _
    // Predicated region
    $region18: #{seq2seq_forward.36} parent=1 // pred_check
      _
    $region19: #{seq2seq_forward.36} parent=1 // pred_check_branch
      %49 = sbr.rel (0) target = $region21
    $region20: #{seq2seq_forward.36} parent=1 // pred_region
      %50 = dma.done [#allocation7], 4096
    $region21: #{seq2seq_forward.36} parent=1 // pred_fallthru
      _
    // Predicated region
    $region22: #{seq2seq_forward.36} parent=1 // pred_check
      _
    $region23: #{seq2seq_forward.36} parent=1 // pred_check_branch
      %52 = sbr.rel (0) target = $region25
    $region24: #{seq2seq_forward.36} parent=1 // pred_region
      %53 = dma.done [#allocation7], 32
    $region25: #{seq2seq_forward.36} parent=1 // pred_fallthru
      _
    %p54 = scmp.eq.s32.totalorder 0, 0
    // Predicated region
    $region26: #{seq2seq_forward.36} parent=1 // pred_check
      %p55 = pneg %p54
    $region27: #{seq2seq_forward.36} parent=1 // pred_check_branch
      %57 = sbr.rel (%p55) target = $region29
    $region28: #{seq2seq_forward.36} parent=1 // pred_region
      %58 = vst [vmem:[#allocation2] sm:$0xff] 0.0
      %59 = vst [vmem:[#allocation2 + $0x8] sm:$0xff] 0.0
      %60 = vst [vmem:[#allocation2 + $0x10] sm:$0xff] 0.0
      %61 = vst [vmem:[#allocation2 + $0x18] sm:$0xff] 0.0
      %62 = vst [vmem:[#allocation2 + $0x20] sm:$0xff] 0.0
      %63 = vst [vmem:[#allocation2 + $0x28] sm:$0xff] 0.0
      %64 = vst [vmem:[#allocation2 + $0x30] sm:$0xff] 0.0
      %65 = vst [vmem:[#allocation2 + $0x38] sm:$0xff] 0.0
    $region29: #{seq2seq_forward.36} parent=1 // pred_fallthru
      _
    %v66 = vld [vmem:[#allocation2] sm:$0xff]
    %v67 = vld [vmem:[#allocation2 + $0x8] sm:$0xff]
    %v68 = vld [vmem:[#allocation2 + $0x10] sm:$0xff]
    %v69 = vld [vmem:[#allocation2 + $0x18] sm:$0xff]
    %v70 = vld [vmem:[#allocation2 + $0x20] sm:$0xff]
    %v71 = vld [vmem:[#allocation2 + $0x28] sm:$0xff]
    %v72 = vld [vmem:[#allocation2 + $0x30] sm:$0xff]
    %v73 = vld [vmem:[#allocation2 + $0x38] sm:$0xff]
    %v74 = vld [vmem:[#allocation3] sm:$0xff]
    %v75 = vld [vmem:[#allocation3 + $0x8] sm:$0xff]
    %v76 = vld [vmem:[#allocation3 + $0x10] sm:$0xff]
    %v77 = vld [vmem:[#allocation3 + $0x18] sm:$0xff]
    %v78 = vld [vmem:[#allocation6] sm:$0xff]
    %v79 = vld [vmem:[#allocation6 + $0x8] sm:$0xff]
    %v80 = vld [vmem:[#allocation6 + $0x10] sm:$0xff]
    %v81 = vld [vmem:[#allocation6 + $0x18] sm:$0xff]
    %v82 = vld [vmem:[#allocation6 + $0x20] sm:$0xff]
    %v83 = vld [vmem:[#allocation6 + $0x28] sm:$0xff]
    %v84 = vld [vmem:[#allocation6 + $0x30] sm:$0xff]
    %v85 = vld [vmem:[#allocation6 + $0x38] sm:$0xff]
    %v86 = vld [vmem:[#allocation6 + $0x40] sm:$0xff]
    %v87 = vld [vmem:[#allocation6 + $0x48] sm:$0xff]
    %v88 = vld [vmem:[#allocation6 + $0x50] sm:$0xff]
    %v89 = vld [vmem:[#allocation6 + $0x58] sm:$0xff]
    %v90 = vld [vmem:[#allocation6 + $0x60] sm:$0xff]
    %v91 = vld [vmem:[#allocation6 + $0x68] sm:$0xff]
    %v92 = vld [vmem:[#allocation6 + $0x70] sm:$0xff]
    %v93 = vld [vmem:[#allocation6 + $0x78] sm:$0xff]
    %v94 = vld [vmem:[#allocation6 + $0x80] sm:$0xff]
    %v95 = vld [vmem:[#allocation6 + $0x88] sm:$0xff]
    %v96 = vld [vmem:[#allocation6 + $0x90] sm:$0xff]
    %v97 = vld [vmem:[#allocation6 + $0x98] sm:$0xff]
    %v98 = vld [vmem:[#allocation6 + $0xa0] sm:$0xff]
    %v99 = vld [vmem:[#allocation6 + $0xa8] sm:$0xff]
    %v100 = vld [vmem:[#allocation6 + $0xb0] sm:$0xff]
    %v101 = vld [vmem:[#allocation6 + $0xb8] sm:$0xff]
    %v102 = vld [vmem:[#allocation6 + $0xc0] sm:$0xff]
    %v103 = vld [vmem:[#allocation6 + $0xc8] sm:$0xff]
    %v104 = vld [vmem:[#allocation6 + $0xd0] sm:$0xff]
    %v105 = vld [vmem:[#allocation6 + $0xd8] sm:$0xff]
    %v106 = vld [vmem:[#allocation6 + $0xe0] sm:$0xff]
    %v107 = vld [vmem:[#allocation6 + $0xe8] sm:$0xff]
    %v108 = vld [vmem:[#allocation6 + $0xf0] sm:$0xff]
    %v109 = vld [vmem:[#allocation6 + $0xf8] sm:$0xff]
    %v114 = vunpack.c.l.b16 %v74
    %v115 = vunpack.c.h.b16 %v74
    %v116 = vunpack.c.l.b16 %v75
    %v117 = vunpack.c.h.b16 %v75
    %v118 = vunpack.c.l.b16 %v76
    %v119 = vunpack.c.h.b16 %v76
    %v120 = vunpack.c.l.b16 %v77
    %v121 = vunpack.c.h.b16 %v77
    %v122 = vpack.c.b16 %v116, %v114
    %v123 = vpack.c.b16 %v117, %v115
    %v124 = vpack.c.b16 %v120, %v118
    %v125 = vpack.c.b16 %v121, %v119
    %v162 = vunpack.c.l.b16 %v78
    %v163 = vunpack.c.h.b16 %v78
    %v164 = vunpack.c.l.b16 %v79
    %v165 = vunpack.c.h.b16 %v79
    %v166 = vunpack.c.l.b16 %v80
    %v167 = vunpack.c.h.b16 %v80
    %v168 = vunpack.c.l.b16 %v81
    %v169 = vunpack.c.h.b16 %v81
    %v170 = vunpack.c.l.b16 %v82
    %v171 = vunpack.c.h.b16 %v82
    %v172 = vunpack.c.l.b16 %v83
    %v173 = vunpack.c.h.b16 %v83
    %v174 = vunpack.c.l.b16 %v84
    %v175 = vunpack.c.h.b16 %v84
    %v176 = vunpack.c.l.b16 %v85
    %v177 = vunpack.c.h.b16 %v85
    %v178 = vunpack.c.l.b16 %v86
    %v179 = vunpack.c.h.b16 %v86
    %v180 = vunpack.c.l.b16 %v87
    %v181 = vunpack.c.h.b16 %v87
    %v182 = vunpack.c.l.b16 %v88
    %v183 = vunpack.c.h.b16 %v88
    %v184 = vunpack.c.l.b16 %v89
    %v185 = vunpack.c.h.b16 %v89
    %v186 = vunpack.c.l.b16 %v90
    %v187 = vunpack.c.h.b16 %v90
    %v188 = vunpack.c.l.b16 %v91
    %v189 = vunpack.c.h.b16 %v91
    %v190 = vunpack.c.l.b16 %v92
    %v191 = vunpack.c.h.b16 %v92
    %v192 = vunpack.c.l.b16 %v93
    %v193 = vunpack.c.h.b16 %v93
    %v194 = vunpack.c.l.b16 %v94
    %v195 = vunpack.c.h.b16 %v94
    %v196 = vunpack.c.l.b16 %v95
    %v197 = vunpack.c.h.b16 %v95
    %v198 = vunpack.c.l.b16 %v96
    %v199 = vunpack.c.h.b16 %v96
    %v200 = vunpack.c.l.b16 %v97
    %v201 = vunpack.c.h.b16 %v97
    %v202 = vunpack.c.l.b16 %v98
    %v203 = vunpack.c.h.b16 %v98
    %v204 = vunpack.c.l.b16 %v99
    %v205 = vunpack.c.h.b16 %v99
    %v206 = vunpack.c.l.b16 %v100
    %v207 = vunpack.c.h.b16 %v100
    %v208 = vunpack.c.l.b16 %v101
    %v209 = vunpack.c.h.b16 %v101
    %v210 = vunpack.c.l.b16 %v102
    %v211 = vunpack.c.h.b16 %v102
    %v212 = vunpack.c.l.b16 %v103
    %v213 = vunpack.c.h.b16 %v103
    %v214 = vunpack.c.l.b16 %v104
    %v215 = vunpack.c.h.b16 %v104
    %v216 = vunpack.c.l.b16 %v105
    %v217 = vunpack.c.h.b16 %v105
    %v218 = vunpack.c.l.b16 %v106
    %v219 = vunpack.c.h.b16 %v106
    %v220 = vunpack.c.l.b16 %v107
    %v221 = vunpack.c.h.b16 %v107
    %v222 = vunpack.c.l.b16 %v108
    %v223 = vunpack.c.h.b16 %v108
    %v224 = vunpack.c.l.b16 %v109
    %v225 = vunpack.c.h.b16 %v109
    %v226 = vpack.c.b16 %v164, %v162
    %v227 = vpack.c.b16 %v165, %v163
    %v228 = vpack.c.b16 %v168, %v166
    %v229 = vpack.c.b16 %v169, %v167
    %v230 = vpack.c.b16 %v172, %v170
    %v231 = vpack.c.b16 %v173, %v171
    %v232 = vpack.c.b16 %v176, %v174
    %v233 = vpack.c.b16 %v177, %v175
    %v234 = vpack.c.b16 %v180, %v178
    %v235 = vpack.c.b16 %v181, %v179
    %v236 = vpack.c.b16 %v184, %v182
    %v237 = vpack.c.b16 %v185, %v183
    %v238 = vpack.c.b16 %v188, %v186
    %v239 = vpack.c.b16 %v189, %v187
    %v240 = vpack.c.b16 %v192, %v190
    %v241 = vpack.c.b16 %v193, %v191
    %v242 = vpack.c.b16 %v196, %v194
    %v243 = vpack.c.b16 %v197, %v195
    %v244 = vpack.c.b16 %v200, %v198
    %v245 = vpack.c.b16 %v201, %v199
    %v246 = vpack.c.b16 %v204, %v202
    %v247 = vpack.c.b16 %v205, %v203
    %v248 = vpack.c.b16 %v208, %v206
    %v249 = vpack.c.b16 %v209, %v207
    %v250 = vpack.c.b16 %v212, %v210
    %v251 = vpack.c.b16 %v213, %v211
    %v252 = vpack.c.b16 %v216, %v214
    %v253 = vpack.c.b16 %v217, %v215
    %v254 = vpack.c.b16 %v220, %v218
    %v255 = vpack.c.b16 %v221, %v219
    %v256 = vpack.c.b16 %v224, %v222
    %v257 = vpack.c.b16 %v225, %v223
    %290 = vmatprep.subr.bf16.mxu0 %v227
    %291 = vmatpush1.bf16.msra.mxu0 %v226
    %292 = vmatprep.subr.bf16.mxu0 %v229
    %293 = vmatpush1.bf16.msra.mxu0 %v228
    %294 = vmatprep.subr.bf16.mxu0 %v231
    %295 = vmatpush1.bf16.msra.mxu0 %v230
    %296 = vmatprep.subr.bf16.mxu0 %v233
    %297 = vmatpush1.bf16.msra.mxu0 %v232
    %298 = vmatprep.subr.bf16.mxu0 %v235
    %299 = vmatpush1.bf16.msra.mxu0 %v234
    %300 = vmatprep.subr.bf16.mxu0 %v237
    %301 = vmatpush1.bf16.msra.mxu0 %v236
    %302 = vmatprep.subr.bf16.mxu0 %v239
    %303 = vmatpush1.bf16.msra.mxu0 %v238
    %304 = vmatprep.subr.bf16.mxu0 %v241
    %305 = vmatpush1.bf16.msra.mxu0 %v240
    %306 = vmatprep.subr.bf16.mxu0 %v243
    %307 = vmatpush1.bf16.msra.mxu0 %v242
    %308 = vmatprep.subr.bf16.mxu0 %v245
    %309 = vmatpush1.bf16.msra.mxu0 %v244
    %310 = vmatprep.subr.bf16.mxu0 %v247
    %311 = vmatpush1.bf16.msra.mxu0 %v246
    %312 = vmatprep.subr.bf16.mxu0 %v249
    %313 = vmatpush1.bf16.msra.mxu0 %v248
    %314 = vmatprep.subr.bf16.mxu0 %v251
    %315 = vmatpush1.bf16.msra.mxu0 %v250
    %316 = vmatprep.subr.bf16.mxu0 %v253
    %317 = vmatpush1.bf16.msra.mxu0 %v252
    %318 = vmatprep.subr.bf16.mxu0 %v255
    %319 = vmatpush1.bf16.msra.mxu0 %v254
    %320 = vmatprep.subr.bf16.mxu0 %v257
    %321 = vmatpush1.bf16.msra.mxu0 %v256
    %322 = vmatprep.mubr.bf16.mxu0 %v123
    %323 = vmatmul.mubr.bf16.gmra.mrb[0].mxu0 %v122
    %v324 = vpop.f32.mrb[0].mxu0
    %v325 = vadd.f32 0.0, %v324
    %v326 = vpop.f32.mrb[0].mxu0
    %v327 = vadd.f32 0.0, %v326
    %v328 = vpop.f32.mrb[0].mxu0
    %v329 = vadd.f32 0.0, %v328
    %v330 = vpop.f32.mrb[0].mxu0
    %v331 = vadd.f32 0.0, %v330
    %332 = vmatprep.mubr.bf16.mxu0 %v125
    %333 = vmatmul.mubr.bf16.gmra.mrb[0].mxu0 %v124
    %v334 = vpop.f32.mrb[0].mxu0
    %v335 = vadd.f32 0.0, %v334
    %v336 = vpop.f32.mrb[0].mxu0
    %v337 = vadd.f32 0.0, %v336
    %v338 = vpop.f32.mrb[0].mxu0
    %v339 = vadd.f32 0.0, %v338
    %v340 = vpop.f32.mrb[0].mxu0
    %v341 = vadd.f32 0.0, %v340
    %342 = vdwg.mxu0
    %v343 = vadd.f32 %v66, %v325
    %v344 = vadd.f32 %v67, %v327
    %v345 = vadd.f32 %v68, %v329
    %v346 = vadd.f32 %v69, %v331
    %v347 = vadd.f32 %v70, %v335
    %v348 = vadd.f32 %v71, %v337
    %v349 = vadd.f32 %v72, %v339
    %v350 = vadd.f32 %v73, %v341
    %351 = vst [vmem:[#allocation2] sm:$0xff] %v343
    %352 = vst [vmem:[#allocation2 + $0x8] sm:$0xff] %v344
    %353 = vst [vmem:[#allocation2 + $0x10] sm:$0xff] %v345
    %354 = vst [vmem:[#allocation2 + $0x18] sm:$0xff] %v346
    %355 = vst [vmem:[#allocation2 + $0x20] sm:$0xff] %v347
    %356 = vst [vmem:[#allocation2 + $0x28] sm:$0xff] %v348
    %357 = vst [vmem:[#allocation2 + $0x30] sm:$0xff] %v349
    %358 = vst [vmem:[#allocation2 + $0x38] sm:$0xff] %v350
    // Predicated region
    $region30: #{seq2seq_forward.36} parent=1 // pred_check
      %p359 = pneg %p54
    $region31: #{seq2seq_forward.36} parent=1 // pred_check_branch
      %361 = sbr.rel (%p359) target = $region33
    $region32: #{seq2seq_forward.36} parent=1 // pred_region
      %v362 = vld [vmem:[#allocation2] sm:$0xff]
      %v363 = vld [vmem:[#allocation2 + $0x8] sm:$0xff]
      %v364 = vld [vmem:[#allocation2 + $0x10] sm:$0xff]
      %v365 = vld [vmem:[#allocation2 + $0x18] sm:$0xff]
      %v366 = vld [vmem:[#allocation2 + $0x20] sm:$0xff]
      %v367 = vld [vmem:[#allocation2 + $0x28] sm:$0xff]
      %v368 = vld [vmem:[#allocation2 + $0x30] sm:$0xff]
      %v369 = vld [vmem:[#allocation2 + $0x38] sm:$0xff]
      %v370 = vld [vmem:[#allocation8] sm:$0x3]
      %v372 = vlaneseq
      %v373 = vshrl.u32 %v372, 7
      %v374 = vsub.s32 0, %v373
      %v375 = vrot.slane %v370, %v374
      %v376 = vlaneseq
      %v377 = vshrl.u32 %v376, 7
      %v378 = vsub.s32 1, %v377
      %v379 = vrot.slane %v370, %v378
      %v382 = vadd.f32 %v362, %v375
      %v383 = vadd.f32 %v363, %v379
      %v384 = vadd.f32 %v364, %v375
      %v385 = vadd.f32 %v365, %v379
      %v386 = vadd.f32 %v366, %v375
      %v387 = vadd.f32 %v367, %v379
      %v388 = vadd.f32 %v368, %v375
      %v389 = vadd.f32 %v369, %v379
      %v390 = vpack.c.bf16 %v384, %v382
      %v391 = vpack.c.bf16 %v385, %v383
      %v392 = vpack.c.bf16 %v388, %v386
      %v393 = vpack.c.bf16 %v389, %v387
      %v398 = vunpack.c.l.b16 %v390
      %v399 = vunpack.c.l.b16 %v391
      %v400 = vunpack.c.h.b16 %v390
      %v401 = vunpack.c.h.b16 %v391
      %v402 = vunpack.c.l.b16 %v392
      %v403 = vunpack.c.l.b16 %v393
      %v404 = vunpack.c.h.b16 %v392
      %v405 = vunpack.c.h.b16 %v393
      %v406 = vpack.c.b16 %v399, %v398
      %v407 = vpack.c.b16 %v401, %v400
      %v408 = vpack.c.b16 %v403, %v402
      %v409 = vpack.c.b16 %v405, %v404
      %414 = vst [vmem:[#allocation9] sm:$0xff] %v406
      %415 = vst [vmem:[#allocation9 + $0x8] sm:$0xff] %v407
      %416 = vst [vmem:[#allocation9 + $0x10] sm:$0xff] %v408
      %417 = vst [vmem:[#allocation9 + $0x18] sm:$0xff] %v409
    $region33: #{seq2seq_forward.36} parent=1 // pred_fallthru
      _
    // Predicated region
    $region34: #{seq2seq_forward.36} parent=1 // pred_check
      _
    $region35: #{seq2seq_forward.36} parent=1 // pred_check_branch
      %419 = sbr.rel (0) target = $region37
    $region36: #{seq2seq_forward.36} parent=1 // pred_region
      %s421 = ssub.s32 512, 512
      %422 = vsyncadd [#allocation5], %s421
      %s423 = sshll.u32 [#allocation9], 4
      %s424 = int_to_ptr.vmem [resolvable:$true] %s423
      %429 = dma.vmem_to_hbm [thread:$0]  %s424, 512, %s3, [#allocation5], 128, 128, 8
    $region37: #{seq2seq_forward.36} parent=1 // pred_fallthru
      _
    // Predicated region
    $region38: #{seq2seq_forward.36} parent=1 // pred_check
      _
    $region39: #{seq2seq_forward.36} parent=1 // pred_check_branch
      %431 = sbr.rel (0) target = $region41
    $region40: #{seq2seq_forward.36} parent=1 // pred_region
      %432 = dma.done [#allocation5], 512
    $region41: #{seq2seq_forward.36} parent=1 // pred_fallthru
      _
    %433 = vsyncpa [#allocation4], 1
    %434 = vsyncpa [#allocation7], 1
    %435 = vsyncpa [#allocation5], 1

// kernel: seq2seq_forward.49
$region0: #{seq2seq_forward.49}
  #allocation0 [shape = 'u32[]', space=smem, size = 0x4, offset = 0x4, fixed_abs, tag = 'smem constant byte address 0x4 - core index']
  #allocation1 [shape = 'u32[144,128]{1,0:T(1,128)}', space=vmem, size = 0x12000, scoped, tag = 'internal scratch']
  #allocation2 [shape = 'f32[16,128]{1,0:T(8,128)}', space=vmem, size = 0x2000, scoped, tag = 'scratch operand']
  %s0 = inlined_call_operand.hbm [shape: bf16[16,256], index: 0, kind: input, shape index: {}]
  %s1 = inlined_call_operand.hbm [shape: bf16[256,128], index: 1, kind: input, shape index: {}]
  %s2 = inlined_call_operand.hbm [shape: f32[1,128], index: 2, kind: input, shape index: {}]
  %s3 = inlined_call_operand.hbm [shape: f32[16,128], index: 3, kind: output, shape index: {}]
  %s4 = sld [smem:[#allocation0]]
  $region42: #{seq2seq_forward.49} parent=0
    _
  %s6 = ssub.s32 1, %s4
  %s7 = scalar_select 0, %s6, %s4
  $region1: #{seq2seq_forward.49} parent=0
    #allocation3 [shape = 'u8[8192]{0}', space=vmem, size = 0x2000, scoped, tag = 'input window, operand 0, single buffered']
    #allocation4 [shape = 's32[1]{0}', space=sflag, size = 0x4, scoped, tag = 'scoped memory for seq2seq_forward.49']
    #allocation5 [shape = 's32[1]{0}', space=sflag, size = 0x4, scoped, tag = 'scoped memory for seq2seq_forward.49']
    #allocation6 [shape = 'u8[65536]{0}', space=vmem, size = 0x10000, scoped, tag = 'input window, operand 1, single buffered']
    #allocation7 [shape = 's32[1]{0}', space=sflag, size = 0x4, scoped, tag = 'scoped memory for seq2seq_forward.49']
    #allocation8 [shape = 'u8[512]{0}', space=vmem, size = 0x400, scoped, tag = 'input window, operand 2, single buffered']
    #allocation9 [shape = 'u8[8192]{0}', space=vmem, size = 0x2000, scoped, tag = 'output window, operand 0, single buffered']
    %8 = vsyncpa [#allocation4], 0
    %9 = vsyncpa [#allocation7], 0
    %10 = vsyncpa [#allocation5], 0
    // Predicated region
    $region2: #{seq2seq_forward.49} parent=1 // pred_check
      _
    $region3: #{seq2seq_forward.49} parent=1 // pred_check_branch
      %12 = sbr.rel (0) target = $region5
    $region4: #{seq2seq_forward.49} parent=1 // pred_region
      %s14 = ssub.s32 256, 256
      %15 = vsyncadd [#allocation4], %s14
      %s16 = sshll.u32 [#allocation3], 4
      %s17 = int_to_ptr.vmem [resolvable:$true] %s16
      %22 = dma.hbm_to_vmem [thread:$0]  %s0, 256, %s17, [#allocation4], 128, 128, 8
    $region5: #{seq2seq_forward.49} parent=1 // pred_fallthru
      _
    // Predicated region
    $region6: #{seq2seq_forward.49} parent=1 // pred_check
      _
    $region7: #{seq2seq_forward.49} parent=1 // pred_check_branch
      %24 = sbr.rel (0) target = $region9
    $region8: #{seq2seq_forward.49} parent=1 // pred_region
      %s26 = ssub.s32 2048, 2048
      %27 = vsyncadd [#allocation7], %s26
      %s28 = sshll.u32 [#allocation6], 4
      %s29 = int_to_ptr.vmem [resolvable:$true] %s28
      %34 = dma.hbm_to_vmem [thread:$0]  %s1, 2048, %s29, [#allocation7], 64, 64, 4
    $region9: #{seq2seq_forward.49} parent=1 // pred_fallthru
      _
    // Predicated region
    $region10: #{seq2seq_forward.49} parent=1 // pred_check
      _
    $region11: #{seq2seq_forward.49} parent=1 // pred_check_branch
      %36 = sbr.rel (0) target = $region13
    $region12: #{seq2seq_forward.49} parent=1 // pred_region
      %s38 = ssub.s32 16, 16
      %39 = vsyncadd [#allocation7], %s38
      %s41 = sshll.u32 [#allocation8], 4
      %s42 = int_to_ptr.vmem [resolvable:$true] %s41
      %44 = dma.hbm_to_vmem [thread:$0]  %s2, 16, %s42, [#allocation7]
    $region13: #{seq2seq_forward.49} parent=1 // pred_fallthru
      _
    // Predicated region
    $region14: #{seq2seq_forward.49} parent=1 // pred_check
      _
    $region15: #{seq2seq_forward.49} parent=1 // pred_check_branch
      %46 = sbr.rel (0) target = $region17
    $region16: #{seq2seq_forward.49} parent=1 // pred_region
      %47 = dma.done [#allocation4], 256
    $region17: #{seq2seq_forward.49} parent=1 // pred_fallthru
      _
    // Predicated region
    $region18: #{seq2seq_forward.49} parent=1 // pred_check
      _
    $region19: #{seq2seq_forward.49} parent=1 // pred_check_branch
      %49 = sbr.rel (0) target = $region21
    $region20: #{seq2seq_forward.49} parent=1 // pred_region
      %50 = dma.done [#allocation7], 2048
    $region21: #{seq2seq_forward.49} parent=1 // pred_fallthru
      _
    // Predicated region
    $region22: #{seq2seq_forward.49} parent=1 // pred_check
      _
    $region23: #{seq2seq_forward.49} parent=1 // pred_check_branch
      %52 = sbr.rel (0) target = $region25
    $region24: #{seq2seq_forward.49} parent=1 // pred_region
      %53 = dma.done [#allocation7], 16
    $region25: #{seq2seq_forward.49} parent=1 // pred_fallthru
      _
    %p55 = scmp.eq.s32.totalorder 0, 0
    // Predicated region
    $region26: #{seq2seq_forward.49} parent=1 // pred_check
      %p56 = pneg %p55
    $region27: #{seq2seq_forward.49} parent=1 // pred_check_branch
      %58 = sbr.rel (%p56) target = $region29
    $region28: #{seq2seq_forward.49} parent=1 // pred_region
      %59 = vst [vmem:[#allocation2] sm:$0xff] 0.0
      %60 = vst [vmem:[#allocation2 + $0x8] sm:$0xff] 0.0
    $region29: #{seq2seq_forward.49} parent=1 // pred_fallthru
      _
    %v61 = vld [vmem:[#allocation2] sm:$0xff]
    %v62 = vld [vmem:[#allocation2 + $0x8] sm:$0xff]
    %v63 = vld [vmem:[#allocation3] sm:$0xff]
    %v64 = vld [vmem:[#allocation3 + $0x8] sm:$0xff]
    %v65 = vld [vmem:[#allocation6] sm:$0xf]
    %v66 = vld [vmem:[#allocation6 + $0x4] sm:$0xf]
    %v67 = vld [vmem:[#allocation6 + $0x8] sm:$0xf]
    %v68 = vld [vmem:[#allocation6 + $0xc] sm:$0xf]
    %v69 = vld [vmem:[#allocation6 + $0x10] sm:$0xf]
    %v70 = vld [vmem:[#allocation6 + $0x14] sm:$0xf]
    %v71 = vld [vmem:[#allocation6 + $0x18] sm:$0xf]
    %v72 = vld [vmem:[#allocation6 + $0x1c] sm:$0xf]
    %v73 = vld [vmem:[#allocation6 + $0x20] sm:$0xf]
    %v74 = vld [vmem:[#allocation6 + $0x24] sm:$0xf]
    %v75 = vld [vmem:[#allocation6 + $0x28] sm:$0xf]
    %v76 = vld [vmem:[#allocation6 + $0x2c] sm:$0xf]
    %v77 = vld [vmem:[#allocation6 + $0x30] sm:$0xf]
    %v78 = vld [vmem:[#allocation6 + $0x34] sm:$0xf]
    %v79 = vld [vmem:[#allocation6 + $0x38] sm:$0xf]
    %v80 = vld [vmem:[#allocation6 + $0x3c] sm:$0xf]
    %v81 = vld [vmem:[#allocation6 + $0x40] sm:$0xf]
    %v82 = vld [vmem:[#allocation6 + $0x44] sm:$0xf]
    %v83 = vld [vmem:[#allocation6 + $0x48] sm:$0xf]
    %v84 = vld [vmem:[#allocation6 + $0x4c] sm:$0xf]
    %v85 = vld [vmem:[#allocation6 + $0x50] sm:$0xf]
    %v86 = vld [vmem:[#allocation6 + $0x54] sm:$0xf]
    %v87 = vld [vmem:[#allocation6 + $0x58] sm:$0xf]
    %v88 = vld [vmem:[#allocation6 + $0x5c] sm:$0xf]
    %v89 = vld [vmem:[#allocation6 + $0x60] sm:$0xf]
    %v90 = vld [vmem:[#allocation6 + $0x64] sm:$0xf]
    %v91 = vld [vmem:[#allocation6 + $0x68] sm:$0xf]
    %v92 = vld [vmem:[#allocation6 + $0x6c] sm:$0xf]
    %v93 = vld [vmem:[#allocation6 + $0x70] sm:$0xf]
    %v94 = vld [vmem:[#allocation6 + $0x74] sm:$0xf]
    %v95 = vld [vmem:[#allocation6 + $0x78] sm:$0xf]
    %v96 = vld [vmem:[#allocation6 + $0x7c] sm:$0xf]
    %v99 = vunpack.c.l.b16 %v63
    %v100 = vunpack.c.h.b16 %v63
    %v101 = vunpack.c.l.b16 %v64
    %v102 = vunpack.c.h.b16 %v64
    %v103 = vpack.c.b16 %v101, %v99
    %v104 = vpack.c.b16 %v102, %v100
    %v139 = vunpack.c.l.b16 %v65
    %v140 = vunpack.c.l.b16 %v66
    %v141 = vunpack.c.l.b16 %v67
    %v142 = vunpack.c.l.b16 %v68
    %v143 = vunpack.c.l.b16 %v69
    %v144 = vunpack.c.l.b16 %v70
    %v145 = vunpack.c.l.b16 %v71
    %v146 = vunpack.c.l.b16 %v72
    %v147 = vunpack.c.l.b16 %v73
    %v148 = vunpack.c.l.b16 %v74
    %v149 = vunpack.c.l.b16 %v75
    %v150 = vunpack.c.l.b16 %v76
    %v151 = vunpack.c.l.b16 %v77
    %v152 = vunpack.c.l.b16 %v78
    %v153 = vunpack.c.l.b16 %v79
    %v154 = vunpack.c.l.b16 %v80
    %v155 = vunpack.c.l.b16 %v81
    %v156 = vunpack.c.l.b16 %v82
    %v157 = vunpack.c.l.b16 %v83
    %v158 = vunpack.c.l.b16 %v84
    %v159 = vunpack.c.l.b16 %v85
    %v160 = vunpack.c.l.b16 %v86
    %v161 = vunpack.c.l.b16 %v87
    %v162 = vunpack.c.l.b16 %v88
    %v163 = vunpack.c.l.b16 %v89
    %v164 = vunpack.c.l.b16 %v90
    %v165 = vunpack.c.l.b16 %v91
    %v166 = vunpack.c.l.b16 %v92
    %v167 = vunpack.c.l.b16 %v93
    %v168 = vunpack.c.l.b16 %v94
    %v169 = vunpack.c.l.b16 %v95
    %v170 = vunpack.c.l.b16 %v96
    %v171 = vpack.c.b16 %v140, %v139
    %v172 = vpack.c.b16 %v142, %v141
    %v173 = vpack.c.b16 %v144, %v143
    %v174 = vpack.c.b16 %v146, %v145
    %v175 = vpack.c.b16 %v148, %v147
    %v176 = vpack.c.b16 %v150, %v149
    %v177 = vpack.c.b16 %v152, %v151
    %v178 = vpack.c.b16 %v154, %v153
    %v179 = vpack.c.b16 %v156, %v155
    %v180 = vpack.c.b16 %v158, %v157
    %v181 = vpack.c.b16 %v160, %v159
    %v182 = vpack.c.b16 %v162, %v161
    %v183 = vpack.c.b16 %v164, %v163
    %v184 = vpack.c.b16 %v166, %v165
    %v185 = vpack.c.b16 %v168, %v167
    %v186 = vpack.c.b16 %v170, %v169
    %203 = vmatprep.subr.bf16.mxu0 0
    %204 = vmatpush1.bf16.msra.mxu0 %v171
    %205 = vmatprep.subr.bf16.mxu0 0
    %206 = vmatpush1.bf16.msra.mxu0 %v172
    %207 = vmatprep.subr.bf16.mxu0 0
    %208 = vmatpush1.bf16.msra.mxu0 %v173
    %209 = vmatprep.subr.bf16.mxu0 0
    %210 = vmatpush1.bf16.msra.mxu0 %v174
    %211 = vmatprep.subr.bf16.mxu0 0
    %212 = vmatpush1.bf16.msra.mxu0 %v175
    %213 = vmatprep.subr.bf16.mxu0 0
    %214 = vmatpush1.bf16.msra.mxu0 %v176
    %215 = vmatprep.subr.bf16.mxu0 0
    %216 = vmatpush1.bf16.msra.mxu0 %v177
    %217 = vmatprep.subr.bf16.mxu0 0
    %218 = vmatpush1.bf16.msra.mxu0 %v178
    %219 = vmatprep.subr.bf16.mxu0 0
    %220 = vmatpush1.bf16.msra.mxu0 %v179
    %221 = vmatprep.subr.bf16.mxu0 0
    %222 = vmatpush1.bf16.msra.mxu0 %v180
    %223 = vmatprep.subr.bf16.mxu0 0
    %224 = vmatpush1.bf16.msra.mxu0 %v181
    %225 = vmatprep.subr.bf16.mxu0 0
    %226 = vmatpush1.bf16.msra.mxu0 %v182
    %227 = vmatprep.subr.bf16.mxu0 0
    %228 = vmatpush1.bf16.msra.mxu0 %v183
    %229 = vmatprep.subr.bf16.mxu0 0
    %230 = vmatpush1.bf16.msra.mxu0 %v184
    %231 = vmatprep.subr.bf16.mxu0 0
    %232 = vmatpush1.bf16.msra.mxu0 %v185
    %233 = vmatprep.subr.bf16.mxu0 0
    %234 = vmatpush1.bf16.msra.mxu0 %v186
    %235 = vmatprep.mubr.bf16.mxu0 %v104
    %236 = vmatmul.mubr.bf16.gmra.mrb[0].mxu0 %v103
    %v237 = vpop.f32.mrb[0].mxu0
    %v238 = vadd.f32 0.0, %v237
    %v239 = vpop.f32.mrb[0].mxu0
    %v240 = vpop.f32.mrb[0].mxu0
    %v241 = vadd.f32 0.0, %v240
    %v242 = vpop.f32.mrb[0].mxu0
    %243 = vdwg.mxu0
    %v244 = vadd.f32 %v61, %v238
    %v245 = vadd.f32 %v62, %v241
    %246 = vst [vmem:[#allocation2] sm:$0xff] %v244
    %247 = vst [vmem:[#allocation2 + $0x8] sm:$0xff] %v245
    // Predicated region
    $region30: #{seq2seq_forward.49} parent=1 // pred_check
      %p248 = pneg %p55
    $region31: #{seq2seq_forward.49} parent=1 // pred_check_branch
      %250 = sbr.rel (%p248) target = $region33
    $region32: #{seq2seq_forward.49} parent=1 // pred_region
      %v251 = vld [vmem:[#allocation2] sm:$0xff]
      %v252 = vld [vmem:[#allocation2 + $0x8] sm:$0xff]
      %v253 = vld [vmem:[#allocation8] sm:$0x1]
      %v255 = vlaneseq
      %v256 = vshrl.u32 %v255, 7
      %v257 = vsub.s32 0, %v256
      %v258 = vrot.slane %v253, %v257
      %v260 = vadd.f32 %v251, %v258
      %v261 = vadd.f32 %v252, %v258
      %262 = vst [vmem:[#allocation9] sm:$0xff] %v260
      %263 = vst [vmem:[#allocation9 + $0x8] sm:$0xff] %v261
    $region33: #{seq2seq_forward.49} parent=1 // pred_fallthru
      _
    // Predicated region
    $region34: #{seq2seq_forward.49} parent=1 // pred_check
      _
    $region35: #{seq2seq_forward.49} parent=1 // pred_check_branch
      %265 = sbr.rel (0) target = $region37
    $region36: #{seq2seq_forward.49} parent=1 // pred_region
      %s267 = ssub.s32 256, 256
      %268 = vsyncadd [#allocation5], %s267
      %s269 = sshll.u32 [#allocation9], 4
      %s270 = int_to_ptr.vmem [resolvable:$true] %s269
      %275 = dma.vmem_to_hbm [thread:$0]  %s270, 256, %s3, [#allocation5], 128, 128, 8
    $region37: #{seq2seq_forward.49} parent=1 // pred_fallthru
      _
    // Predicated region
    $region38: #{seq2seq_forward.49} parent=1 // pred_check
      _
    $region39: #{seq2seq_forward.49} parent=1 // pred_check_branch
      %277 = sbr.rel (0) target = $region41
    $region40: #{seq2seq_forward.49} parent=1 // pred_region
      %278 = dma.done [#allocation5], 256
    $region41: #{seq2seq_forward.49} parent=1 // pred_fallthru
      _
    %279 = vsyncpa [#allocation4], 1
    %280 = vsyncpa [#allocation7], 1
    %281 = vsyncpa [#allocation5], 1

</llo_original>
